<compile_context>
chip_gen: v7x
topology: tpu7x:2x2x1
jax: 0.10.0
libtpu: 0.0.40
codegen_flags: <defaults>
</compile_context>

<pallas_src>
import math
import numpy as np

import jax
import jax.numpy as jnp
from jax.experimental import pallas as pl
from jax.experimental.pallas import tpu as pltpu

# ----------------------------- small config ---------------------------------
SAMPLE_RATE = 1600
N_FFT = 64
HOP_LENGTH = 32
N_MELS = 32                      # == d_model  (custom_configs: d_model = n_mels)
N_FREQ = N_FFT // 2 + 1          # 33
NFREQ_PAD = 64                   # pad cos/sin halves to 64 lanes each -> (64,128) DFT matrix
N_HEADS = 4
D_KV = 8
D_INNER = N_HEADS * D_KV         # 32
D_FF = 64
N_LAYERS = 2
NUM_BUCKETS = 32
MAX_DISTANCE = 128
VOC_DICT = {"n_voc": 50, "pad": 0}
N_VOC = VOC_DICT["n_voc"]
VOC_PAD = 128                    # lane-dense lm_head / logits store
PAD_ID = VOC_DICT["pad"]         # also decoder_start_token_id for T5
EPS_MEL = 1e-5
EPS_LN = 1e-6
NEG_INF = -1e9
GELU_C = math.sqrt(2.0 / math.pi)

# ------------------------------ fused Pallas kernel ---------------------------
def _fused_kernel(frames_ref, dft_ref, melfb_ref,
                  enc_bias_ref, dec_bias_ref, cross_bias_ref,
                  e_ln1_ref, e_qkv_ref, e_o_ref, e_ln2_ref, e_wi_ref, e_wo_ref, e_lnf_ref,
                  dx_ref,
                  d_ln1_ref, d_sqkv_ref, d_so_ref, d_ln2_ref,
                  d_cq_ref, d_ckv_ref, d_co_ref, d_ln3_ref, d_wi_ref, d_wo_ref, d_lnf_ref,
                  lm_ref, logits_ref):
    f32 = jnp.float32

    def mm(a, b):
        return jnp.dot(a, b, preferred_element_type=f32)

    def rms(x, w):                                   # T5 RMSNorm, w: (1, D)
        var = jnp.mean(x * x, axis=-1, keepdims=True)
        return x * jax.lax.rsqrt(var + EPS_LN) * w

    def gelu_new(x):                                 # HF gelu_new (tanh approx)
        return 0.5 * x * (1.0 + jnp.tanh(GELU_C * (x + 0.044715 * x * x * x)))

    def attention(q, k, v, bias_ref):
        # q: (Rq, D_INNER), k/v: (Rk, D_INNER); bias_ref: (H or 1, Rq, Rk) already contains
        # relative-position bias (+causal) and the block-diagonal batch mask.
        nb = bias_ref.shape[0]
        heads = []
        for h in range(N_HEADS):
            sl = slice(h * D_KV, (h + 1) * D_KV)
            qh, kh, vh = q[:, sl], k[:, sl], v[:, sl]
            # T5 does NOT scale scores by 1/sqrt(dk)
            s = jax.lax.dot_general(qh, kh, (((1,), (1,)), ((), ())),
                                    preferred_element_type=f32)      # (Rq, Rk)
            s = s + bias_ref[h % nb]
            m = jnp.max(s, axis=-1, keepdims=True)
            p = jnp.exp(s - m)
            p = p * pl.reciprocal(jnp.sum(p, axis=-1, keepdims=True), approx=True)
            heads.append(mm(p, vh))                                  # (Rq, dk)
        return jnp.concatenate(heads, axis=1)                        # (Rq, D_INNER)

    # ---- fused log-mel frontend: (windowed) STFT magnitude -> mel fbank -> clamp -> log ----
    # The Hann window is pre-folded into dft_ref, so this is one MXU matmul.
    spec = mm(frames_ref[...], dft_ref[...])             # (Re, 2*NFREQ_PAD) = cos|sin halves
    re = spec[:, :NFREQ_PAD]
    im = spec[:, NFREQ_PAD:]
    mag = jnp.sqrt(re * re + im * im)                    # power=1 magnitude (padded cols = 0)
    h = jnp.log(jnp.maximum(mm(mag, melfb_ref[...]), EPS_MEL))   # (Re, D)  (already "transposed")

    # ------------------------------- encoder ---------------------------------
    for l in range(N_LAYERS):
        xn = rms(h, e_ln1_ref[l])
        qkv = mm(xn, e_qkv_ref[l])                                   # (Re, 3*D_INNER)
        q, k, v = qkv[:, :D_INNER], qkv[:, D_INNER:2 * D_INNER], qkv[:, 2 * D_INNER:]
        h = h + mm(attention(q, k, v, enc_bias_ref), e_o_ref[l])
        xn = rms(h, e_ln2_ref[l])
        hh = mm(xn, e_wi_ref[l])                                     # (Re, 2*D_FF)
        h = h + mm(gelu_new(hh[:, :D_FF]) * hh[:, D_FF:], e_wo_ref[l])
    enc_out = rms(h, e_lnf_ref[...])

    # ------------------------------- decoder ---------------------------------
    h = dx_ref[...]                                                  # (Rd, D) input embeds
    for l in range(N_LAYERS):
        # masked self-attention
        xn = rms(h, d_ln1_ref[l])
        qkv = mm(xn, d_sqkv_ref[l])
        q, k, v = qkv[:, :D_INNER], qkv[:, D_INNER:2 * D_INNER], qkv[:, 2 * D_INNER:]
        h = h + mm(attention(q, k, v, dec_bias_ref), d_so_ref[l])
        # cross-attention (no positional bias in T5; only batch block mask)
        xn = rms(h, d_ln2_ref[l])
        qc = mm(xn, d_cq_ref[l])
        kv = mm(enc_out, d_ckv_ref[l])                               # (Re, 2*D_INNER)
        h = h + mm(attention(qc, kv[:, :D_INNER], kv[:, D_INNER:], cross_bias_ref),
                   d_co_ref[l])
        # gated-GELU FFN (t5-v1.1)
        xn = rms(h, d_ln3_ref[l])
        hh = mm(xn, d_wi_ref[l])
        h = h + mm(gelu_new(hh[:, :D_FF]) * hh[:, D_FF:], d_wo_ref[l])
    dec_out = rms(h, d_lnf_ref[...])

    # lm_head (untied t5-v1.1 -> no d_model**-0.5 rescale); lane-dense (Rd, 128) store
    logits_ref[...] = mm(dec_out, lm_ref[...])


def _zero_map(nd):
    return lambda i: (0,) * nd


def fused_transformer(packed, frames2, dec_x, enc_bias, dec_bias, cross_bias):
    args = [
        frames2, packed["dft_cs"], packed["melfb"],
        enc_bias, dec_bias, cross_bias,
        packed["e_ln1"], packed["e_qkv"], packed["e_o"],
        packed["e_ln2"], packed["e_wi"], packed["e_wo"], packed["e_lnf"],
        dec_x,
        packed["d_ln1"], packed["d_sqkv"], packed["d_so"], packed["d_ln2"],
        packed["d_cq"], packed["d_ckv"], packed["d_co"],
        packed["d_ln3"], packed["d_wi"], packed["d_wo"], packed["d_lnf"],
        packed["lm"],
    ]
    rd = dec_x.shape[0]
    in_specs = [pl.BlockSpec(a.shape, _zero_map(a.ndim)) for a in args]
    return pl.pallas_call(
        _fused_kernel,
        out_shape=jax.ShapeDtypeStruct((rd, VOC_PAD), jnp.float32),
        grid=(1,),
        in_specs=in_specs,
        out_specs=pl.BlockSpec((rd, VOC_PAD), lambda i: (0, 0)),
        compiler_params=pltpu.CompilerParams(dimension_semantics=("arbitrary",)),
    )(*args)

# -------------------------- mel / STFT constants (glue) ----------------------
def _hz_to_mel_slaney(f):
    f_sp = 200.0 / 3
    min_log_hz = 1000.0
    min_log_mel = min_log_hz / f_sp
    logstep = math.log(6.4) / 27.0
    f = np.asarray(f, dtype=np.float64)
    return np.where(f >= min_log_hz,
                    min_log_mel + np.log(np.maximum(f, 1e-10) / min_log_hz) / logstep,
                    f / f_sp)


def _mel_to_hz_slaney(m):
    f_sp = 200.0 / 3
    min_log_hz = 1000.0
    min_log_mel = min_log_hz / f_sp
    logstep = math.log(6.4) / 27.0
    m = np.asarray(m, dtype=np.float64)
    return np.where(m >= min_log_mel,
                    min_log_hz * np.exp(logstep * (m - min_log_mel)),
                    f_sp * m)


def melscale_fbanks(n_freqs, f_min, f_max, n_mels, sr):
    all_freqs = np.linspace(0.0, sr / 2.0, n_freqs)
    m_pts = np.linspace(_hz_to_mel_slaney(f_min), _hz_to_mel_slaney(f_max), n_mels + 2)
    f_pts = _mel_to_hz_slaney(m_pts)
    f_diff = f_pts[1:] - f_pts[:-1]
    slopes = f_pts[None, :] - all_freqs[:, None]
    down = -slopes[:, :-2] / f_diff[:-1]
    up = slopes[:, 2:] / f_diff[1:]
    fb = np.maximum(0.0, np.minimum(down, up))
    enorm = 2.0 / (f_pts[2:n_mels + 2] - f_pts[:n_mels])       # slaney norm
    fb = fb * enorm[None, :]
    return jnp.asarray(fb, dtype=jnp.float32)                  # (n_freqs, n_mels)


def dft_matrices(n_fft):
    n = np.arange(n_fft)[:, None]
    k = np.arange(n_fft // 2 + 1)[None, :]
    ang = 2.0 * np.pi * n * k / n_fft
    return (jnp.asarray(np.cos(ang), jnp.float32),
            jnp.asarray(-np.sin(ang), jnp.float32))


def frame_signal(wav, n_fft, hop):
    # torch.stft(center=True, pad_mode='reflect'); window is folded into the DFT matrix.
    pad = n_fft // 2
    x = jnp.pad(wav, ((0, 0), (pad, pad)), mode="reflect")     # (B, L + n_fft)
    n_frames = 1 + wav.shape[-1] // hop
    if n_fft == 2 * hop and x.shape[-1] % hop == 0:
        # 50%-overlap fast path: each frame = two adjacent hop-blocks -> no gather.
        blocks = x.reshape(x.shape[0], -1, hop)                # (B, nb, hop)
        frames = jnp.concatenate([blocks[:, :-1, :], blocks[:, 1:, :]], axis=-1)
        frames = frames[:, :n_frames]
    else:
        idx = jnp.arange(n_frames)[:, None] * hop + jnp.arange(n_fft)[None, :]
        frames = x[:, idx]
    return frames                                              # (B, T, n_fft)

# ------------------------------ T5 glue pieces --------------------------------
def relative_position_bucket(rel_pos, bidirectional, num_buckets=NUM_BUCKETS,
                             max_distance=MAX_DISTANCE):
    buckets = jnp.zeros_like(rel_pos)
    if bidirectional:
        num_buckets //= 2
        buckets = buckets + (rel_pos > 0).astype(jnp.int32) * num_buckets
        rel_pos = jnp.abs(rel_pos)
    else:
        rel_pos = -jnp.minimum(rel_pos, 0)
    max_exact = num_buckets // 2
    is_small = rel_pos < max_exact
    rel_large = max_exact + (
        jnp.log(jnp.maximum(rel_pos, 1).astype(jnp.float32) / max_exact)
        / math.log(max_distance / max_exact) * (num_buckets - max_exact)
    ).astype(jnp.int32)
    rel_large = jnp.minimum(rel_large, num_buckets - 1)
    return buckets + jnp.where(is_small, rel_pos, rel_large)


def compute_rel_bias(q_len, k_len, table, bidirectional):
    ctx = jnp.arange(q_len)[:, None]
    mem = jnp.arange(k_len)[None, :]
    buckets = relative_position_bucket(mem - ctx, bidirectional)
    values = table[buckets]                                    # (q, k, H)
    return jnp.transpose(values, (2, 0, 1))                    # (H, q, k)


def _block_mask(B, Tq, Tk):
    # 0 where query/key belong to the same batch element, -1e9 otherwise.
    bq = jnp.repeat(jnp.arange(B), Tq)
    bk = jnp.repeat(jnp.arange(B), Tk)
    return jnp.where(bq[:, None] == bk[None, :], 0.0, NEG_INF).astype(jnp.float32)


def shift_right(labels):
    start = jnp.full((labels.shape[0], 1), PAD_ID, dtype=labels.dtype)
    dec_in = jnp.concatenate([start, labels[:, :-1]], axis=-1)
    return jnp.where(dec_in == -100, PAD_ID, dec_in)


def cross_entropy(logits, labels):
    logp = jax.nn.log_softmax(logits.astype(jnp.float32), axis=-1)
    mask = (labels != -100)
    safe = jnp.where(mask, labels, 0)
    nll = -jnp.take_along_axis(logp, safe[..., None], axis=-1)[..., 0]
    return jnp.sum(nll * mask) / jnp.maximum(jnp.sum(mask), 1)

# ------------------------------ full forward ---------------------------------
def seq2seq_forward(packed, wav, labels):
    # TODO(synk): dropout layers of T5 are omitted (identity / eval semantics).
    B = wav.shape[0]

    # --- STFT frames (window folded into DFT matrix), batch folded into rows ---
    frames = frame_signal(wav, N_FFT, HOP_LENGTH)              # (B, Te, n_fft)
    Te = frames.shape[1]
    frames2 = frames.reshape(B * Te, N_FFT)

    # --- decoder input embeddings (gather in JAX) ---
    dec_in = shift_right(labels)
    Td = dec_in.shape[1]
    dec_x = packed["shared"][dec_in].reshape(B * Td, N_MELS)

    # --- attention biases: relative-position bias (+causal) tiled over batch blocks,
    #     plus block-diagonal batch mask so one kernel handles all B*H at once ---
    enc_rel = compute_rel_bias(Te, Te, packed["enc_rel_bias"], bidirectional=True)   # (H,Te,Te)
    dec_rel = compute_rel_bias(Td, Td, packed["dec_rel_bias"], bidirectional=False)  # (H,Td,Td)
    causal = jnp.where(jnp.arange(Td)[None, :] <= jnp.arange(Td)[:, None], 0.0, NEG_INF)
    enc_bias = jnp.tile(enc_rel, (1, B, B)) + _block_mask(B, Te, Te)[None]           # (H,BTe,BTe)
    dec_bias = jnp.tile(dec_rel + causal[None], (1, B, B)) + _block_mask(B, Td, Td)[None]
    cross_bias = _block_mask(B, Td, Te)[None]                                        # (1,BTd,BTe)

    # --- one fused Pallas kernel for everything heavy ---
    logits_pad = fused_transformer(packed, frames2, dec_x, enc_bias, dec_bias, cross_bias)
    logits = logits_pad.reshape(B, Td, VOC_PAD)[:, :, :N_VOC]   # drop padded vocab columns

    loss = cross_entropy(logits, labels)
    return {"loss": loss, "logits": logits}

# --------------------------- parameter construction --------------------------
def init_params(key):
    keys = iter(jax.random.split(key, 256))

    def nrm(shape, scale=0.05):
        return scale * jax.random.normal(next(keys), shape, dtype=jnp.float32)

    def attn_weights():
        return dict(q=nrm((N_MELS, D_INNER)), k=nrm((N_MELS, D_INNER)),
                    v=nrm((N_MELS, D_INNER)), o=nrm((D_INNER, N_MELS)))

    def ffn_weights():
        return dict(wi0=nrm((N_MELS, D_FF)), wi1=nrm((N_MELS, D_FF)), wo=nrm((D_FF, N_MELS)))

    enc_layers, dec_layers = [], []
    for _ in range(N_LAYERS):
        a = attn_weights()
        enc_layers.append(dict(ln1=jnp.ones((N_MELS,), jnp.float32),
                               ln2=jnp.ones((N_MELS,), jnp.float32),
                               **a, **ffn_weights()))
    for _ in range(N_LAYERS):
        s = attn_weights()
        c = attn_weights()
        dec_layers.append(dict(ln1=jnp.ones((N_MELS,), jnp.float32),
                               ln2=jnp.ones((N_MELS,), jnp.float32),
                               ln3=jnp.ones((N_MELS,), jnp.float32),
                               sq=s["q"], sk=s["k"], sv=s["v"], so=s["o"],
                               cq=c["q"], ck=c["k"], cv=c["v"], co=c["o"],
                               **ffn_weights()))

    dft_cos, dft_sin = dft_matrices(N_FFT)
    return dict(
        shared=nrm((N_VOC, N_MELS)),
        lm_head=nrm((N_MELS, N_VOC)),
        enc_rel_bias=nrm((NUM_BUCKETS, N_HEADS)),
        dec_rel_bias=nrm((NUM_BUCKETS, N_HEADS)),
        enc_layers=enc_layers,
        dec_layers=dec_layers,
        enc_final_ln=jnp.ones((N_MELS,), jnp.float32),
        dec_final_ln=jnp.ones((N_MELS,), jnp.float32),
        mel_fb=melscale_fbanks(N_FREQ, 20.0, SAMPLE_RATE / 2.0, N_MELS, SAMPLE_RATE),
        dft_cos=dft_cos,
        dft_sin=dft_sin,
    )


def pack_params(p):
    """Concatenate / stack / pad weights once into the kernel-friendly layout."""
    enc, dec = p["enc_layers"], p["dec_layers"]
    st = lambda layers, fn: jnp.stack([fn(l) for l in layers])

    # DFT (cos|sin) padded to 128 lanes, with the periodic-Hann window folded into its rows:
    #   (frames * win) @ D == frames @ (diag(win) @ D)
    win = 0.5 * (1.0 - jnp.cos(2.0 * jnp.pi * jnp.arange(N_FFT) / N_FFT)).astype(jnp.float32)
    dft_cs = jnp.zeros((N_FFT, 2 * NFREQ_PAD), jnp.float32)
    dft_cs = dft_cs.at[:, :N_FREQ].set(p["dft_cos"])
    dft_cs = dft_cs.at[:, NFREQ_PAD:NFREQ_PAD + N_FREQ].set(p["dft_sin"])
    dft_cs = dft_cs * win[:, None]
    melfb = jnp.zeros((NFREQ_PAD, N_MELS), jnp.float32).at[:N_FREQ].set(p["mel_fb"])
    lm = jnp.zeros((N_MELS, VOC_PAD), jnp.float32).at[:, :N_VOC].set(p["lm_head"])

    return dict(
        dft_cs=dft_cs, melfb=melfb, lm=lm,
        shared=p["shared"],
        enc_rel_bias=p["enc_rel_bias"], dec_rel_bias=p["dec_rel_bias"],
        e_ln1=st(enc, lambda l: l["ln1"].reshape(1, -1)),
        e_qkv=st(enc, lambda l: jnp.concatenate([l["q"], l["k"], l["v"]], axis=1)),
        e_o=st(enc, lambda l: l["o"]),
        e_ln2=st(enc, lambda l: l["ln2"].reshape(1, -1)),
        e_wi=st(enc, lambda l: jnp.concatenate([l["wi0"], l["wi1"]], axis=1)),
        e_wo=st(enc, lambda l: l["wo"]),
        e_lnf=p["enc_final_ln"].reshape(1, -1),
        d_ln1=st(dec, lambda l: l["ln1"].reshape(1, -1)),
        d_sqkv=st(dec, lambda l: jnp.concatenate([l["sq"], l["sk"], l["sv"]], axis=1)),
        d_so=st(dec, lambda l: l["so"]),
        d_ln2=st(dec, lambda l: l["ln2"].reshape(1, -1)),
        d_cq=st(dec, lambda l: l["cq"]),
        d_ckv=st(dec, lambda l: jnp.concatenate([l["ck"], l["cv"]], axis=1)),
        d_co=st(dec, lambda l: l["co"]),
        d_ln3=st(dec, lambda l: l["ln3"].reshape(1, -1)),
        d_wi=st(dec, lambda l: jnp.concatenate([l["wi0"], l["wi1"]], axis=1)),
        d_wo=st(dec, lambda l: l["wo"]),
        d_lnf=p["dec_final_ln"].reshape(1, -1),
    )

# ----------------------------------- main -------------------------------------
if __name__ == "__main__":
    key = jax.random.PRNGKey(0)
    k_par, k_wav, k_lab = jax.random.split(key, 3)

    params = init_params(k_par)
    packed = pack_params(params)            # one-time weight packing outside jit

    B, L, T_DEC = 2, 256, 8
    wav = 0.1 * jax.random.normal(k_wav, (B, L), dtype=jnp.float32)
    labels = jax.random.randint(k_lab, (B, T_DEC), 1, N_VOC, dtype=jnp.int32)

    fwd = jax.jit(seq2seq_forward)
    outs = fwd(packed, wav, labels)
    jax.block_until_ready(outs)

    loss = float(outs["loss"])
    logits = outs["logits"]
    assert logits.shape == (B, T_DEC, N_VOC)
    assert np.isfinite(loss) and bool(jnp.all(jnp.isfinite(logits)))
    print("KERNEL_OK")
</pallas_src>

<mosaic_0001>
module attributes {stable_mosaic.version = 11 : i64} {
  func.func @_fused_kernel(%arg0: i32, %arg1: memref<18x64xf32, #tpu.memory_space<vmem>>, %arg2: memref<64x128xf32, #tpu.memory_space<vmem>>, %arg3: memref<64x32xf32, #tpu.memory_space<vmem>>, %arg4: memref<4x18x18xf32, #tpu.memory_space<vmem>>, %arg5: memref<4x16x16xf32, #tpu.memory_space<vmem>>, %arg6: memref<1x16x18xf32, #tpu.memory_space<vmem>>, %arg7: memref<2x1x32xf32, #tpu.memory_space<vmem>>, %arg8: memref<2x32x96xf32, #tpu.memory_space<vmem>>, %arg9: memref<2x32x32xf32, #tpu.memory_space<vmem>>, %arg10: memref<2x1x32xf32, #tpu.memory_space<vmem>>, %arg11: memref<2x32x128xf32, #tpu.memory_space<vmem>>, %arg12: memref<2x64x32xf32, #tpu.memory_space<vmem>>, %arg13: memref<1x32xf32, #tpu.memory_space<vmem>>, %arg14: memref<16x32xf32, #tpu.memory_space<vmem>>, %arg15: memref<2x1x32xf32, #tpu.memory_space<vmem>>, %arg16: memref<2x32x96xf32, #tpu.memory_space<vmem>>, %arg17: memref<2x32x32xf32, #tpu.memory_space<vmem>>, %arg18: memref<2x1x32xf32, #tpu.memory_space<vmem>>, %arg19: memref<2x32x32xf32, #tpu.memory_space<vmem>>, %arg20: memref<2x32x64xf32, #tpu.memory_space<vmem>>, %arg21: memref<2x32x32xf32, #tpu.memory_space<vmem>>, %arg22: memref<2x1x32xf32, #tpu.memory_space<vmem>>, %arg23: memref<2x32x128xf32, #tpu.memory_space<vmem>>, %arg24: memref<2x64x32xf32, #tpu.memory_space<vmem>>, %arg25: memref<1x32xf32, #tpu.memory_space<vmem>>, %arg26: memref<32x128xf32, #tpu.memory_space<vmem>>, %arg27: memref<16x128xf32, #tpu.memory_space<vmem>>) attributes {dimension_semantics = [#tpu.dimension_semantics<arbitrary>], iteration_bounds = array<i64: 1>, scalar_prefetch = 0 : i64, scratch_operands = 0 : i64, tpu.core_type = #tpu.core_type<tc>, window_params = [{pipeline_mode = #tpu.pipeline_mode<synchronous>, transform_indices = @transform_0, window_bounds = array<i64: 18, 64>}, {pipeline_mode = #tpu.pipeline_mode<synchronous>, transform_indices = @transform_1, window_bounds = array<i64: 64, 128>}, {pipeline_mode = #tpu.pipeline_mode<synchronous>, transform_indices = @transform_2, window_bounds = array<i64: 64, 32>}, {pipeline_mode = #tpu.pipeline_mode<synchronous>, transform_indices = @transform_3, window_bounds = array<i64: 4, 18, 18>}, {pipeline_mode = #tpu.pipeline_mode<synchronous>, transform_indices = @transform_4, window_bounds = array<i64: 4, 16, 16>}, {pipeline_mode = #tpu.pipeline_mode<synchronous>, transform_indices = @transform_5, window_bounds = array<i64: 1, 16, 18>}, {pipeline_mode = #tpu.pipeline_mode<synchronous>, transform_indices = @transform_6, window_bounds = array<i64: 2, 1, 32>}, {pipeline_mode = #tpu.pipeline_mode<synchronous>, transform_indices = @transform_7, window_bounds = array<i64: 2, 32, 96>}, {pipeline_mode = #tpu.pipeline_mode<synchronous>, transform_indices = @transform_8, window_bounds = array<i64: 2, 32, 32>}, {pipeline_mode = #tpu.pipeline_mode<synchronous>, transform_indices = @transform_9, window_bounds = array<i64: 2, 1, 32>}, {pipeline_mode = #tpu.pipeline_mode<synchronous>, transform_indices = @transform_10, window_bounds = array<i64: 2, 32, 128>}, {pipeline_mode = #tpu.pipeline_mode<synchronous>, transform_indices = @transform_11, window_bounds = array<i64: 2, 64, 32>}, {pipeline_mode = #tpu.pipeline_mode<synchronous>, transform_indices = @transform_12, window_bounds = array<i64: 1, 32>}, {pipeline_mode = #tpu.pipeline_mode<synchronous>, transform_indices = @transform_13, window_bounds = array<i64: 16, 32>}, {pipeline_mode = #tpu.pipeline_mode<synchronous>, transform_indices = @transform_14, window_bounds = array<i64: 2, 1, 32>}, {pipeline_mode = #tpu.pipeline_mode<synchronous>, transform_indices = @transform_15, window_bounds = array<i64: 2, 32, 96>}, {pipeline_mode = #tpu.pipeline_mode<synchronous>, transform_indices = @transform_16, window_bounds = array<i64: 2, 32, 32>}, {pipeline_mode = #tpu.pipeline_mode<synchronous>, transform_indices = @transform_17, window_bounds = array<i64: 2, 1, 32>}, {pipeline_mode = #tpu.pipeline_mode<synchronous>, transform_indices = @transform_18, window_bounds = array<i64: 2, 32, 32>}, {pipeline_mode = #tpu.pipeline_mode<synchronous>, transform_indices = @transform_19, window_bounds = array<i64: 2, 32, 64>}, {pipeline_mode = #tpu.pipeline_mode<synchronous>, transform_indices = @transform_20, window_bounds = array<i64: 2, 32, 32>}, {pipeline_mode = #tpu.pipeline_mode<synchronous>, transform_indices = @transform_21, window_bounds = array<i64: 2, 1, 32>}, {pipeline_mode = #tpu.pipeline_mode<synchronous>, transform_indices = @transform_22, window_bounds = array<i64: 2, 32, 128>}, {pipeline_mode = #tpu.pipeline_mode<synchronous>, transform_indices = @transform_23, window_bounds = array<i64: 2, 64, 32>}, {pipeline_mode = #tpu.pipeline_mode<synchronous>, transform_indices = @transform_24, window_bounds = array<i64: 1, 32>}, {pipeline_mode = #tpu.pipeline_mode<synchronous>, transform_indices = @transform_25, window_bounds = array<i64: 32, 128>}, {pipeline_mode = #tpu.pipeline_mode<synchronous>, transform_indices = @transform_26, window_bounds = array<i64: 16, 128>}]} {
    %c0 = arith.constant 0 : index
    %c0_0 = arith.constant 0 : index
    %0 = vector.load %arg1[%c0, %c0_0] : memref<18x64xf32, #tpu.memory_space<vmem>>, vector<18x64xf32>
    %c0_1 = arith.constant 0 : index
    %c0_2 = arith.constant 0 : index
    %1 = vector.load %arg2[%c0_1, %c0_2] : memref<64x128xf32, #tpu.memory_space<vmem>>, vector<64x128xf32>
    %cst = arith.constant dense<0.000000e+00> : vector<18x128xf32>
    %2 = tpu.matmul %0, %1, %cst {dimension_numbers = #tpu.dot_dimension_numbers<[1], [0], [0], [1], [0, 0, 1, 1], [], []>} : vector<18x64xf32>, vector<64x128xf32>, vector<18x128xf32> -> vector<18x128xf32>
    %3 = vector.extract_strided_slice %2 {offsets = [0, 0], sizes = [18, 64], strides = [1, 1]} : vector<18x128xf32> to vector<18x64xf32>
    %4 = vector.extract_strided_slice %2 {offsets = [0, 64], sizes = [18, 64], strides = [1, 1]} : vector<18x128xf32> to vector<18x64xf32>
    %5 = arith.mulf %3, %3 : vector<18x64xf32>
    %6 = arith.mulf %4, %4 : vector<18x64xf32>
    %7 = arith.addf %5, %6 : vector<18x64xf32>
    %8 = math.sqrt %7 : vector<18x64xf32>
    %c0_3 = arith.constant 0 : index
    %c0_4 = arith.constant 0 : index
    %9 = vector.load %arg3[%c0_3, %c0_4] : memref<64x32xf32, #tpu.memory_space<vmem>>, vector<64x32xf32>
    %cst_5 = arith.constant dense<0.000000e+00> : vector<18x32xf32>
    %10 = tpu.matmul %8, %9, %cst_5 {dimension_numbers = #tpu.dot_dimension_numbers<[1], [0], [0], [1], [0, 0, 1, 1], [], []>} : vector<18x64xf32>, vector<64x32xf32>, vector<18x32xf32> -> vector<18x32xf32>
    %cst_6 = arith.constant 9.99999974E-6 : f32
    %11 = vector.broadcast %cst_6 : f32 to vector<18x32xf32>
    %12 = arith.maximumf %10, %11 : vector<18x32xf32>
    %13 = math.log %12 : vector<18x32xf32>
    %c0_7 = arith.constant 0 : index
    %c0_8 = arith.constant 0 : index
    %c0_9 = arith.constant 0 : index
    %14 = vector.load %arg7[%c0_7, %c0_8, %c0_9] : memref<2x1x32xf32, #tpu.memory_space<vmem>>, vector<1x1x32xf32>
    %15 = vector.shape_cast %14 : vector<1x1x32xf32> to vector<1x32xf32>
    %16 = arith.mulf %13, %13 : vector<18x32xf32>
    %cst_10 = arith.constant dense<0.000000e+00> : vector<18xf32>
    %17 = vector.multi_reduction <add>, %16, %cst_10 [1] : vector<18x32xf32> to vector<18xf32>
    %18 = vector.shape_cast %17 : vector<18xf32> to vector<18x1xf32>
    %cst_11 = arith.constant 3.200000e+01 : f32
    %19 = vector.broadcast %cst_11 : f32 to vector<18x1xf32>
    %20 = arith.divf %18, %19 : vector<18x1xf32>
    %cst_12 = arith.constant 9.99999997E-7 : f32
    %21 = vector.broadcast %cst_12 : f32 to vector<18x1xf32>
    %22 = arith.addf %20, %21 : vector<18x1xf32>
    %23 = math.rsqrt %22 : vector<18x1xf32>
    %24 = vector.broadcast %23 : vector<18x1xf32> to vector<18x32xf32>
    %25 = arith.mulf %13, %24 : vector<18x32xf32>
    %26 = vector.broadcast %15 : vector<1x32xf32> to vector<18x32xf32>
    %27 = arith.mulf %25, %26 : vector<18x32xf32>
    %c0_13 = arith.constant 0 : index
    %c0_14 = arith.constant 0 : index
    %c0_15 = arith.constant 0 : index
    %28 = vector.load %arg8[%c0_13, %c0_14, %c0_15] : memref<2x32x96xf32, #tpu.memory_space<vmem>>, vector<1x32x96xf32>
    %29 = vector.shape_cast %28 : vector<1x32x96xf32> to vector<32x96xf32>
    %cst_16 = arith.constant dense<0.000000e+00> : vector<18x96xf32>
    %30 = tpu.matmul %27, %29, %cst_16 {dimension_numbers = #tpu.dot_dimension_numbers<[1], [0], [0], [1], [0, 0, 1, 1], [], []>} : vector<18x32xf32>, vector<32x96xf32>, vector<18x96xf32> -> vector<18x96xf32>
    %31 = vector.extract_strided_slice %30 {offsets = [0, 0], sizes = [18, 32], strides = [1, 1]} : vector<18x96xf32> to vector<18x32xf32>
    %32 = vector.extract_strided_slice %30 {offsets = [0, 32], sizes = [18, 32], strides = [1, 1]} : vector<18x96xf32> to vector<18x32xf32>
    %33 = vector.extract_strided_slice %30 {offsets = [0, 64], sizes = [18, 32], strides = [1, 1]} : vector<18x96xf32> to vector<18x32xf32>
    %34 = vector.extract_strided_slice %31 {offsets = [0, 0], sizes = [18, 8], strides = [1, 1]} : vector<18x32xf32> to vector<18x8xf32>
    %35 = vector.extract_strided_slice %32 {offsets = [0, 0], sizes = [18, 8], strides = [1, 1]} : vector<18x32xf32> to vector<18x8xf32>
    %36 = vector.extract_strided_slice %33 {offsets = [0, 0], sizes = [18, 8], strides = [1, 1]} : vector<18x32xf32> to vector<18x8xf32>
    %cst_17 = arith.constant dense<0.000000e+00> : vector<18x18xf32>
    %37 = tpu.matmul %34, %35, %cst_17 {dimension_numbers = #tpu.dot_dimension_numbers<[1], [1], [0], [0], [0, 0, 1, 0], [], []>} : vector<18x8xf32>, vector<18x8xf32>, vector<18x18xf32> -> vector<18x18xf32>
    %c0_18 = arith.constant 0 : index
    %c0_19 = arith.constant 0 : index
    %c0_20 = arith.constant 0 : index
    %38 = vector.load %arg4[%c0_18, %c0_19, %c0_20] : memref<4x18x18xf32, #tpu.memory_space<vmem>>, vector<1x18x18xf32>
    %39 = vector.shape_cast %38 : vector<1x18x18xf32> to vector<18x18xf32>
    %40 = arith.addf %37, %39 : vector<18x18xf32>
    %cst_21 = arith.constant dense<0xFF800000> : vector<18xf32>
    %41 = vector.multi_reduction <maximumf>, %40, %cst_21 [1] : vector<18x18xf32> to vector<18xf32>
    %42 = vector.shape_cast %41 : vector<18xf32> to vector<18x1xf32>
    %43 = vector.broadcast %42 : vector<18x1xf32> to vector<18x18xf32>
    %44 = arith.subf %40, %43 : vector<18x18xf32>
    %45 = math.exp %44 : vector<18x18xf32>
    %cst_22 = arith.constant dense<0.000000e+00> : vector<18xf32>
    %46 = vector.multi_reduction <add>, %45, %cst_22 [1] : vector<18x18xf32> to vector<18xf32>
    %47 = vector.shape_cast %46 : vector<18xf32> to vector<18x1xf32>
    %48 = tpu.reciprocal %47 {approx = true} : vector<18x1xf32> -> vector<18x1xf32>
    %49 = vector.broadcast %48 : vector<18x1xf32> to vector<18x18xf32>
    %50 = arith.mulf %45, %49 : vector<18x18xf32>
    %cst_23 = arith.constant dense<0.000000e+00> : vector<18x8xf32>
    %51 = tpu.matmul %50, %36, %cst_23 {dimension_numbers = #tpu.dot_dimension_numbers<[1], [0], [0], [1], [0, 0, 1, 1], [], []>} : vector<18x18xf32>, vector<18x8xf32>, vector<18x8xf32> -> vector<18x8xf32>
    %52 = vector.extract_strided_slice %31 {offsets = [0, 8], sizes = [18, 8], strides = [1, 1]} : vector<18x32xf32> to vector<18x8xf32>
    %53 = vector.extract_strided_slice %32 {offsets = [0, 8], sizes = [18, 8], strides = [1, 1]} : vector<18x32xf32> to vector<18x8xf32>
    %54 = vector.extract_strided_slice %33 {offsets = [0, 8], sizes = [18, 8], strides = [1, 1]} : vector<18x32xf32> to vector<18x8xf32>
    %cst_24 = arith.constant dense<0.000000e+00> : vector<18x18xf32>
    %55 = tpu.matmul %52, %53, %cst_24 {dimension_numbers = #tpu.dot_dimension_numbers<[1], [1], [0], [0], [0, 0, 1, 0], [], []>} : vector<18x8xf32>, vector<18x8xf32>, vector<18x18xf32> -> vector<18x18xf32>
    %c1 = arith.constant 1 : index
    %c0_25 = arith.constant 0 : index
    %c0_26 = arith.constant 0 : index
    %56 = vector.load %arg4[%c1, %c0_25, %c0_26] : memref<4x18x18xf32, #tpu.memory_space<vmem>>, vector<1x18x18xf32>
    %57 = vector.shape_cast %56 : vector<1x18x18xf32> to vector<18x18xf32>
    %58 = arith.addf %55, %57 : vector<18x18xf32>
    %cst_27 = arith.constant dense<0xFF800000> : vector<18xf32>
    %59 = vector.multi_reduction <maximumf>, %58, %cst_27 [1] : vector<18x18xf32> to vector<18xf32>
    %60 = vector.shape_cast %59 : vector<18xf32> to vector<18x1xf32>
    %61 = vector.broadcast %60 : vector<18x1xf32> to vector<18x18xf32>
    %62 = arith.subf %58, %61 : vector<18x18xf32>
    %63 = math.exp %62 : vector<18x18xf32>
    %cst_28 = arith.constant dense<0.000000e+00> : vector<18xf32>
    %64 = vector.multi_reduction <add>, %63, %cst_28 [1] : vector<18x18xf32> to vector<18xf32>
    %65 = vector.shape_cast %64 : vector<18xf32> to vector<18x1xf32>
    %66 = tpu.reciprocal %65 {approx = true} : vector<18x1xf32> -> vector<18x1xf32>
    %67 = vector.broadcast %66 : vector<18x1xf32> to vector<18x18xf32>
    %68 = arith.mulf %63, %67 : vector<18x18xf32>
    %cst_29 = arith.constant dense<0.000000e+00> : vector<18x8xf32>
    %69 = tpu.matmul %68, %54, %cst_29 {dimension_numbers = #tpu.dot_dimension_numbers<[1], [0], [0], [1], [0, 0, 1, 1], [], []>} : vector<18x18xf32>, vector<18x8xf32>, vector<18x8xf32> -> vector<18x8xf32>
    %70 = vector.extract_strided_slice %31 {offsets = [0, 16], sizes = [18, 8], strides = [1, 1]} : vector<18x32xf32> to vector<18x8xf32>
    %71 = vector.extract_strided_slice %32 {offsets = [0, 16], sizes = [18, 8], strides = [1, 1]} : vector<18x32xf32> to vector<18x8xf32>
    %72 = vector.extract_strided_slice %33 {offsets = [0, 16], sizes = [18, 8], strides = [1, 1]} : vector<18x32xf32> to vector<18x8xf32>
    %cst_30 = arith.constant dense<0.000000e+00> : vector<18x18xf32>
    %73 = tpu.matmul %70, %71, %cst_30 {dimension_numbers = #tpu.dot_dimension_numbers<[1], [1], [0], [0], [0, 0, 1, 0], [], []>} : vector<18x8xf32>, vector<18x8xf32>, vector<18x18xf32> -> vector<18x18xf32>
    %c2 = arith.constant 2 : index
    %c0_31 = arith.constant 0 : index
    %c0_32 = arith.constant 0 : index
    %74 = vector.load %arg4[%c2, %c0_31, %c0_32] : memref<4x18x18xf32, #tpu.memory_space<vmem>>, vector<1x18x18xf32>
    %75 = vector.shape_cast %74 : vector<1x18x18xf32> to vector<18x18xf32>
    %76 = arith.addf %73, %75 : vector<18x18xf32>
    %cst_33 = arith.constant dense<0xFF800000> : vector<18xf32>
    %77 = vector.multi_reduction <maximumf>, %76, %cst_33 [1] : vector<18x18xf32> to vector<18xf32>
    %78 = vector.shape_cast %77 : vector<18xf32> to vector<18x1xf32>
    %79 = vector.broadcast %78 : vector<18x1xf32> to vector<18x18xf32>
    %80 = arith.subf %76, %79 : vector<18x18xf32>
    %81 = math.exp %80 : vector<18x18xf32>
    %cst_34 = arith.constant dense<0.000000e+00> : vector<18xf32>
    %82 = vector.multi_reduction <add>, %81, %cst_34 [1] : vector<18x18xf32> to vector<18xf32>
    %83 = vector.shape_cast %82 : vector<18xf32> to vector<18x1xf32>
    %84 = tpu.reciprocal %83 {approx = true} : vector<18x1xf32> -> vector<18x1xf32>
    %85 = vector.broadcast %84 : vector<18x1xf32> to vector<18x18xf32>
    %86 = arith.mulf %81, %85 : vector<18x18xf32>
    %cst_35 = arith.constant dense<0.000000e+00> : vector<18x8xf32>
    %87 = tpu.matmul %86, %72, %cst_35 {dimension_numbers = #tpu.dot_dimension_numbers<[1], [0], [0], [1], [0, 0, 1, 1], [], []>} : vector<18x18xf32>, vector<18x8xf32>, vector<18x8xf32> -> vector<18x8xf32>
    %88 = vector.extract_strided_slice %31 {offsets = [0, 24], sizes = [18, 8], strides = [1, 1]} : vector<18x32xf32> to vector<18x8xf32>
    %89 = vector.extract_strided_slice %32 {offsets = [0, 24], sizes = [18, 8], strides = [1, 1]} : vector<18x32xf32> to vector<18x8xf32>
    %90 = vector.extract_strided_slice %33 {offsets = [0, 24], sizes = [18, 8], strides = [1, 1]} : vector<18x32xf32> to vector<18x8xf32>
    %cst_36 = arith.constant dense<0.000000e+00> : vector<18x18xf32>
    %91 = tpu.matmul %88, %89, %cst_36 {dimension_numbers = #tpu.dot_dimension_numbers<[1], [1], [0], [0], [0, 0, 1, 0], [], []>} : vector<18x8xf32>, vector<18x8xf32>, vector<18x18xf32> -> vector<18x18xf32>
    %c3 = arith.constant 3 : index
    %c0_37 = arith.constant 0 : index
    %c0_38 = arith.constant 0 : index
    %92 = vector.load %arg4[%c3, %c0_37, %c0_38] : memref<4x18x18xf32, #tpu.memory_space<vmem>>, vector<1x18x18xf32>
    %93 = vector.shape_cast %92 : vector<1x18x18xf32> to vector<18x18xf32>
    %94 = arith.addf %91, %93 : vector<18x18xf32>
    %cst_39 = arith.constant dense<0xFF800000> : vector<18xf32>
    %95 = vector.multi_reduction <maximumf>, %94, %cst_39 [1] : vector<18x18xf32> to vector<18xf32>
    %96 = vector.shape_cast %95 : vector<18xf32> to vector<18x1xf32>
    %97 = vector.broadcast %96 : vector<18x1xf32> to vector<18x18xf32>
    %98 = arith.subf %94, %97 : vector<18x18xf32>
    %99 = math.exp %98 : vector<18x18xf32>
    %cst_40 = arith.constant dense<0.000000e+00> : vector<18xf32>
    %100 = vector.multi_reduction <add>, %99, %cst_40 [1] : vector<18x18xf32> to vector<18xf32>
    %101 = vector.shape_cast %100 : vector<18xf32> to vector<18x1xf32>
    %102 = tpu.reciprocal %101 {approx = true} : vector<18x1xf32> -> vector<18x1xf32>
    %103 = vector.broadcast %102 : vector<18x1xf32> to vector<18x18xf32>
    %104 = arith.mulf %99, %103 : vector<18x18xf32>
    %cst_41 = arith.constant dense<0.000000e+00> : vector<18x8xf32>
    %105 = tpu.matmul %104, %90, %cst_41 {dimension_numbers = #tpu.dot_dimension_numbers<[1], [0], [0], [1], [0, 0, 1, 1], [], []>} : vector<18x18xf32>, vector<18x8xf32>, vector<18x8xf32> -> vector<18x8xf32>
    %106 = tpu.concatenate %51, %69, %87, %105 in 1 : vector<18x8xf32>, vector<18x8xf32>, vector<18x8xf32>, vector<18x8xf32> -> vector<18x32xf32>
    %c0_42 = arith.constant 0 : index
    %c0_43 = arith.constant 0 : index
    %c0_44 = arith.constant 0 : index
    %107 = vector.load %arg9[%c0_42, %c0_43, %c0_44] : memref<2x32x32xf32, #tpu.memory_space<vmem>>, vector<1x32x32xf32>
    %108 = vector.shape_cast %107 : vector<1x32x32xf32> to vector<32x32xf32>
    %cst_45 = arith.constant dense<0.000000e+00> : vector<18x32xf32>
    %109 = tpu.matmul %106, %108, %cst_45 {dimension_numbers = #tpu.dot_dimension_numbers<[1], [0], [0], [1], [0, 0, 1, 1], [], []>} : vector<18x32xf32>, vector<32x32xf32>, vector<18x32xf32> -> vector<18x32xf32>
    %110 = arith.addf %13, %109 : vector<18x32xf32>
    %c0_46 = arith.constant 0 : index
    %c0_47 = arith.constant 0 : index
    %c0_48 = arith.constant 0 : index
    %111 = vector.load %arg10[%c0_46, %c0_47, %c0_48] : memref<2x1x32xf32, #tpu.memory_space<vmem>>, vector<1x1x32xf32>
    %112 = vector.shape_cast %111 : vector<1x1x32xf32> to vector<1x32xf32>
    %113 = arith.mulf %110, %110 : vector<18x32xf32>
    %cst_49 = arith.constant dense<0.000000e+00> : vector<18xf32>
    %114 = vector.multi_reduction <add>, %113, %cst_49 [1] : vector<18x32xf32> to vector<18xf32>
    %115 = vector.shape_cast %114 : vector<18xf32> to vector<18x1xf32>
    %cst_50 = arith.constant 3.200000e+01 : f32
    %116 = vector.broadcast %cst_50 : f32 to vector<18x1xf32>
    %117 = arith.divf %115, %116 : vector<18x1xf32>
    %cst_51 = arith.constant 9.99999997E-7 : f32
    %118 = vector.broadcast %cst_51 : f32 to vector<18x1xf32>
    %119 = arith.addf %117, %118 : vector<18x1xf32>
    %120 = math.rsqrt %119 : vector<18x1xf32>
    %121 = vector.broadcast %120 : vector<18x1xf32> to vector<18x32xf32>
    %122 = arith.mulf %110, %121 : vector<18x32xf32>
    %123 = vector.broadcast %112 : vector<1x32xf32> to vector<18x32xf32>
    %124 = arith.mulf %122, %123 : vector<18x32xf32>
    %c0_52 = arith.constant 0 : index
    %c0_53 = arith.constant 0 : index
    %c0_54 = arith.constant 0 : index
    %125 = vector.load %arg11[%c0_52, %c0_53, %c0_54] : memref<2x32x128xf32, #tpu.memory_space<vmem>>, vector<1x32x128xf32>
    %126 = vector.shape_cast %125 : vector<1x32x128xf32> to vector<32x128xf32>
    %cst_55 = arith.constant dense<0.000000e+00> : vector<18x128xf32>
    %127 = tpu.matmul %124, %126, %cst_55 {dimension_numbers = #tpu.dot_dimension_numbers<[1], [0], [0], [1], [0, 0, 1, 1], [], []>} : vector<18x32xf32>, vector<32x128xf32>, vector<18x128xf32> -> vector<18x128xf32>
    %128 = vector.extract_strided_slice %127 {offsets = [0, 0], sizes = [18, 64], strides = [1, 1]} : vector<18x128xf32> to vector<18x64xf32>
    %cst_56 = arith.constant 5.000000e-01 : f32
    %129 = vector.broadcast %cst_56 : f32 to vector<18x64xf32>
    %130 = arith.mulf %129, %128 : vector<18x64xf32>
    %cst_57 = arith.constant 4.471500e-02 : f32
    %131 = vector.broadcast %cst_57 : f32 to vector<18x64xf32>
    %132 = arith.mulf %131, %128 : vector<18x64xf32>
    %133 = arith.mulf %132, %128 : vector<18x64xf32>
    %134 = arith.mulf %133, %128 : vector<18x64xf32>
    %135 = arith.addf %128, %134 : vector<18x64xf32>
    %cst_58 = arith.constant 0.797884583 : f32
    %136 = vector.broadcast %cst_58 : f32 to vector<18x64xf32>
    %137 = arith.mulf %136, %135 : vector<18x64xf32>
    %138 = math.tanh %137 : vector<18x64xf32>
    %cst_59 = arith.constant 1.000000e+00 : f32
    %139 = vector.broadcast %cst_59 : f32 to vector<18x64xf32>
    %140 = arith.addf %139, %138 : vector<18x64xf32>
    %141 = arith.mulf %130, %140 : vector<18x64xf32>
    %142 = vector.extract_strided_slice %127 {offsets = [0, 64], sizes = [18, 64], strides = [1, 1]} : vector<18x128xf32> to vector<18x64xf32>
    %143 = arith.mulf %141, %142 : vector<18x64xf32>
    %c0_60 = arith.constant 0 : index
    %c0_61 = arith.constant 0 : index
    %c0_62 = arith.constant 0 : index
    %144 = vector.load %arg12[%c0_60, %c0_61, %c0_62] : memref<2x64x32xf32, #tpu.memory_space<vmem>>, vector<1x64x32xf32>
    %145 = vector.shape_cast %144 : vector<1x64x32xf32> to vector<64x32xf32>
    %cst_63 = arith.constant dense<0.000000e+00> : vector<18x32xf32>
    %146 = tpu.matmul %143, %145, %cst_63 {dimension_numbers = #tpu.dot_dimension_numbers<[1], [0], [0], [1], [0, 0, 1, 1], [], []>} : vector<18x64xf32>, vector<64x32xf32>, vector<18x32xf32> -> vector<18x32xf32>
    %147 = arith.addf %110, %146 : vector<18x32xf32>
    %c1_64 = arith.constant 1 : index
    %c0_65 = arith.constant 0 : index
    %c0_66 = arith.constant 0 : index
    %148 = vector.load %arg7[%c1_64, %c0_65, %c0_66] : memref<2x1x32xf32, #tpu.memory_space<vmem>>, vector<1x1x32xf32>
    %149 = vector.shape_cast %148 : vector<1x1x32xf32> to vector<1x32xf32>
    %150 = arith.mulf %147, %147 : vector<18x32xf32>
    %cst_67 = arith.constant dense<0.000000e+00> : vector<18xf32>
    %151 = vector.multi_reduction <add>, %150, %cst_67 [1] : vector<18x32xf32> to vector<18xf32>
    %152 = vector.shape_cast %151 : vector<18xf32> to vector<18x1xf32>
    %cst_68 = arith.constant 3.200000e+01 : f32
    %153 = vector.broadcast %cst_68 : f32 to vector<18x1xf32>
    %154 = arith.divf %152, %153 : vector<18x1xf32>
    %cst_69 = arith.constant 9.99999997E-7 : f32
    %155 = vector.broadcast %cst_69 : f32 to vector<18x1xf32>
    %156 = arith.addf %154, %155 : vector<18x1xf32>
    %157 = math.rsqrt %156 : vector<18x1xf32>
    %158 = vector.broadcast %157 : vector<18x1xf32> to vector<18x32xf32>
    %159 = arith.mulf %147, %158 : vector<18x32xf32>
    %160 = vector.broadcast %149 : vector<1x32xf32> to vector<18x32xf32>
    %161 = arith.mulf %159, %160 : vector<18x32xf32>
    %c1_70 = arith.constant 1 : index
    %c0_71 = arith.constant 0 : index
    %c0_72 = arith.constant 0 : index
    %162 = vector.load %arg8[%c1_70, %c0_71, %c0_72] : memref<2x32x96xf32, #tpu.memory_space<vmem>>, vector<1x32x96xf32>
    %163 = vector.shape_cast %162 : vector<1x32x96xf32> to vector<32x96xf32>
    %cst_73 = arith.constant dense<0.000000e+00> : vector<18x96xf32>
    %164 = tpu.matmul %161, %163, %cst_73 {dimension_numbers = #tpu.dot_dimension_numbers<[1], [0], [0], [1], [0, 0, 1, 1], [], []>} : vector<18x32xf32>, vector<32x96xf32>, vector<18x96xf32> -> vector<18x96xf32>
    %165 = vector.extract_strided_slice %164 {offsets = [0, 0], sizes = [18, 32], strides = [1, 1]} : vector<18x96xf32> to vector<18x32xf32>
    %166 = vector.extract_strided_slice %164 {offsets = [0, 32], sizes = [18, 32], strides = [1, 1]} : vector<18x96xf32> to vector<18x32xf32>
    %167 = vector.extract_strided_slice %164 {offsets = [0, 64], sizes = [18, 32], strides = [1, 1]} : vector<18x96xf32> to vector<18x32xf32>
    %168 = vector.extract_strided_slice %165 {offsets = [0, 0], sizes = [18, 8], strides = [1, 1]} : vector<18x32xf32> to vector<18x8xf32>
    %169 = vector.extract_strided_slice %166 {offsets = [0, 0], sizes = [18, 8], strides = [1, 1]} : vector<18x32xf32> to vector<18x8xf32>
    %170 = vector.extract_strided_slice %167 {offsets = [0, 0], sizes = [18, 8], strides = [1, 1]} : vector<18x32xf32> to vector<18x8xf32>
    %cst_74 = arith.constant dense<0.000000e+00> : vector<18x18xf32>
    %171 = tpu.matmul %168, %169, %cst_74 {dimension_numbers = #tpu.dot_dimension_numbers<[1], [1], [0], [0], [0, 0, 1, 0], [], []>} : vector<18x8xf32>, vector<18x8xf32>, vector<18x18xf32> -> vector<18x18xf32>
    %c0_75 = arith.constant 0 : index
    %c0_76 = arith.constant 0 : index
    %c0_77 = arith.constant 0 : index
    %172 = vector.load %arg4[%c0_75, %c0_76, %c0_77] : memref<4x18x18xf32, #tpu.memory_space<vmem>>, vector<1x18x18xf32>
    %173 = vector.shape_cast %172 : vector<1x18x18xf32> to vector<18x18xf32>
    %174 = arith.addf %171, %173 : vector<18x18xf32>
    %cst_78 = arith.constant dense<0xFF800000> : vector<18xf32>
    %175 = vector.multi_reduction <maximumf>, %174, %cst_78 [1] : vector<18x18xf32> to vector<18xf32>
    %176 = vector.shape_cast %175 : vector<18xf32> to vector<18x1xf32>
    %177 = vector.broadcast %176 : vector<18x1xf32> to vector<18x18xf32>
    %178 = arith.subf %174, %177 : vector<18x18xf32>
    %179 = math.exp %178 : vector<18x18xf32>
    %cst_79 = arith.constant dense<0.000000e+00> : vector<18xf32>
    %180 = vector.multi_reduction <add>, %179, %cst_79 [1] : vector<18x18xf32> to vector<18xf32>
    %181 = vector.shape_cast %180 : vector<18xf32> to vector<18x1xf32>
    %182 = tpu.reciprocal %181 {approx = true} : vector<18x1xf32> -> vector<18x1xf32>
    %183 = vector.broadcast %182 : vector<18x1xf32> to vector<18x18xf32>
    %184 = arith.mulf %179, %183 : vector<18x18xf32>
    %cst_80 = arith.constant dense<0.000000e+00> : vector<18x8xf32>
    %185 = tpu.matmul %184, %170, %cst_80 {dimension_numbers = #tpu.dot_dimension_numbers<[1], [0], [0], [1], [0, 0, 1, 1], [], []>} : vector<18x18xf32>, vector<18x8xf32>, vector<18x8xf32> -> vector<18x8xf32>
    %186 = vector.extract_strided_slice %165 {offsets = [0, 8], sizes = [18, 8], strides = [1, 1]} : vector<18x32xf32> to vector<18x8xf32>
    %187 = vector.extract_strided_slice %166 {offsets = [0, 8], sizes = [18, 8], strides = [1, 1]} : vector<18x32xf32> to vector<18x8xf32>
    %188 = vector.extract_strided_slice %167 {offsets = [0, 8], sizes = [18, 8], strides = [1, 1]} : vector<18x32xf32> to vector<18x8xf32>
    %cst_81 = arith.constant dense<0.000000e+00> : vector<18x18xf32>
    %189 = tpu.matmul %186, %187, %cst_81 {dimension_numbers = #tpu.dot_dimension_numbers<[1], [1], [0], [0], [0, 0, 1, 0], [], []>} : vector<18x8xf32>, vector<18x8xf32>, vector<18x18xf32> -> vector<18x18xf32>
    %c1_82 = arith.constant 1 : index
    %c0_83 = arith.constant 0 : index
    %c0_84 = arith.constant 0 : index
    %190 = vector.load %arg4[%c1_82, %c0_83, %c0_84] : memref<4x18x18xf32, #tpu.memory_space<vmem>>, vector<1x18x18xf32>
    %191 = vector.shape_cast %190 : vector<1x18x18xf32> to vector<18x18xf32>
    %192 = arith.addf %189, %191 : vector<18x18xf32>
    %cst_85 = arith.constant dense<0xFF800000> : vector<18xf32>
    %193 = vector.multi_reduction <maximumf>, %192, %cst_85 [1] : vector<18x18xf32> to vector<18xf32>
    %194 = vector.shape_cast %193 : vector<18xf32> to vector<18x1xf32>
    %195 = vector.broadcast %194 : vector<18x1xf32> to vector<18x18xf32>
    %196 = arith.subf %192, %195 : vector<18x18xf32>
    %197 = math.exp %196 : vector<18x18xf32>
    %cst_86 = arith.constant dense<0.000000e+00> : vector<18xf32>
    %198 = vector.multi_reduction <add>, %197, %cst_86 [1] : vector<18x18xf32> to vector<18xf32>
    %199 = vector.shape_cast %198 : vector<18xf32> to vector<18x1xf32>
    %200 = tpu.reciprocal %199 {approx = true} : vector<18x1xf32> -> vector<18x1xf32>
    %201 = vector.broadcast %200 : vector<18x1xf32> to vector<18x18xf32>
    %202 = arith.mulf %197, %201 : vector<18x18xf32>
    %cst_87 = arith.constant dense<0.000000e+00> : vector<18x8xf32>
    %203 = tpu.matmul %202, %188, %cst_87 {dimension_numbers = #tpu.dot_dimension_numbers<[1], [0], [0], [1], [0, 0, 1, 1], [], []>} : vector<18x18xf32>, vector<18x8xf32>, vector<18x8xf32> -> vector<18x8xf32>
    %204 = vector.extract_strided_slice %165 {offsets = [0, 16], sizes = [18, 8], strides = [1, 1]} : vector<18x32xf32> to vector<18x8xf32>
    %205 = vector.extract_strided_slice %166 {offsets = [0, 16], sizes = [18, 8], strides = [1, 1]} : vector<18x32xf32> to vector<18x8xf32>
    %206 = vector.extract_strided_slice %167 {offsets = [0, 16], sizes = [18, 8], strides = [1, 1]} : vector<18x32xf32> to vector<18x8xf32>
    %cst_88 = arith.constant dense<0.000000e+00> : vector<18x18xf32>
    %207 = tpu.matmul %204, %205, %cst_88 {dimension_numbers = #tpu.dot_dimension_numbers<[1], [1], [0], [0], [0, 0, 1, 0], [], []>} : vector<18x8xf32>, vector<18x8xf32>, vector<18x18xf32> -> vector<18x18xf32>
    %c2_89 = arith.constant 2 : index
    %c0_90 = arith.constant 0 : index
    %c0_91 = arith.constant 0 : index
    %208 = vector.load %arg4[%c2_89, %c0_90, %c0_91] : memref<4x18x18xf32, #tpu.memory_space<vmem>>, vector<1x18x18xf32>
    %209 = vector.shape_cast %208 : vector<1x18x18xf32> to vector<18x18xf32>
    %210 = arith.addf %207, %209 : vector<18x18xf32>
    %cst_92 = arith.constant dense<0xFF800000> : vector<18xf32>
    %211 = vector.multi_reduction <maximumf>, %210, %cst_92 [1] : vector<18x18xf32> to vector<18xf32>
    %212 = vector.shape_cast %211 : vector<18xf32> to vector<18x1xf32>
    %213 = vector.broadcast %212 : vector<18x1xf32> to vector<18x18xf32>
    %214 = arith.subf %210, %213 : vector<18x18xf32>
    %215 = math.exp %214 : vector<18x18xf32>
    %cst_93 = arith.constant dense<0.000000e+00> : vector<18xf32>
    %216 = vector.multi_reduction <add>, %215, %cst_93 [1] : vector<18x18xf32> to vector<18xf32>
    %217 = vector.shape_cast %216 : vector<18xf32> to vector<18x1xf32>
    %218 = tpu.reciprocal %217 {approx = true} : vector<18x1xf32> -> vector<18x1xf32>
    %219 = vector.broadcast %218 : vector<18x1xf32> to vector<18x18xf32>
    %220 = arith.mulf %215, %219 : vector<18x18xf32>
    %cst_94 = arith.constant dense<0.000000e+00> : vector<18x8xf32>
    %221 = tpu.matmul %220, %206, %cst_94 {dimension_numbers = #tpu.dot_dimension_numbers<[1], [0], [0], [1], [0, 0, 1, 1], [], []>} : vector<18x18xf32>, vector<18x8xf32>, vector<18x8xf32> -> vector<18x8xf32>
    %222 = vector.extract_strided_slice %165 {offsets = [0, 24], sizes = [18, 8], strides = [1, 1]} : vector<18x32xf32> to vector<18x8xf32>
    %223 = vector.extract_strided_slice %166 {offsets = [0, 24], sizes = [18, 8], strides = [1, 1]} : vector<18x32xf32> to vector<18x8xf32>
    %224 = vector.extract_strided_slice %167 {offsets = [0, 24], sizes = [18, 8], strides = [1, 1]} : vector<18x32xf32> to vector<18x8xf32>
    %cst_95 = arith.constant dense<0.000000e+00> : vector<18x18xf32>
    %225 = tpu.matmul %222, %223, %cst_95 {dimension_numbers = #tpu.dot_dimension_numbers<[1], [1], [0], [0], [0, 0, 1, 0], [], []>} : vector<18x8xf32>, vector<18x8xf32>, vector<18x18xf32> -> vector<18x18xf32>
    %c3_96 = arith.constant 3 : index
    %c0_97 = arith.constant 0 : index
    %c0_98 = arith.constant 0 : index
    %226 = vector.load %arg4[%c3_96, %c0_97, %c0_98] : memref<4x18x18xf32, #tpu.memory_space<vmem>>, vector<1x18x18xf32>
    %227 = vector.shape_cast %226 : vector<1x18x18xf32> to vector<18x18xf32>
    %228 = arith.addf %225, %227 : vector<18x18xf32>
    %cst_99 = arith.constant dense<0xFF800000> : vector<18xf32>
    %229 = vector.multi_reduction <maximumf>, %228, %cst_99 [1] : vector<18x18xf32> to vector<18xf32>
    %230 = vector.shape_cast %229 : vector<18xf32> to vector<18x1xf32>
    %231 = vector.broadcast %230 : vector<18x1xf32> to vector<18x18xf32>
    %232 = arith.subf %228, %231 : vector<18x18xf32>
    %233 = math.exp %232 : vector<18x18xf32>
    %cst_100 = arith.constant dense<0.000000e+00> : vector<18xf32>
    %234 = vector.multi_reduction <add>, %233, %cst_100 [1] : vector<18x18xf32> to vector<18xf32>
    %235 = vector.shape_cast %234 : vector<18xf32> to vector<18x1xf32>
    %236 = tpu.reciprocal %235 {approx = true} : vector<18x1xf32> -> vector<18x1xf32>
    %237 = vector.broadcast %236 : vector<18x1xf32> to vector<18x18xf32>
    %238 = arith.mulf %233, %237 : vector<18x18xf32>
    %cst_101 = arith.constant dense<0.000000e+00> : vector<18x8xf32>
    %239 = tpu.matmul %238, %224, %cst_101 {dimension_numbers = #tpu.dot_dimension_numbers<[1], [0], [0], [1], [0, 0, 1, 1], [], []>} : vector<18x18xf32>, vector<18x8xf32>, vector<18x8xf32> -> vector<18x8xf32>
    %240 = tpu.concatenate %185, %203, %221, %239 in 1 : vector<18x8xf32>, vector<18x8xf32>, vector<18x8xf32>, vector<18x8xf32> -> vector<18x32xf32>
    %c1_102 = arith.constant 1 : index
    %c0_103 = arith.constant 0 : index
    %c0_104 = arith.constant 0 : index
    %241 = vector.load %arg9[%c1_102, %c0_103, %c0_104] : memref<2x32x32xf32, #tpu.memory_space<vmem>>, vector<1x32x32xf32>
    %242 = vector.shape_cast %241 : vector<1x32x32xf32> to vector<32x32xf32>
    %cst_105 = arith.constant dense<0.000000e+00> : vector<18x32xf32>
    %243 = tpu.matmul %240, %242, %cst_105 {dimension_numbers = #tpu.dot_dimension_numbers<[1], [0], [0], [1], [0, 0, 1, 1], [], []>} : vector<18x32xf32>, vector<32x32xf32>, vector<18x32xf32> -> vector<18x32xf32>
    %244 = arith.addf %147, %243 : vector<18x32xf32>
    %c1_106 = arith.constant 1 : index
    %c0_107 = arith.constant 0 : index
    %c0_108 = arith.constant 0 : index
    %245 = vector.load %arg10[%c1_106, %c0_107, %c0_108] : memref<2x1x32xf32, #tpu.memory_space<vmem>>, vector<1x1x32xf32>
    %246 = vector.shape_cast %245 : vector<1x1x32xf32> to vector<1x32xf32>
    %247 = arith.mulf %244, %244 : vector<18x32xf32>
    %cst_109 = arith.constant dense<0.000000e+00> : vector<18xf32>
    %248 = vector.multi_reduction <add>, %247, %cst_109 [1] : vector<18x32xf32> to vector<18xf32>
    %249 = vector.shape_cast %248 : vector<18xf32> to vector<18x1xf32>
    %cst_110 = arith.constant 3.200000e+01 : f32
    %250 = vector.broadcast %cst_110 : f32 to vector<18x1xf32>
    %251 = arith.divf %249, %250 : vector<18x1xf32>
    %cst_111 = arith.constant 9.99999997E-7 : f32
    %252 = vector.broadcast %cst_111 : f32 to vector<18x1xf32>
    %253 = arith.addf %251, %252 : vector<18x1xf32>
    %254 = math.rsqrt %253 : vector<18x1xf32>
    %255 = vector.broadcast %254 : vector<18x1xf32> to vector<18x32xf32>
    %256 = arith.mulf %244, %255 : vector<18x32xf32>
    %257 = vector.broadcast %246 : vector<1x32xf32> to vector<18x32xf32>
    %258 = arith.mulf %256, %257 : vector<18x32xf32>
    %c1_112 = arith.constant 1 : index
    %c0_113 = arith.constant 0 : index
    %c0_114 = arith.constant 0 : index
    %259 = vector.load %arg11[%c1_112, %c0_113, %c0_114] : memref<2x32x128xf32, #tpu.memory_space<vmem>>, vector<1x32x128xf32>
    %260 = vector.shape_cast %259 : vector<1x32x128xf32> to vector<32x128xf32>
    %cst_115 = arith.constant dense<0.000000e+00> : vector<18x128xf32>
    %261 = tpu.matmul %258, %260, %cst_115 {dimension_numbers = #tpu.dot_dimension_numbers<[1], [0], [0], [1], [0, 0, 1, 1], [], []>} : vector<18x32xf32>, vector<32x128xf32>, vector<18x128xf32> -> vector<18x128xf32>
    %262 = vector.extract_strided_slice %261 {offsets = [0, 0], sizes = [18, 64], strides = [1, 1]} : vector<18x128xf32> to vector<18x64xf32>
    %cst_116 = arith.constant 5.000000e-01 : f32
    %263 = vector.broadcast %cst_116 : f32 to vector<18x64xf32>
    %264 = arith.mulf %263, %262 : vector<18x64xf32>
    %cst_117 = arith.constant 4.471500e-02 : f32
    %265 = vector.broadcast %cst_117 : f32 to vector<18x64xf32>
    %266 = arith.mulf %265, %262 : vector<18x64xf32>
    %267 = arith.mulf %266, %262 : vector<18x64xf32>
    %268 = arith.mulf %267, %262 : vector<18x64xf32>
    %269 = arith.addf %262, %268 : vector<18x64xf32>
    %cst_118 = arith.constant 0.797884583 : f32
    %270 = vector.broadcast %cst_118 : f32 to vector<18x64xf32>
    %271 = arith.mulf %270, %269 : vector<18x64xf32>
    %272 = math.tanh %271 : vector<18x64xf32>
    %cst_119 = arith.constant 1.000000e+00 : f32
    %273 = vector.broadcast %cst_119 : f32 to vector<18x64xf32>
    %274 = arith.addf %273, %272 : vector<18x64xf32>
    %275 = arith.mulf %264, %274 : vector<18x64xf32>
    %276 = vector.extract_strided_slice %261 {offsets = [0, 64], sizes = [18, 64], strides = [1, 1]} : vector<18x128xf32> to vector<18x64xf32>
    %277 = arith.mulf %275, %276 : vector<18x64xf32>
    %c1_120 = arith.constant 1 : index
    %c0_121 = arith.constant 0 : index
    %c0_122 = arith.constant 0 : index
    %278 = vector.load %arg12[%c1_120, %c0_121, %c0_122] : memref<2x64x32xf32, #tpu.memory_space<vmem>>, vector<1x64x32xf32>
    %279 = vector.shape_cast %278 : vector<1x64x32xf32> to vector<64x32xf32>
    %cst_123 = arith.constant dense<0.000000e+00> : vector<18x32xf32>
    %280 = tpu.matmul %277, %279, %cst_123 {dimension_numbers = #tpu.dot_dimension_numbers<[1], [0], [0], [1], [0, 0, 1, 1], [], []>} : vector<18x64xf32>, vector<64x32xf32>, vector<18x32xf32> -> vector<18x32xf32>
    %281 = arith.addf %244, %280 : vector<18x32xf32>
    %c0_124 = arith.constant 0 : index
    %c0_125 = arith.constant 0 : index
    %282 = vector.load %arg13[%c0_124, %c0_125] : memref<1x32xf32, #tpu.memory_space<vmem>>, vector<1x32xf32>
    %283 = arith.mulf %281, %281 : vector<18x32xf32>
    %cst_126 = arith.constant dense<0.000000e+00> : vector<18xf32>
    %284 = vector.multi_reduction <add>, %283, %cst_126 [1] : vector<18x32xf32> to vector<18xf32>
    %285 = vector.shape_cast %284 : vector<18xf32> to vector<18x1xf32>
    %cst_127 = arith.constant 3.200000e+01 : f32
    %286 = vector.broadcast %cst_127 : f32 to vector<18x1xf32>
    %287 = arith.divf %285, %286 : vector<18x1xf32>
    %cst_128 = arith.constant 9.99999997E-7 : f32
    %288 = vector.broadcast %cst_128 : f32 to vector<18x1xf32>
    %289 = arith.addf %287, %288 : vector<18x1xf32>
    %290 = math.rsqrt %289 : vector<18x1xf32>
    %291 = vector.broadcast %290 : vector<18x1xf32> to vector<18x32xf32>
    %292 = arith.mulf %281, %291 : vector<18x32xf32>
    %293 = vector.broadcast %282 : vector<1x32xf32> to vector<18x32xf32>
    %294 = arith.mulf %292, %293 : vector<18x32xf32>
    %c0_129 = arith.constant 0 : index
    %c0_130 = arith.constant 0 : index
    %295 = vector.load %arg14[%c0_129, %c0_130] : memref<16x32xf32, #tpu.memory_space<vmem>>, vector<16x32xf32>
    %c0_131 = arith.constant 0 : index
    %c0_132 = arith.constant 0 : index
    %c0_133 = arith.constant 0 : index
    %296 = vector.load %arg15[%c0_131, %c0_132, %c0_133] : memref<2x1x32xf32, #tpu.memory_space<vmem>>, vector<1x1x32xf32>
    %297 = vector.shape_cast %296 : vector<1x1x32xf32> to vector<1x32xf32>
    %298 = arith.mulf %295, %295 : vector<16x32xf32>
    %cst_134 = arith.constant dense<0.000000e+00> : vector<16xf32>
    %299 = vector.multi_reduction <add>, %298, %cst_134 [1] : vector<16x32xf32> to vector<16xf32>
    %300 = vector.shape_cast %299 : vector<16xf32> to vector<16x1xf32>
    %cst_135 = arith.constant 3.200000e+01 : f32
    %301 = vector.broadcast %cst_135 : f32 to vector<16x1xf32>
    %302 = arith.divf %300, %301 : vector<16x1xf32>
    %cst_136 = arith.constant 9.99999997E-7 : f32
    %303 = vector.broadcast %cst_136 : f32 to vector<16x1xf32>
    %304 = arith.addf %302, %303 : vector<16x1xf32>
    %305 = math.rsqrt %304 : vector<16x1xf32>
    %306 = vector.broadcast %305 : vector<16x1xf32> to vector<16x32xf32>
    %307 = arith.mulf %295, %306 : vector<16x32xf32>
    %308 = vector.broadcast %297 : vector<1x32xf32> to vector<16x32xf32>
    %309 = arith.mulf %307, %308 : vector<16x32xf32>
    %c0_137 = arith.constant 0 : index
    %c0_138 = arith.constant 0 : index
    %c0_139 = arith.constant 0 : index
    %310 = vector.load %arg16[%c0_137, %c0_138, %c0_139] : memref<2x32x96xf32, #tpu.memory_space<vmem>>, vector<1x32x96xf32>
    %311 = vector.shape_cast %310 : vector<1x32x96xf32> to vector<32x96xf32>
    %cst_140 = arith.constant dense<0.000000e+00> : vector<16x96xf32>
    %312 = tpu.matmul %309, %311, %cst_140 {dimension_numbers = #tpu.dot_dimension_numbers<[1], [0], [0], [1], [0, 0, 1, 1], [], []>} : vector<16x32xf32>, vector<32x96xf32>, vector<16x96xf32> -> vector<16x96xf32>
    %313 = vector.extract_strided_slice %312 {offsets = [0, 0], sizes = [16, 32], strides = [1, 1]} : vector<16x96xf32> to vector<16x32xf32>
    %314 = vector.extract_strided_slice %312 {offsets = [0, 32], sizes = [16, 32], strides = [1, 1]} : vector<16x96xf32> to vector<16x32xf32>
    %315 = vector.extract_strided_slice %312 {offsets = [0, 64], sizes = [16, 32], strides = [1, 1]} : vector<16x96xf32> to vector<16x32xf32>
    %316 = vector.extract_strided_slice %313 {offsets = [0, 0], sizes = [16, 8], strides = [1, 1]} : vector<16x32xf32> to vector<16x8xf32>
    %317 = vector.extract_strided_slice %314 {offsets = [0, 0], sizes = [16, 8], strides = [1, 1]} : vector<16x32xf32> to vector<16x8xf32>
    %318 = vector.extract_strided_slice %315 {offsets = [0, 0], sizes = [16, 8], strides = [1, 1]} : vector<16x32xf32> to vector<16x8xf32>
    %cst_141 = arith.constant dense<0.000000e+00> : vector<16x16xf32>
    %319 = tpu.matmul %316, %317, %cst_141 {dimension_numbers = #tpu.dot_dimension_numbers<[1], [1], [0], [0], [0, 0, 1, 0], [], []>} : vector<16x8xf32>, vector<16x8xf32>, vector<16x16xf32> -> vector<16x16xf32>
    %c0_142 = arith.constant 0 : index
    %c0_143 = arith.constant 0 : index
    %c0_144 = arith.constant 0 : index
    %320 = vector.load %arg5[%c0_142, %c0_143, %c0_144] : memref<4x16x16xf32, #tpu.memory_space<vmem>>, vector<1x16x16xf32>
    %321 = vector.shape_cast %320 : vector<1x16x16xf32> to vector<16x16xf32>
    %322 = arith.addf %319, %321 : vector<16x16xf32>
    %cst_145 = arith.constant dense<0xFF800000> : vector<16xf32>
    %323 = vector.multi_reduction <maximumf>, %322, %cst_145 [1] : vector<16x16xf32> to vector<16xf32>
    %324 = vector.shape_cast %323 : vector<16xf32> to vector<16x1xf32>
    %325 = vector.broadcast %324 : vector<16x1xf32> to vector<16x16xf32>
    %326 = arith.subf %322, %325 : vector<16x16xf32>
    %327 = math.exp %326 : vector<16x16xf32>
    %cst_146 = arith.constant dense<0.000000e+00> : vector<16xf32>
    %328 = vector.multi_reduction <add>, %327, %cst_146 [1] : vector<16x16xf32> to vector<16xf32>
    %329 = vector.shape_cast %328 : vector<16xf32> to vector<16x1xf32>
    %330 = tpu.reciprocal %329 {approx = true} : vector<16x1xf32> -> vector<16x1xf32>
    %331 = vector.broadcast %330 : vector<16x1xf32> to vector<16x16xf32>
    %332 = arith.mulf %327, %331 : vector<16x16xf32>
    %cst_147 = arith.constant dense<0.000000e+00> : vector<16x8xf32>
    %333 = tpu.matmul %332, %318, %cst_147 {dimension_numbers = #tpu.dot_dimension_numbers<[1], [0], [0], [1], [0, 0, 1, 1], [], []>} : vector<16x16xf32>, vector<16x8xf32>, vector<16x8xf32> -> vector<16x8xf32>
    %334 = vector.extract_strided_slice %313 {offsets = [0, 8], sizes = [16, 8], strides = [1, 1]} : vector<16x32xf32> to vector<16x8xf32>
    %335 = vector.extract_strided_slice %314 {offsets = [0, 8], sizes = [16, 8], strides = [1, 1]} : vector<16x32xf32> to vector<16x8xf32>
    %336 = vector.extract_strided_slice %315 {offsets = [0, 8], sizes = [16, 8], strides = [1, 1]} : vector<16x32xf32> to vector<16x8xf32>
    %cst_148 = arith.constant dense<0.000000e+00> : vector<16x16xf32>
    %337 = tpu.matmul %334, %335, %cst_148 {dimension_numbers = #tpu.dot_dimension_numbers<[1], [1], [0], [0], [0, 0, 1, 0], [], []>} : vector<16x8xf32>, vector<16x8xf32>, vector<16x16xf32> -> vector<16x16xf32>
    %c1_149 = arith.constant 1 : index
    %c0_150 = arith.constant 0 : index
    %c0_151 = arith.constant 0 : index
    %338 = vector.load %arg5[%c1_149, %c0_150, %c0_151] : memref<4x16x16xf32, #tpu.memory_space<vmem>>, vector<1x16x16xf32>
    %339 = vector.shape_cast %338 : vector<1x16x16xf32> to vector<16x16xf32>
    %340 = arith.addf %337, %339 : vector<16x16xf32>
    %cst_152 = arith.constant dense<0xFF800000> : vector<16xf32>
    %341 = vector.multi_reduction <maximumf>, %340, %cst_152 [1] : vector<16x16xf32> to vector<16xf32>
    %342 = vector.shape_cast %341 : vector<16xf32> to vector<16x1xf32>
    %343 = vector.broadcast %342 : vector<16x1xf32> to vector<16x16xf32>
    %344 = arith.subf %340, %343 : vector<16x16xf32>
    %345 = math.exp %344 : vector<16x16xf32>
    %cst_153 = arith.constant dense<0.000000e+00> : vector<16xf32>
    %346 = vector.multi_reduction <add>, %345, %cst_153 [1] : vector<16x16xf32> to vector<16xf32>
    %347 = vector.shape_cast %346 : vector<16xf32> to vector<16x1xf32>
    %348 = tpu.reciprocal %347 {approx = true} : vector<16x1xf32> -> vector<16x1xf32>
    %349 = vector.broadcast %348 : vector<16x1xf32> to vector<16x16xf32>
    %350 = arith.mulf %345, %349 : vector<16x16xf32>
    %cst_154 = arith.constant dense<0.000000e+00> : vector<16x8xf32>
    %351 = tpu.matmul %350, %336, %cst_154 {dimension_numbers = #tpu.dot_dimension_numbers<[1], [0], [0], [1], [0, 0, 1, 1], [], []>} : vector<16x16xf32>, vector<16x8xf32>, vector<16x8xf32> -> vector<16x8xf32>
    %352 = vector.extract_strided_slice %313 {offsets = [0, 16], sizes = [16, 8], strides = [1, 1]} : vector<16x32xf32> to vector<16x8xf32>
    %353 = vector.extract_strided_slice %314 {offsets = [0, 16], sizes = [16, 8], strides = [1, 1]} : vector<16x32xf32> to vector<16x8xf32>
    %354 = vector.extract_strided_slice %315 {offsets = [0, 16], sizes = [16, 8], strides = [1, 1]} : vector<16x32xf32> to vector<16x8xf32>
    %cst_155 = arith.constant dense<0.000000e+00> : vector<16x16xf32>
    %355 = tpu.matmul %352, %353, %cst_155 {dimension_numbers = #tpu.dot_dimension_numbers<[1], [1], [0], [0], [0, 0, 1, 0], [], []>} : vector<16x8xf32>, vector<16x8xf32>, vector<16x16xf32> -> vector<16x16xf32>
    %c2_156 = arith.constant 2 : index
    %c0_157 = arith.constant 0 : index
    %c0_158 = arith.constant 0 : index
    %356 = vector.load %arg5[%c2_156, %c0_157, %c0_158] : memref<4x16x16xf32, #tpu.memory_space<vmem>>, vector<1x16x16xf32>
    %357 = vector.shape_cast %356 : vector<1x16x16xf32> to vector<16x16xf32>
    %358 = arith.addf %355, %357 : vector<16x16xf32>
    %cst_159 = arith.constant dense<0xFF800000> : vector<16xf32>
    %359 = vector.multi_reduction <maximumf>, %358, %cst_159 [1] : vector<16x16xf32> to vector<16xf32>
    %360 = vector.shape_cast %359 : vector<16xf32> to vector<16x1xf32>
    %361 = vector.broadcast %360 : vector<16x1xf32> to vector<16x16xf32>
    %362 = arith.subf %358, %361 : vector<16x16xf32>
    %363 = math.exp %362 : vector<16x16xf32>
    %cst_160 = arith.constant dense<0.000000e+00> : vector<16xf32>
    %364 = vector.multi_reduction <add>, %363, %cst_160 [1] : vector<16x16xf32> to vector<16xf32>
    %365 = vector.shape_cast %364 : vector<16xf32> to vector<16x1xf32>
    %366 = tpu.reciprocal %365 {approx = true} : vector<16x1xf32> -> vector<16x1xf32>
    %367 = vector.broadcast %366 : vector<16x1xf32> to vector<16x16xf32>
    %368 = arith.mulf %363, %367 : vector<16x16xf32>
    %cst_161 = arith.constant dense<0.000000e+00> : vector<16x8xf32>
    %369 = tpu.matmul %368, %354, %cst_161 {dimension_numbers = #tpu.dot_dimension_numbers<[1], [0], [0], [1], [0, 0, 1, 1], [], []>} : vector<16x16xf32>, vector<16x8xf32>, vector<16x8xf32> -> vector<16x8xf32>
    %370 = vector.extract_strided_slice %313 {offsets = [0, 24], sizes = [16, 8], strides = [1, 1]} : vector<16x32xf32> to vector<16x8xf32>
    %371 = vector.extract_strided_slice %314 {offsets = [0, 24], sizes = [16, 8], strides = [1, 1]} : vector<16x32xf32> to vector<16x8xf32>
    %372 = vector.extract_strided_slice %315 {offsets = [0, 24], sizes = [16, 8], strides = [1, 1]} : vector<16x32xf32> to vector<16x8xf32>
    %cst_162 = arith.constant dense<0.000000e+00> : vector<16x16xf32>
    %373 = tpu.matmul %370, %371, %cst_162 {dimension_numbers = #tpu.dot_dimension_numbers<[1], [1], [0], [0], [0, 0, 1, 0], [], []>} : vector<16x8xf32>, vector<16x8xf32>, vector<16x16xf32> -> vector<16x16xf32>
    %c3_163 = arith.constant 3 : index
    %c0_164 = arith.constant 0 : index
    %c0_165 = arith.constant 0 : index
    %374 = vector.load %arg5[%c3_163, %c0_164, %c0_165] : memref<4x16x16xf32, #tpu.memory_space<vmem>>, vector<1x16x16xf32>
    %375 = vector.shape_cast %374 : vector<1x16x16xf32> to vector<16x16xf32>
    %376 = arith.addf %373, %375 : vector<16x16xf32>
    %cst_166 = arith.constant dense<0xFF800000> : vector<16xf32>
    %377 = vector.multi_reduction <maximumf>, %376, %cst_166 [1] : vector<16x16xf32> to vector<16xf32>
    %378 = vector.shape_cast %377 : vector<16xf32> to vector<16x1xf32>
    %379 = vector.broadcast %378 : vector<16x1xf32> to vector<16x16xf32>
    %380 = arith.subf %376, %379 : vector<16x16xf32>
    %381 = math.exp %380 : vector<16x16xf32>
    %cst_167 = arith.constant dense<0.000000e+00> : vector<16xf32>
    %382 = vector.multi_reduction <add>, %381, %cst_167 [1] : vector<16x16xf32> to vector<16xf32>
    %383 = vector.shape_cast %382 : vector<16xf32> to vector<16x1xf32>
    %384 = tpu.reciprocal %383 {approx = true} : vector<16x1xf32> -> vector<16x1xf32>
    %385 = vector.broadcast %384 : vector<16x1xf32> to vector<16x16xf32>
    %386 = arith.mulf %381, %385 : vector<16x16xf32>
    %cst_168 = arith.constant dense<0.000000e+00> : vector<16x8xf32>
    %387 = tpu.matmul %386, %372, %cst_168 {dimension_numbers = #tpu.dot_dimension_numbers<[1], [0], [0], [1], [0, 0, 1, 1], [], []>} : vector<16x16xf32>, vector<16x8xf32>, vector<16x8xf32> -> vector<16x8xf32>
    %388 = tpu.concatenate %333, %351, %369, %387 in 1 : vector<16x8xf32>, vector<16x8xf32>, vector<16x8xf32>, vector<16x8xf32> -> vector<16x32xf32>
    %c0_169 = arith.constant 0 : index
    %c0_170 = arith.constant 0 : index
    %c0_171 = arith.constant 0 : index
    %389 = vector.load %arg17[%c0_169, %c0_170, %c0_171] : memref<2x32x32xf32, #tpu.memory_space<vmem>>, vector<1x32x32xf32>
    %390 = vector.shape_cast %389 : vector<1x32x32xf32> to vector<32x32xf32>
    %cst_172 = arith.constant dense<0.000000e+00> : vector<16x32xf32>
    %391 = tpu.matmul %388, %390, %cst_172 {dimension_numbers = #tpu.dot_dimension_numbers<[1], [0], [0], [1], [0, 0, 1, 1], [], []>} : vector<16x32xf32>, vector<32x32xf32>, vector<16x32xf32> -> vector<16x32xf32>
    %392 = arith.addf %295, %391 : vector<16x32xf32>
    %c0_173 = arith.constant 0 : index
    %c0_174 = arith.constant 0 : index
    %c0_175 = arith.constant 0 : index
    %393 = vector.load %arg18[%c0_173, %c0_174, %c0_175] : memref<2x1x32xf32, #tpu.memory_space<vmem>>, vector<1x1x32xf32>
    %394 = vector.shape_cast %393 : vector<1x1x32xf32> to vector<1x32xf32>
    %395 = arith.mulf %392, %392 : vector<16x32xf32>
    %cst_176 = arith.constant dense<0.000000e+00> : vector<16xf32>
    %396 = vector.multi_reduction <add>, %395, %cst_176 [1] : vector<16x32xf32> to vector<16xf32>
    %397 = vector.shape_cast %396 : vector<16xf32> to vector<16x1xf32>
    %cst_177 = arith.constant 3.200000e+01 : f32
    %398 = vector.broadcast %cst_177 : f32 to vector<16x1xf32>
    %399 = arith.divf %397, %398 : vector<16x1xf32>
    %cst_178 = arith.constant 9.99999997E-7 : f32
    %400 = vector.broadcast %cst_178 : f32 to vector<16x1xf32>
    %401 = arith.addf %399, %400 : vector<16x1xf32>
    %402 = math.rsqrt %401 : vector<16x1xf32>
    %403 = vector.broadcast %402 : vector<16x1xf32> to vector<16x32xf32>
    %404 = arith.mulf %392, %403 : vector<16x32xf32>
    %405 = vector.broadcast %394 : vector<1x32xf32> to vector<16x32xf32>
    %406 = arith.mulf %404, %405 : vector<16x32xf32>
    %c0_179 = arith.constant 0 : index
    %c0_180 = arith.constant 0 : index
    %c0_181 = arith.constant 0 : index
    %407 = vector.load %arg19[%c0_179, %c0_180, %c0_181] : memref<2x32x32xf32, #tpu.memory_space<vmem>>, vector<1x32x32xf32>
    %408 = vector.shape_cast %407 : vector<1x32x32xf32> to vector<32x32xf32>
    %cst_182 = arith.constant dense<0.000000e+00> : vector<16x32xf32>
    %409 = tpu.matmul %406, %408, %cst_182 {dimension_numbers = #tpu.dot_dimension_numbers<[1], [0], [0], [1], [0, 0, 1, 1], [], []>} : vector<16x32xf32>, vector<32x32xf32>, vector<16x32xf32> -> vector<16x32xf32>
    %c0_183 = arith.constant 0 : index
    %c0_184 = arith.constant 0 : index
    %c0_185 = arith.constant 0 : index
    %410 = vector.load %arg20[%c0_183, %c0_184, %c0_185] : memref<2x32x64xf32, #tpu.memory_space<vmem>>, vector<1x32x64xf32>
    %411 = vector.shape_cast %410 : vector<1x32x64xf32> to vector<32x64xf32>
    %cst_186 = arith.constant dense<0.000000e+00> : vector<18x64xf32>
    %412 = tpu.matmul %294, %411, %cst_186 {dimension_numbers = #tpu.dot_dimension_numbers<[1], [0], [0], [1], [0, 0, 1, 1], [], []>} : vector<18x32xf32>, vector<32x64xf32>, vector<18x64xf32> -> vector<18x64xf32>
    %413 = vector.extract_strided_slice %412 {offsets = [0, 0], sizes = [18, 32], strides = [1, 1]} : vector<18x64xf32> to vector<18x32xf32>
    %414 = vector.extract_strided_slice %412 {offsets = [0, 32], sizes = [18, 32], strides = [1, 1]} : vector<18x64xf32> to vector<18x32xf32>
    %415 = vector.extract_strided_slice %409 {offsets = [0, 0], sizes = [16, 8], strides = [1, 1]} : vector<16x32xf32> to vector<16x8xf32>
    %416 = vector.extract_strided_slice %413 {offsets = [0, 0], sizes = [18, 8], strides = [1, 1]} : vector<18x32xf32> to vector<18x8xf32>
    %417 = vector.extract_strided_slice %414 {offsets = [0, 0], sizes = [18, 8], strides = [1, 1]} : vector<18x32xf32> to vector<18x8xf32>
    %cst_187 = arith.constant dense<0.000000e+00> : vector<16x18xf32>
    %418 = tpu.matmul %415, %416, %cst_187 {dimension_numbers = #tpu.dot_dimension_numbers<[1], [1], [0], [0], [0, 0, 1, 0], [], []>} : vector<16x8xf32>, vector<18x8xf32>, vector<16x18xf32> -> vector<16x18xf32>
    %c0_188 = arith.constant 0 : index
    %c0_189 = arith.constant 0 : index
    %c0_190 = arith.constant 0 : index
    %419 = vector.load %arg6[%c0_188, %c0_189, %c0_190] : memref<1x16x18xf32, #tpu.memory_space<vmem>>, vector<1x16x18xf32>
    %420 = vector.shape_cast %419 : vector<1x16x18xf32> to vector<16x18xf32>
    %421 = arith.addf %418, %420 : vector<16x18xf32>
    %cst_191 = arith.constant dense<0xFF800000> : vector<16xf32>
    %422 = vector.multi_reduction <maximumf>, %421, %cst_191 [1] : vector<16x18xf32> to vector<16xf32>
    %423 = vector.shape_cast %422 : vector<16xf32> to vector<16x1xf32>
    %424 = vector.broadcast %423 : vector<16x1xf32> to vector<16x18xf32>
    %425 = arith.subf %421, %424 : vector<16x18xf32>
    %426 = math.exp %425 : vector<16x18xf32>
    %cst_192 = arith.constant dense<0.000000e+00> : vector<16xf32>
    %427 = vector.multi_reduction <add>, %426, %cst_192 [1] : vector<16x18xf32> to vector<16xf32>
    %428 = vector.shape_cast %427 : vector<16xf32> to vector<16x1xf32>
    %429 = tpu.reciprocal %428 {approx = true} : vector<16x1xf32> -> vector<16x1xf32>
    %430 = vector.broadcast %429 : vector<16x1xf32> to vector<16x18xf32>
    %431 = arith.mulf %426, %430 : vector<16x18xf32>
    %cst_193 = arith.constant dense<0.000000e+00> : vector<16x8xf32>
    %432 = tpu.matmul %431, %417, %cst_193 {dimension_numbers = #tpu.dot_dimension_numbers<[1], [0], [0], [1], [0, 0, 1, 1], [], []>} : vector<16x18xf32>, vector<18x8xf32>, vector<16x8xf32> -> vector<16x8xf32>
    %433 = vector.extract_strided_slice %409 {offsets = [0, 8], sizes = [16, 8], strides = [1, 1]} : vector<16x32xf32> to vector<16x8xf32>
    %434 = vector.extract_strided_slice %413 {offsets = [0, 8], sizes = [18, 8], strides = [1, 1]} : vector<18x32xf32> to vector<18x8xf32>
    %435 = vector.extract_strided_slice %414 {offsets = [0, 8], sizes = [18, 8], strides = [1, 1]} : vector<18x32xf32> to vector<18x8xf32>
    %cst_194 = arith.constant dense<0.000000e+00> : vector<16x18xf32>
    %436 = tpu.matmul %433, %434, %cst_194 {dimension_numbers = #tpu.dot_dimension_numbers<[1], [1], [0], [0], [0, 0, 1, 0], [], []>} : vector<16x8xf32>, vector<18x8xf32>, vector<16x18xf32> -> vector<16x18xf32>
    %c0_195 = arith.constant 0 : index
    %c0_196 = arith.constant 0 : index
    %c0_197 = arith.constant 0 : index
    %437 = vector.load %arg6[%c0_195, %c0_196, %c0_197] : memref<1x16x18xf32, #tpu.memory_space<vmem>>, vector<1x16x18xf32>
    %438 = vector.shape_cast %437 : vector<1x16x18xf32> to vector<16x18xf32>
    %439 = arith.addf %436, %438 : vector<16x18xf32>
    %cst_198 = arith.constant dense<0xFF800000> : vector<16xf32>
    %440 = vector.multi_reduction <maximumf>, %439, %cst_198 [1] : vector<16x18xf32> to vector<16xf32>
    %441 = vector.shape_cast %440 : vector<16xf32> to vector<16x1xf32>
    %442 = vector.broadcast %441 : vector<16x1xf32> to vector<16x18xf32>
    %443 = arith.subf %439, %442 : vector<16x18xf32>
    %444 = math.exp %443 : vector<16x18xf32>
    %cst_199 = arith.constant dense<0.000000e+00> : vector<16xf32>
    %445 = vector.multi_reduction <add>, %444, %cst_199 [1] : vector<16x18xf32> to vector<16xf32>
    %446 = vector.shape_cast %445 : vector<16xf32> to vector<16x1xf32>
    %447 = tpu.reciprocal %446 {approx = true} : vector<16x1xf32> -> vector<16x1xf32>
    %448 = vector.broadcast %447 : vector<16x1xf32> to vector<16x18xf32>
    %449 = arith.mulf %444, %448 : vector<16x18xf32>
    %cst_200 = arith.constant dense<0.000000e+00> : vector<16x8xf32>
    %450 = tpu.matmul %449, %435, %cst_200 {dimension_numbers = #tpu.dot_dimension_numbers<[1], [0], [0], [1], [0, 0, 1, 1], [], []>} : vector<16x18xf32>, vector<18x8xf32>, vector<16x8xf32> -> vector<16x8xf32>
    %451 = vector.extract_strided_slice %409 {offsets = [0, 16], sizes = [16, 8], strides = [1, 1]} : vector<16x32xf32> to vector<16x8xf32>
    %452 = vector.extract_strided_slice %413 {offsets = [0, 16], sizes = [18, 8], strides = [1, 1]} : vector<18x32xf32> to vector<18x8xf32>
    %453 = vector.extract_strided_slice %414 {offsets = [0, 16], sizes = [18, 8], strides = [1, 1]} : vector<18x32xf32> to vector<18x8xf32>
    %cst_201 = arith.constant dense<0.000000e+00> : vector<16x18xf32>
    %454 = tpu.matmul %451, %452, %cst_201 {dimension_numbers = #tpu.dot_dimension_numbers<[1], [1], [0], [0], [0, 0, 1, 0], [], []>} : vector<16x8xf32>, vector<18x8xf32>, vector<16x18xf32> -> vector<16x18xf32>
    %c0_202 = arith.constant 0 : index
    %c0_203 = arith.constant 0 : index
    %c0_204 = arith.constant 0 : index
    %455 = vector.load %arg6[%c0_202, %c0_203, %c0_204] : memref<1x16x18xf32, #tpu.memory_space<vmem>>, vector<1x16x18xf32>
    %456 = vector.shape_cast %455 : vector<1x16x18xf32> to vector<16x18xf32>
    %457 = arith.addf %454, %456 : vector<16x18xf32>
    %cst_205 = arith.constant dense<0xFF800000> : vector<16xf32>
    %458 = vector.multi_reduction <maximumf>, %457, %cst_205 [1] : vector<16x18xf32> to vector<16xf32>
    %459 = vector.shape_cast %458 : vector<16xf32> to vector<16x1xf32>
    %460 = vector.broadcast %459 : vector<16x1xf32> to vector<16x18xf32>
    %461 = arith.subf %457, %460 : vector<16x18xf32>
    %462 = math.exp %461 : vector<16x18xf32>
    %cst_206 = arith.constant dense<0.000000e+00> : vector<16xf32>
    %463 = vector.multi_reduction <add>, %462, %cst_206 [1] : vector<16x18xf32> to vector<16xf32>
    %464 = vector.shape_cast %463 : vector<16xf32> to vector<16x1xf32>
    %465 = tpu.reciprocal %464 {approx = true} : vector<16x1xf32> -> vector<16x1xf32>
    %466 = vector.broadcast %465 : vector<16x1xf32> to vector<16x18xf32>
    %467 = arith.mulf %462, %466 : vector<16x18xf32>
    %cst_207 = arith.constant dense<0.000000e+00> : vector<16x8xf32>
    %468 = tpu.matmul %467, %453, %cst_207 {dimension_numbers = #tpu.dot_dimension_numbers<[1], [0], [0], [1], [0, 0, 1, 1], [], []>} : vector<16x18xf32>, vector<18x8xf32>, vector<16x8xf32> -> vector<16x8xf32>
    %469 = vector.extract_strided_slice %409 {offsets = [0, 24], sizes = [16, 8], strides = [1, 1]} : vector<16x32xf32> to vector<16x8xf32>
    %470 = vector.extract_strided_slice %413 {offsets = [0, 24], sizes = [18, 8], strides = [1, 1]} : vector<18x32xf32> to vector<18x8xf32>
    %471 = vector.extract_strided_slice %414 {offsets = [0, 24], sizes = [18, 8], strides = [1, 1]} : vector<18x32xf32> to vector<18x8xf32>
    %cst_208 = arith.constant dense<0.000000e+00> : vector<16x18xf32>
    %472 = tpu.matmul %469, %470, %cst_208 {dimension_numbers = #tpu.dot_dimension_numbers<[1], [1], [0], [0], [0, 0, 1, 0], [], []>} : vector<16x8xf32>, vector<18x8xf32>, vector<16x18xf32> -> vector<16x18xf32>
    %c0_209 = arith.constant 0 : index
    %c0_210 = arith.constant 0 : index
    %c0_211 = arith.constant 0 : index
    %473 = vector.load %arg6[%c0_209, %c0_210, %c0_211] : memref<1x16x18xf32, #tpu.memory_space<vmem>>, vector<1x16x18xf32>
    %474 = vector.shape_cast %473 : vector<1x16x18xf32> to vector<16x18xf32>
    %475 = arith.addf %472, %474 : vector<16x18xf32>
    %cst_212 = arith.constant dense<0xFF800000> : vector<16xf32>
    %476 = vector.multi_reduction <maximumf>, %475, %cst_212 [1] : vector<16x18xf32> to vector<16xf32>
    %477 = vector.shape_cast %476 : vector<16xf32> to vector<16x1xf32>
    %478 = vector.broadcast %477 : vector<16x1xf32> to vector<16x18xf32>
    %479 = arith.subf %475, %478 : vector<16x18xf32>
    %480 = math.exp %479 : vector<16x18xf32>
    %cst_213 = arith.constant dense<0.000000e+00> : vector<16xf32>
    %481 = vector.multi_reduction <add>, %480, %cst_213 [1] : vector<16x18xf32> to vector<16xf32>
    %482 = vector.shape_cast %481 : vector<16xf32> to vector<16x1xf32>
    %483 = tpu.reciprocal %482 {approx = true} : vector<16x1xf32> -> vector<16x1xf32>
    %484 = vector.broadcast %483 : vector<16x1xf32> to vector<16x18xf32>
    %485 = arith.mulf %480, %484 : vector<16x18xf32>
    %cst_214 = arith.constant dense<0.000000e+00> : vector<16x8xf32>
    %486 = tpu.matmul %485, %471, %cst_214 {dimension_numbers = #tpu.dot_dimension_numbers<[1], [0], [0], [1], [0, 0, 1, 1], [], []>} : vector<16x18xf32>, vector<18x8xf32>, vector<16x8xf32> -> vector<16x8xf32>
    %487 = tpu.concatenate %432, %450, %468, %486 in 1 : vector<16x8xf32>, vector<16x8xf32>, vector<16x8xf32>, vector<16x8xf32> -> vector<16x32xf32>
    %c0_215 = arith.constant 0 : index
    %c0_216 = arith.constant 0 : index
    %c0_217 = arith.constant 0 : index
    %488 = vector.load %arg21[%c0_215, %c0_216, %c0_217] : memref<2x32x32xf32, #tpu.memory_space<vmem>>, vector<1x32x32xf32>
    %489 = vector.shape_cast %488 : vector<1x32x32xf32> to vector<32x32xf32>
    %cst_218 = arith.constant dense<0.000000e+00> : vector<16x32xf32>
    %490 = tpu.matmul %487, %489, %cst_218 {dimension_numbers = #tpu.dot_dimension_numbers<[1], [0], [0], [1], [0, 0, 1, 1], [], []>} : vector<16x32xf32>, vector<32x32xf32>, vector<16x32xf32> -> vector<16x32xf32>
    %491 = arith.addf %392, %490 : vector<16x32xf32>
    %c0_219 = arith.constant 0 : index
    %c0_220 = arith.constant 0 : index
    %c0_221 = arith.constant 0 : index
    %492 = vector.load %arg22[%c0_219, %c0_220, %c0_221] : memref<2x1x32xf32, #tpu.memory_space<vmem>>, vector<1x1x32xf32>
    %493 = vector.shape_cast %492 : vector<1x1x32xf32> to vector<1x32xf32>
    %494 = arith.mulf %491, %491 : vector<16x32xf32>
    %cst_222 = arith.constant dense<0.000000e+00> : vector<16xf32>
    %495 = vector.multi_reduction <add>, %494, %cst_222 [1] : vector<16x32xf32> to vector<16xf32>
    %496 = vector.shape_cast %495 : vector<16xf32> to vector<16x1xf32>
    %cst_223 = arith.constant 3.200000e+01 : f32
    %497 = vector.broadcast %cst_223 : f32 to vector<16x1xf32>
    %498 = arith.divf %496, %497 : vector<16x1xf32>
    %cst_224 = arith.constant 9.99999997E-7 : f32
    %499 = vector.broadcast %cst_224 : f32 to vector<16x1xf32>
    %500 = arith.addf %498, %499 : vector<16x1xf32>
    %501 = math.rsqrt %500 : vector<16x1xf32>
    %502 = vector.broadcast %501 : vector<16x1xf32> to vector<16x32xf32>
    %503 = arith.mulf %491, %502 : vector<16x32xf32>
    %504 = vector.broadcast %493 : vector<1x32xf32> to vector<16x32xf32>
    %505 = arith.mulf %503, %504 : vector<16x32xf32>
    %c0_225 = arith.constant 0 : index
    %c0_226 = arith.constant 0 : index
    %c0_227 = arith.constant 0 : index
    %506 = vector.load %arg23[%c0_225, %c0_226, %c0_227] : memref<2x32x128xf32, #tpu.memory_space<vmem>>, vector<1x32x128xf32>
    %507 = vector.shape_cast %506 : vector<1x32x128xf32> to vector<32x128xf32>
    %cst_228 = arith.constant dense<0.000000e+00> : vector<16x128xf32>
    %508 = tpu.matmul %505, %507, %cst_228 {dimension_numbers = #tpu.dot_dimension_numbers<[1], [0], [0], [1], [0, 0, 1, 1], [], []>} : vector<16x32xf32>, vector<32x128xf32>, vector<16x128xf32> -> vector<16x128xf32>
    %509 = vector.extract_strided_slice %508 {offsets = [0, 0], sizes = [16, 64], strides = [1, 1]} : vector<16x128xf32> to vector<16x64xf32>
    %cst_229 = arith.constant 5.000000e-01 : f32
    %510 = vector.broadcast %cst_229 : f32 to vector<16x64xf32>
    %511 = arith.mulf %510, %509 : vector<16x64xf32>
    %cst_230 = arith.constant 4.471500e-02 : f32
    %512 = vector.broadcast %cst_230 : f32 to vector<16x64xf32>
    %513 = arith.mulf %512, %509 : vector<16x64xf32>
    %514 = arith.mulf %513, %509 : vector<16x64xf32>
    %515 = arith.mulf %514, %509 : vector<16x64xf32>
    %516 = arith.addf %509, %515 : vector<16x64xf32>
    %cst_231 = arith.constant 0.797884583 : f32
    %517 = vector.broadcast %cst_231 : f32 to vector<16x64xf32>
    %518 = arith.mulf %517, %516 : vector<16x64xf32>
    %519 = math.tanh %518 : vector<16x64xf32>
    %cst_232 = arith.constant 1.000000e+00 : f32
    %520 = vector.broadcast %cst_232 : f32 to vector<16x64xf32>
    %521 = arith.addf %520, %519 : vector<16x64xf32>
    %522 = arith.mulf %511, %521 : vector<16x64xf32>
    %523 = vector.extract_strided_slice %508 {offsets = [0, 64], sizes = [16, 64], strides = [1, 1]} : vector<16x128xf32> to vector<16x64xf32>
    %524 = arith.mulf %522, %523 : vector<16x64xf32>
    %c0_233 = arith.constant 0 : index
    %c0_234 = arith.constant 0 : index
    %c0_235 = arith.constant 0 : index
    %525 = vector.load %arg24[%c0_233, %c0_234, %c0_235] : memref<2x64x32xf32, #tpu.memory_space<vmem>>, vector<1x64x32xf32>
    %526 = vector.shape_cast %525 : vector<1x64x32xf32> to vector<64x32xf32>
    %cst_236 = arith.constant dense<0.000000e+00> : vector<16x32xf32>
    %527 = tpu.matmul %524, %526, %cst_236 {dimension_numbers = #tpu.dot_dimension_numbers<[1], [0], [0], [1], [0, 0, 1, 1], [], []>} : vector<16x64xf32>, vector<64x32xf32>, vector<16x32xf32> -> vector<16x32xf32>
    %528 = arith.addf %491, %527 : vector<16x32xf32>
    %c1_237 = arith.constant 1 : index
    %c0_238 = arith.constant 0 : index
    %c0_239 = arith.constant 0 : index
    %529 = vector.load %arg15[%c1_237, %c0_238, %c0_239] : memref<2x1x32xf32, #tpu.memory_space<vmem>>, vector<1x1x32xf32>
    %530 = vector.shape_cast %529 : vector<1x1x32xf32> to vector<1x32xf32>
    %531 = arith.mulf %528, %528 : vector<16x32xf32>
    %cst_240 = arith.constant dense<0.000000e+00> : vector<16xf32>
    %532 = vector.multi_reduction <add>, %531, %cst_240 [1] : vector<16x32xf32> to vector<16xf32>
    %533 = vector.shape_cast %532 : vector<16xf32> to vector<16x1xf32>
    %cst_241 = arith.constant 3.200000e+01 : f32
    %534 = vector.broadcast %cst_241 : f32 to vector<16x1xf32>
    %535 = arith.divf %533, %534 : vector<16x1xf32>
    %cst_242 = arith.constant 9.99999997E-7 : f32
    %536 = vector.broadcast %cst_242 : f32 to vector<16x1xf32>
    %537 = arith.addf %535, %536 : vector<16x1xf32>
    %538 = math.rsqrt %537 : vector<16x1xf32>
    %539 = vector.broadcast %538 : vector<16x1xf32> to vector<16x32xf32>
    %540 = arith.mulf %528, %539 : vector<16x32xf32>
    %541 = vector.broadcast %530 : vector<1x32xf32> to vector<16x32xf32>
    %542 = arith.mulf %540, %541 : vector<16x32xf32>
    %c1_243 = arith.constant 1 : index
    %c0_244 = arith.constant 0 : index
    %c0_245 = arith.constant 0 : index
    %543 = vector.load %arg16[%c1_243, %c0_244, %c0_245] : memref<2x32x96xf32, #tpu.memory_space<vmem>>, vector<1x32x96xf32>
    %544 = vector.shape_cast %543 : vector<1x32x96xf32> to vector<32x96xf32>
    %cst_246 = arith.constant dense<0.000000e+00> : vector<16x96xf32>
    %545 = tpu.matmul %542, %544, %cst_246 {dimension_numbers = #tpu.dot_dimension_numbers<[1], [0], [0], [1], [0, 0, 1, 1], [], []>} : vector<16x32xf32>, vector<32x96xf32>, vector<16x96xf32> -> vector<16x96xf32>
    %546 = vector.extract_strided_slice %545 {offsets = [0, 0], sizes = [16, 32], strides = [1, 1]} : vector<16x96xf32> to vector<16x32xf32>
    %547 = vector.extract_strided_slice %545 {offsets = [0, 32], sizes = [16, 32], strides = [1, 1]} : vector<16x96xf32> to vector<16x32xf32>
    %548 = vector.extract_strided_slice %545 {offsets = [0, 64], sizes = [16, 32], strides = [1, 1]} : vector<16x96xf32> to vector<16x32xf32>
    %549 = vector.extract_strided_slice %546 {offsets = [0, 0], sizes = [16, 8], strides = [1, 1]} : vector<16x32xf32> to vector<16x8xf32>
    %550 = vector.extract_strided_slice %547 {offsets = [0, 0], sizes = [16, 8], strides = [1, 1]} : vector<16x32xf32> to vector<16x8xf32>
    %551 = vector.extract_strided_slice %548 {offsets = [0, 0], sizes = [16, 8], strides = [1, 1]} : vector<16x32xf32> to vector<16x8xf32>
    %cst_247 = arith.constant dense<0.000000e+00> : vector<16x16xf32>
    %552 = tpu.matmul %549, %550, %cst_247 {dimension_numbers = #tpu.dot_dimension_numbers<[1], [1], [0], [0], [0, 0, 1, 0], [], []>} : vector<16x8xf32>, vector<16x8xf32>, vector<16x16xf32> -> vector<16x16xf32>
    %c0_248 = arith.constant 0 : index
    %c0_249 = arith.constant 0 : index
    %c0_250 = arith.constant 0 : index
    %553 = vector.load %arg5[%c0_248, %c0_249, %c0_250] : memref<4x16x16xf32, #tpu.memory_space<vmem>>, vector<1x16x16xf32>
    %554 = vector.shape_cast %553 : vector<1x16x16xf32> to vector<16x16xf32>
    %555 = arith.addf %552, %554 : vector<16x16xf32>
    %cst_251 = arith.constant dense<0xFF800000> : vector<16xf32>
    %556 = vector.multi_reduction <maximumf>, %555, %cst_251 [1] : vector<16x16xf32> to vector<16xf32>
    %557 = vector.shape_cast %556 : vector<16xf32> to vector<16x1xf32>
    %558 = vector.broadcast %557 : vector<16x1xf32> to vector<16x16xf32>
    %559 = arith.subf %555, %558 : vector<16x16xf32>
    %560 = math.exp %559 : vector<16x16xf32>
    %cst_252 = arith.constant dense<0.000000e+00> : vector<16xf32>
    %561 = vector.multi_reduction <add>, %560, %cst_252 [1] : vector<16x16xf32> to vector<16xf32>
    %562 = vector.shape_cast %561 : vector<16xf32> to vector<16x1xf32>
    %563 = tpu.reciprocal %562 {approx = true} : vector<16x1xf32> -> vector<16x1xf32>
    %564 = vector.broadcast %563 : vector<16x1xf32> to vector<16x16xf32>
    %565 = arith.mulf %560, %564 : vector<16x16xf32>
    %cst_253 = arith.constant dense<0.000000e+00> : vector<16x8xf32>
    %566 = tpu.matmul %565, %551, %cst_253 {dimension_numbers = #tpu.dot_dimension_numbers<[1], [0], [0], [1], [0, 0, 1, 1], [], []>} : vector<16x16xf32>, vector<16x8xf32>, vector<16x8xf32> -> vector<16x8xf32>
    %567 = vector.extract_strided_slice %546 {offsets = [0, 8], sizes = [16, 8], strides = [1, 1]} : vector<16x32xf32> to vector<16x8xf32>
    %568 = vector.extract_strided_slice %547 {offsets = [0, 8], sizes = [16, 8], strides = [1, 1]} : vector<16x32xf32> to vector<16x8xf32>
    %569 = vector.extract_strided_slice %548 {offsets = [0, 8], sizes = [16, 8], strides = [1, 1]} : vector<16x32xf32> to vector<16x8xf32>
    %cst_254 = arith.constant dense<0.000000e+00> : vector<16x16xf32>
    %570 = tpu.matmul %567, %568, %cst_254 {dimension_numbers = #tpu.dot_dimension_numbers<[1], [1], [0], [0], [0, 0, 1, 0], [], []>} : vector<16x8xf32>, vector<16x8xf32>, vector<16x16xf32> -> vector<16x16xf32>
    %c1_255 = arith.constant 1 : index
    %c0_256 = arith.constant 0 : index
    %c0_257 = arith.constant 0 : index
    %571 = vector.load %arg5[%c1_255, %c0_256, %c0_257] : memref<4x16x16xf32, #tpu.memory_space<vmem>>, vector<1x16x16xf32>
    %572 = vector.shape_cast %571 : vector<1x16x16xf32> to vector<16x16xf32>
    %573 = arith.addf %570, %572 : vector<16x16xf32>
    %cst_258 = arith.constant dense<0xFF800000> : vector<16xf32>
    %574 = vector.multi_reduction <maximumf>, %573, %cst_258 [1] : vector<16x16xf32> to vector<16xf32>
    %575 = vector.shape_cast %574 : vector<16xf32> to vector<16x1xf32>
    %576 = vector.broadcast %575 : vector<16x1xf32> to vector<16x16xf32>
    %577 = arith.subf %573, %576 : vector<16x16xf32>
    %578 = math.exp %577 : vector<16x16xf32>
    %cst_259 = arith.constant dense<0.000000e+00> : vector<16xf32>
    %579 = vector.multi_reduction <add>, %578, %cst_259 [1] : vector<16x16xf32> to vector<16xf32>
    %580 = vector.shape_cast %579 : vector<16xf32> to vector<16x1xf32>
    %581 = tpu.reciprocal %580 {approx = true} : vector<16x1xf32> -> vector<16x1xf32>
    %582 = vector.broadcast %581 : vector<16x1xf32> to vector<16x16xf32>
    %583 = arith.mulf %578, %582 : vector<16x16xf32>
    %cst_260 = arith.constant dense<0.000000e+00> : vector<16x8xf32>
    %584 = tpu.matmul %583, %569, %cst_260 {dimension_numbers = #tpu.dot_dimension_numbers<[1], [0], [0], [1], [0, 0, 1, 1], [], []>} : vector<16x16xf32>, vector<16x8xf32>, vector<16x8xf32> -> vector<16x8xf32>
    %585 = vector.extract_strided_slice %546 {offsets = [0, 16], sizes = [16, 8], strides = [1, 1]} : vector<16x32xf32> to vector<16x8xf32>
    %586 = vector.extract_strided_slice %547 {offsets = [0, 16], sizes = [16, 8], strides = [1, 1]} : vector<16x32xf32> to vector<16x8xf32>
    %587 = vector.extract_strided_slice %548 {offsets = [0, 16], sizes = [16, 8], strides = [1, 1]} : vector<16x32xf32> to vector<16x8xf32>
    %cst_261 = arith.constant dense<0.000000e+00> : vector<16x16xf32>
    %588 = tpu.matmul %585, %586, %cst_261 {dimension_numbers = #tpu.dot_dimension_numbers<[1], [1], [0], [0], [0, 0, 1, 0], [], []>} : vector<16x8xf32>, vector<16x8xf32>, vector<16x16xf32> -> vector<16x16xf32>
    %c2_262 = arith.constant 2 : index
    %c0_263 = arith.constant 0 : index
    %c0_264 = arith.constant 0 : index
    %589 = vector.load %arg5[%c2_262, %c0_263, %c0_264] : memref<4x16x16xf32, #tpu.memory_space<vmem>>, vector<1x16x16xf32>
    %590 = vector.shape_cast %589 : vector<1x16x16xf32> to vector<16x16xf32>
    %591 = arith.addf %588, %590 : vector<16x16xf32>
    %cst_265 = arith.constant dense<0xFF800000> : vector<16xf32>
    %592 = vector.multi_reduction <maximumf>, %591, %cst_265 [1] : vector<16x16xf32> to vector<16xf32>
    %593 = vector.shape_cast %592 : vector<16xf32> to vector<16x1xf32>
    %594 = vector.broadcast %593 : vector<16x1xf32> to vector<16x16xf32>
    %595 = arith.subf %591, %594 : vector<16x16xf32>
    %596 = math.exp %595 : vector<16x16xf32>
    %cst_266 = arith.constant dense<0.000000e+00> : vector<16xf32>
    %597 = vector.multi_reduction <add>, %596, %cst_266 [1] : vector<16x16xf32> to vector<16xf32>
    %598 = vector.shape_cast %597 : vector<16xf32> to vector<16x1xf32>
    %599 = tpu.reciprocal %598 {approx = true} : vector<16x1xf32> -> vector<16x1xf32>
    %600 = vector.broadcast %599 : vector<16x1xf32> to vector<16x16xf32>
    %601 = arith.mulf %596, %600 : vector<16x16xf32>
    %cst_267 = arith.constant dense<0.000000e+00> : vector<16x8xf32>
    %602 = tpu.matmul %601, %587, %cst_267 {dimension_numbers = #tpu.dot_dimension_numbers<[1], [0], [0], [1], [0, 0, 1, 1], [], []>} : vector<16x16xf32>, vector<16x8xf32>, vector<16x8xf32> -> vector<16x8xf32>
    %603 = vector.extract_strided_slice %546 {offsets = [0, 24], sizes = [16, 8], strides = [1, 1]} : vector<16x32xf32> to vector<16x8xf32>
    %604 = vector.extract_strided_slice %547 {offsets = [0, 24], sizes = [16, 8], strides = [1, 1]} : vector<16x32xf32> to vector<16x8xf32>
    %605 = vector.extract_strided_slice %548 {offsets = [0, 24], sizes = [16, 8], strides = [1, 1]} : vector<16x32xf32> to vector<16x8xf32>
    %cst_268 = arith.constant dense<0.000000e+00> : vector<16x16xf32>
    %606 = tpu.matmul %603, %604, %cst_268 {dimension_numbers = #tpu.dot_dimension_numbers<[1], [1], [0], [0], [0, 0, 1, 0], [], []>} : vector<16x8xf32>, vector<16x8xf32>, vector<16x16xf32> -> vector<16x16xf32>
    %c3_269 = arith.constant 3 : index
    %c0_270 = arith.constant 0 : index
    %c0_271 = arith.constant 0 : index
    %607 = vector.load %arg5[%c3_269, %c0_270, %c0_271] : memref<4x16x16xf32, #tpu.memory_space<vmem>>, vector<1x16x16xf32>
    %608 = vector.shape_cast %607 : vector<1x16x16xf32> to vector<16x16xf32>
    %609 = arith.addf %606, %608 : vector<16x16xf32>
    %cst_272 = arith.constant dense<0xFF800000> : vector<16xf32>
    %610 = vector.multi_reduction <maximumf>, %609, %cst_272 [1] : vector<16x16xf32> to vector<16xf32>
    %611 = vector.shape_cast %610 : vector<16xf32> to vector<16x1xf32>
    %612 = vector.broadcast %611 : vector<16x1xf32> to vector<16x16xf32>
    %613 = arith.subf %609, %612 : vector<16x16xf32>
    %614 = math.exp %613 : vector<16x16xf32>
    %cst_273 = arith.constant dense<0.000000e+00> : vector<16xf32>
    %615 = vector.multi_reduction <add>, %614, %cst_273 [1] : vector<16x16xf32> to vector<16xf32>
    %616 = vector.shape_cast %615 : vector<16xf32> to vector<16x1xf32>
    %617 = tpu.reciprocal %616 {approx = true} : vector<16x1xf32> -> vector<16x1xf32>
    %618 = vector.broadcast %617 : vector<16x1xf32> to vector<16x16xf32>
    %619 = arith.mulf %614, %618 : vector<16x16xf32>
    %cst_274 = arith.constant dense<0.000000e+00> : vector<16x8xf32>
    %620 = tpu.matmul %619, %605, %cst_274 {dimension_numbers = #tpu.dot_dimension_numbers<[1], [0], [0], [1], [0, 0, 1, 1], [], []>} : vector<16x16xf32>, vector<16x8xf32>, vector<16x8xf32> -> vector<16x8xf32>
    %621 = tpu.concatenate %566, %584, %602, %620 in 1 : vector<16x8xf32>, vector<16x8xf32>, vector<16x8xf32>, vector<16x8xf32> -> vector<16x32xf32>
    %c1_275 = arith.constant 1 : index
    %c0_276 = arith.constant 0 : index
    %c0_277 = arith.constant 0 : index
    %622 = vector.load %arg17[%c1_275, %c0_276, %c0_277] : memref<2x32x32xf32, #tpu.memory_space<vmem>>, vector<1x32x32xf32>
    %623 = vector.shape_cast %622 : vector<1x32x32xf32> to vector<32x32xf32>
    %cst_278 = arith.constant dense<0.000000e+00> : vector<16x32xf32>
    %624 = tpu.matmul %621, %623, %cst_278 {dimension_numbers = #tpu.dot_dimension_numbers<[1], [0], [0], [1], [0, 0, 1, 1], [], []>} : vector<16x32xf32>, vector<32x32xf32>, vector<16x32xf32> -> vector<16x32xf32>
    %625 = arith.addf %528, %624 : vector<16x32xf32>
    %c1_279 = arith.constant 1 : index
    %c0_280 = arith.constant 0 : index
    %c0_281 = arith.constant 0 : index
    %626 = vector.load %arg18[%c1_279, %c0_280, %c0_281] : memref<2x1x32xf32, #tpu.memory_space<vmem>>, vector<1x1x32xf32>
    %627 = vector.shape_cast %626 : vector<1x1x32xf32> to vector<1x32xf32>
    %628 = arith.mulf %625, %625 : vector<16x32xf32>
    %cst_282 = arith.constant dense<0.000000e+00> : vector<16xf32>
    %629 = vector.multi_reduction <add>, %628, %cst_282 [1] : vector<16x32xf32> to vector<16xf32>
    %630 = vector.shape_cast %629 : vector<16xf32> to vector<16x1xf32>
    %cst_283 = arith.constant 3.200000e+01 : f32
    %631 = vector.broadcast %cst_283 : f32 to vector<16x1xf32>
    %632 = arith.divf %630, %631 : vector<16x1xf32>
    %cst_284 = arith.constant 9.99999997E-7 : f32
    %633 = vector.broadcast %cst_284 : f32 to vector<16x1xf32>
    %634 = arith.addf %632, %633 : vector<16x1xf32>
    %635 = math.rsqrt %634 : vector<16x1xf32>
    %636 = vector.broadcast %635 : vector<16x1xf32> to vector<16x32xf32>
    %637 = arith.mulf %625, %636 : vector<16x32xf32>
    %638 = vector.broadcast %627 : vector<1x32xf32> to vector<16x32xf32>
    %639 = arith.mulf %637, %638 : vector<16x32xf32>
    %c1_285 = arith.constant 1 : index
    %c0_286 = arith.constant 0 : index
    %c0_287 = arith.constant 0 : index
    %640 = vector.load %arg19[%c1_285, %c0_286, %c0_287] : memref<2x32x32xf32, #tpu.memory_space<vmem>>, vector<1x32x32xf32>
    %641 = vector.shape_cast %640 : vector<1x32x32xf32> to vector<32x32xf32>
    %cst_288 = arith.constant dense<0.000000e+00> : vector<16x32xf32>
    %642 = tpu.matmul %639, %641, %cst_288 {dimension_numbers = #tpu.dot_dimension_numbers<[1], [0], [0], [1], [0, 0, 1, 1], [], []>} : vector<16x32xf32>, vector<32x32xf32>, vector<16x32xf32> -> vector<16x32xf32>
    %c1_289 = arith.constant 1 : index
    %c0_290 = arith.constant 0 : index
    %c0_291 = arith.constant 0 : index
    %643 = vector.load %arg20[%c1_289, %c0_290, %c0_291] : memref<2x32x64xf32, #tpu.memory_space<vmem>>, vector<1x32x64xf32>
    %644 = vector.shape_cast %643 : vector<1x32x64xf32> to vector<32x64xf32>
    %cst_292 = arith.constant dense<0.000000e+00> : vector<18x64xf32>
    %645 = tpu.matmul %294, %644, %cst_292 {dimension_numbers = #tpu.dot_dimension_numbers<[1], [0], [0], [1], [0, 0, 1, 1], [], []>} : vector<18x32xf32>, vector<32x64xf32>, vector<18x64xf32> -> vector<18x64xf32>
    %646 = vector.extract_strided_slice %645 {offsets = [0, 0], sizes = [18, 32], strides = [1, 1]} : vector<18x64xf32> to vector<18x32xf32>
    %647 = vector.extract_strided_slice %645 {offsets = [0, 32], sizes = [18, 32], strides = [1, 1]} : vector<18x64xf32> to vector<18x32xf32>
    %648 = vector.extract_strided_slice %642 {offsets = [0, 0], sizes = [16, 8], strides = [1, 1]} : vector<16x32xf32> to vector<16x8xf32>
    %649 = vector.extract_strided_slice %646 {offsets = [0, 0], sizes = [18, 8], strides = [1, 1]} : vector<18x32xf32> to vector<18x8xf32>
    %650 = vector.extract_strided_slice %647 {offsets = [0, 0], sizes = [18, 8], strides = [1, 1]} : vector<18x32xf32> to vector<18x8xf32>
    %cst_293 = arith.constant dense<0.000000e+00> : vector<16x18xf32>
    %651 = tpu.matmul %648, %649, %cst_293 {dimension_numbers = #tpu.dot_dimension_numbers<[1], [1], [0], [0], [0, 0, 1, 0], [], []>} : vector<16x8xf32>, vector<18x8xf32>, vector<16x18xf32> -> vector<16x18xf32>
    %c0_294 = arith.constant 0 : index
    %c0_295 = arith.constant 0 : index
    %c0_296 = arith.constant 0 : index
    %652 = vector.load %arg6[%c0_294, %c0_295, %c0_296] : memref<1x16x18xf32, #tpu.memory_space<vmem>>, vector<1x16x18xf32>
    %653 = vector.shape_cast %652 : vector<1x16x18xf32> to vector<16x18xf32>
    %654 = arith.addf %651, %653 : vector<16x18xf32>
    %cst_297 = arith.constant dense<0xFF800000> : vector<16xf32>
    %655 = vector.multi_reduction <maximumf>, %654, %cst_297 [1] : vector<16x18xf32> to vector<16xf32>
    %656 = vector.shape_cast %655 : vector<16xf32> to vector<16x1xf32>
    %657 = vector.broadcast %656 : vector<16x1xf32> to vector<16x18xf32>
    %658 = arith.subf %654, %657 : vector<16x18xf32>
    %659 = math.exp %658 : vector<16x18xf32>
    %cst_298 = arith.constant dense<0.000000e+00> : vector<16xf32>
    %660 = vector.multi_reduction <add>, %659, %cst_298 [1] : vector<16x18xf32> to vector<16xf32>
    %661 = vector.shape_cast %660 : vector<16xf32> to vector<16x1xf32>
    %662 = tpu.reciprocal %661 {approx = true} : vector<16x1xf32> -> vector<16x1xf32>
    %663 = vector.broadcast %662 : vector<16x1xf32> to vector<16x18xf32>
    %664 = arith.mulf %659, %663 : vector<16x18xf32>
    %cst_299 = arith.constant dense<0.000000e+00> : vector<16x8xf32>
    %665 = tpu.matmul %664, %650, %cst_299 {dimension_numbers = #tpu.dot_dimension_numbers<[1], [0], [0], [1], [0, 0, 1, 1], [], []>} : vector<16x18xf32>, vector<18x8xf32>, vector<16x8xf32> -> vector<16x8xf32>
    %666 = vector.extract_strided_slice %642 {offsets = [0, 8], sizes = [16, 8], strides = [1, 1]} : vector<16x32xf32> to vector<16x8xf32>
    %667 = vector.extract_strided_slice %646 {offsets = [0, 8], sizes = [18, 8], strides = [1, 1]} : vector<18x32xf32> to vector<18x8xf32>
    %668 = vector.extract_strided_slice %647 {offsets = [0, 8], sizes = [18, 8], strides = [1, 1]} : vector<18x32xf32> to vector<18x8xf32>
    %cst_300 = arith.constant dense<0.000000e+00> : vector<16x18xf32>
    %669 = tpu.matmul %666, %667, %cst_300 {dimension_numbers = #tpu.dot_dimension_numbers<[1], [1], [0], [0], [0, 0, 1, 0], [], []>} : vector<16x8xf32>, vector<18x8xf32>, vector<16x18xf32> -> vector<16x18xf32>
    %c0_301 = arith.constant 0 : index
    %c0_302 = arith.constant 0 : index
    %c0_303 = arith.constant 0 : index
    %670 = vector.load %arg6[%c0_301, %c0_302, %c0_303] : memref<1x16x18xf32, #tpu.memory_space<vmem>>, vector<1x16x18xf32>
    %671 = vector.shape_cast %670 : vector<1x16x18xf32> to vector<16x18xf32>
    %672 = arith.addf %669, %671 : vector<16x18xf32>
    %cst_304 = arith.constant dense<0xFF800000> : vector<16xf32>
    %673 = vector.multi_reduction <maximumf>, %672, %cst_304 [1] : vector<16x18xf32> to vector<16xf32>
    %674 = vector.shape_cast %673 : vector<16xf32> to vector<16x1xf32>
    %675 = vector.broadcast %674 : vector<16x1xf32> to vector<16x18xf32>
    %676 = arith.subf %672, %675 : vector<16x18xf32>
    %677 = math.exp %676 : vector<16x18xf32>
    %cst_305 = arith.constant dense<0.000000e+00> : vector<16xf32>
    %678 = vector.multi_reduction <add>, %677, %cst_305 [1] : vector<16x18xf32> to vector<16xf32>
    %679 = vector.shape_cast %678 : vector<16xf32> to vector<16x1xf32>
    %680 = tpu.reciprocal %679 {approx = true} : vector<16x1xf32> -> vector<16x1xf32>
    %681 = vector.broadcast %680 : vector<16x1xf32> to vector<16x18xf32>
    %682 = arith.mulf %677, %681 : vector<16x18xf32>
    %cst_306 = arith.constant dense<0.000000e+00> : vector<16x8xf32>
    %683 = tpu.matmul %682, %668, %cst_306 {dimension_numbers = #tpu.dot_dimension_numbers<[1], [0], [0], [1], [0, 0, 1, 1], [], []>} : vector<16x18xf32>, vector<18x8xf32>, vector<16x8xf32> -> vector<16x8xf32>
    %684 = vector.extract_strided_slice %642 {offsets = [0, 16], sizes = [16, 8], strides = [1, 1]} : vector<16x32xf32> to vector<16x8xf32>
    %685 = vector.extract_strided_slice %646 {offsets = [0, 16], sizes = [18, 8], strides = [1, 1]} : vector<18x32xf32> to vector<18x8xf32>
    %686 = vector.extract_strided_slice %647 {offsets = [0, 16], sizes = [18, 8], strides = [1, 1]} : vector<18x32xf32> to vector<18x8xf32>
    %cst_307 = arith.constant dense<0.000000e+00> : vector<16x18xf32>
    %687 = tpu.matmul %684, %685, %cst_307 {dimension_numbers = #tpu.dot_dimension_numbers<[1], [1], [0], [0], [0, 0, 1, 0], [], []>} : vector<16x8xf32>, vector<18x8xf32>, vector<16x18xf32> -> vector<16x18xf32>
    %c0_308 = arith.constant 0 : index
    %c0_309 = arith.constant 0 : index
    %c0_310 = arith.constant 0 : index
    %688 = vector.load %arg6[%c0_308, %c0_309, %c0_310] : memref<1x16x18xf32, #tpu.memory_space<vmem>>, vector<1x16x18xf32>
    %689 = vector.shape_cast %688 : vector<1x16x18xf32> to vector<16x18xf32>
    %690 = arith.addf %687, %689 : vector<16x18xf32>
    %cst_311 = arith.constant dense<0xFF800000> : vector<16xf32>
    %691 = vector.multi_reduction <maximumf>, %690, %cst_311 [1] : vector<16x18xf32> to vector<16xf32>
    %692 = vector.shape_cast %691 : vector<16xf32> to vector<16x1xf32>
    %693 = vector.broadcast %692 : vector<16x1xf32> to vector<16x18xf32>
    %694 = arith.subf %690, %693 : vector<16x18xf32>
    %695 = math.exp %694 : vector<16x18xf32>
    %cst_312 = arith.constant dense<0.000000e+00> : vector<16xf32>
    %696 = vector.multi_reduction <add>, %695, %cst_312 [1] : vector<16x18xf32> to vector<16xf32>
    %697 = vector.shape_cast %696 : vector<16xf32> to vector<16x1xf32>
    %698 = tpu.reciprocal %697 {approx = true} : vector<16x1xf32> -> vector<16x1xf32>
    %699 = vector.broadcast %698 : vector<16x1xf32> to vector<16x18xf32>
    %700 = arith.mulf %695, %699 : vector<16x18xf32>
    %cst_313 = arith.constant dense<0.000000e+00> : vector<16x8xf32>
    %701 = tpu.matmul %700, %686, %cst_313 {dimension_numbers = #tpu.dot_dimension_numbers<[1], [0], [0], [1], [0, 0, 1, 1], [], []>} : vector<16x18xf32>, vector<18x8xf32>, vector<16x8xf32> -> vector<16x8xf32>
    %702 = vector.extract_strided_slice %642 {offsets = [0, 24], sizes = [16, 8], strides = [1, 1]} : vector<16x32xf32> to vector<16x8xf32>
    %703 = vector.extract_strided_slice %646 {offsets = [0, 24], sizes = [18, 8], strides = [1, 1]} : vector<18x32xf32> to vector<18x8xf32>
    %704 = vector.extract_strided_slice %647 {offsets = [0, 24], sizes = [18, 8], strides = [1, 1]} : vector<18x32xf32> to vector<18x8xf32>
    %cst_314 = arith.constant dense<0.000000e+00> : vector<16x18xf32>
    %705 = tpu.matmul %702, %703, %cst_314 {dimension_numbers = #tpu.dot_dimension_numbers<[1], [1], [0], [0], [0, 0, 1, 0], [], []>} : vector<16x8xf32>, vector<18x8xf32>, vector<16x18xf32> -> vector<16x18xf32>
    %c0_315 = arith.constant 0 : index
    %c0_316 = arith.constant 0 : index
    %c0_317 = arith.constant 0 : index
    %706 = vector.load %arg6[%c0_315, %c0_316, %c0_317] : memref<1x16x18xf32, #tpu.memory_space<vmem>>, vector<1x16x18xf32>
    %707 = vector.shape_cast %706 : vector<1x16x18xf32> to vector<16x18xf32>
    %708 = arith.addf %705, %707 : vector<16x18xf32>
    %cst_318 = arith.constant dense<0xFF800000> : vector<16xf32>
    %709 = vector.multi_reduction <maximumf>, %708, %cst_318 [1] : vector<16x18xf32> to vector<16xf32>
    %710 = vector.shape_cast %709 : vector<16xf32> to vector<16x1xf32>
    %711 = vector.broadcast %710 : vector<16x1xf32> to vector<16x18xf32>
    %712 = arith.subf %708, %711 : vector<16x18xf32>
    %713 = math.exp %712 : vector<16x18xf32>
    %cst_319 = arith.constant dense<0.000000e+00> : vector<16xf32>
    %714 = vector.multi_reduction <add>, %713, %cst_319 [1] : vector<16x18xf32> to vector<16xf32>
    %715 = vector.shape_cast %714 : vector<16xf32> to vector<16x1xf32>
    %716 = tpu.reciprocal %715 {approx = true} : vector<16x1xf32> -> vector<16x1xf32>
    %717 = vector.broadcast %716 : vector<16x1xf32> to vector<16x18xf32>
    %718 = arith.mulf %713, %717 : vector<16x18xf32>
    %cst_320 = arith.constant dense<0.000000e+00> : vector<16x8xf32>
    %719 = tpu.matmul %718, %704, %cst_320 {dimension_numbers = #tpu.dot_dimension_numbers<[1], [0], [0], [1], [0, 0, 1, 1], [], []>} : vector<16x18xf32>, vector<18x8xf32>, vector<16x8xf32> -> vector<16x8xf32>
    %720 = tpu.concatenate %665, %683, %701, %719 in 1 : vector<16x8xf32>, vector<16x8xf32>, vector<16x8xf32>, vector<16x8xf32> -> vector<16x32xf32>
    %c1_321 = arith.constant 1 : index
    %c0_322 = arith.constant 0 : index
    %c0_323 = arith.constant 0 : index
    %721 = vector.load %arg21[%c1_321, %c0_322, %c0_323] : memref<2x32x32xf32, #tpu.memory_space<vmem>>, vector<1x32x32xf32>
    %722 = vector.shape_cast %721 : vector<1x32x32xf32> to vector<32x32xf32>
    %cst_324 = arith.constant dense<0.000000e+00> : vector<16x32xf32>
    %723 = tpu.matmul %720, %722, %cst_324 {dimension_numbers = #tpu.dot_dimension_numbers<[1], [0], [0], [1], [0, 0, 1, 1], [], []>} : vector<16x32xf32>, vector<32x32xf32>, vector<16x32xf32> -> vector<16x32xf32>
    %724 = arith.addf %625, %723 : vector<16x32xf32>
    %c1_325 = arith.constant 1 : index
    %c0_326 = arith.constant 0 : index
    %c0_327 = arith.constant 0 : index
    %725 = vector.load %arg22[%c1_325, %c0_326, %c0_327] : memref<2x1x32xf32, #tpu.memory_space<vmem>>, vector<1x1x32xf32>
    %726 = vector.shape_cast %725 : vector<1x1x32xf32> to vector<1x32xf32>
    %727 = arith.mulf %724, %724 : vector<16x32xf32>
    %cst_328 = arith.constant dense<0.000000e+00> : vector<16xf32>
    %728 = vector.multi_reduction <add>, %727, %cst_328 [1] : vector<16x32xf32> to vector<16xf32>
    %729 = vector.shape_cast %728 : vector<16xf32> to vector<16x1xf32>
    %cst_329 = arith.constant 3.200000e+01 : f32
    %730 = vector.broadcast %cst_329 : f32 to vector<16x1xf32>
    %731 = arith.divf %729, %730 : vector<16x1xf32>
    %cst_330 = arith.constant 9.99999997E-7 : f32
    %732 = vector.broadcast %cst_330 : f32 to vector<16x1xf32>
    %733 = arith.addf %731, %732 : vector<16x1xf32>
    %734 = math.rsqrt %733 : vector<16x1xf32>
    %735 = vector.broadcast %734 : vector<16x1xf32> to vector<16x32xf32>
    %736 = arith.mulf %724, %735 : vector<16x32xf32>
    %737 = vector.broadcast %726 : vector<1x32xf32> to vector<16x32xf32>
    %738 = arith.mulf %736, %737 : vector<16x32xf32>
    %c1_331 = arith.constant 1 : index
    %c0_332 = arith.constant 0 : index
    %c0_333 = arith.constant 0 : index
    %739 = vector.load %arg23[%c1_331, %c0_332, %c0_333] : memref<2x32x128xf32, #tpu.memory_space<vmem>>, vector<1x32x128xf32>
    %740 = vector.shape_cast %739 : vector<1x32x128xf32> to vector<32x128xf32>
    %cst_334 = arith.constant dense<0.000000e+00> : vector<16x128xf32>
    %741 = tpu.matmul %738, %740, %cst_334 {dimension_numbers = #tpu.dot_dimension_numbers<[1], [0], [0], [1], [0, 0, 1, 1], [], []>} : vector<16x32xf32>, vector<32x128xf32>, vector<16x128xf32> -> vector<16x128xf32>
    %742 = vector.extract_strided_slice %741 {offsets = [0, 0], sizes = [16, 64], strides = [1, 1]} : vector<16x128xf32> to vector<16x64xf32>
    %cst_335 = arith.constant 5.000000e-01 : f32
    %743 = vector.broadcast %cst_335 : f32 to vector<16x64xf32>
    %744 = arith.mulf %743, %742 : vector<16x64xf32>
    %cst_336 = arith.constant 4.471500e-02 : f32
    %745 = vector.broadcast %cst_336 : f32 to vector<16x64xf32>
    %746 = arith.mulf %745, %742 : vector<16x64xf32>
    %747 = arith.mulf %746, %742 : vector<16x64xf32>
    %748 = arith.mulf %747, %742 : vector<16x64xf32>
    %749 = arith.addf %742, %748 : vector<16x64xf32>
    %cst_337 = arith.constant 0.797884583 : f32
    %750 = vector.broadcast %cst_337 : f32 to vector<16x64xf32>
    %751 = arith.mulf %750, %749 : vector<16x64xf32>
    %752 = math.tanh %751 : vector<16x64xf32>
    %cst_338 = arith.constant 1.000000e+00 : f32
    %753 = vector.broadcast %cst_338 : f32 to vector<16x64xf32>
    %754 = arith.addf %753, %752 : vector<16x64xf32>
    %755 = arith.mulf %744, %754 : vector<16x64xf32>
    %756 = vector.extract_strided_slice %741 {offsets = [0, 64], sizes = [16, 64], strides = [1, 1]} : vector<16x128xf32> to vector<16x64xf32>
    %757 = arith.mulf %755, %756 : vector<16x64xf32>
    %c1_339 = arith.constant 1 : index
    %c0_340 = arith.constant 0 : index
    %c0_341 = arith.constant 0 : index
    %758 = vector.load %arg24[%c1_339, %c0_340, %c0_341] : memref<2x64x32xf32, #tpu.memory_space<vmem>>, vector<1x64x32xf32>
    %759 = vector.shape_cast %758 : vector<1x64x32xf32> to vector<64x32xf32>
    %cst_342 = arith.constant dense<0.000000e+00> : vector<16x32xf32>
    %760 = tpu.matmul %757, %759, %cst_342 {dimension_numbers = #tpu.dot_dimension_numbers<[1], [0], [0], [1], [0, 0, 1, 1], [], []>} : vector<16x64xf32>, vector<64x32xf32>, vector<16x32xf32> -> vector<16x32xf32>
    %761 = arith.addf %724, %760 : vector<16x32xf32>
    %c0_343 = arith.constant 0 : index
    %c0_344 = arith.constant 0 : index
    %762 = vector.load %arg25[%c0_343, %c0_344] : memref<1x32xf32, #tpu.memory_space<vmem>>, vector<1x32xf32>
    %763 = arith.mulf %761, %761 : vector<16x32xf32>
    %cst_345 = arith.constant dense<0.000000e+00> : vector<16xf32>
    %764 = vector.multi_reduction <add>, %763, %cst_345 [1] : vector<16x32xf32> to vector<16xf32>
    %765 = vector.shape_cast %764 : vector<16xf32> to vector<16x1xf32>
    %cst_346 = arith.constant 3.200000e+01 : f32
    %766 = vector.broadcast %cst_346 : f32 to vector<16x1xf32>
    %767 = arith.divf %765, %766 : vector<16x1xf32>
    %cst_347 = arith.constant 9.99999997E-7 : f32
    %768 = vector.broadcast %cst_347 : f32 to vector<16x1xf32>
    %769 = arith.addf %767, %768 : vector<16x1xf32>
    %770 = math.rsqrt %769 : vector<16x1xf32>
    %771 = vector.broadcast %770 : vector<16x1xf32> to vector<16x32xf32>
    %772 = arith.mulf %761, %771 : vector<16x32xf32>
    %773 = vector.broadcast %762 : vector<1x32xf32> to vector<16x32xf32>
    %774 = arith.mulf %772, %773 : vector<16x32xf32>
    %c0_348 = arith.constant 0 : index
    %c0_349 = arith.constant 0 : index
    %775 = vector.load %arg26[%c0_348, %c0_349] : memref<32x128xf32, #tpu.memory_space<vmem>>, vector<32x128xf32>
    %cst_350 = arith.constant dense<0.000000e+00> : vector<16x128xf32>
    %776 = tpu.matmul %774, %775, %cst_350 {dimension_numbers = #tpu.dot_dimension_numbers<[1], [0], [0], [1], [0, 0, 1, 1], [], []>} : vector<16x32xf32>, vector<32x128xf32>, vector<16x128xf32> -> vector<16x128xf32>
    %c0_351 = arith.constant 0 : index
    %c0_352 = arith.constant 0 : index
    %777 = vector.load %arg27[%c0_351, %c0_352] : memref<16x128xf32, #tpu.memory_space<vmem>>, vector<16x128xf32>
    tpu.vector_store %arg27[%c0_351, %c0_352], %776 {strides = array<i32>} : memref<16x128xf32, #tpu.memory_space<vmem>>, vector<16x128xf32>,
    return
  }
  func.func @transform_0(%arg0: i32) -> (i32, i32) {
    %c0_i32 = arith.constant 0 : i32
    %c0_i32_0 = arith.constant 0 : i32
    %c0_i32_1 = arith.constant 0 : i32
    return %c0_i32, %c0_i32_0 : i32, i32
  }
  func.func @transform_1(%arg0: i32) -> (i32, i32) {
    %c0_i32 = arith.constant 0 : i32
    %c0_i32_0 = arith.constant 0 : i32
    %c0_i32_1 = arith.constant 0 : i32
    return %c0_i32, %c0_i32_0 : i32, i32
  }
  func.func @transform_2(%arg0: i32) -> (i32, i32) {
    %c0_i32 = arith.constant 0 : i32
    %c0_i32_0 = arith.constant 0 : i32
    %c0_i32_1 = arith.constant 0 : i32
    return %c0_i32, %c0_i32_0 : i32, i32
  }
  func.func @transform_3(%arg0: i32) -> (i32, i32, i32) {
    %c0_i32 = arith.constant 0 : i32
    %c0_i32_0 = arith.constant 0 : i32
    %c0_i32_1 = arith.constant 0 : i32
    %c0_i32_2 = arith.constant 0 : i32
    return %c0_i32, %c0_i32_0, %c0_i32_1 : i32, i32, i32
  }
  func.func @transform_4(%arg0: i32) -> (i32, i32, i32) {
    %c0_i32 = arith.constant 0 : i32
    %c0_i32_0 = arith.constant 0 : i32
    %c0_i32_1 = arith.constant 0 : i32
    %c0_i32_2 = arith.constant 0 : i32
    return %c0_i32, %c0_i32_0, %c0_i32_1 : i32, i32, i32
  }
  func.func @transform_5(%arg0: i32) -> (i32, i32, i32) {
    %c0_i32 = arith.constant 0 : i32
    %c0_i32_0 = arith.constant 0 : i32
    %c0_i32_1 = arith.constant 0 : i32
    %c0_i32_2 = arith.constant 0 : i32
    return %c0_i32, %c0_i32_0, %c0_i32_1 : i32, i32, i32
  }
  func.func @transform_6(%arg0: i32) -> (i32, i32, i32) {
    %c0_i32 = arith.constant 0 : i32
    %c0_i32_0 = arith.constant 0 : i32
    %c0_i32_1 = arith.constant 0 : i32
    %c0_i32_2 = arith.constant 0 : i32
    return %c0_i32, %c0_i32_0, %c0_i32_1 : i32, i32, i32
  }
  func.func @transform_7(%arg0: i32) -> (i32, i32, i32) {
    %c0_i32 = arith.constant 0 : i32
    %c0_i32_0 = arith.constant 0 : i32
    %c0_i32_1 = arith.constant 0 : i32
    %c0_i32_2 = arith.constant 0 : i32
    return %c0_i32, %c0_i32_0, %c0_i32_1 : i32, i32, i32
  }
  func.func @transform_8(%arg0: i32) -> (i32, i32, i32) {
    %c0_i32 = arith.constant 0 : i32
    %c0_i32_0 = arith.constant 0 : i32
    %c0_i32_1 = arith.constant 0 : i32
    %c0_i32_2 = arith.constant 0 : i32
    return %c0_i32, %c0_i32_0, %c0_i32_1 : i32, i32, i32
  }
  func.func @transform_9(%arg0: i32) -> (i32, i32, i32) {
    %c0_i32 = arith.constant 0 : i32
    %c0_i32_0 = arith.constant 0 : i32
    %c0_i32_1 = arith.constant 0 : i32
    %c0_i32_2 = arith.constant 0 : i32
    return %c0_i32, %c0_i32_0, %c0_i32_1 : i32, i32, i32
  }
  func.func @transform_10(%arg0: i32) -> (i32, i32, i32) {
    %c0_i32 = arith.constant 0 : i32
    %c0_i32_0 = arith.constant 0 : i32
    %c0_i32_1 = arith.constant 0 : i32
    %c0_i32_2 = arith.constant 0 : i32
    return %c0_i32, %c0_i32_0, %c0_i32_1 : i32, i32, i32
  }
  func.func @transform_11(%arg0: i32) -> (i32, i32, i32) {
    %c0_i32 = arith.constant 0 : i32
    %c0_i32_0 = arith.constant 0 : i32
    %c0_i32_1 = arith.constant 0 : i32
    %c0_i32_2 = arith.constant 0 : i32
    return %c0_i32, %c0_i32_0, %c0_i32_1 : i32, i32, i32
  }
  func.func @transform_12(%arg0: i32) -> (i32, i32) {
    %c0_i32 = arith.constant 0 : i32
    %c0_i32_0 = arith.constant 0 : i32
    %c0_i32_1 = arith.constant 0 : i32
    return %c0_i32, %c0_i32_0 : i32, i32
  }
  func.func @transform_13(%arg0: i32) -> (i32, i32) {
    %c0_i32 = arith.constant 0 : i32
    %c0_i32_0 = arith.constant 0 : i32
    %c0_i32_1 = arith.constant 0 : i32
    return %c0_i32, %c0_i32_0 : i32, i32
  }
  func.func @transform_14(%arg0: i32) -> (i32, i32, i32) {
    %c0_i32 = arith.constant 0 : i32
    %c0_i32_0 = arith.constant 0 : i32
    %c0_i32_1 = arith.constant 0 : i32
    %c0_i32_2 = arith.constant 0 : i32
    return %c0_i32, %c0_i32_0, %c0_i32_1 : i32, i32, i32
  }
  func.func @transform_15(%arg0: i32) -> (i32, i32, i32) {
    %c0_i32 = arith.constant 0 : i32
    %c0_i32_0 = arith.constant 0 : i32
    %c0_i32_1 = arith.constant 0 : i32
    %c0_i32_2 = arith.constant 0 : i32
    return %c0_i32, %c0_i32_0, %c0_i32_1 : i32, i32, i32
  }
  func.func @transform_16(%arg0: i32) -> (i32, i32, i32) {
    %c0_i32 = arith.constant 0 : i32
    %c0_i32_0 = arith.constant 0 : i32
    %c0_i32_1 = arith.constant 0 : i32
    %c0_i32_2 = arith.constant 0 : i32
    return %c0_i32, %c0_i32_0, %c0_i32_1 : i32, i32, i32
  }
  func.func @transform_17(%arg0: i32) -> (i32, i32, i32) {
    %c0_i32 = arith.constant 0 : i32
    %c0_i32_0 = arith.constant 0 : i32
    %c0_i32_1 = arith.constant 0 : i32
    %c0_i32_2 = arith.constant 0 : i32
    return %c0_i32, %c0_i32_0, %c0_i32_1 : i32, i32, i32
  }
  func.func @transform_18(%arg0: i32) -> (i32, i32, i32) {
    %c0_i32 = arith.constant 0 : i32
    %c0_i32_0 = arith.constant 0 : i32
    %c0_i32_1 = arith.constant 0 : i32
    %c0_i32_2 = arith.constant 0 : i32
    return %c0_i32, %c0_i32_0, %c0_i32_1 : i32, i32, i32
  }
  func.func @transform_19(%arg0: i32) -> (i32, i32, i32) {
    %c0_i32 = arith.constant 0 : i32
    %c0_i32_0 = arith.constant 0 : i32
    %c0_i32_1 = arith.constant 0 : i32
    %c0_i32_2 = arith.constant 0 : i32
    return %c0_i32, %c0_i32_0, %c0_i32_1 : i32, i32, i32
  }
  func.func @transform_20(%arg0: i32) -> (i32, i32, i32) {
    %c0_i32 = arith.constant 0 : i32
    %c0_i32_0 = arith.constant 0 : i32
    %c0_i32_1 = arith.constant 0 : i32
    %c0_i32_2 = arith.constant 0 : i32
    return %c0_i32, %c0_i32_0, %c0_i32_1 : i32, i32, i32
  }
  func.func @transform_21(%arg0: i32) -> (i32, i32, i32) {
    %c0_i32 = arith.constant 0 : i32
    %c0_i32_0 = arith.constant 0 : i32
    %c0_i32_1 = arith.constant 0 : i32
    %c0_i32_2 = arith.constant 0 : i32
    return %c0_i32, %c0_i32_0, %c0_i32_1 : i32, i32, i32
  }
  func.func @transform_22(%arg0: i32) -> (i32, i32, i32) {
    %c0_i32 = arith.constant 0 : i32
    %c0_i32_0 = arith.constant 0 : i32
    %c0_i32_1 = arith.constant 0 : i32
    %c0_i32_2 = arith.constant 0 : i32
    return %c0_i32, %c0_i32_0, %c0_i32_1 : i32, i32, i32
  }
  func.func @transform_23(%arg0: i32) -> (i32, i32, i32) {
    %c0_i32 = arith.constant 0 : i32
    %c0_i32_0 = arith.constant 0 : i32
    %c0_i32_1 = arith.constant 0 : i32
    %c0_i32_2 = arith.constant 0 : i32
    return %c0_i32, %c0_i32_0, %c0_i32_1 : i32, i32, i32
  }
  func.func @transform_24(%arg0: i32) -> (i32, i32) {
    %c0_i32 = arith.constant 0 : i32
    %c0_i32_0 = arith.constant 0 : i32
    %c0_i32_1 = arith.constant 0 : i32
    return %c0_i32, %c0_i32_0 : i32, i32
  }
  func.func @transform_25(%arg0: i32) -> (i32, i32) {
    %c0_i32 = arith.constant 0 : i32
    %c0_i32_0 = arith.constant 0 : i32
    %c0_i32_1 = arith.constant 0 : i32
    return %c0_i32, %c0_i32_0 : i32, i32
  }
  func.func @transform_26(%arg0: i32) -> (i32, i32) {
    %c0_i32 = arith.constant 0 : i32
    %c0_i32_0 = arith.constant 0 : i32
    %c0_i32_1 = arith.constant 0 : i32
    return %c0_i32, %c0_i32_0 : i32, i32
  }
}

</mosaic_0001>

<llo_original>
// kernel: tile.14
$region0: #{tile.14}
  %s0 = inlined_call_operand.vmem [shape: f32[4,2,9,2,9], index: 0, kind: input, shape index: {}]
  %s1 = inlined_call_operand.vmem [shape: f32[4,18,18], index: 1, kind: output, shape index: {}]
  $region1: #{tile.14} parent=0
    #allocation0 [shape = 'u8[73728]{0}', space=vmem, size = 0x12000, scoped, tag = 'scoped mem for output reshape']
    #allocation1 [shape = 'u8[294912]{0}', space=vmem, size = 0x48000, scoped, tag = 'scoped mem for input reshape']
    %s3 = sshllo.u32 0, 2
    %s4 = smul.addr 2, 71
    %s5 = scalar_lea.vmem %s0, %s4
    %v6 = vld [vmem:[%s5] sm:%s3]
    %s7 = scalar_lea.vmem [#allocation1], 568
    %8 = vst [vmem:[%s7] sm:%s3] %v6
    %s9 = smul.addr 2, 70
    %s10 = scalar_lea.vmem %s0, %s9
    %v11 = vld [vmem:[%s10] sm:%s3]
    %s12 = scalar_lea.vmem [#allocation1], 560
    %13 = vst [vmem:[%s12] sm:%s3] %v11
    %s14 = smul.addr 2, 69
    %s15 = scalar_lea.vmem %s0, %s14
    %v16 = vld [vmem:[%s15] sm:%s3]
    %s17 = scalar_lea.vmem [#allocation1], 552
    %18 = vst [vmem:[%s17] sm:%s3] %v16
    %s19 = smul.addr 2, 68
    %s20 = scalar_lea.vmem %s0, %s19
    %v21 = vld [vmem:[%s20] sm:%s3]
    %s22 = scalar_lea.vmem [#allocation1], 544
    %23 = vst [vmem:[%s22] sm:%s3] %v21
    %s24 = smul.addr 2, 67
    %s25 = scalar_lea.vmem %s0, %s24
    %v26 = vld [vmem:[%s25] sm:%s3]
    %s27 = scalar_lea.vmem [#allocation1], 536
    %28 = vst [vmem:[%s27] sm:%s3] %v26
    %s29 = smul.addr 2, 66
    %s30 = scalar_lea.vmem %s0, %s29
    %v31 = vld [vmem:[%s30] sm:%s3]
    %s32 = scalar_lea.vmem [#allocation1], 528
    %33 = vst [vmem:[%s32] sm:%s3] %v31
    %s34 = smul.addr 2, 65
    %s35 = scalar_lea.vmem %s0, %s34
    %v36 = vld [vmem:[%s35] sm:%s3]
    %s37 = scalar_lea.vmem [#allocation1], 520
    %38 = vst [vmem:[%s37] sm:%s3] %v36
    %s39 = smul.addr 2, 64
    %s40 = scalar_lea.vmem %s0, %s39
    %v41 = vld [vmem:[%s40] sm:%s3]
    %s42 = scalar_lea.vmem [#allocation1], 512
    %43 = vst [vmem:[%s42] sm:%s3] %v41
    %s44 = smul.addr 2, 63
    %s45 = scalar_lea.vmem %s0, %s44
    %v46 = vld [vmem:[%s45] sm:%s3]
    %s47 = scalar_lea.vmem [#allocation1], 504
    %48 = vst [vmem:[%s47] sm:%s3] %v46
    %s49 = smul.addr 2, 62
    %s50 = scalar_lea.vmem %s0, %s49
    %v51 = vld [vmem:[%s50] sm:%s3]
    %s52 = scalar_lea.vmem [#allocation1], 496
    %53 = vst [vmem:[%s52] sm:%s3] %v51
    %s54 = smul.addr 2, 61
    %s55 = scalar_lea.vmem %s0, %s54
    %v56 = vld [vmem:[%s55] sm:%s3]
    %s57 = scalar_lea.vmem [#allocation1], 488
    %58 = vst [vmem:[%s57] sm:%s3] %v56
    %s59 = smul.addr 2, 60
    %s60 = scalar_lea.vmem %s0, %s59
    %v61 = vld [vmem:[%s60] sm:%s3]
    %s62 = scalar_lea.vmem [#allocation1], 480
    %63 = vst [vmem:[%s62] sm:%s3] %v61
    %s64 = smul.addr 2, 59
    %s65 = scalar_lea.vmem %s0, %s64
    %v66 = vld [vmem:[%s65] sm:%s3]
    %s67 = scalar_lea.vmem [#allocation1], 472
    %68 = vst [vmem:[%s67] sm:%s3] %v66
    %s69 = smul.addr 2, 58
    %s70 = scalar_lea.vmem %s0, %s69
    %v71 = vld [vmem:[%s70] sm:%s3]
    %s72 = scalar_lea.vmem [#allocation1], 464
    %73 = vst [vmem:[%s72] sm:%s3] %v71
    %s74 = smul.addr 2, 57
    %s75 = scalar_lea.vmem %s0, %s74
    %v76 = vld [vmem:[%s75] sm:%s3]
    %s77 = scalar_lea.vmem [#allocation1], 456
    %78 = vst [vmem:[%s77] sm:%s3] %v76
    %s79 = smul.addr 2, 56
    %s80 = scalar_lea.vmem %s0, %s79
    %v81 = vld [vmem:[%s80] sm:%s3]
    %s82 = scalar_lea.vmem [#allocation1], 448
    %83 = vst [vmem:[%s82] sm:%s3] %v81
    %s84 = smul.addr 2, 55
    %s85 = scalar_lea.vmem %s0, %s84
    %v86 = vld [vmem:[%s85] sm:%s3]
    %s87 = scalar_lea.vmem [#allocation1], 440
    %88 = vst [vmem:[%s87] sm:%s3] %v86
    %s89 = smul.addr 2, 54
    %s90 = scalar_lea.vmem %s0, %s89
    %v91 = vld [vmem:[%s90] sm:%s3]
    %s92 = scalar_lea.vmem [#allocation1], 432
    %93 = vst [vmem:[%s92] sm:%s3] %v91
    %s94 = smul.addr 2, 53
    %s95 = scalar_lea.vmem %s0, %s94
    %v96 = vld [vmem:[%s95] sm:%s3]
    %s97 = scalar_lea.vmem [#allocation1], 424
    %98 = vst [vmem:[%s97] sm:%s3] %v96
    %s99 = smul.addr 2, 52
    %s100 = scalar_lea.vmem %s0, %s99
    %v101 = vld [vmem:[%s100] sm:%s3]
    %s102 = scalar_lea.vmem [#allocation1], 416
    %103 = vst [vmem:[%s102] sm:%s3] %v101
    %s104 = smul.addr 2, 51
    %s105 = scalar_lea.vmem %s0, %s104
    %v106 = vld [vmem:[%s105] sm:%s3]
    %s107 = scalar_lea.vmem [#allocation1], 408
    %108 = vst [vmem:[%s107] sm:%s3] %v106
    %s109 = smul.addr 2, 50
    %s110 = scalar_lea.vmem %s0, %s109
    %v111 = vld [vmem:[%s110] sm:%s3]
    %s112 = scalar_lea.vmem [#allocation1], 400
    %113 = vst [vmem:[%s112] sm:%s3] %v111
    %s114 = smul.addr 2, 49
    %s115 = scalar_lea.vmem %s0, %s114
    %v116 = vld [vmem:[%s115] sm:%s3]
    %s117 = scalar_lea.vmem [#allocation1], 392
    %118 = vst [vmem:[%s117] sm:%s3] %v116
    %s119 = smul.addr 2, 48
    %s120 = scalar_lea.vmem %s0, %s119
    %v121 = vld [vmem:[%s120] sm:%s3]
    %s122 = scalar_lea.vmem [#allocation1], 384
    %123 = vst [vmem:[%s122] sm:%s3] %v121
    %s124 = smul.addr 2, 47
    %s125 = scalar_lea.vmem %s0, %s124
    %v126 = vld [vmem:[%s125] sm:%s3]
    %s127 = scalar_lea.vmem [#allocation1], 376
    %128 = vst [vmem:[%s127] sm:%s3] %v126
    %s129 = smul.addr 2, 46
    %s130 = scalar_lea.vmem %s0, %s129
    %v131 = vld [vmem:[%s130] sm:%s3]
    %s132 = scalar_lea.vmem [#allocation1], 368
    %133 = vst [vmem:[%s132] sm:%s3] %v131
    %s134 = smul.addr 2, 45
    %s135 = scalar_lea.vmem %s0, %s134
    %v136 = vld [vmem:[%s135] sm:%s3]
    %s137 = scalar_lea.vmem [#allocation1], 360
    %138 = vst [vmem:[%s137] sm:%s3] %v136
    %s139 = smul.addr 2, 44
    %s140 = scalar_lea.vmem %s0, %s139
    %v141 = vld [vmem:[%s140] sm:%s3]
    %s142 = scalar_lea.vmem [#allocation1], 352
    %143 = vst [vmem:[%s142] sm:%s3] %v141
    %s144 = smul.addr 2, 43
    %s145 = scalar_lea.vmem %s0, %s144
    %v146 = vld [vmem:[%s145] sm:%s3]
    %s147 = scalar_lea.vmem [#allocation1], 344
    %148 = vst [vmem:[%s147] sm:%s3] %v146
    %s149 = smul.addr 2, 42
    %s150 = scalar_lea.vmem %s0, %s149
    %v151 = vld [vmem:[%s150] sm:%s3]
    %s152 = scalar_lea.vmem [#allocation1], 336
    %153 = vst [vmem:[%s152] sm:%s3] %v151
    %s154 = smul.addr 2, 41
    %s155 = scalar_lea.vmem %s0, %s154
    %v156 = vld [vmem:[%s155] sm:%s3]
    %s157 = scalar_lea.vmem [#allocation1], 328
    %158 = vst [vmem:[%s157] sm:%s3] %v156
    %s159 = smul.addr 2, 40
    %s160 = scalar_lea.vmem %s0, %s159
    %v161 = vld [vmem:[%s160] sm:%s3]
    %s162 = scalar_lea.vmem [#allocation1], 320
    %163 = vst [vmem:[%s162] sm:%s3] %v161
    %s164 = smul.addr 2, 39
    %s165 = scalar_lea.vmem %s0, %s164
    %v166 = vld [vmem:[%s165] sm:%s3]
    %s167 = scalar_lea.vmem [#allocation1], 312
    %168 = vst [vmem:[%s167] sm:%s3] %v166
    %s169 = smul.addr 2, 38
    %s170 = scalar_lea.vmem %s0, %s169
    %v171 = vld [vmem:[%s170] sm:%s3]
    %s172 = scalar_lea.vmem [#allocation1], 304
    %173 = vst [vmem:[%s172] sm:%s3] %v171
    %s174 = smul.addr 2, 37
    %s175 = scalar_lea.vmem %s0, %s174
    %v176 = vld [vmem:[%s175] sm:%s3]
    %s177 = scalar_lea.vmem [#allocation1], 296
    %178 = vst [vmem:[%s177] sm:%s3] %v176
    %s179 = smul.addr 2, 36
    %s180 = scalar_lea.vmem %s0, %s179
    %v181 = vld [vmem:[%s180] sm:%s3]
    %s182 = scalar_lea.vmem [#allocation1], 288
    %183 = vst [vmem:[%s182] sm:%s3] %v181
    %s184 = smul.addr 2, 35
    %s185 = scalar_lea.vmem %s0, %s184
    %v186 = vld [vmem:[%s185] sm:%s3]
    %s187 = scalar_lea.vmem [#allocation1], 280
    %188 = vst [vmem:[%s187] sm:%s3] %v186
    %s189 = smul.addr 2, 34
    %s190 = scalar_lea.vmem %s0, %s189
    %v191 = vld [vmem:[%s190] sm:%s3]
    %s192 = scalar_lea.vmem [#allocation1], 272
    %193 = vst [vmem:[%s192] sm:%s3] %v191
    %s194 = smul.addr 2, 33
    %s195 = scalar_lea.vmem %s0, %s194
    %v196 = vld [vmem:[%s195] sm:%s3]
    %s197 = scalar_lea.vmem [#allocation1], 264
    %198 = vst [vmem:[%s197] sm:%s3] %v196
    %s199 = smul.addr 2, 32
    %s200 = scalar_lea.vmem %s0, %s199
    %v201 = vld [vmem:[%s200] sm:%s3]
    %s202 = scalar_lea.vmem [#allocation1], 256
    %203 = vst [vmem:[%s202] sm:%s3] %v201
    %s204 = smul.addr 2, 31
    %s205 = scalar_lea.vmem %s0, %s204
    %v206 = vld [vmem:[%s205] sm:%s3]
    %s207 = scalar_lea.vmem [#allocation1], 248
    %208 = vst [vmem:[%s207] sm:%s3] %v206
    %s209 = smul.addr 2, 30
    %s210 = scalar_lea.vmem %s0, %s209
    %v211 = vld [vmem:[%s210] sm:%s3]
    %s212 = scalar_lea.vmem [#allocation1], 240
    %213 = vst [vmem:[%s212] sm:%s3] %v211
    %s214 = smul.addr 2, 29
    %s215 = scalar_lea.vmem %s0, %s214
    %v216 = vld [vmem:[%s215] sm:%s3]
    %s217 = scalar_lea.vmem [#allocation1], 232
    %218 = vst [vmem:[%s217] sm:%s3] %v216
    %s219 = smul.addr 2, 28
    %s220 = scalar_lea.vmem %s0, %s219
    %v221 = vld [vmem:[%s220] sm:%s3]
    %s222 = scalar_lea.vmem [#allocation1], 224
    %223 = vst [vmem:[%s222] sm:%s3] %v221
    %s224 = smul.addr 2, 27
    %s225 = scalar_lea.vmem %s0, %s224
    %v226 = vld [vmem:[%s225] sm:%s3]
    %s227 = scalar_lea.vmem [#allocation1], 216
    %228 = vst [vmem:[%s227] sm:%s3] %v226
    %s229 = smul.addr 2, 26
    %s230 = scalar_lea.vmem %s0, %s229
    %v231 = vld [vmem:[%s230] sm:%s3]
    %s232 = scalar_lea.vmem [#allocation1], 208
    %233 = vst [vmem:[%s232] sm:%s3] %v231
    %s234 = smul.addr 2, 25
    %s235 = scalar_lea.vmem %s0, %s234
    %v236 = vld [vmem:[%s235] sm:%s3]
    %s237 = scalar_lea.vmem [#allocation1], 200
    %238 = vst [vmem:[%s237] sm:%s3] %v236
    %s239 = smul.addr 2, 24
    %s240 = scalar_lea.vmem %s0, %s239
    %v241 = vld [vmem:[%s240] sm:%s3]
    %s242 = scalar_lea.vmem [#allocation1], 192
    %243 = vst [vmem:[%s242] sm:%s3] %v241
    %s244 = smul.addr 2, 23
    %s245 = scalar_lea.vmem %s0, %s244
    %v246 = vld [vmem:[%s245] sm:%s3]
    %s247 = scalar_lea.vmem [#allocation1], 184
    %248 = vst [vmem:[%s247] sm:%s3] %v246
    %s249 = smul.addr 2, 22
    %s250 = scalar_lea.vmem %s0, %s249
    %v251 = vld [vmem:[%s250] sm:%s3]
    %s252 = scalar_lea.vmem [#allocation1], 176
    %253 = vst [vmem:[%s252] sm:%s3] %v251
    %s254 = smul.addr 2, 21
    %s255 = scalar_lea.vmem %s0, %s254
    %v256 = vld [vmem:[%s255] sm:%s3]
    %s257 = scalar_lea.vmem [#allocation1], 168
    %258 = vst [vmem:[%s257] sm:%s3] %v256
    %s259 = smul.addr 2, 20
    %s260 = scalar_lea.vmem %s0, %s259
    %v261 = vld [vmem:[%s260] sm:%s3]
    %s262 = scalar_lea.vmem [#allocation1], 160
    %263 = vst [vmem:[%s262] sm:%s3] %v261
    %s264 = smul.addr 2, 19
    %s265 = scalar_lea.vmem %s0, %s264
    %v266 = vld [vmem:[%s265] sm:%s3]
    %s267 = scalar_lea.vmem [#allocation1], 152
    %268 = vst [vmem:[%s267] sm:%s3] %v266
    %s269 = smul.addr 2, 18
    %s270 = scalar_lea.vmem %s0, %s269
    %v271 = vld [vmem:[%s270] sm:%s3]
    %s272 = scalar_lea.vmem [#allocation1], 144
    %273 = vst [vmem:[%s272] sm:%s3] %v271
    %s274 = smul.addr 2, 17
    %s275 = scalar_lea.vmem %s0, %s274
    %v276 = vld [vmem:[%s275] sm:%s3]
    %s277 = scalar_lea.vmem [#allocation1], 136
    %278 = vst [vmem:[%s277] sm:%s3] %v276
    %s279 = smul.addr 2, 16
    %s280 = scalar_lea.vmem %s0, %s279
    %v281 = vld [vmem:[%s280] sm:%s3]
    %s282 = scalar_lea.vmem [#allocation1], 128
    %283 = vst [vmem:[%s282] sm:%s3] %v281
    %s284 = smul.addr 2, 15
    %s285 = scalar_lea.vmem %s0, %s284
    %v286 = vld [vmem:[%s285] sm:%s3]
    %s287 = scalar_lea.vmem [#allocation1], 120
    %288 = vst [vmem:[%s287] sm:%s3] %v286
    %s289 = smul.addr 2, 14
    %s290 = scalar_lea.vmem %s0, %s289
    %v291 = vld [vmem:[%s290] sm:%s3]
    %s292 = scalar_lea.vmem [#allocation1], 112
    %293 = vst [vmem:[%s292] sm:%s3] %v291
    %s294 = smul.addr 2, 13
    %s295 = scalar_lea.vmem %s0, %s294
    %v296 = vld [vmem:[%s295] sm:%s3]
    %s297 = scalar_lea.vmem [#allocation1], 104
    %298 = vst [vmem:[%s297] sm:%s3] %v296
    %s299 = smul.addr 2, 12
    %s300 = scalar_lea.vmem %s0, %s299
    %v301 = vld [vmem:[%s300] sm:%s3]
    %s302 = scalar_lea.vmem [#allocation1], 96
    %303 = vst [vmem:[%s302] sm:%s3] %v301
    %s304 = smul.addr 2, 11
    %s305 = scalar_lea.vmem %s0, %s304
    %v306 = vld [vmem:[%s305] sm:%s3]
    %s307 = scalar_lea.vmem [#allocation1], 88
    %308 = vst [vmem:[%s307] sm:%s3] %v306
    %s309 = smul.addr 2, 10
    %s310 = scalar_lea.vmem %s0, %s309
    %v311 = vld [vmem:[%s310] sm:%s3]
    %s312 = scalar_lea.vmem [#allocation1], 80
    %313 = vst [vmem:[%s312] sm:%s3] %v311
    %s314 = smul.addr 2, 9
    %s315 = scalar_lea.vmem %s0, %s314
    %v316 = vld [vmem:[%s315] sm:%s3]
    %s317 = scalar_lea.vmem [#allocation1], 72
    %318 = vst [vmem:[%s317] sm:%s3] %v316
    %s319 = smul.addr 2, 8
    %s320 = scalar_lea.vmem %s0, %s319
    %v321 = vld [vmem:[%s320] sm:%s3]
    %s322 = scalar_lea.vmem [#allocation1], 64
    %323 = vst [vmem:[%s322] sm:%s3] %v321
    %s324 = smul.addr 2, 7
    %s325 = scalar_lea.vmem %s0, %s324
    %v326 = vld [vmem:[%s325] sm:%s3]
    %s327 = scalar_lea.vmem [#allocation1], 56
    %328 = vst [vmem:[%s327] sm:%s3] %v326
    %s329 = smul.addr 2, 6
    %s330 = scalar_lea.vmem %s0, %s329
    %v331 = vld [vmem:[%s330] sm:%s3]
    %s332 = scalar_lea.vmem [#allocation1], 48
    %333 = vst [vmem:[%s332] sm:%s3] %v331
    %s334 = smul.addr 2, 5
    %s335 = scalar_lea.vmem %s0, %s334
    %v336 = vld [vmem:[%s335] sm:%s3]
    %s337 = scalar_lea.vmem [#allocation1], 40
    %338 = vst [vmem:[%s337] sm:%s3] %v336
    %s339 = smul.addr 2, 4
    %s340 = scalar_lea.vmem %s0, %s339
    %v341 = vld [vmem:[%s340] sm:%s3]
    %s342 = scalar_lea.vmem [#allocation1], 32
    %343 = vst [vmem:[%s342] sm:%s3] %v341
    %s344 = smul.addr 2, 3
    %s345 = scalar_lea.vmem %s0, %s344
    %v346 = vld [vmem:[%s345] sm:%s3]
    %s347 = scalar_lea.vmem [#allocation1], 24
    %348 = vst [vmem:[%s347] sm:%s3] %v346
    %s349 = smul.addr 2, 2
    %s350 = scalar_lea.vmem %s0, %s349
    %v351 = vld [vmem:[%s350] sm:%s3]
    %s352 = scalar_lea.vmem [#allocation1], 16
    %353 = vst [vmem:[%s352] sm:%s3] %v351
    %s354 = scalar_lea.vmem %s0, 2
    %v355 = vld [vmem:[%s354] sm:%s3]
    %s356 = scalar_lea.vmem [#allocation1], 8
    %357 = vst [vmem:[%s356] sm:%s3] %v355
    %v358 = vld [vmem:[%s0] sm:%s3]
    %359 = vst [vmem:[#allocation1] sm:%s3] %v358
    %v360 = vld [vmem:[#allocation1] ss:$8 sm:$0xf]
    %v361 = vld [vmem:[#allocation1] ss:$8 sm:$0xf0]
    %vm362 = vcmask 1047556
    %v363 = vsel %vm362, %v361, %v360
    %vm364 = vcmask 72704
    %365 = vst.msk [vmem:[#allocation0] sm:$0xf] %vm364, %v363
    %s366 = scalar_lea.vmem [#allocation0], 4
    %367 = vst.msk [vmem:[%s366] sm:$0xf0] %vm364, %v363
    %s368 = scalar_lea.vmem [#allocation1], 64
    %v369 = vld [vmem:[%s368] ss:$8 sm:$0xf]
    %s370 = scalar_lea.vmem [#allocation1], 64
    %v371 = vld [vmem:[%s370] ss:$8 sm:$0xf0]
    %vm372 = vcmask 1047556
    %v373 = vsel %vm372, %v371, %v369
    %vm374 = vcmask 72704
    %s375 = scalar_lea.vmem [#allocation0], 16
    %376 = vst.msk [vmem:[%s375] sm:$0xf] %vm374, %v373
    %s377 = scalar_lea.vmem [#allocation0], 20
    %378 = vst.msk [vmem:[%s377] sm:$0xf0] %vm374, %v373
    %s379 = scalar_lea.vmem [#allocation1], 128
    %v380 = vld [vmem:[%s379] ss:$8 sm:$0xf]
    %s381 = scalar_lea.vmem [#allocation1], 128
    %v382 = vld [vmem:[%s381] ss:$8 sm:$0xf0]
    %vm383 = vcmask 1047556
    %v384 = vsel %vm383, %v382, %v380
    %vm385 = vcmask 72704
    %s386 = scalar_lea.vmem [#allocation0], 32
    %387 = vst.msk [vmem:[%s386] sm:$0xf] %vm385, %v384
    %s388 = scalar_lea.vmem [#allocation0], 36
    %389 = vst.msk [vmem:[%s388] sm:$0xf0] %vm385, %v384
    %s390 = scalar_lea.vmem [#allocation1], 192
    %v391 = vld [vmem:[%s390] ss:$8 sm:$0xf]
    %s392 = scalar_lea.vmem [#allocation1], 192
    %v393 = vld [vmem:[%s392] ss:$8 sm:$0xf0]
    %vm394 = vcmask 1047556
    %v395 = vsel %vm394, %v393, %v391
    %vm396 = vcmask 72704
    %s397 = scalar_lea.vmem [#allocation0], 48
    %398 = vst.msk [vmem:[%s397] sm:$0xf] %vm396, %v395
    %s399 = scalar_lea.vmem [#allocation0], 52
    %400 = vst.msk [vmem:[%s399] sm:$0xf0] %vm396, %v395
    %s401 = scalar_lea.vmem [#allocation1], 256
    %v402 = vld [vmem:[%s401] ss:$8 sm:$0xf]
    %s403 = scalar_lea.vmem [#allocation1], 256
    %v404 = vld [vmem:[%s403] ss:$8 sm:$0xf0]
    %vm405 = vcmask 1047556
    %v406 = vsel %vm405, %v404, %v402
    %vm407 = vcmask 72704
    %s408 = scalar_lea.vmem [#allocation0], 64
    %409 = vst.msk [vmem:[%s408] sm:$0xf] %vm407, %v406
    %s410 = scalar_lea.vmem [#allocation0], 68
    %411 = vst.msk [vmem:[%s410] sm:$0xf0] %vm407, %v406
    %s412 = scalar_lea.vmem [#allocation1], 320
    %v413 = vld [vmem:[%s412] ss:$8 sm:$0xf]
    %s414 = scalar_lea.vmem [#allocation1], 320
    %v415 = vld [vmem:[%s414] ss:$8 sm:$0xf0]
    %vm416 = vcmask 1047556
    %v417 = vsel %vm416, %v415, %v413
    %vm418 = vcmask 72704
    %s419 = scalar_lea.vmem [#allocation0], 80
    %420 = vst.msk [vmem:[%s419] sm:$0xf] %vm418, %v417
    %s421 = scalar_lea.vmem [#allocation0], 84
    %422 = vst.msk [vmem:[%s421] sm:$0xf0] %vm418, %v417
    %s423 = scalar_lea.vmem [#allocation1], 384
    %v424 = vld [vmem:[%s423] ss:$8 sm:$0xf]
    %s425 = scalar_lea.vmem [#allocation1], 384
    %v426 = vld [vmem:[%s425] ss:$8 sm:$0xf0]
    %vm427 = vcmask 1047556
    %v428 = vsel %vm427, %v426, %v424
    %vm429 = vcmask 72704
    %s430 = scalar_lea.vmem [#allocation0], 96
    %431 = vst.msk [vmem:[%s430] sm:$0xf] %vm429, %v428
    %s432 = scalar_lea.vmem [#allocation0], 100
    %433 = vst.msk [vmem:[%s432] sm:$0xf0] %vm429, %v428
    %s434 = scalar_lea.vmem [#allocation1], 448
    %v435 = vld [vmem:[%s434] ss:$8 sm:$0xf]
    %s436 = scalar_lea.vmem [#allocation1], 448
    %v437 = vld [vmem:[%s436] ss:$8 sm:$0xf0]
    %vm438 = vcmask 1047556
    %v439 = vsel %vm438, %v437, %v435
    %vm440 = vcmask 72704
    %s441 = scalar_lea.vmem [#allocation0], 112
    %442 = vst.msk [vmem:[%s441] sm:$0xf] %vm440, %v439
    %s443 = scalar_lea.vmem [#allocation0], 116
    %444 = vst.msk [vmem:[%s443] sm:$0xf0] %vm440, %v439
    %s445 = scalar_lea.vmem [#allocation1], 512
    %v446 = vld [vmem:[%s445] ss:$8 sm:$0xf]
    %s447 = scalar_lea.vmem [#allocation1], 512
    %v448 = vld [vmem:[%s447] ss:$8 sm:$0xf0]
    %vm449 = vcmask 1047556
    %v450 = vsel %vm449, %v448, %v446
    %vm451 = vcmask 72704
    %s452 = scalar_lea.vmem [#allocation0], 128
    %453 = vst.msk [vmem:[%s452] sm:$0xf] %vm451, %v450
    %s454 = scalar_lea.vmem [#allocation0], 132
    %455 = vst.msk [vmem:[%s454] sm:$0xf0] %vm451, %v450
    %s456 = scalar_lea.vmem [#allocation1], 1
    %v457 = vld [vmem:[%s456] ss:$8 sm:$0xf]
    %s458 = scalar_lea.vmem [#allocation1], 1
    %v459 = vld [vmem:[%s458] ss:$8 sm:$0xf0]
    %vm460 = vcmask 1047556
    %v461 = vsel %vm460, %v459, %v457
    %462 = vrot.lane.b32.xlu0 %v461, 9
    %v463 = vpop.permute.xlu0 %462
    %vm464 = vcmask 146504
    %465 = vst.msk [vmem:[#allocation0] sm:$0xf] %vm464, %v463
    %s466 = scalar_lea.vmem [#allocation0], 4
    %467 = vst.msk [vmem:[%s466] sm:$0xf0] %vm464, %v463
    %s468 = scalar_lea.vmem [#allocation1], 129
    %v469 = vld [vmem:[%s468] ss:$8 sm:$0xf]
    %s470 = scalar_lea.vmem [#allocation1], 129
    %v471 = vld [vmem:[%s470] ss:$8 sm:$0xf0]
    %vm472 = vcmask 1047556
    %v473 = vsel %vm472, %v471, %v469
    %474 = vrot.lane.b32.xlu0 %v473, 9
    %v475 = vpop.permute.xlu0 %474
    %vm476 = vcmask 146504
    %s477 = scalar_lea.vmem [#allocation0], 32
    %478 = vst.msk [vmem:[%s477] sm:$0xf] %vm476, %v475
    %s479 = scalar_lea.vmem [#allocation0], 36
    %480 = vst.msk [vmem:[%s479] sm:$0xf0] %vm476, %v475
    %s481 = scalar_lea.vmem [#allocation1], 257
    %v482 = vld [vmem:[%s481] ss:$8 sm:$0xf]
    %s483 = scalar_lea.vmem [#allocation1], 257
    %v484 = vld [vmem:[%s483] ss:$8 sm:$0xf0]
    %vm485 = vcmask 1047556
    %v486 = vsel %vm485, %v484, %v482
    %487 = vrot.lane.b32.xlu0 %v486, 9
    %v488 = vpop.permute.xlu0 %487
    %vm489 = vcmask 146504
    %s490 = scalar_lea.vmem [#allocation0], 64
    %491 = vst.msk [vmem:[%s490] sm:$0xf] %vm489, %v488
    %s492 = scalar_lea.vmem [#allocation0], 68
    %493 = vst.msk [vmem:[%s492] sm:$0xf0] %vm489, %v488
    %s494 = scalar_lea.vmem [#allocation1], 385
    %v495 = vld [vmem:[%s494] ss:$8 sm:$0xf]
    %s496 = scalar_lea.vmem [#allocation1], 385
    %v497 = vld [vmem:[%s496] ss:$8 sm:$0xf0]
    %vm498 = vcmask 1047556
    %v499 = vsel %vm498, %v497, %v495
    %500 = vrot.lane.b32.xlu0 %v499, 9
    %v501 = vpop.permute.xlu0 %500
    %vm502 = vcmask 146504
    %s503 = scalar_lea.vmem [#allocation0], 96
    %504 = vst.msk [vmem:[%s503] sm:$0xf] %vm502, %v501
    %s505 = scalar_lea.vmem [#allocation0], 100
    %506 = vst.msk [vmem:[%s505] sm:$0xf0] %vm502, %v501
    %s507 = scalar_lea.vmem [#allocation1], 513
    %v508 = vld [vmem:[%s507] ss:$8 sm:$0xf]
    %s509 = scalar_lea.vmem [#allocation1], 513
    %v510 = vld [vmem:[%s509] ss:$8 sm:$0xf0]
    %vm511 = vcmask 1047556
    %v512 = vsel %vm511, %v510, %v508
    %513 = vrot.lane.b32.xlu0 %v512, 9
    %v514 = vpop.permute.xlu0 %513
    %vm515 = vcmask 146504
    %s516 = scalar_lea.vmem [#allocation0], 128
    %517 = vst.msk [vmem:[%s516] sm:$0xf] %vm515, %v514
    %s518 = scalar_lea.vmem [#allocation0], 132
    %519 = vst.msk [vmem:[%s518] sm:$0xf0] %vm515, %v514
    %s520 = scalar_lea.vmem [#allocation1], 65
    %v521 = vld [vmem:[%s520] ss:$8 sm:$0xf]
    %s522 = scalar_lea.vmem [#allocation1], 65
    %v523 = vld [vmem:[%s522] ss:$8 sm:$0xf0]
    %vm524 = vcmask 1047556
    %v525 = vsel %vm524, %v523, %v521
    %526 = vrot.lane.b32.xlu0 %v525, 9
    %v527 = vpop.permute.xlu0 %526
    %vm528 = vcmask 146504
    %s529 = scalar_lea.vmem [#allocation0], 16
    %530 = vst.msk [vmem:[%s529] sm:$0xf] %vm528, %v527
    %s531 = scalar_lea.vmem [#allocation0], 20
    %532 = vst.msk [vmem:[%s531] sm:$0xf0] %vm528, %v527
    %s533 = scalar_lea.vmem [#allocation1], 193
    %v534 = vld [vmem:[%s533] ss:$8 sm:$0xf]
    %s535 = scalar_lea.vmem [#allocation1], 193
    %v536 = vld [vmem:[%s535] ss:$8 sm:$0xf0]
    %vm537 = vcmask 1047556
    %v538 = vsel %vm537, %v536, %v534
    %539 = vrot.lane.b32.xlu0 %v538, 9
    %v540 = vpop.permute.xlu0 %539
    %vm541 = vcmask 146504
    %s542 = scalar_lea.vmem [#allocation0], 48
    %543 = vst.msk [vmem:[%s542] sm:$0xf] %vm541, %v540
    %s544 = scalar_lea.vmem [#allocation0], 52
    %545 = vst.msk [vmem:[%s544] sm:$0xf0] %vm541, %v540
    %s546 = scalar_lea.vmem [#allocation1], 321
    %v547 = vld [vmem:[%s546] ss:$8 sm:$0xf]
    %s548 = scalar_lea.vmem [#allocation1], 321
    %v549 = vld [vmem:[%s548] ss:$8 sm:$0xf0]
    %vm550 = vcmask 1047556
    %v551 = vsel %vm550, %v549, %v547
    %552 = vrot.lane.b32.xlu0 %v551, 9
    %v553 = vpop.permute.xlu0 %552
    %vm554 = vcmask 146504
    %s555 = scalar_lea.vmem [#allocation0], 80
    %556 = vst.msk [vmem:[%s555] sm:$0xf] %vm554, %v553
    %s557 = scalar_lea.vmem [#allocation0], 84
    %558 = vst.msk [vmem:[%s557] sm:$0xf0] %vm554, %v553
    %s559 = scalar_lea.vmem [#allocation1], 449
    %v560 = vld [vmem:[%s559] ss:$8 sm:$0xf]
    %s561 = scalar_lea.vmem [#allocation1], 449
    %v562 = vld [vmem:[%s561] ss:$8 sm:$0xf0]
    %vm563 = vcmask 1047556
    %v564 = vsel %vm563, %v562, %v560
    %565 = vrot.lane.b32.xlu0 %v564, 9
    %v566 = vpop.permute.xlu0 %565
    %vm567 = vcmask 146504
    %s568 = scalar_lea.vmem [#allocation0], 112
    %569 = vst.msk [vmem:[%s568] sm:$0xf] %vm567, %v566
    %s570 = scalar_lea.vmem [#allocation0], 116
    %571 = vst.msk [vmem:[%s570] sm:$0xf0] %vm567, %v566
    %s573 = sshllo.u32 0, 4
    %v575 = vld [vmem:[#allocation0] sm:%s573]
    %s576 = sshllo.u32 0, 4
    %577 = vst [vmem:[%s1] sm:%s576] %v575
    %s578 = scalar_lea.vmem [#allocation0], 8
    %v579 = vld [vmem:[%s578] sm:%s573]
    %s580 = sshllo.u32 0, 4
    %s581 = scalar_lea.vmem %s1, 4
    %582 = vst [vmem:[%s581] sm:%s580] %v579
    %s583 = scalar_lea.vmem [#allocation0], 16
    %v584 = vld [vmem:[%s583] sm:%s573]
    %s585 = sshllo.u32 0, 4
    %s586 = smul.addr 4, 2
    %s587 = scalar_lea.vmem %s1, %s586
    %588 = vst [vmem:[%s587] sm:%s585] %v584
    %s589 = scalar_lea.vmem [#allocation0], 24
    %v590 = vld [vmem:[%s589] sm:%s573]
    %s591 = sshllo.u32 0, 4
    %s592 = smul.addr 4, 3
    %s593 = scalar_lea.vmem %s1, %s592
    %594 = vst [vmem:[%s593] sm:%s591] %v590
    %s595 = scalar_lea.vmem [#allocation0], 32
    %v596 = vld [vmem:[%s595] sm:%s573]
    %s597 = sshllo.u32 0, 4
    %s598 = smul.addr 4, 4
    %s599 = scalar_lea.vmem %s1, %s598
    %600 = vst [vmem:[%s599] sm:%s597] %v596
    %s601 = scalar_lea.vmem [#allocation0], 40
    %v602 = vld [vmem:[%s601] sm:%s573]
    %s603 = sshllo.u32 0, 4
    %s604 = smul.addr 4, 5
    %s605 = scalar_lea.vmem %s1, %s604
    %606 = vst [vmem:[%s605] sm:%s603] %v602
    %s607 = scalar_lea.vmem [#allocation0], 48
    %v608 = vld [vmem:[%s607] sm:%s573]
    %s609 = sshllo.u32 0, 4
    %s610 = smul.addr 4, 6
    %s611 = scalar_lea.vmem %s1, %s610
    %612 = vst [vmem:[%s611] sm:%s609] %v608
    %s613 = scalar_lea.vmem [#allocation0], 56
    %v614 = vld [vmem:[%s613] sm:%s573]
    %s615 = sshllo.u32 0, 4
    %s616 = smul.addr 4, 7
    %s617 = scalar_lea.vmem %s1, %s616
    %618 = vst [vmem:[%s617] sm:%s615] %v614
    %s619 = scalar_lea.vmem [#allocation0], 64
    %v620 = vld [vmem:[%s619] sm:%s573]
    %s621 = sshllo.u32 0, 4
    %s622 = smul.addr 4, 8
    %s623 = scalar_lea.vmem %s1, %s622
    %624 = vst [vmem:[%s623] sm:%s621] %v620
    %s625 = scalar_lea.vmem [#allocation0], 72
    %v626 = vld [vmem:[%s625] sm:%s573]
    %s627 = sshllo.u32 0, 4
    %s628 = smul.addr 4, 9
    %s629 = scalar_lea.vmem %s1, %s628
    %630 = vst [vmem:[%s629] sm:%s627] %v626
    %s631 = scalar_lea.vmem [#allocation0], 80
    %v632 = vld [vmem:[%s631] sm:%s573]
    %s633 = sshllo.u32 0, 4
    %s634 = smul.addr 4, 10
    %s635 = scalar_lea.vmem %s1, %s634
    %636 = vst [vmem:[%s635] sm:%s633] %v632
    %s637 = scalar_lea.vmem [#allocation0], 88
    %v638 = vld [vmem:[%s637] sm:%s573]
    %s639 = sshllo.u32 0, 4
    %s640 = smul.addr 4, 11
    %s641 = scalar_lea.vmem %s1, %s640
    %642 = vst [vmem:[%s641] sm:%s639] %v638
    %s643 = scalar_lea.vmem [#allocation0], 96
    %v644 = vld [vmem:[%s643] sm:%s573]
    %s645 = sshllo.u32 0, 4
    %s646 = smul.addr 4, 12
    %s647 = scalar_lea.vmem %s1, %s646
    %648 = vst [vmem:[%s647] sm:%s645] %v644
    %s649 = scalar_lea.vmem [#allocation0], 104
    %v650 = vld [vmem:[%s649] sm:%s573]
    %s651 = sshllo.u32 0, 4
    %s652 = smul.addr 4, 13
    %s653 = scalar_lea.vmem %s1, %s652
    %654 = vst [vmem:[%s653] sm:%s651] %v650
    %s655 = scalar_lea.vmem [#allocation0], 112
    %v656 = vld [vmem:[%s655] sm:%s573]
    %s657 = sshllo.u32 0, 4
    %s658 = smul.addr 4, 14
    %s659 = scalar_lea.vmem %s1, %s658
    %660 = vst [vmem:[%s659] sm:%s657] %v656
    %s661 = scalar_lea.vmem [#allocation0], 120
    %v662 = vld [vmem:[%s661] sm:%s573]
    %s663 = sshllo.u32 0, 4
    %s664 = smul.addr 4, 15
    %s665 = scalar_lea.vmem %s1, %s664
    %666 = vst [vmem:[%s665] sm:%s663] %v662
    %s667 = scalar_lea.vmem [#allocation0], 128
    %v668 = vld [vmem:[%s667] sm:%s573]
    %s669 = sshllo.u32 0, 4
    %s670 = smul.addr 4, 16
    %s671 = scalar_lea.vmem %s1, %s670
    %672 = vst [vmem:[%s671] sm:%s669] %v668
    %s673 = scalar_lea.vmem [#allocation0], 136
    %v674 = vld [vmem:[%s673] sm:%s573]
    %s675 = sshllo.u32 0, 4
    %s676 = smul.addr 4, 17
    %s677 = scalar_lea.vmem %s1, %s676
    %678 = vst [vmem:[%s677] sm:%s675] %v674

// kernel: tile.19
$region0: #{tile.19}
  %s0 = inlined_call_operand.vmem [shape: f32[4,2,8,2,8], index: 0, kind: input, shape index: {}]
  %s1 = inlined_call_operand.vmem [shape: f32[4,16,16], index: 1, kind: output, shape index: {}]
  $region1: #{tile.19} parent=0
    #allocation0 [shape = 'u8[262144]{0}', space=vmem, size = 0x40000, scoped, tag = 'scoped mem for input reshape']
    %s3 = sshllo.u32 0, 2
    %s4 = smul.addr 2, 63
    %s5 = scalar_lea.vmem %s0, %s4
    %v6 = vld [vmem:[%s5] sm:%s3]
    %s7 = scalar_lea.vmem [#allocation0], 504
    %8 = vst [vmem:[%s7] sm:%s3] %v6
    %s9 = smul.addr 2, 62
    %s10 = scalar_lea.vmem %s0, %s9
    %v11 = vld [vmem:[%s10] sm:%s3]
    %s12 = scalar_lea.vmem [#allocation0], 496
    %13 = vst [vmem:[%s12] sm:%s3] %v11
    %s14 = smul.addr 2, 61
    %s15 = scalar_lea.vmem %s0, %s14
    %v16 = vld [vmem:[%s15] sm:%s3]
    %s17 = scalar_lea.vmem [#allocation0], 488
    %18 = vst [vmem:[%s17] sm:%s3] %v16
    %s19 = smul.addr 2, 60
    %s20 = scalar_lea.vmem %s0, %s19
    %v21 = vld [vmem:[%s20] sm:%s3]
    %s22 = scalar_lea.vmem [#allocation0], 480
    %23 = vst [vmem:[%s22] sm:%s3] %v21
    %s24 = smul.addr 2, 59
    %s25 = scalar_lea.vmem %s0, %s24
    %v26 = vld [vmem:[%s25] sm:%s3]
    %s27 = scalar_lea.vmem [#allocation0], 472
    %28 = vst [vmem:[%s27] sm:%s3] %v26
    %s29 = smul.addr 2, 58
    %s30 = scalar_lea.vmem %s0, %s29
    %v31 = vld [vmem:[%s30] sm:%s3]
    %s32 = scalar_lea.vmem [#allocation0], 464
    %33 = vst [vmem:[%s32] sm:%s3] %v31
    %s34 = smul.addr 2, 57
    %s35 = scalar_lea.vmem %s0, %s34
    %v36 = vld [vmem:[%s35] sm:%s3]
    %s37 = scalar_lea.vmem [#allocation0], 456
    %38 = vst [vmem:[%s37] sm:%s3] %v36
    %s39 = smul.addr 2, 56
    %s40 = scalar_lea.vmem %s0, %s39
    %v41 = vld [vmem:[%s40] sm:%s3]
    %s42 = scalar_lea.vmem [#allocation0], 448
    %43 = vst [vmem:[%s42] sm:%s3] %v41
    %s44 = smul.addr 2, 55
    %s45 = scalar_lea.vmem %s0, %s44
    %v46 = vld [vmem:[%s45] sm:%s3]
    %s47 = scalar_lea.vmem [#allocation0], 440
    %48 = vst [vmem:[%s47] sm:%s3] %v46
    %s49 = smul.addr 2, 54
    %s50 = scalar_lea.vmem %s0, %s49
    %v51 = vld [vmem:[%s50] sm:%s3]
    %s52 = scalar_lea.vmem [#allocation0], 432
    %53 = vst [vmem:[%s52] sm:%s3] %v51
    %s54 = smul.addr 2, 53
    %s55 = scalar_lea.vmem %s0, %s54
    %v56 = vld [vmem:[%s55] sm:%s3]
    %s57 = scalar_lea.vmem [#allocation0], 424
    %58 = vst [vmem:[%s57] sm:%s3] %v56
    %s59 = smul.addr 2, 52
    %s60 = scalar_lea.vmem %s0, %s59
    %v61 = vld [vmem:[%s60] sm:%s3]
    %s62 = scalar_lea.vmem [#allocation0], 416
    %63 = vst [vmem:[%s62] sm:%s3] %v61
    %s64 = smul.addr 2, 51
    %s65 = scalar_lea.vmem %s0, %s64
    %v66 = vld [vmem:[%s65] sm:%s3]
    %s67 = scalar_lea.vmem [#allocation0], 408
    %68 = vst [vmem:[%s67] sm:%s3] %v66
    %s69 = smul.addr 2, 50
    %s70 = scalar_lea.vmem %s0, %s69
    %v71 = vld [vmem:[%s70] sm:%s3]
    %s72 = scalar_lea.vmem [#allocation0], 400
    %73 = vst [vmem:[%s72] sm:%s3] %v71
    %s74 = smul.addr 2, 49
    %s75 = scalar_lea.vmem %s0, %s74
    %v76 = vld [vmem:[%s75] sm:%s3]
    %s77 = scalar_lea.vmem [#allocation0], 392
    %78 = vst [vmem:[%s77] sm:%s3] %v76
    %s79 = smul.addr 2, 48
    %s80 = scalar_lea.vmem %s0, %s79
    %v81 = vld [vmem:[%s80] sm:%s3]
    %s82 = scalar_lea.vmem [#allocation0], 384
    %83 = vst [vmem:[%s82] sm:%s3] %v81
    %s84 = smul.addr 2, 47
    %s85 = scalar_lea.vmem %s0, %s84
    %v86 = vld [vmem:[%s85] sm:%s3]
    %s87 = scalar_lea.vmem [#allocation0], 376
    %88 = vst [vmem:[%s87] sm:%s3] %v86
    %s89 = smul.addr 2, 46
    %s90 = scalar_lea.vmem %s0, %s89
    %v91 = vld [vmem:[%s90] sm:%s3]
    %s92 = scalar_lea.vmem [#allocation0], 368
    %93 = vst [vmem:[%s92] sm:%s3] %v91
    %s94 = smul.addr 2, 45
    %s95 = scalar_lea.vmem %s0, %s94
    %v96 = vld [vmem:[%s95] sm:%s3]
    %s97 = scalar_lea.vmem [#allocation0], 360
    %98 = vst [vmem:[%s97] sm:%s3] %v96
    %s99 = smul.addr 2, 44
    %s100 = scalar_lea.vmem %s0, %s99
    %v101 = vld [vmem:[%s100] sm:%s3]
    %s102 = scalar_lea.vmem [#allocation0], 352
    %103 = vst [vmem:[%s102] sm:%s3] %v101
    %s104 = smul.addr 2, 43
    %s105 = scalar_lea.vmem %s0, %s104
    %v106 = vld [vmem:[%s105] sm:%s3]
    %s107 = scalar_lea.vmem [#allocation0], 344
    %108 = vst [vmem:[%s107] sm:%s3] %v106
    %s109 = smul.addr 2, 42
    %s110 = scalar_lea.vmem %s0, %s109
    %v111 = vld [vmem:[%s110] sm:%s3]
    %s112 = scalar_lea.vmem [#allocation0], 336
    %113 = vst [vmem:[%s112] sm:%s3] %v111
    %s114 = smul.addr 2, 41
    %s115 = scalar_lea.vmem %s0, %s114
    %v116 = vld [vmem:[%s115] sm:%s3]
    %s117 = scalar_lea.vmem [#allocation0], 328
    %118 = vst [vmem:[%s117] sm:%s3] %v116
    %s119 = smul.addr 2, 40
    %s120 = scalar_lea.vmem %s0, %s119
    %v121 = vld [vmem:[%s120] sm:%s3]
    %s122 = scalar_lea.vmem [#allocation0], 320
    %123 = vst [vmem:[%s122] sm:%s3] %v121
    %s124 = smul.addr 2, 39
    %s125 = scalar_lea.vmem %s0, %s124
    %v126 = vld [vmem:[%s125] sm:%s3]
    %s127 = scalar_lea.vmem [#allocation0], 312
    %128 = vst [vmem:[%s127] sm:%s3] %v126
    %s129 = smul.addr 2, 38
    %s130 = scalar_lea.vmem %s0, %s129
    %v131 = vld [vmem:[%s130] sm:%s3]
    %s132 = scalar_lea.vmem [#allocation0], 304
    %133 = vst [vmem:[%s132] sm:%s3] %v131
    %s134 = smul.addr 2, 37
    %s135 = scalar_lea.vmem %s0, %s134
    %v136 = vld [vmem:[%s135] sm:%s3]
    %s137 = scalar_lea.vmem [#allocation0], 296
    %138 = vst [vmem:[%s137] sm:%s3] %v136
    %s139 = smul.addr 2, 36
    %s140 = scalar_lea.vmem %s0, %s139
    %v141 = vld [vmem:[%s140] sm:%s3]
    %s142 = scalar_lea.vmem [#allocation0], 288
    %143 = vst [vmem:[%s142] sm:%s3] %v141
    %s144 = smul.addr 2, 35
    %s145 = scalar_lea.vmem %s0, %s144
    %v146 = vld [vmem:[%s145] sm:%s3]
    %s147 = scalar_lea.vmem [#allocation0], 280
    %148 = vst [vmem:[%s147] sm:%s3] %v146
    %s149 = smul.addr 2, 34
    %s150 = scalar_lea.vmem %s0, %s149
    %v151 = vld [vmem:[%s150] sm:%s3]
    %s152 = scalar_lea.vmem [#allocation0], 272
    %153 = vst [vmem:[%s152] sm:%s3] %v151
    %s154 = smul.addr 2, 33
    %s155 = scalar_lea.vmem %s0, %s154
    %v156 = vld [vmem:[%s155] sm:%s3]
    %s157 = scalar_lea.vmem [#allocation0], 264
    %158 = vst [vmem:[%s157] sm:%s3] %v156
    %s159 = smul.addr 2, 32
    %s160 = scalar_lea.vmem %s0, %s159
    %v161 = vld [vmem:[%s160] sm:%s3]
    %s162 = scalar_lea.vmem [#allocation0], 256
    %163 = vst [vmem:[%s162] sm:%s3] %v161
    %s164 = smul.addr 2, 31
    %s165 = scalar_lea.vmem %s0, %s164
    %v166 = vld [vmem:[%s165] sm:%s3]
    %s167 = scalar_lea.vmem [#allocation0], 248
    %168 = vst [vmem:[%s167] sm:%s3] %v166
    %s169 = smul.addr 2, 30
    %s170 = scalar_lea.vmem %s0, %s169
    %v171 = vld [vmem:[%s170] sm:%s3]
    %s172 = scalar_lea.vmem [#allocation0], 240
    %173 = vst [vmem:[%s172] sm:%s3] %v171
    %s174 = smul.addr 2, 29
    %s175 = scalar_lea.vmem %s0, %s174
    %v176 = vld [vmem:[%s175] sm:%s3]
    %s177 = scalar_lea.vmem [#allocation0], 232
    %178 = vst [vmem:[%s177] sm:%s3] %v176
    %s179 = smul.addr 2, 28
    %s180 = scalar_lea.vmem %s0, %s179
    %v181 = vld [vmem:[%s180] sm:%s3]
    %s182 = scalar_lea.vmem [#allocation0], 224
    %183 = vst [vmem:[%s182] sm:%s3] %v181
    %s184 = smul.addr 2, 27
    %s185 = scalar_lea.vmem %s0, %s184
    %v186 = vld [vmem:[%s185] sm:%s3]
    %s187 = scalar_lea.vmem [#allocation0], 216
    %188 = vst [vmem:[%s187] sm:%s3] %v186
    %s189 = smul.addr 2, 26
    %s190 = scalar_lea.vmem %s0, %s189
    %v191 = vld [vmem:[%s190] sm:%s3]
    %s192 = scalar_lea.vmem [#allocation0], 208
    %193 = vst [vmem:[%s192] sm:%s3] %v191
    %s194 = smul.addr 2, 25
    %s195 = scalar_lea.vmem %s0, %s194
    %v196 = vld [vmem:[%s195] sm:%s3]
    %s197 = scalar_lea.vmem [#allocation0], 200
    %198 = vst [vmem:[%s197] sm:%s3] %v196
    %s199 = smul.addr 2, 24
    %s200 = scalar_lea.vmem %s0, %s199
    %v201 = vld [vmem:[%s200] sm:%s3]
    %s202 = scalar_lea.vmem [#allocation0], 192
    %203 = vst [vmem:[%s202] sm:%s3] %v201
    %s204 = smul.addr 2, 23
    %s205 = scalar_lea.vmem %s0, %s204
    %v206 = vld [vmem:[%s205] sm:%s3]
    %s207 = scalar_lea.vmem [#allocation0], 184
    %208 = vst [vmem:[%s207] sm:%s3] %v206
    %s209 = smul.addr 2, 22
    %s210 = scalar_lea.vmem %s0, %s209
    %v211 = vld [vmem:[%s210] sm:%s3]
    %s212 = scalar_lea.vmem [#allocation0], 176
    %213 = vst [vmem:[%s212] sm:%s3] %v211
    %s214 = smul.addr 2, 21
    %s215 = scalar_lea.vmem %s0, %s214
    %v216 = vld [vmem:[%s215] sm:%s3]
    %s217 = scalar_lea.vmem [#allocation0], 168
    %218 = vst [vmem:[%s217] sm:%s3] %v216
    %s219 = smul.addr 2, 20
    %s220 = scalar_lea.vmem %s0, %s219
    %v221 = vld [vmem:[%s220] sm:%s3]
    %s222 = scalar_lea.vmem [#allocation0], 160
    %223 = vst [vmem:[%s222] sm:%s3] %v221
    %s224 = smul.addr 2, 19
    %s225 = scalar_lea.vmem %s0, %s224
    %v226 = vld [vmem:[%s225] sm:%s3]
    %s227 = scalar_lea.vmem [#allocation0], 152
    %228 = vst [vmem:[%s227] sm:%s3] %v226
    %s229 = smul.addr 2, 18
    %s230 = scalar_lea.vmem %s0, %s229
    %v231 = vld [vmem:[%s230] sm:%s3]
    %s232 = scalar_lea.vmem [#allocation0], 144
    %233 = vst [vmem:[%s232] sm:%s3] %v231
    %s234 = smul.addr 2, 17
    %s235 = scalar_lea.vmem %s0, %s234
    %v236 = vld [vmem:[%s235] sm:%s3]
    %s237 = scalar_lea.vmem [#allocation0], 136
    %238 = vst [vmem:[%s237] sm:%s3] %v236
    %s239 = smul.addr 2, 16
    %s240 = scalar_lea.vmem %s0, %s239
    %v241 = vld [vmem:[%s240] sm:%s3]
    %s242 = scalar_lea.vmem [#allocation0], 128
    %243 = vst [vmem:[%s242] sm:%s3] %v241
    %s244 = smul.addr 2, 15
    %s245 = scalar_lea.vmem %s0, %s244
    %v246 = vld [vmem:[%s245] sm:%s3]
    %s247 = scalar_lea.vmem [#allocation0], 120
    %248 = vst [vmem:[%s247] sm:%s3] %v246
    %s249 = smul.addr 2, 14
    %s250 = scalar_lea.vmem %s0, %s249
    %v251 = vld [vmem:[%s250] sm:%s3]
    %s252 = scalar_lea.vmem [#allocation0], 112
    %253 = vst [vmem:[%s252] sm:%s3] %v251
    %s254 = smul.addr 2, 13
    %s255 = scalar_lea.vmem %s0, %s254
    %v256 = vld [vmem:[%s255] sm:%s3]
    %s257 = scalar_lea.vmem [#allocation0], 104
    %258 = vst [vmem:[%s257] sm:%s3] %v256
    %s259 = smul.addr 2, 12
    %s260 = scalar_lea.vmem %s0, %s259
    %v261 = vld [vmem:[%s260] sm:%s3]
    %s262 = scalar_lea.vmem [#allocation0], 96
    %263 = vst [vmem:[%s262] sm:%s3] %v261
    %s264 = smul.addr 2, 11
    %s265 = scalar_lea.vmem %s0, %s264
    %v266 = vld [vmem:[%s265] sm:%s3]
    %s267 = scalar_lea.vmem [#allocation0], 88
    %268 = vst [vmem:[%s267] sm:%s3] %v266
    %s269 = smul.addr 2, 10
    %s270 = scalar_lea.vmem %s0, %s269
    %v271 = vld [vmem:[%s270] sm:%s3]
    %s272 = scalar_lea.vmem [#allocation0], 80
    %273 = vst [vmem:[%s272] sm:%s3] %v271
    %s274 = smul.addr 2, 9
    %s275 = scalar_lea.vmem %s0, %s274
    %v276 = vld [vmem:[%s275] sm:%s3]
    %s277 = scalar_lea.vmem [#allocation0], 72
    %278 = vst [vmem:[%s277] sm:%s3] %v276
    %s279 = smul.addr 2, 8
    %s280 = scalar_lea.vmem %s0, %s279
    %v281 = vld [vmem:[%s280] sm:%s3]
    %s282 = scalar_lea.vmem [#allocation0], 64
    %283 = vst [vmem:[%s282] sm:%s3] %v281
    %s284 = smul.addr 2, 7
    %s285 = scalar_lea.vmem %s0, %s284
    %v286 = vld [vmem:[%s285] sm:%s3]
    %s287 = scalar_lea.vmem [#allocation0], 56
    %288 = vst [vmem:[%s287] sm:%s3] %v286
    %s289 = smul.addr 2, 6
    %s290 = scalar_lea.vmem %s0, %s289
    %v291 = vld [vmem:[%s290] sm:%s3]
    %s292 = scalar_lea.vmem [#allocation0], 48
    %293 = vst [vmem:[%s292] sm:%s3] %v291
    %s294 = smul.addr 2, 5
    %s295 = scalar_lea.vmem %s0, %s294
    %v296 = vld [vmem:[%s295] sm:%s3]
    %s297 = scalar_lea.vmem [#allocation0], 40
    %298 = vst [vmem:[%s297] sm:%s3] %v296
    %s299 = smul.addr 2, 4
    %s300 = scalar_lea.vmem %s0, %s299
    %v301 = vld [vmem:[%s300] sm:%s3]
    %s302 = scalar_lea.vmem [#allocation0], 32
    %303 = vst [vmem:[%s302] sm:%s3] %v301
    %s304 = smul.addr 2, 3
    %s305 = scalar_lea.vmem %s0, %s304
    %v306 = vld [vmem:[%s305] sm:%s3]
    %s307 = scalar_lea.vmem [#allocation0], 24
    %308 = vst [vmem:[%s307] sm:%s3] %v306
    %s309 = smul.addr 2, 2
    %s310 = scalar_lea.vmem %s0, %s309
    %v311 = vld [vmem:[%s310] sm:%s3]
    %s312 = scalar_lea.vmem [#allocation0], 16
    %313 = vst [vmem:[%s312] sm:%s3] %v311
    %s314 = scalar_lea.vmem %s0, 2
    %v315 = vld [vmem:[%s314] sm:%s3]
    %s316 = scalar_lea.vmem [#allocation0], 8
    %317 = vst [vmem:[%s316] sm:%s3] %v315
    %v318 = vld [vmem:[%s0] sm:%s3]
    %319 = vst [vmem:[#allocation0] sm:%s3] %v318
    %v320 = vld [vmem:[#allocation0] ss:$8 sm:$0xf]
    %v321 = vld [vmem:[#allocation0] ss:$8 sm:$0xf0]
    %vm322 = vcmask 1047556
    %v323 = vsel %vm322, %v321, %v320
    %vm324 = vcmask 64512
    %325 = vst.msk [vmem:[%s1] sm:$0xff] %vm324, %v323
    %s326 = scalar_lea.vmem [#allocation0], 64
    %v327 = vld [vmem:[%s326] ss:$8 sm:$0xf]
    %s328 = scalar_lea.vmem [#allocation0], 64
    %v329 = vld [vmem:[%s328] ss:$8 sm:$0xf0]
    %vm330 = vcmask 1047556
    %v331 = vsel %vm330, %v329, %v327
    %vm332 = vcmask 64512
    %s333 = scalar_lea.vmem %s1, 8
    %334 = vst.msk [vmem:[%s333] sm:$0xff] %vm332, %v331
    %s335 = scalar_lea.vmem [#allocation0], 128
    %v336 = vld [vmem:[%s335] ss:$8 sm:$0xf]
    %s337 = scalar_lea.vmem [#allocation0], 128
    %v338 = vld [vmem:[%s337] ss:$8 sm:$0xf0]
    %vm339 = vcmask 1047556
    %v340 = vsel %vm339, %v338, %v336
    %vm341 = vcmask 64512
    %s342 = scalar_lea.vmem %s1, 16
    %343 = vst.msk [vmem:[%s342] sm:$0xff] %vm341, %v340
    %s344 = scalar_lea.vmem [#allocation0], 192
    %v345 = vld [vmem:[%s344] ss:$8 sm:$0xf]
    %s346 = scalar_lea.vmem [#allocation0], 192
    %v347 = vld [vmem:[%s346] ss:$8 sm:$0xf0]
    %vm348 = vcmask 1047556
    %v349 = vsel %vm348, %v347, %v345
    %vm350 = vcmask 64512
    %s351 = scalar_lea.vmem %s1, 24
    %352 = vst.msk [vmem:[%s351] sm:$0xff] %vm350, %v349
    %s353 = scalar_lea.vmem [#allocation0], 256
    %v354 = vld [vmem:[%s353] ss:$8 sm:$0xf]
    %s355 = scalar_lea.vmem [#allocation0], 256
    %v356 = vld [vmem:[%s355] ss:$8 sm:$0xf0]
    %vm357 = vcmask 1047556
    %v358 = vsel %vm357, %v356, %v354
    %vm359 = vcmask 64512
    %s360 = scalar_lea.vmem %s1, 32
    %361 = vst.msk [vmem:[%s360] sm:$0xff] %vm359, %v358
    %s362 = scalar_lea.vmem [#allocation0], 320
    %v363 = vld [vmem:[%s362] ss:$8 sm:$0xf]
    %s364 = scalar_lea.vmem [#allocation0], 320
    %v365 = vld [vmem:[%s364] ss:$8 sm:$0xf0]
    %vm366 = vcmask 1047556
    %v367 = vsel %vm366, %v365, %v363
    %vm368 = vcmask 64512
    %s369 = scalar_lea.vmem %s1, 40
    %370 = vst.msk [vmem:[%s369] sm:$0xff] %vm368, %v367
    %s371 = scalar_lea.vmem [#allocation0], 384
    %v372 = vld [vmem:[%s371] ss:$8 sm:$0xf]
    %s373 = scalar_lea.vmem [#allocation0], 384
    %v374 = vld [vmem:[%s373] ss:$8 sm:$0xf0]
    %vm375 = vcmask 1047556
    %v376 = vsel %vm375, %v374, %v372
    %vm377 = vcmask 64512
    %s378 = scalar_lea.vmem %s1, 48
    %379 = vst.msk [vmem:[%s378] sm:$0xff] %vm377, %v376
    %s380 = scalar_lea.vmem [#allocation0], 448
    %v381 = vld [vmem:[%s380] ss:$8 sm:$0xf]
    %s382 = scalar_lea.vmem [#allocation0], 448
    %v383 = vld [vmem:[%s382] ss:$8 sm:$0xf0]
    %vm384 = vcmask 1047556
    %v385 = vsel %vm384, %v383, %v381
    %vm386 = vcmask 64512
    %s387 = scalar_lea.vmem %s1, 56
    %388 = vst.msk [vmem:[%s387] sm:$0xff] %vm386, %v385
    %s389 = scalar_lea.vmem [#allocation0], 1
    %v390 = vld [vmem:[%s389] ss:$8 sm:$0xf]
    %s391 = scalar_lea.vmem [#allocation0], 1
    %v392 = vld [vmem:[%s391] ss:$8 sm:$0xf0]
    %vm393 = vcmask 1047556
    %v394 = vsel %vm393, %v392, %v390
    %395 = vrot.lane.b32.xlu0 %v394, 8
    %v396 = vpop.permute.xlu0 %395
    %vm397 = vcmask 130112
    %398 = vst.msk [vmem:[%s1] sm:$0xff] %vm397, %v396
    %s399 = scalar_lea.vmem [#allocation0], 257
    %v400 = vld [vmem:[%s399] ss:$8 sm:$0xf]
    %s401 = scalar_lea.vmem [#allocation0], 257
    %v402 = vld [vmem:[%s401] ss:$8 sm:$0xf0]
    %vm403 = vcmask 1047556
    %v404 = vsel %vm403, %v402, %v400
    %405 = vrot.lane.b32.xlu0 %v404, 8
    %v406 = vpop.permute.xlu0 %405
    %vm407 = vcmask 130112
    %s408 = scalar_lea.vmem %s1, 32
    %409 = vst.msk [vmem:[%s408] sm:$0xff] %vm407, %v406
    %s410 = scalar_lea.vmem [#allocation0], 65
    %v411 = vld [vmem:[%s410] ss:$8 sm:$0xf]
    %s412 = scalar_lea.vmem [#allocation0], 65
    %v413 = vld [vmem:[%s412] ss:$8 sm:$0xf0]
    %vm414 = vcmask 1047556
    %v415 = vsel %vm414, %v413, %v411
    %416 = vrot.lane.b32.xlu0 %v415, 8
    %v417 = vpop.permute.xlu0 %416
    %vm418 = vcmask 130112
    %s419 = scalar_lea.vmem %s1, 8
    %420 = vst.msk [vmem:[%s419] sm:$0xff] %vm418, %v417
    %s421 = scalar_lea.vmem [#allocation0], 321
    %v422 = vld [vmem:[%s421] ss:$8 sm:$0xf]
    %s423 = scalar_lea.vmem [#allocation0], 321
    %v424 = vld [vmem:[%s423] ss:$8 sm:$0xf0]
    %vm425 = vcmask 1047556
    %v426 = vsel %vm425, %v424, %v422
    %427 = vrot.lane.b32.xlu0 %v426, 8
    %v428 = vpop.permute.xlu0 %427
    %vm429 = vcmask 130112
    %s430 = scalar_lea.vmem %s1, 40
    %431 = vst.msk [vmem:[%s430] sm:$0xff] %vm429, %v428
    %s432 = scalar_lea.vmem [#allocation0], 129
    %v433 = vld [vmem:[%s432] ss:$8 sm:$0xf]
    %s434 = scalar_lea.vmem [#allocation0], 129
    %v435 = vld [vmem:[%s434] ss:$8 sm:$0xf0]
    %vm436 = vcmask 1047556
    %v437 = vsel %vm436, %v435, %v433
    %438 = vrot.lane.b32.xlu0 %v437, 8
    %v439 = vpop.permute.xlu0 %438
    %vm440 = vcmask 130112
    %s441 = scalar_lea.vmem %s1, 16
    %442 = vst.msk [vmem:[%s441] sm:$0xff] %vm440, %v439
    %s443 = scalar_lea.vmem [#allocation0], 385
    %v444 = vld [vmem:[%s443] ss:$8 sm:$0xf]
    %s445 = scalar_lea.vmem [#allocation0], 385
    %v446 = vld [vmem:[%s445] ss:$8 sm:$0xf0]
    %vm447 = vcmask 1047556
    %v448 = vsel %vm447, %v446, %v444
    %449 = vrot.lane.b32.xlu0 %v448, 8
    %v450 = vpop.permute.xlu0 %449
    %vm451 = vcmask 130112
    %s452 = scalar_lea.vmem %s1, 48
    %453 = vst.msk [vmem:[%s452] sm:$0xff] %vm451, %v450
    %s454 = scalar_lea.vmem [#allocation0], 193
    %v455 = vld [vmem:[%s454] ss:$8 sm:$0xf]
    %s456 = scalar_lea.vmem [#allocation0], 193
    %v457 = vld [vmem:[%s456] ss:$8 sm:$0xf0]
    %vm458 = vcmask 1047556
    %v459 = vsel %vm458, %v457, %v455
    %460 = vrot.lane.b32.xlu0 %v459, 8
    %v461 = vpop.permute.xlu0 %460
    %vm462 = vcmask 130112
    %s463 = scalar_lea.vmem %s1, 24
    %464 = vst.msk [vmem:[%s463] sm:$0xff] %vm462, %v461
    %s465 = scalar_lea.vmem [#allocation0], 449
    %v466 = vld [vmem:[%s465] ss:$8 sm:$0xf]
    %s467 = scalar_lea.vmem [#allocation0], 449
    %v468 = vld [vmem:[%s467] ss:$8 sm:$0xf0]
    %vm469 = vcmask 1047556
    %v470 = vsel %vm469, %v468, %v466
    %471 = vrot.lane.b32.xlu0 %v470, 8
    %v472 = vpop.permute.xlu0 %471
    %vm473 = vcmask 130112
    %s474 = scalar_lea.vmem %s1, 56
    %475 = vst.msk [vmem:[%s474] sm:$0xff] %vm473, %v472

// kernel: seq2seq_forward.1
$region0: #{seq2seq_forward.1}
  #allocation0 [shape = 'u32[]', space=smem, size = 0x4, offset = 0x4, fixed_abs, tag = 'smem constant byte address 0x4 - core index']
  #allocation1 [shape = 'u32[144,128]{1,0:T(1,128)}', space=vmem, size = 0x12000, scoped, tag = 'internal scratch']
  %s0 = inlined_call_operand.vmem [shape: f32[18,64], index: 0, kind: input, shape index: {}]
  %s1 = inlined_call_operand.vmem [shape: f32[64,128], index: 1, kind: input, shape index: {}]
  %s2 = inlined_call_operand.vmem [shape: f32[64,32], index: 2, kind: input, shape index: {}]
  %s3 = inlined_call_operand.vmem [shape: f32[4,18,18], index: 3, kind: input, shape index: {}]
  %s4 = inlined_call_operand.vmem [shape: f32[4,16,16], index: 4, kind: input, shape index: {}]
  %s5 = inlined_call_operand.vmem [shape: f32[1,16,18], index: 5, kind: input, shape index: {}]
  %s6 = inlined_call_operand.vmem [shape: f32[2,1,32], index: 6, kind: input, shape index: {}]
  %s7 = inlined_call_operand.vmem [shape: f32[2,32,96], index: 7, kind: input, shape index: {}]
  %s8 = inlined_call_operand.vmem [shape: f32[2,32,32], index: 8, kind: input, shape index: {}]
  %s9 = inlined_call_operand.vmem [shape: f32[2,1,32], index: 9, kind: input, shape index: {}]
  %s10 = inlined_call_operand.vmem [shape: f32[2,32,128], index: 10, kind: input, shape index: {}]
  %s11 = inlined_call_operand.vmem [shape: f32[2,64,32], index: 11, kind: input, shape index: {}]
  %s12 = inlined_call_operand.vmem [shape: f32[1,32], index: 12, kind: input, shape index: {}]
  %s13 = inlined_call_operand.vmem [shape: f32[16,32], index: 13, kind: input, shape index: {}]
  %s14 = inlined_call_operand.vmem [shape: f32[2,1,32], index: 14, kind: input, shape index: {}]
  %s15 = inlined_call_operand.vmem [shape: f32[2,32,96], index: 15, kind: input, shape index: {}]
  %s16 = inlined_call_operand.vmem [shape: f32[2,32,32], index: 16, kind: input, shape index: {}]
  %s17 = inlined_call_operand.vmem [shape: f32[2,1,32], index: 17, kind: input, shape index: {}]
  %s18 = inlined_call_operand.vmem [shape: f32[2,32,32], index: 18, kind: input, shape index: {}]
  %s19 = inlined_call_operand.vmem [shape: f32[2,32,64], index: 19, kind: input, shape index: {}]
  %s20 = inlined_call_operand.vmem [shape: f32[2,32,32], index: 20, kind: input, shape index: {}]
  %s21 = inlined_call_operand.vmem [shape: f32[2,1,32], index: 21, kind: input, shape index: {}]
  %s22 = inlined_call_operand.vmem [shape: f32[2,32,128], index: 22, kind: input, shape index: {}]
  %s23 = inlined_call_operand.vmem [shape: f32[2,64,32], index: 23, kind: input, shape index: {}]
  %s24 = inlined_call_operand.vmem [shape: f32[1,32], index: 24, kind: input, shape index: {}]
  %s25 = inlined_call_operand.vmem [shape: f32[32,128], index: 25, kind: input, shape index: {}]
  %s26 = inlined_call_operand.vmem [shape: f32[16,128], index: 26, kind: output, shape index: {}]
  %s27 = sld [smem:[#allocation0]]
  $region114: #{seq2seq_forward.1} parent=0
    _
  %s29 = ssub.s32 1, %s27
  %s30 = scalar_select 0, %s29, %s27
  // Predicated region
  $region2: #{seq2seq_forward.1} parent=0 // pred_check
    _
  $region3: #{seq2seq_forward.1} parent=0 // pred_check_branch
    %32 = sbr.rel (0) target = $region5
  $region4: #{seq2seq_forward.1} parent=0 // pred_region
    _
  $region5: #{seq2seq_forward.1} parent=0 // pred_fallthru
    _
  // Predicated region
  $region6: #{seq2seq_forward.1} parent=0 // pred_check
    _
  $region7: #{seq2seq_forward.1} parent=0 // pred_check_branch
    %34 = sbr.rel (0) target = $region9
  $region8: #{seq2seq_forward.1} parent=0 // pred_region
    _
  $region9: #{seq2seq_forward.1} parent=0 // pred_fallthru
    _
  // Predicated region
  $region10: #{seq2seq_forward.1} parent=0 // pred_check
    _
  $region11: #{seq2seq_forward.1} parent=0 // pred_check_branch
    %36 = sbr.rel (0) target = $region13
  $region12: #{seq2seq_forward.1} parent=0 // pred_region
    _
  $region13: #{seq2seq_forward.1} parent=0 // pred_fallthru
    _
  // Predicated region
  $region14: #{seq2seq_forward.1} parent=0 // pred_check
    _
  $region15: #{seq2seq_forward.1} parent=0 // pred_check_branch
    %38 = sbr.rel (0) target = $region17
  $region16: #{seq2seq_forward.1} parent=0 // pred_region
    _
  $region17: #{seq2seq_forward.1} parent=0 // pred_fallthru
    _
  // Predicated region
  $region18: #{seq2seq_forward.1} parent=0 // pred_check
    _
  $region19: #{seq2seq_forward.1} parent=0 // pred_check_branch
    %40 = sbr.rel (0) target = $region21
  $region20: #{seq2seq_forward.1} parent=0 // pred_region
    _
  $region21: #{seq2seq_forward.1} parent=0 // pred_fallthru
    _
  // Predicated region
  $region22: #{seq2seq_forward.1} parent=0 // pred_check
    _
  $region23: #{seq2seq_forward.1} parent=0 // pred_check_branch
    %42 = sbr.rel (0) target = $region25
  $region24: #{seq2seq_forward.1} parent=0 // pred_region
    _
  $region25: #{seq2seq_forward.1} parent=0 // pred_fallthru
    _
  // Predicated region
  $region26: #{seq2seq_forward.1} parent=0 // pred_check
    _
  $region27: #{seq2seq_forward.1} parent=0 // pred_check_branch
    %44 = sbr.rel (0) target = $region29
  $region28: #{seq2seq_forward.1} parent=0 // pred_region
    _
  $region29: #{seq2seq_forward.1} parent=0 // pred_fallthru
    _
  // Predicated region
  $region30: #{seq2seq_forward.1} parent=0 // pred_check
    _
  $region31: #{seq2seq_forward.1} parent=0 // pred_check_branch
    %46 = sbr.rel (0) target = $region33
  $region32: #{seq2seq_forward.1} parent=0 // pred_region
    _
  $region33: #{seq2seq_forward.1} parent=0 // pred_fallthru
    _
  // Predicated region
  $region34: #{seq2seq_forward.1} parent=0 // pred_check
    _
  $region35: #{seq2seq_forward.1} parent=0 // pred_check_branch
    %48 = sbr.rel (0) target = $region37
  $region36: #{seq2seq_forward.1} parent=0 // pred_region
    _
  $region37: #{seq2seq_forward.1} parent=0 // pred_fallthru
    _
  // Predicated region
  $region38: #{seq2seq_forward.1} parent=0 // pred_check
    _
  $region39: #{seq2seq_forward.1} parent=0 // pred_check_branch
    %50 = sbr.rel (0) target = $region41
  $region40: #{seq2seq_forward.1} parent=0 // pred_region
    _
  $region41: #{seq2seq_forward.1} parent=0 // pred_fallthru
    _
  // Predicated region
  $region42: #{seq2seq_forward.1} parent=0 // pred_check
    _
  $region43: #{seq2seq_forward.1} parent=0 // pred_check_branch
    %52 = sbr.rel (0) target = $region45
  $region44: #{seq2seq_forward.1} parent=0 // pred_region
    _
  $region45: #{seq2seq_forward.1} parent=0 // pred_fallthru
    _
  // Predicated region
  $region46: #{seq2seq_forward.1} parent=0 // pred_check
    _
  $region47: #{seq2seq_forward.1} parent=0 // pred_check_branch
    %54 = sbr.rel (0) target = $region49
  $region48: #{seq2seq_forward.1} parent=0 // pred_region
    _
  $region49: #{seq2seq_forward.1} parent=0 // pred_fallthru
    _
  // Predicated region
  $region50: #{seq2seq_forward.1} parent=0 // pred_check
    _
  $region51: #{seq2seq_forward.1} parent=0 // pred_check_branch
    %56 = sbr.rel (0) target = $region53
  $region52: #{seq2seq_forward.1} parent=0 // pred_region
    _
  $region53: #{seq2seq_forward.1} parent=0 // pred_fallthru
    _
  // Predicated region
  $region54: #{seq2seq_forward.1} parent=0 // pred_check
    _
  $region55: #{seq2seq_forward.1} parent=0 // pred_check_branch
    %58 = sbr.rel (0) target = $region57
  $region56: #{seq2seq_forward.1} parent=0 // pred_region
    _
  $region57: #{seq2seq_forward.1} parent=0 // pred_fallthru
    _
  // Predicated region
  $region58: #{seq2seq_forward.1} parent=0 // pred_check
    _
  $region59: #{seq2seq_forward.1} parent=0 // pred_check_branch
    %60 = sbr.rel (0) target = $region61
  $region60: #{seq2seq_forward.1} parent=0 // pred_region
    _
  $region61: #{seq2seq_forward.1} parent=0 // pred_fallthru
    _
  // Predicated region
  $region62: #{seq2seq_forward.1} parent=0 // pred_check
    _
  $region63: #{seq2seq_forward.1} parent=0 // pred_check_branch
    %62 = sbr.rel (0) target = $region65
  $region64: #{seq2seq_forward.1} parent=0 // pred_region
    _
  $region65: #{seq2seq_forward.1} parent=0 // pred_fallthru
    _
  // Predicated region
  $region66: #{seq2seq_forward.1} parent=0 // pred_check
    _
  $region67: #{seq2seq_forward.1} parent=0 // pred_check_branch
    %64 = sbr.rel (0) target = $region69
  $region68: #{seq2seq_forward.1} parent=0 // pred_region
    _
  $region69: #{seq2seq_forward.1} parent=0 // pred_fallthru
    _
  // Predicated region
  $region70: #{seq2seq_forward.1} parent=0 // pred_check
    _
  $region71: #{seq2seq_forward.1} parent=0 // pred_check_branch
    %66 = sbr.rel (0) target = $region73
  $region72: #{seq2seq_forward.1} parent=0 // pred_region
    _
  $region73: #{seq2seq_forward.1} parent=0 // pred_fallthru
    _
  // Predicated region
  $region74: #{seq2seq_forward.1} parent=0 // pred_check
    _
  $region75: #{seq2seq_forward.1} parent=0 // pred_check_branch
    %68 = sbr.rel (0) target = $region77
  $region76: #{seq2seq_forward.1} parent=0 // pred_region
    _
  $region77: #{seq2seq_forward.1} parent=0 // pred_fallthru
    _
  // Predicated region
  $region78: #{seq2seq_forward.1} parent=0 // pred_check
    _
  $region79: #{seq2seq_forward.1} parent=0 // pred_check_branch
    %70 = sbr.rel (0) target = $region81
  $region80: #{seq2seq_forward.1} parent=0 // pred_region
    _
  $region81: #{seq2seq_forward.1} parent=0 // pred_fallthru
    _
  // Predicated region
  $region82: #{seq2seq_forward.1} parent=0 // pred_check
    _
  $region83: #{seq2seq_forward.1} parent=0 // pred_check_branch
    %72 = sbr.rel (0) target = $region85
  $region84: #{seq2seq_forward.1} parent=0 // pred_region
    _
  $region85: #{seq2seq_forward.1} parent=0 // pred_fallthru
    _
  // Predicated region
  $region86: #{seq2seq_forward.1} parent=0 // pred_check
    _
  $region87: #{seq2seq_forward.1} parent=0 // pred_check_branch
    %74 = sbr.rel (0) target = $region89
  $region88: #{seq2seq_forward.1} parent=0 // pred_region
    _
  $region89: #{seq2seq_forward.1} parent=0 // pred_fallthru
    _
  // Predicated region
  $region90: #{seq2seq_forward.1} parent=0 // pred_check
    _
  $region91: #{seq2seq_forward.1} parent=0 // pred_check_branch
    %76 = sbr.rel (0) target = $region93
  $region92: #{seq2seq_forward.1} parent=0 // pred_region
    _
  $region93: #{seq2seq_forward.1} parent=0 // pred_fallthru
    _
  // Predicated region
  $region94: #{seq2seq_forward.1} parent=0 // pred_check
    _
  $region95: #{seq2seq_forward.1} parent=0 // pred_check_branch
    %78 = sbr.rel (0) target = $region97
  $region96: #{seq2seq_forward.1} parent=0 // pred_region
    _
  $region97: #{seq2seq_forward.1} parent=0 // pred_fallthru
    _
  // Predicated region
  $region98: #{seq2seq_forward.1} parent=0 // pred_check
    _
  $region99: #{seq2seq_forward.1} parent=0 // pred_check_branch
    %80 = sbr.rel (0) target = $region101
  $region100: #{seq2seq_forward.1} parent=0 // pred_region
    _
  $region101: #{seq2seq_forward.1} parent=0 // pred_fallthru
    _
  // Predicated region
  $region102: #{seq2seq_forward.1} parent=0 // pred_check
    _
  $region103: #{seq2seq_forward.1} parent=0 // pred_check_branch
    %82 = sbr.rel (0) target = $region105
  $region104: #{seq2seq_forward.1} parent=0 // pred_region
    _
  $region105: #{seq2seq_forward.1} parent=0 // pred_fallthru
    _
  %v83 = vld [vmem:[%s0] sm:$0xff]
  %v84 = vld [vmem:[%s0 + $0x8] sm:$0xff]
  %v85 = vld [vmem:[%s0 + $0x10] sm:$0x3]
  %v86 = vld [vmem:[%s1] sm:$0xff]
  %v87 = vld [vmem:[%s1 + $0x8] sm:$0xff]
  %v88 = vld [vmem:[%s1 + $0x10] sm:$0xff]
  %v89 = vld [vmem:[%s1 + $0x18] sm:$0xff]
  %v90 = vld [vmem:[%s1 + $0x20] sm:$0xff]
  %v91 = vld [vmem:[%s1 + $0x28] sm:$0xff]
  %v92 = vld [vmem:[%s1 + $0x30] sm:$0xff]
  %v93 = vld [vmem:[%s1 + $0x38] sm:$0xff]
  %vm94 = vcmask 523264
  %v96 = vsel %vm94, %v83, 0
  %v99 = vsel %vm94, %v84, 0
  %v102 = vsel %vm94, %v85, 0
  %104 = vmatprep.subr.mxu0 0.0
  %105 = vmatpush1.msra.mxu0 %v86
  %106 = vmatprep.subr.mxu0 0.0
  %107 = vmatpush1.msra.mxu0 %v87
  %108 = vmatprep.subr.mxu0 0.0
  %109 = vmatpush1.msra.mxu0 %v88
  %110 = vmatprep.subr.mxu0 0.0
  %111 = vmatpush1.msra.mxu0 %v89
  %112 = vmatprep.subr.mxu0 0.0
  %113 = vmatpush1.msra.mxu0 %v90
  %114 = vmatprep.subr.mxu0 0.0
  %115 = vmatpush1.msra.mxu0 %v91
  %116 = vmatprep.subr.mxu0 0.0
  %117 = vmatpush1.msra.mxu0 %v92
  %118 = vmatprep.subr.mxu0 0.0
  %119 = vmatpush1.msra.mxu0 %v93
  %120 = vmatprep.subr.mxu0 0.0
  %121 = vmatpush1.msra.mxu0 0.0
  %122 = vmatprep.subr.mxu0 0.0
  %123 = vmatpush1.msra.mxu0 0.0
  %124 = vmatprep.subr.mxu0 0.0
  %125 = vmatpush1.msra.mxu0 0.0
  %126 = vmatprep.subr.mxu0 0.0
  %127 = vmatpush1.msra.mxu0 0.0
  %128 = vmatprep.subr.mxu0 0.0
  %129 = vmatpush1.msra.mxu0 0.0
  %130 = vmatprep.subr.mxu0 0.0
  %131 = vmatpush1.msra.mxu0 0.0
  %132 = vmatprep.subr.mxu0 0.0
  %133 = vmatpush1.msra.mxu0 0.0
  %134 = vmatprep.subr.mxu0 0.0
  %135 = vmatpush1.msra.mxu0 0.0
  %136 = vmatprep.subr.mxu0 0.0
  %137 = vmatpush1.msra.mxu0 0.0
  %138 = vmatprep.subr.mxu0 0.0
  %139 = vmatpush1.msra.mxu0 0.0
  %140 = vmatprep.subr.mxu0 0.0
  %141 = vmatpush1.msra.mxu0 0.0
  %142 = vmatprep.subr.mxu0 0.0
  %143 = vmatpush1.msra.mxu0 0.0
  %144 = vmatprep.subr.mxu0 0.0
  %145 = vmatpush1.msra.mxu0 0.0
  %146 = vmatprep.subr.mxu0 0.0
  %147 = vmatpush1.msra.mxu0 0.0
  %148 = vmatprep.subr.mxu0 0.0
  %149 = vmatpush1.msra.mxu0 0.0
  %150 = vmatprep.subr.mxu0 0.0
  %151 = vmatpush1.msra.mxu0 0.0
  %152 = vmatprep.subr.mxu0 0.0
  %153 = vmatpush1.msra.mxu0 0.0
  %154 = vmatprep.subr.mxu0 0.0
  %155 = vmatpush1.msra.mxu0 0.0
  %156 = vmatprep.subr.mxu0 0.0
  %157 = vmatpush1.msra.mxu0 0.0
  %158 = vmatprep.subr.mxu0 0.0
  %159 = vmatpush1.msra.mxu0 0.0
  %160 = vmatprep.subr.mxu0 0.0
  %161 = vmatpush1.msra.mxu0 0.0
  %162 = vmatprep.subr.mxu0 0.0
  %163 = vmatpush1.msra.mxu0 0.0
  %164 = vmatprep.subr.mxu0 0.0
  %165 = vmatpush1.msra.mxu0 0.0
  %166 = vmatprep.subr.mxu0 0.0
  %167 = vmatpush1.msra.mxu0 0.0
  %168 = vmatprep.mubr.f32.mxu0 0.0
  %169 = vmatmul.mubr.f32.gmra.mrb[0].mxu0 %v96
  %v170 = vpop.f32.mrb[0].mxu0
  %v171 = vadd.f32 0.0, %v170
  %v172 = vpop.f32.mrb[0].mxu0
  %173 = vmatprep.mubr.f32.mxu0 0.0
  %174 = vmatmul.mubr.f32.gmra.mrb[0].mxu0 %v99
  %v175 = vpop.f32.mrb[0].mxu0
  %v176 = vadd.f32 0.0, %v175
  %v177 = vpop.f32.mrb[0].mxu0
  %178 = vmatprep.mubr.f32.mxu0 0.0
  %179 = vmatmul.mubr.f32.gmra.mrb[0].mxu0 %v102
  %v180 = vpop.f32.mrb[0].mxu0
  %v181 = vadd.f32 0.0, %v180
  %v182 = vpop.f32.mrb[0].mxu0
  %183 = vdwg.mxu0
  %v184 = vmul.f32 %v171, %v171
  %v185 = vmul.f32 %v176, %v176
  %v186 = vmul.f32 %v181, %v181
  %190 = vrot.lane.b32.xlu0 %v184, 64
  %v191 = vpop.permute.xlu0 %190
  %192 = vrot.lane.b32.xlu0 %v185, 64
  %v193 = vpop.permute.xlu0 %192
  %194 = vrot.lane.b32.xlu0 %v186, 64
  %v195 = vpop.permute.xlu0 %194
  %v199 = vadd.f32 %v184, %v191
  %v200 = vadd.f32 %v185, %v193
  %v201 = vadd.f32 %v186, %v195
  %v202 = vrsqrt.pop %v199
  %v203 = vmul.f32 %v199, %v202
  %vm204 = vcmp.eq.f32.partialorder %v199, inf
  %v205 = vsel %vm204, %v199, %v203
  %vm206 = vcmp.eq.f32.partialorder %v199, 0.0
  %v207 = vand.u32 %v199, 2147483648
  %v208 = vsel %vm206, %v207, %v205
  %v209 = vrsqrt.pop %v200
  %v210 = vmul.f32 %v200, %v209
  %vm211 = vcmp.eq.f32.partialorder %v200, inf
  %v212 = vsel %vm211, %v200, %v210
  %vm213 = vcmp.eq.f32.partialorder %v200, 0.0
  %v214 = vand.u32 %v200, 2147483648
  %v215 = vsel %vm213, %v214, %v212
  %v216 = vrsqrt.pop %v201
  %v217 = vmul.f32 %v201, %v216
  %vm218 = vcmp.eq.f32.partialorder %v201, inf
  %v219 = vsel %vm218, %v201, %v217
  %vm220 = vcmp.eq.f32.partialorder %v201, 0.0
  %v221 = vand.u32 %v201, 2147483648
  %v222 = vsel %vm220, %v221, %v219
  %v223 = vld [vmem:[%s2] sm:$0xff]
  %v224 = vld [vmem:[%s2 + $0x8] sm:$0xff]
  %v225 = vld [vmem:[%s2 + $0x10] sm:$0xff]
  %v226 = vld [vmem:[%s2 + $0x18] sm:$0xff]
  %v227 = vld [vmem:[%s2 + $0x20] sm:$0xff]
  %v228 = vld [vmem:[%s2 + $0x28] sm:$0xff]
  %v229 = vld [vmem:[%s2 + $0x30] sm:$0xff]
  %v230 = vld [vmem:[%s2 + $0x38] sm:$0xff]
  %v232 = vsel %vm94, %v208, 0
  %v235 = vsel %vm94, %v215, 0
  %v238 = vsel %vm94, %v222, 0
  %240 = vmatprep.subr.mxu0 0.0
  %241 = vmatpush1.msra.mxu0 %v223
  %242 = vmatprep.subr.mxu0 0.0
  %243 = vmatpush1.msra.mxu0 %v224
  %244 = vmatprep.subr.mxu0 0.0
  %245 = vmatpush1.msra.mxu0 %v225
  %246 = vmatprep.subr.mxu0 0.0
  %247 = vmatpush1.msra.mxu0 %v226
  %248 = vmatprep.subr.mxu0 0.0
  %249 = vmatpush1.msra.mxu0 %v227
  %250 = vmatprep.subr.mxu0 0.0
  %251 = vmatpush1.msra.mxu0 %v228
  %252 = vmatprep.subr.mxu0 0.0
  %253 = vmatpush1.msra.mxu0 %v229
  %254 = vmatprep.subr.mxu0 0.0
  %255 = vmatpush1.msra.mxu0 %v230
  %256 = vmatprep.subr.mxu0 0.0
  %257 = vmatpush1.msra.mxu0 0.0
  %258 = vmatprep.subr.mxu0 0.0
  %259 = vmatpush1.msra.mxu0 0.0
  %260 = vmatprep.subr.mxu0 0.0
  %261 = vmatpush1.msra.mxu0 0.0
  %262 = vmatprep.subr.mxu0 0.0
  %263 = vmatpush1.msra.mxu0 0.0
  %264 = vmatprep.subr.mxu0 0.0
  %265 = vmatpush1.msra.mxu0 0.0
  %266 = vmatprep.subr.mxu0 0.0
  %267 = vmatpush1.msra.mxu0 0.0
  %268 = vmatprep.subr.mxu0 0.0
  %269 = vmatpush1.msra.mxu0 0.0
  %270 = vmatprep.subr.mxu0 0.0
  %271 = vmatpush1.msra.mxu0 0.0
  %272 = vmatprep.subr.mxu0 0.0
  %273 = vmatpush1.msra.mxu0 0.0
  %274 = vmatprep.subr.mxu0 0.0
  %275 = vmatpush1.msra.mxu0 0.0
  %276 = vmatprep.subr.mxu0 0.0
  %277 = vmatpush1.msra.mxu0 0.0
  %278 = vmatprep.subr.mxu0 0.0
  %279 = vmatpush1.msra.mxu0 0.0
  %280 = vmatprep.subr.mxu0 0.0
  %281 = vmatpush1.msra.mxu0 0.0
  %282 = vmatprep.subr.mxu0 0.0
  %283 = vmatpush1.msra.mxu0 0.0
  %284 = vmatprep.subr.mxu0 0.0
  %285 = vmatpush1.msra.mxu0 0.0
  %286 = vmatprep.subr.mxu0 0.0
  %287 = vmatpush1.msra.mxu0 0.0
  %288 = vmatprep.subr.mxu0 0.0
  %289 = vmatpush1.msra.mxu0 0.0
  %290 = vmatprep.subr.mxu0 0.0
  %291 = vmatpush1.msra.mxu0 0.0
  %292 = vmatprep.subr.mxu0 0.0
  %293 = vmatpush1.msra.mxu0 0.0
  %294 = vmatprep.subr.mxu0 0.0
  %295 = vmatpush1.msra.mxu0 0.0
  %296 = vmatprep.subr.mxu0 0.0
  %297 = vmatpush1.msra.mxu0 0.0
  %298 = vmatprep.subr.mxu0 0.0
  %299 = vmatpush1.msra.mxu0 0.0
  %300 = vmatprep.subr.mxu0 0.0
  %301 = vmatpush1.msra.mxu0 0.0
  %302 = vmatprep.subr.mxu0 0.0
  %303 = vmatpush1.msra.mxu0 0.0
  %304 = vmatprep.mubr.f32.mxu0 0.0
  %305 = vmatmul.mubr.f32.gmra.mrb[0].mxu0 %v232
  %v306 = vpop.f32.mrb[0].mxu0
  %v307 = vadd.f32 0.0, %v306
  %v308 = vpop.f32.mrb[0].mxu0
  %309 = vmatprep.mubr.f32.mxu0 0.0
  %310 = vmatmul.mubr.f32.gmra.mrb[0].mxu0 %v235
  %v311 = vpop.f32.mrb[0].mxu0
  %v312 = vadd.f32 0.0, %v311
  %v313 = vpop.f32.mrb[0].mxu0
  %314 = vmatprep.mubr.f32.mxu0 0.0
  %315 = vmatmul.mubr.f32.gmra.mrb[0].mxu0 %v238
  %v316 = vpop.f32.mrb[0].mxu0
  %v317 = vadd.f32 0.0, %v316
  %v318 = vpop.f32.mrb[0].mxu0
  %319 = vdwg.mxu0
  %v320 = vmax.f32 %v307, 1e-05
  %v321 = vmax.f32 %v312, 1e-05
  %v322 = vmax.f32 %v317, 1e-05
  %v323 = vlog2.pop %v320
  %v324 = vmul.f32 %v323, 0.6931472
  %v325 = vlog2.pop %v321
  %v326 = vmul.f32 %v325, 0.6931472
  %v327 = vlog2.pop %v322
  %v328 = vmul.f32 %v327, 0.6931472
  %v329 = vld [vmem:[%s6] sm:$0x1]
  %v330 = vmul.f32 %v324, %v324
  %v331 = vmul.f32 %v326, %v326
  %v332 = vmul.f32 %v328, %v328
  %vm333 = vcmask 261120
  %v334 = vsel %vm333, %v330, 0.0
  %335 = vadd.xlane.f32.xlu0 %v334
  %v336 = vpop.xlane.xlu0 %335
  %v337 = vsel %vm333, %v331, 0.0
  %338 = vadd.xlane.f32.xlu0 %v337
  %v339 = vpop.xlane.xlu0 %338
  %vm340 = vcmask 254976
  %v341 = vsel %vm340, %v332, 0.0
  %342 = vadd.xlane.f32.xlu0 %v341
  %v343 = vpop.xlane.xlu0 %342
  %v344 = vrcp.pop 32.0
  %v345 = vmul.f32 %v336, %v344
  %v346 = vmul.f32 %v339, %v344
  %v347 = vmul.f32 %v343, %v344
  %v348 = vadd.f32 %v345, 1e-06
  %v349 = vadd.f32 %v346, 1e-06
  %v350 = vadd.f32 %v347, 1e-06
  %v351 = vrsqrt.pop %v348
  %v352 = vrsqrt.pop %v349
  %v353 = vrsqrt.pop %v350
  %v354 = vmul.f32 %v324, %v351
  %v355 = vmul.f32 %v326, %v352
  %v356 = vmul.f32 %v328, %v353
  %v358 = vlaneseq
  %v359 = vshrl.u32 %v358, 7
  %v360 = vsub.s32 0, %v359
  %v361 = vrot.slane %v329, %v360
  %v363 = vmul.f32 %v354, %v361
  %v364 = vmul.f32 %v355, %v361
  %v365 = vmul.f32 %v356, %v361
  %v366 = vld [vmem:[%s7] sm:$0xff]
  %v367 = vld [vmem:[%s7 + $0x8] sm:$0xff]
  %v368 = vld [vmem:[%s7 + $0x10] sm:$0xff]
  %v369 = vld [vmem:[%s7 + $0x18] sm:$0xff]
  %v371 = vsel %vm333, %v363, 0
  %v374 = vsel %vm333, %v364, 0
  %v377 = vsel %vm333, %v365, 0
  %379 = vmatprep.subr.mxu0 0.0
  %380 = vmatpush1.msra.mxu0 %v366
  %381 = vmatprep.subr.mxu0 0.0
  %382 = vmatpush1.msra.mxu0 %v367
  %383 = vmatprep.subr.mxu0 0.0
  %384 = vmatpush1.msra.mxu0 %v368
  %385 = vmatprep.subr.mxu0 0.0
  %386 = vmatpush1.msra.mxu0 %v369
  %387 = vmatprep.subr.mxu0 0.0
  %388 = vmatpush1.msra.mxu0 0.0
  %389 = vmatprep.subr.mxu0 0.0
  %390 = vmatpush1.msra.mxu0 0.0
  %391 = vmatprep.subr.mxu0 0.0
  %392 = vmatpush1.msra.mxu0 0.0
  %393 = vmatprep.subr.mxu0 0.0
  %394 = vmatpush1.msra.mxu0 0.0
  %395 = vmatprep.subr.mxu0 0.0
  %396 = vmatpush1.msra.mxu0 0.0
  %397 = vmatprep.subr.mxu0 0.0
  %398 = vmatpush1.msra.mxu0 0.0
  %399 = vmatprep.subr.mxu0 0.0
  %400 = vmatpush1.msra.mxu0 0.0
  %401 = vmatprep.subr.mxu0 0.0
  %402 = vmatpush1.msra.mxu0 0.0
  %403 = vmatprep.subr.mxu0 0.0
  %404 = vmatpush1.msra.mxu0 0.0
  %405 = vmatprep.subr.mxu0 0.0
  %406 = vmatpush1.msra.mxu0 0.0
  %407 = vmatprep.subr.mxu0 0.0
  %408 = vmatpush1.msra.mxu0 0.0
  %409 = vmatprep.subr.mxu0 0.0
  %410 = vmatpush1.msra.mxu0 0.0
  %411 = vmatprep.subr.mxu0 0.0
  %412 = vmatpush1.msra.mxu0 0.0
  %413 = vmatprep.subr.mxu0 0.0
  %414 = vmatpush1.msra.mxu0 0.0
  %415 = vmatprep.subr.mxu0 0.0
  %416 = vmatpush1.msra.mxu0 0.0
  %417 = vmatprep.subr.mxu0 0.0
  %418 = vmatpush1.msra.mxu0 0.0
  %419 = vmatprep.subr.mxu0 0.0
  %420 = vmatpush1.msra.mxu0 0.0
  %421 = vmatprep.subr.mxu0 0.0
  %422 = vmatpush1.msra.mxu0 0.0
  %423 = vmatprep.subr.mxu0 0.0
  %424 = vmatpush1.msra.mxu0 0.0
  %425 = vmatprep.subr.mxu0 0.0
  %426 = vmatpush1.msra.mxu0 0.0
  %427 = vmatprep.subr.mxu0 0.0
  %428 = vmatpush1.msra.mxu0 0.0
  %429 = vmatprep.subr.mxu0 0.0
  %430 = vmatpush1.msra.mxu0 0.0
  %431 = vmatprep.subr.mxu0 0.0
  %432 = vmatpush1.msra.mxu0 0.0
  %433 = vmatprep.subr.mxu0 0.0
  %434 = vmatpush1.msra.mxu0 0.0
  %435 = vmatprep.subr.mxu0 0.0
  %436 = vmatpush1.msra.mxu0 0.0
  %437 = vmatprep.subr.mxu0 0.0
  %438 = vmatpush1.msra.mxu0 0.0
  %439 = vmatprep.subr.mxu0 0.0
  %440 = vmatpush1.msra.mxu0 0.0
  %441 = vmatprep.subr.mxu0 0.0
  %442 = vmatpush1.msra.mxu0 0.0
  %443 = vmatprep.mubr.f32.mxu0 0.0
  %444 = vmatmul.mubr.f32.gmra.mrb[0].mxu0 %v371
  %v445 = vpop.f32.mrb[0].mxu0
  %v446 = vadd.f32 0.0, %v445
  %v447 = vpop.f32.mrb[0].mxu0
  %448 = vmatprep.mubr.f32.mxu0 0.0
  %449 = vmatmul.mubr.f32.gmra.mrb[0].mxu0 %v374
  %v450 = vpop.f32.mrb[0].mxu0
  %v451 = vadd.f32 0.0, %v450
  %v452 = vpop.f32.mrb[0].mxu0
  %453 = vmatprep.mubr.f32.mxu0 0.0
  %454 = vmatmul.mubr.f32.gmra.mrb[0].mxu0 %v377
  %v455 = vpop.f32.mrb[0].mxu0
  %v456 = vadd.f32 0.0, %v455
  %v457 = vpop.f32.mrb[0].mxu0
  %458 = vdwg.mxu0
  %v459 = vld [vmem:[%s3] sm:$0xff]
  %v460 = vld [vmem:[%s3 + $0x8] sm:$0xff]
  %v461 = vld [vmem:[%s3 + $0x10] sm:$0x3]
  %465 = vrot.lane.b32.xlu0 %v446, 96
  %v466 = vpop.permute.xlu0 %465
  %467 = vrot.lane.b32.xlu0 %v451, 96
  %v468 = vpop.permute.xlu0 %467
  %469 = vrot.lane.b32.xlu0 %v456, 96
  %v470 = vpop.permute.xlu0 %469
  %vm471 = vcmask 64512
  %v472 = vsel %vm471, %v446, 0
  %v474 = vsel %vm471, %v451, 0
  %v476 = vsel %vm471, %v456, 0
  %v478 = vsel %vm471, %v466, 0
  %v480 = vsel %vm471, %v468, 0
  %v482 = vsel %vm471, %v470, 0
  %484 = vmatprep.subr.mxu0 0.0
  %485 = vmatpush1.xpose.msra.mxu0 %v478
  %486 = vmatprep.subr.mxu0 0.0
  %487 = vmatpush1.xpose.msra.mxu0 %v480
  %488 = vmatprep.subr.mxu0 0.0
  %489 = vmatpush1.xpose.msra.mxu0 %v482
  %490 = vmatprep.subr.mxu0 0.0
  %491 = vmatpush1.xpose.msra.mxu0 0.0
  %492 = vmatprep.subr.mxu0 0.0
  %493 = vmatpush1.xpose.msra.mxu0 0.0
  %494 = vmatprep.subr.mxu0 0.0
  %495 = vmatpush1.xpose.msra.mxu0 0.0
  %496 = vmatprep.subr.mxu0 0.0
  %497 = vmatpush1.xpose.msra.mxu0 0.0
  %498 = vmatprep.subr.mxu0 0.0
  %499 = vmatpush1.xpose.msra.mxu0 0.0
  %500 = vmatprep.subr.mxu0 0.0
  %501 = vmatpush1.xpose.msra.mxu0 0.0
  %502 = vmatprep.subr.mxu0 0.0
  %503 = vmatpush1.xpose.msra.mxu0 0.0
  %504 = vmatprep.subr.mxu0 0.0
  %505 = vmatpush1.xpose.msra.mxu0 0.0
  %506 = vmatprep.subr.mxu0 0.0
  %507 = vmatpush1.xpose.msra.mxu0 0.0
  %508 = vmatprep.subr.mxu0 0.0
  %509 = vmatpush1.xpose.msra.mxu0 0.0
  %510 = vmatprep.subr.mxu0 0.0
  %511 = vmatpush1.xpose.msra.mxu0 0.0
  %512 = vmatprep.subr.mxu0 0.0
  %513 = vmatpush1.xpose.msra.mxu0 0.0
  %514 = vmatprep.subr.mxu0 0.0
  %515 = vmatpush1.xpose.msra.mxu0 0.0
  %516 = vmatprep.subr.mxu0 0.0
  %517 = vmatpush1.xpose.msra.mxu0 0.0
  %518 = vmatprep.subr.mxu0 0.0
  %519 = vmatpush1.xpose.msra.mxu0 0.0
  %520 = vmatprep.subr.mxu0 0.0
  %521 = vmatpush1.xpose.msra.mxu0 0.0
  %522 = vmatprep.subr.mxu0 0.0
  %523 = vmatpush1.xpose.msra.mxu0 0.0
  %524 = vmatprep.subr.mxu0 0.0
  %525 = vmatpush1.xpose.msra.mxu0 0.0
  %526 = vmatprep.subr.mxu0 0.0
  %527 = vmatpush1.xpose.msra.mxu0 0.0
  %528 = vmatprep.subr.mxu0 0.0
  %529 = vmatpush1.xpose.msra.mxu0 0.0
  %530 = vmatprep.subr.mxu0 0.0
  %531 = vmatpush1.xpose.msra.mxu0 0.0
  %532 = vmatprep.subr.mxu0 0.0
  %533 = vmatpush1.xpose.msra.mxu0 0.0
  %534 = vmatprep.subr.mxu0 0.0
  %535 = vmatpush1.xpose.msra.mxu0 0.0
  %536 = vmatprep.subr.mxu0 0.0
  %537 = vmatpush1.xpose.msra.mxu0 0.0
  %538 = vmatprep.subr.mxu0 0.0
  %539 = vmatpush1.xpose.msra.mxu0 0.0
  %540 = vmatprep.subr.mxu0 0.0
  %541 = vmatpush1.xpose.msra.mxu0 0.0
  %542 = vmatprep.subr.mxu0 0.0
  %543 = vmatpush1.xpose.msra.mxu0 0.0
  %544 = vmatprep.subr.mxu0 0.0
  %545 = vmatpush1.xpose.msra.mxu0 0.0
  %546 = vmatprep.subr.mxu0 0.0
  %547 = vmatpush1.xpose.msra.mxu0 0.0
  %548 = vmatprep.mubr.f32.mxu0 0.0
  %549 = vmatmul.mubr.f32.gmra.mrb[0].mxu0 %v472
  %v550 = vpop.f32.mrb[0].mxu0
  %v551 = vadd.f32 %v459, %v550
  %v552 = vpop.f32.mrb[0].mxu0
  %553 = vmatprep.mubr.f32.mxu0 0.0
  %554 = vmatmul.mubr.f32.gmra.mrb[0].mxu0 %v474
  %v555 = vpop.f32.mrb[0].mxu0
  %v556 = vadd.f32 %v460, %v555
  %v557 = vpop.f32.mrb[0].mxu0
  %558 = vmatprep.mubr.f32.mxu0 0.0
  %559 = vmatmul.mubr.f32.gmra.mrb[0].mxu0 %v476
  %v560 = vpop.f32.mrb[0].mxu0
  %v561 = vadd.f32 %v461, %v560
  %v562 = vpop.f32.mrb[0].mxu0
  %563 = vdwg.mxu0
  %vm564 = vcmask 146432
  %v565 = vsel %vm564, %v551, -inf
  %566 = vmax.xlane.f32.xlu0 %v565
  %v567 = vpop.xlane.xlu0 %566
  %v568 = vsel %vm564, %v556, -inf
  %569 = vmax.xlane.f32.xlu0 %v568
  %v570 = vpop.xlane.xlu0 %569
  %vm571 = vcmask 140288
  %v572 = vsel %vm571, %v561, -inf
  %573 = vmax.xlane.f32.xlu0 %v572
  %v574 = vpop.xlane.xlu0 %573
  %v575 = vsub.f32 %v551, %v567
  %v576 = vsub.f32 %v556, %v570
  %v577 = vsub.f32 %v561, %v574
  %v578 = vmul.f32 %v575, 1.442695
  %v579 = vpow.pop %v578
  %v580 = vmul.f32 %v576, 1.442695
  %v581 = vpow.pop %v580
  %v582 = vmul.f32 %v577, 1.442695
  %v583 = vpow.pop %v582
  %v584 = vsel %vm564, %v579, 0.0
  %585 = vadd.xlane.f32.xlu0 %v584
  %v586 = vpop.xlane.xlu0 %585
  %v587 = vsel %vm564, %v581, 0.0
  %588 = vadd.xlane.f32.xlu0 %v587
  %v589 = vpop.xlane.xlu0 %588
  %v590 = vsel %vm571, %v583, 0.0
  %591 = vadd.xlane.f32.xlu0 %v590
  %v592 = vpop.xlane.xlu0 %591
  %v593 = vrcp.pop %v586
  %v594 = vrcp.pop %v589
  %v595 = vrcp.pop %v592
  %v596 = vmul.f32 %v579, %v593
  %v597 = vmul.f32 %v581, %v594
  %v598 = vmul.f32 %v583, %v595
  %599 = vrot.lane.b32.xlu0 %v446, 64
  %v600 = vpop.permute.xlu0 %599
  %601 = vrot.lane.b32.xlu0 %v451, 64
  %v602 = vpop.permute.xlu0 %601
  %603 = vrot.lane.b32.xlu0 %v456, 64
  %v604 = vpop.permute.xlu0 %603
  %v608 = vsel %vm564, %v596, 0
  %v611 = vsel %vm564, %v597, 0
  %v614 = vsel %vm564, %v598, 0
  %vm616 = vcmask 1041408
  %v617 = vsel %vm616, %v604, 0
  %619 = vmatprep.subr.mxu0 0.0
  %620 = vmatpush1.msra.mxu0 %v600
  %621 = vmatprep.subr.mxu0 0.0
  %622 = vmatpush1.msra.mxu0 %v602
  %623 = vmatprep.subr.mxu0 0.0
  %624 = vmatpush1.msra.mxu0 %v617
  %625 = vmatprep.subr.mxu0 0.0
  %626 = vmatpush1.msra.mxu0 0.0
  %627 = vmatprep.subr.mxu0 0.0
  %628 = vmatpush1.msra.mxu0 0.0
  %629 = vmatprep.subr.mxu0 0.0
  %630 = vmatpush1.msra.mxu0 0.0
  %631 = vmatprep.subr.mxu0 0.0
  %632 = vmatpush1.msra.mxu0 0.0
  %633 = vmatprep.subr.mxu0 0.0
  %634 = vmatpush1.msra.mxu0 0.0
  %635 = vmatprep.subr.mxu0 0.0
  %636 = vmatpush1.msra.mxu0 0.0
  %637 = vmatprep.subr.mxu0 0.0
  %638 = vmatpush1.msra.mxu0 0.0
  %639 = vmatprep.subr.mxu0 0.0
  %640 = vmatpush1.msra.mxu0 0.0
  %641 = vmatprep.subr.mxu0 0.0
  %642 = vmatpush1.msra.mxu0 0.0
  %643 = vmatprep.subr.mxu0 0.0
  %644 = vmatpush1.msra.mxu0 0.0
  %645 = vmatprep.subr.mxu0 0.0
  %646 = vmatpush1.msra.mxu0 0.0
  %647 = vmatprep.subr.mxu0 0.0
  %648 = vmatpush1.msra.mxu0 0.0
  %649 = vmatprep.subr.mxu0 0.0
  %650 = vmatpush1.msra.mxu0 0.0
  %651 = vmatprep.subr.mxu0 0.0
  %652 = vmatpush1.msra.mxu0 0.0
  %653 = vmatprep.subr.mxu0 0.0
  %654 = vmatpush1.msra.mxu0 0.0
  %655 = vmatprep.subr.mxu0 0.0
  %656 = vmatpush1.msra.mxu0 0.0
  %657 = vmatprep.subr.mxu0 0.0
  %658 = vmatpush1.msra.mxu0 0.0
  %659 = vmatprep.subr.mxu0 0.0
  %660 = vmatpush1.msra.mxu0 0.0
  %661 = vmatprep.subr.mxu0 0.0
  %662 = vmatpush1.msra.mxu0 0.0
  %663 = vmatprep.subr.mxu0 0.0
  %664 = vmatpush1.msra.mxu0 0.0
  %665 = vmatprep.subr.mxu0 0.0
  %666 = vmatpush1.msra.mxu0 0.0
  %667 = vmatprep.subr.mxu0 0.0
  %668 = vmatpush1.msra.mxu0 0.0
  %669 = vmatprep.subr.mxu0 0.0
  %670 = vmatpush1.msra.mxu0 0.0
  %671 = vmatprep.subr.mxu0 0.0
  %672 = vmatpush1.msra.mxu0 0.0
  %673 = vmatprep.subr.mxu0 0.0
  %674 = vmatpush1.msra.mxu0 0.0
  %675 = vmatprep.subr.mxu0 0.0
  %676 = vmatpush1.msra.mxu0 0.0
  %677 = vmatprep.subr.mxu0 0.0
  %678 = vmatpush1.msra.mxu0 0.0
  %679 = vmatprep.subr.mxu0 0.0
  %680 = vmatpush1.msra.mxu0 0.0
  %681 = vmatprep.subr.mxu0 0.0
  %682 = vmatpush1.msra.mxu0 0.0
  %683 = vmatprep.mubr.f32.mxu0 0.0
  %684 = vmatmul.mubr.f32.gmra.mrb[0].mxu0 %v608
  %v685 = vpop.f32.mrb[0].mxu0
  %v686 = vadd.f32 0.0, %v685
  %v687 = vpop.f32.mrb[0].mxu0
  %688 = vmatprep.mubr.f32.mxu0 0.0
  %689 = vmatmul.mubr.f32.gmra.mrb[0].mxu0 %v611
  %v690 = vpop.f32.mrb[0].mxu0
  %v691 = vadd.f32 0.0, %v690
  %v692 = vpop.f32.mrb[0].mxu0
  %693 = vmatprep.mubr.f32.mxu0 0.0
  %694 = vmatmul.mubr.f32.gmra.mrb[0].mxu0 %v614
  %v695 = vpop.f32.mrb[0].mxu0
  %v696 = vadd.f32 0.0, %v695
  %v697 = vpop.f32.mrb[0].mxu0
  %698 = vdwg.mxu0
  %s699 = scalar_lea.vmem %s3, 24
  %v700 = vld [vmem:[%s699] sm:$0xff]
  %v701 = vld [vmem:[%s699 + $0x8] sm:$0xff]
  %v702 = vld [vmem:[%s699 + $0x10] sm:$0x3]
  %703 = vrot.lane.b32.xlu0 %v446, 120
  %v704 = vpop.permute.xlu0 %703
  %705 = vrot.lane.b32.xlu0 %v451, 120
  %v706 = vpop.permute.xlu0 %705
  %707 = vrot.lane.b32.xlu0 %v456, 120
  %v708 = vpop.permute.xlu0 %707
  %709 = vrot.lane.b32.xlu0 %v446, 88
  %v710 = vpop.permute.xlu0 %709
  %711 = vrot.lane.b32.xlu0 %v451, 88
  %v712 = vpop.permute.xlu0 %711
  %713 = vrot.lane.b32.xlu0 %v456, 88
  %v714 = vpop.permute.xlu0 %713
  %v715 = vsel %vm471, %v704, 0
  %v717 = vsel %vm471, %v706, 0
  %v719 = vsel %vm471, %v708, 0
  %v721 = vsel %vm471, %v710, 0
  %v723 = vsel %vm471, %v712, 0
  %v725 = vsel %vm471, %v714, 0
  %727 = vmatprep.subr.mxu0 0.0
  %728 = vmatpush1.xpose.msra.mxu0 %v721
  %729 = vmatprep.subr.mxu0 0.0
  %730 = vmatpush1.xpose.msra.mxu0 %v723
  %731 = vmatprep.subr.mxu0 0.0
  %732 = vmatpush1.xpose.msra.mxu0 %v725
  %733 = vmatprep.subr.mxu0 0.0
  %734 = vmatpush1.xpose.msra.mxu0 0.0
  %735 = vmatprep.subr.mxu0 0.0
  %736 = vmatpush1.xpose.msra.mxu0 0.0
  %737 = vmatprep.subr.mxu0 0.0
  %738 = vmatpush1.xpose.msra.mxu0 0.0
  %739 = vmatprep.subr.mxu0 0.0
  %740 = vmatpush1.xpose.msra.mxu0 0.0
  %741 = vmatprep.subr.mxu0 0.0
  %742 = vmatpush1.xpose.msra.mxu0 0.0
  %743 = vmatprep.subr.mxu0 0.0
  %744 = vmatpush1.xpose.msra.mxu0 0.0
  %745 = vmatprep.subr.mxu0 0.0
  %746 = vmatpush1.xpose.msra.mxu0 0.0
  %747 = vmatprep.subr.mxu0 0.0
  %748 = vmatpush1.xpose.msra.mxu0 0.0
  %749 = vmatprep.subr.mxu0 0.0
  %750 = vmatpush1.xpose.msra.mxu0 0.0
  %751 = vmatprep.subr.mxu0 0.0
  %752 = vmatpush1.xpose.msra.mxu0 0.0
  %753 = vmatprep.subr.mxu0 0.0
  %754 = vmatpush1.xpose.msra.mxu0 0.0
  %755 = vmatprep.subr.mxu0 0.0
  %756 = vmatpush1.xpose.msra.mxu0 0.0
  %757 = vmatprep.subr.mxu0 0.0
  %758 = vmatpush1.xpose.msra.mxu0 0.0
  %759 = vmatprep.subr.mxu0 0.0
  %760 = vmatpush1.xpose.msra.mxu0 0.0
  %761 = vmatprep.subr.mxu0 0.0
  %762 = vmatpush1.xpose.msra.mxu0 0.0
  %763 = vmatprep.subr.mxu0 0.0
  %764 = vmatpush1.xpose.msra.mxu0 0.0
  %765 = vmatprep.subr.mxu0 0.0
  %766 = vmatpush1.xpose.msra.mxu0 0.0
  %767 = vmatprep.subr.mxu0 0.0
  %768 = vmatpush1.xpose.msra.mxu0 0.0
  %769 = vmatprep.subr.mxu0 0.0
  %770 = vmatpush1.xpose.msra.mxu0 0.0
  %771 = vmatprep.subr.mxu0 0.0
  %772 = vmatpush1.xpose.msra.mxu0 0.0
  %773 = vmatprep.subr.mxu0 0.0
  %774 = vmatpush1.xpose.msra.mxu0 0.0
  %775 = vmatprep.subr.mxu0 0.0
  %776 = vmatpush1.xpose.msra.mxu0 0.0
  %777 = vmatprep.subr.mxu0 0.0
  %778 = vmatpush1.xpose.msra.mxu0 0.0
  %779 = vmatprep.subr.mxu0 0.0
  %780 = vmatpush1.xpose.msra.mxu0 0.0
  %781 = vmatprep.subr.mxu0 0.0
  %782 = vmatpush1.xpose.msra.mxu0 0.0
  %783 = vmatprep.subr.mxu0 0.0
  %784 = vmatpush1.xpose.msra.mxu0 0.0
  %785 = vmatprep.subr.mxu0 0.0
  %786 = vmatpush1.xpose.msra.mxu0 0.0
  %787 = vmatprep.subr.mxu0 0.0
  %788 = vmatpush1.xpose.msra.mxu0 0.0
  %789 = vmatprep.subr.mxu0 0.0
  %790 = vmatpush1.xpose.msra.mxu0 0.0
  %791 = vmatprep.mubr.f32.mxu0 0.0
  %792 = vmatmul.mubr.f32.gmra.mrb[0].mxu0 %v715
  %v793 = vpop.f32.mrb[0].mxu0
  %v794 = vadd.f32 %v700, %v793
  %v795 = vpop.f32.mrb[0].mxu0
  %796 = vmatprep.mubr.f32.mxu0 0.0
  %797 = vmatmul.mubr.f32.gmra.mrb[0].mxu0 %v717
  %v798 = vpop.f32.mrb[0].mxu0
  %v799 = vadd.f32 %v701, %v798
  %v800 = vpop.f32.mrb[0].mxu0
  %801 = vmatprep.mubr.f32.mxu0 0.0
  %802 = vmatmul.mubr.f32.gmra.mrb[0].mxu0 %v719
  %v803 = vpop.f32.mrb[0].mxu0
  %v804 = vadd.f32 %v702, %v803
  %v805 = vpop.f32.mrb[0].mxu0
  %806 = vdwg.mxu0
  %v807 = vsel %vm564, %v794, -inf
  %808 = vmax.xlane.f32.xlu0 %v807
  %v809 = vpop.xlane.xlu0 %808
  %v810 = vsel %vm564, %v799, -inf
  %811 = vmax.xlane.f32.xlu0 %v810
  %v812 = vpop.xlane.xlu0 %811
  %v813 = vsel %vm571, %v804, -inf
  %814 = vmax.xlane.f32.xlu0 %v813
  %v815 = vpop.xlane.xlu0 %814
  %v816 = vsub.f32 %v794, %v809
  %v817 = vsub.f32 %v799, %v812
  %v818 = vsub.f32 %v804, %v815
  %v819 = vmul.f32 %v816, 1.442695
  %v820 = vpow.pop %v819
  %v821 = vmul.f32 %v817, 1.442695
  %v822 = vpow.pop %v821
  %v823 = vmul.f32 %v818, 1.442695
  %v824 = vpow.pop %v823
  %v825 = vsel %vm564, %v820, 0.0
  %826 = vadd.xlane.f32.xlu0 %v825
  %v827 = vpop.xlane.xlu0 %826
  %v828 = vsel %vm564, %v822, 0.0
  %829 = vadd.xlane.f32.xlu0 %v828
  %v830 = vpop.xlane.xlu0 %829
  %v831 = vsel %vm571, %v824, 0.0
  %832 = vadd.xlane.f32.xlu0 %v831
  %v833 = vpop.xlane.xlu0 %832
  %v834 = vrcp.pop %v827
  %v835 = vrcp.pop %v830
  %v836 = vrcp.pop %v833
  %v837 = vmul.f32 %v820, %v834
  %v838 = vmul.f32 %v822, %v835
  %v839 = vmul.f32 %v824, %v836
  %840 = vrot.lane.b32.xlu0 %v446, 56
  %v841 = vpop.permute.xlu0 %840
  %842 = vrot.lane.b32.xlu0 %v451, 56
  %v843 = vpop.permute.xlu0 %842
  %844 = vrot.lane.b32.xlu0 %v456, 56
  %v845 = vpop.permute.xlu0 %844
  %v849 = vsel %vm564, %v837, 0
  %v852 = vsel %vm564, %v838, 0
  %v855 = vsel %vm564, %v839, 0
  %v857 = vsel %vm616, %v845, 0
  %859 = vmatprep.subr.mxu0 0.0
  %860 = vmatpush1.msra.mxu0 %v841
  %861 = vmatprep.subr.mxu0 0.0
  %862 = vmatpush1.msra.mxu0 %v843
  %863 = vmatprep.subr.mxu0 0.0
  %864 = vmatpush1.msra.mxu0 %v857
  %865 = vmatprep.subr.mxu0 0.0
  %866 = vmatpush1.msra.mxu0 0.0
  %867 = vmatprep.subr.mxu0 0.0
  %868 = vmatpush1.msra.mxu0 0.0
  %869 = vmatprep.subr.mxu0 0.0
  %870 = vmatpush1.msra.mxu0 0.0
  %871 = vmatprep.subr.mxu0 0.0
  %872 = vmatpush1.msra.mxu0 0.0
  %873 = vmatprep.subr.mxu0 0.0
  %874 = vmatpush1.msra.mxu0 0.0
  %875 = vmatprep.subr.mxu0 0.0
  %876 = vmatpush1.msra.mxu0 0.0
  %877 = vmatprep.subr.mxu0 0.0
  %878 = vmatpush1.msra.mxu0 0.0
  %879 = vmatprep.subr.mxu0 0.0
  %880 = vmatpush1.msra.mxu0 0.0
  %881 = vmatprep.subr.mxu0 0.0
  %882 = vmatpush1.msra.mxu0 0.0
  %883 = vmatprep.subr.mxu0 0.0
  %884 = vmatpush1.msra.mxu0 0.0
  %885 = vmatprep.subr.mxu0 0.0
  %886 = vmatpush1.msra.mxu0 0.0
  %887 = vmatprep.subr.mxu0 0.0
  %888 = vmatpush1.msra.mxu0 0.0
  %889 = vmatprep.subr.mxu0 0.0
  %890 = vmatpush1.msra.mxu0 0.0
  %891 = vmatprep.subr.mxu0 0.0
  %892 = vmatpush1.msra.mxu0 0.0
  %893 = vmatprep.subr.mxu0 0.0
  %894 = vmatpush1.msra.mxu0 0.0
  %895 = vmatprep.subr.mxu0 0.0
  %896 = vmatpush1.msra.mxu0 0.0
  %897 = vmatprep.subr.mxu0 0.0
  %898 = vmatpush1.msra.mxu0 0.0
  %899 = vmatprep.subr.mxu0 0.0
  %900 = vmatpush1.msra.mxu0 0.0
  %901 = vmatprep.subr.mxu0 0.0
  %902 = vmatpush1.msra.mxu0 0.0
  %903 = vmatprep.subr.mxu0 0.0
  %904 = vmatpush1.msra.mxu0 0.0
  %905 = vmatprep.subr.mxu0 0.0
  %906 = vmatpush1.msra.mxu0 0.0
  %907 = vmatprep.subr.mxu0 0.0
  %908 = vmatpush1.msra.mxu0 0.0
  %909 = vmatprep.subr.mxu0 0.0
  %910 = vmatpush1.msra.mxu0 0.0
  %911 = vmatprep.subr.mxu0 0.0
  %912 = vmatpush1.msra.mxu0 0.0
  %913 = vmatprep.subr.mxu0 0.0
  %914 = vmatpush1.msra.mxu0 0.0
  %915 = vmatprep.subr.mxu0 0.0
  %916 = vmatpush1.msra.mxu0 0.0
  %917 = vmatprep.subr.mxu0 0.0
  %918 = vmatpush1.msra.mxu0 0.0
  %919 = vmatprep.subr.mxu0 0.0
  %920 = vmatpush1.msra.mxu0 0.0
  %921 = vmatprep.subr.mxu0 0.0
  %922 = vmatpush1.msra.mxu0 0.0
  %923 = vmatprep.mubr.f32.mxu0 0.0
  %924 = vmatmul.mubr.f32.gmra.mrb[0].mxu0 %v849
  %v925 = vpop.f32.mrb[0].mxu0
  %v926 = vadd.f32 0.0, %v925
  %v927 = vpop.f32.mrb[0].mxu0
  %928 = vmatprep.mubr.f32.mxu0 0.0
  %929 = vmatmul.mubr.f32.gmra.mrb[0].mxu0 %v852
  %v930 = vpop.f32.mrb[0].mxu0
  %v931 = vadd.f32 0.0, %v930
  %v932 = vpop.f32.mrb[0].mxu0
  %933 = vmatprep.mubr.f32.mxu0 0.0
  %934 = vmatmul.mubr.f32.gmra.mrb[0].mxu0 %v855
  %v935 = vpop.f32.mrb[0].mxu0
  %v936 = vadd.f32 0.0, %v935
  %v937 = vpop.f32.mrb[0].mxu0
  %938 = vdwg.mxu0
  %s939 = scalar_lea.vmem %s3, 48
  %v940 = vld [vmem:[%s939] sm:$0xff]
  %v941 = vld [vmem:[%s939 + $0x8] sm:$0xff]
  %v942 = vld [vmem:[%s939 + $0x10] sm:$0x3]
  %943 = vrot.lane.b32.xlu0 %v446, 112
  %v944 = vpop.permute.xlu0 %943
  %945 = vrot.lane.b32.xlu0 %v451, 112
  %v946 = vpop.permute.xlu0 %945
  %947 = vrot.lane.b32.xlu0 %v456, 112
  %v948 = vpop.permute.xlu0 %947
  %949 = vrot.lane.b32.xlu0 %v446, 80
  %v950 = vpop.permute.xlu0 %949
  %951 = vrot.lane.b32.xlu0 %v451, 80
  %v952 = vpop.permute.xlu0 %951
  %953 = vrot.lane.b32.xlu0 %v456, 80
  %v954 = vpop.permute.xlu0 %953
  %v955 = vsel %vm471, %v944, 0
  %v957 = vsel %vm471, %v946, 0
  %v959 = vsel %vm471, %v948, 0
  %v961 = vsel %vm471, %v950, 0
  %v963 = vsel %vm471, %v952, 0
  %v965 = vsel %vm471, %v954, 0
  %967 = vmatprep.subr.mxu0 0.0
  %968 = vmatpush1.xpose.msra.mxu0 %v961
  %969 = vmatprep.subr.mxu0 0.0
  %970 = vmatpush1.xpose.msra.mxu0 %v963
  %971 = vmatprep.subr.mxu0 0.0
  %972 = vmatpush1.xpose.msra.mxu0 %v965
  %973 = vmatprep.subr.mxu0 0.0
  %974 = vmatpush1.xpose.msra.mxu0 0.0
  %975 = vmatprep.subr.mxu0 0.0
  %976 = vmatpush1.xpose.msra.mxu0 0.0
  %977 = vmatprep.subr.mxu0 0.0
  %978 = vmatpush1.xpose.msra.mxu0 0.0
  %979 = vmatprep.subr.mxu0 0.0
  %980 = vmatpush1.xpose.msra.mxu0 0.0
  %981 = vmatprep.subr.mxu0 0.0
  %982 = vmatpush1.xpose.msra.mxu0 0.0
  %983 = vmatprep.subr.mxu0 0.0
  %984 = vmatpush1.xpose.msra.mxu0 0.0
  %985 = vmatprep.subr.mxu0 0.0
  %986 = vmatpush1.xpose.msra.mxu0 0.0
  %987 = vmatprep.subr.mxu0 0.0
  %988 = vmatpush1.xpose.msra.mxu0 0.0
  %989 = vmatprep.subr.mxu0 0.0
  %990 = vmatpush1.xpose.msra.mxu0 0.0
  %991 = vmatprep.subr.mxu0 0.0
  %992 = vmatpush1.xpose.msra.mxu0 0.0
  %993 = vmatprep.subr.mxu0 0.0
  %994 = vmatpush1.xpose.msra.mxu0 0.0
  %995 = vmatprep.subr.mxu0 0.0
  %996 = vmatpush1.xpose.msra.mxu0 0.0
  %997 = vmatprep.subr.mxu0 0.0
  %998 = vmatpush1.xpose.msra.mxu0 0.0
  %999 = vmatprep.subr.mxu0 0.0
  %1000 = vmatpush1.xpose.msra.mxu0 0.0
  %1001 = vmatprep.subr.mxu0 0.0
  %1002 = vmatpush1.xpose.msra.mxu0 0.0
  %1003 = vmatprep.subr.mxu0 0.0
  %1004 = vmatpush1.xpose.msra.mxu0 0.0
  %1005 = vmatprep.subr.mxu0 0.0
  %1006 = vmatpush1.xpose.msra.mxu0 0.0
  %1007 = vmatprep.subr.mxu0 0.0
  %1008 = vmatpush1.xpose.msra.mxu0 0.0
  %1009 = vmatprep.subr.mxu0 0.0
  %1010 = vmatpush1.xpose.msra.mxu0 0.0
  %1011 = vmatprep.subr.mxu0 0.0
  %1012 = vmatpush1.xpose.msra.mxu0 0.0
  %1013 = vmatprep.subr.mxu0 0.0
  %1014 = vmatpush1.xpose.msra.mxu0 0.0
  %1015 = vmatprep.subr.mxu0 0.0
  %1016 = vmatpush1.xpose.msra.mxu0 0.0
  %1017 = vmatprep.subr.mxu0 0.0
  %1018 = vmatpush1.xpose.msra.mxu0 0.0
  %1019 = vmatprep.subr.mxu0 0.0
  %1020 = vmatpush1.xpose.msra.mxu0 0.0
  %1021 = vmatprep.subr.mxu0 0.0
  %1022 = vmatpush1.xpose.msra.mxu0 0.0
  %1023 = vmatprep.subr.mxu0 0.0
  %1024 = vmatpush1.xpose.msra.mxu0 0.0
  %1025 = vmatprep.subr.mxu0 0.0
  %1026 = vmatpush1.xpose.msra.mxu0 0.0
  %1027 = vmatprep.subr.mxu0 0.0
  %1028 = vmatpush1.xpose.msra.mxu0 0.0
  %1029 = vmatprep.subr.mxu0 0.0
  %1030 = vmatpush1.xpose.msra.mxu0 0.0
  %1031 = vmatprep.mubr.f32.mxu0 0.0
  %1032 = vmatmul.mubr.f32.gmra.mrb[0].mxu0 %v955
  %v1033 = vpop.f32.mrb[0].mxu0
  %v1034 = vadd.f32 %v940, %v1033
  %v1035 = vpop.f32.mrb[0].mxu0
  %1036 = vmatprep.mubr.f32.mxu0 0.0
  %1037 = vmatmul.mubr.f32.gmra.mrb[0].mxu0 %v957
  %v1038 = vpop.f32.mrb[0].mxu0
  %v1039 = vadd.f32 %v941, %v1038
  %v1040 = vpop.f32.mrb[0].mxu0
  %1041 = vmatprep.mubr.f32.mxu0 0.0
  %1042 = vmatmul.mubr.f32.gmra.mrb[0].mxu0 %v959
  %v1043 = vpop.f32.mrb[0].mxu0
  %v1044 = vadd.f32 %v942, %v1043
  %v1045 = vpop.f32.mrb[0].mxu0
  %1046 = vdwg.mxu0
  %v1047 = vsel %vm564, %v1034, -inf
  %1048 = vmax.xlane.f32.xlu0 %v1047
  %v1049 = vpop.xlane.xlu0 %1048
  %v1050 = vsel %vm564, %v1039, -inf
  %1051 = vmax.xlane.f32.xlu0 %v1050
  %v1052 = vpop.xlane.xlu0 %1051
  %v1053 = vsel %vm571, %v1044, -inf
  %1054 = vmax.xlane.f32.xlu0 %v1053
  %v1055 = vpop.xlane.xlu0 %1054
  %v1056 = vsub.f32 %v1034, %v1049
  %v1057 = vsub.f32 %v1039, %v1052
  %v1058 = vsub.f32 %v1044, %v1055
  %v1059 = vmul.f32 %v1056, 1.442695
  %v1060 = vpow.pop %v1059
  %v1061 = vmul.f32 %v1057, 1.442695
  %v1062 = vpow.pop %v1061
  %v1063 = vmul.f32 %v1058, 1.442695
  %v1064 = vpow.pop %v1063
  %v1065 = vsel %vm564, %v1060, 0.0
  %1066 = vadd.xlane.f32.xlu0 %v1065
  %v1067 = vpop.xlane.xlu0 %1066
  %v1068 = vsel %vm564, %v1062, 0.0
  %1069 = vadd.xlane.f32.xlu0 %v1068
  %v1070 = vpop.xlane.xlu0 %1069
  %v1071 = vsel %vm571, %v1064, 0.0
  %1072 = vadd.xlane.f32.xlu0 %v1071
  %v1073 = vpop.xlane.xlu0 %1072
  %v1074 = vrcp.pop %v1067
  %v1075 = vrcp.pop %v1070
  %v1076 = vrcp.pop %v1073
  %v1077 = vmul.f32 %v1060, %v1074
  %v1078 = vmul.f32 %v1062, %v1075
  %v1079 = vmul.f32 %v1064, %v1076
  %1080 = vrot.lane.b32.xlu0 %v446, 48
  %v1081 = vpop.permute.xlu0 %1080
  %1082 = vrot.lane.b32.xlu0 %v451, 48
  %v1083 = vpop.permute.xlu0 %1082
  %1084 = vrot.lane.b32.xlu0 %v456, 48
  %v1085 = vpop.permute.xlu0 %1084
  %v1089 = vsel %vm564, %v1077, 0
  %v1092 = vsel %vm564, %v1078, 0
  %v1095 = vsel %vm564, %v1079, 0
  %v1097 = vsel %vm616, %v1085, 0
  %1099 = vmatprep.subr.mxu0 0.0
  %1100 = vmatpush1.msra.mxu0 %v1081
  %1101 = vmatprep.subr.mxu0 0.0
  %1102 = vmatpush1.msra.mxu0 %v1083
  %1103 = vmatprep.subr.mxu0 0.0
  %1104 = vmatpush1.msra.mxu0 %v1097
  %1105 = vmatprep.subr.mxu0 0.0
  %1106 = vmatpush1.msra.mxu0 0.0
  %1107 = vmatprep.subr.mxu0 0.0
  %1108 = vmatpush1.msra.mxu0 0.0
  %1109 = vmatprep.subr.mxu0 0.0
  %1110 = vmatpush1.msra.mxu0 0.0
  %1111 = vmatprep.subr.mxu0 0.0
  %1112 = vmatpush1.msra.mxu0 0.0
  %1113 = vmatprep.subr.mxu0 0.0
  %1114 = vmatpush1.msra.mxu0 0.0
  %1115 = vmatprep.subr.mxu0 0.0
  %1116 = vmatpush1.msra.mxu0 0.0
  %1117 = vmatprep.subr.mxu0 0.0
  %1118 = vmatpush1.msra.mxu0 0.0
  %1119 = vmatprep.subr.mxu0 0.0
  %1120 = vmatpush1.msra.mxu0 0.0
  %1121 = vmatprep.subr.mxu0 0.0
  %1122 = vmatpush1.msra.mxu0 0.0
  %1123 = vmatprep.subr.mxu0 0.0
  %1124 = vmatpush1.msra.mxu0 0.0
  %1125 = vmatprep.subr.mxu0 0.0
  %1126 = vmatpush1.msra.mxu0 0.0
  %1127 = vmatprep.subr.mxu0 0.0
  %1128 = vmatpush1.msra.mxu0 0.0
  %1129 = vmatprep.subr.mxu0 0.0
  %1130 = vmatpush1.msra.mxu0 0.0
  %1131 = vmatprep.subr.mxu0 0.0
  %1132 = vmatpush1.msra.mxu0 0.0
  %1133 = vmatprep.subr.mxu0 0.0
  %1134 = vmatpush1.msra.mxu0 0.0
  %1135 = vmatprep.subr.mxu0 0.0
  %1136 = vmatpush1.msra.mxu0 0.0
  %1137 = vmatprep.subr.mxu0 0.0
  %1138 = vmatpush1.msra.mxu0 0.0
  %1139 = vmatprep.subr.mxu0 0.0
  %1140 = vmatpush1.msra.mxu0 0.0
  %1141 = vmatprep.subr.mxu0 0.0
  %1142 = vmatpush1.msra.mxu0 0.0
  %1143 = vmatprep.subr.mxu0 0.0
  %1144 = vmatpush1.msra.mxu0 0.0
  %1145 = vmatprep.subr.mxu0 0.0
  %1146 = vmatpush1.msra.mxu0 0.0
  %1147 = vmatprep.subr.mxu0 0.0
  %1148 = vmatpush1.msra.mxu0 0.0
  %1149 = vmatprep.subr.mxu0 0.0
  %1150 = vmatpush1.msra.mxu0 0.0
  %1151 = vmatprep.subr.mxu0 0.0
  %1152 = vmatpush1.msra.mxu0 0.0
  %1153 = vmatprep.subr.mxu0 0.0
  %1154 = vmatpush1.msra.mxu0 0.0
  %1155 = vmatprep.subr.mxu0 0.0
  %1156 = vmatpush1.msra.mxu0 0.0
  %1157 = vmatprep.subr.mxu0 0.0
  %1158 = vmatpush1.msra.mxu0 0.0
  %1159 = vmatprep.subr.mxu0 0.0
  %1160 = vmatpush1.msra.mxu0 0.0
  %1161 = vmatprep.subr.mxu0 0.0
  %1162 = vmatpush1.msra.mxu0 0.0
  %1163 = vmatprep.mubr.f32.mxu0 0.0
  %1164 = vmatmul.mubr.f32.gmra.mrb[0].mxu0 %v1089
  %v1165 = vpop.f32.mrb[0].mxu0
  %v1166 = vadd.f32 0.0, %v1165
  %v1167 = vpop.f32.mrb[0].mxu0
  %1168 = vmatprep.mubr.f32.mxu0 0.0
  %1169 = vmatmul.mubr.f32.gmra.mrb[0].mxu0 %v1092
  %v1170 = vpop.f32.mrb[0].mxu0
  %v1171 = vadd.f32 0.0, %v1170
  %v1172 = vpop.f32.mrb[0].mxu0
  %1173 = vmatprep.mubr.f32.mxu0 0.0
  %1174 = vmatmul.mubr.f32.gmra.mrb[0].mxu0 %v1095
  %v1175 = vpop.f32.mrb[0].mxu0
  %v1176 = vadd.f32 0.0, %v1175
  %v1177 = vpop.f32.mrb[0].mxu0
  %1178 = vdwg.mxu0
  %s1179 = scalar_lea.vmem %s3, 72
  %v1180 = vld [vmem:[%s1179] sm:$0xff]
  %v1181 = vld [vmem:[%s1179 + $0x8] sm:$0xff]
  %v1182 = vld [vmem:[%s1179 + $0x10] sm:$0x3]
  %1183 = vrot.lane.b32.xlu0 %v446, 104
  %v1184 = vpop.permute.xlu0 %1183
  %1185 = vrot.lane.b32.xlu0 %v451, 104
  %v1186 = vpop.permute.xlu0 %1185
  %1187 = vrot.lane.b32.xlu0 %v456, 104
  %v1188 = vpop.permute.xlu0 %1187
  %1189 = vrot.lane.b32.xlu0 %v446, 72
  %v1190 = vpop.permute.xlu0 %1189
  %1191 = vrot.lane.b32.xlu0 %v451, 72
  %v1192 = vpop.permute.xlu0 %1191
  %1193 = vrot.lane.b32.xlu0 %v456, 72
  %v1194 = vpop.permute.xlu0 %1193
  %v1195 = vsel %vm471, %v1184, 0
  %v1197 = vsel %vm471, %v1186, 0
  %v1199 = vsel %vm471, %v1188, 0
  %v1201 = vsel %vm471, %v1190, 0
  %v1203 = vsel %vm471, %v1192, 0
  %v1205 = vsel %vm471, %v1194, 0
  %1207 = vmatprep.subr.mxu0 0.0
  %1208 = vmatpush1.xpose.msra.mxu0 %v1201
  %1209 = vmatprep.subr.mxu0 0.0
  %1210 = vmatpush1.xpose.msra.mxu0 %v1203
  %1211 = vmatprep.subr.mxu0 0.0
  %1212 = vmatpush1.xpose.msra.mxu0 %v1205
  %1213 = vmatprep.subr.mxu0 0.0
  %1214 = vmatpush1.xpose.msra.mxu0 0.0
  %1215 = vmatprep.subr.mxu0 0.0
  %1216 = vmatpush1.xpose.msra.mxu0 0.0
  %1217 = vmatprep.subr.mxu0 0.0
  %1218 = vmatpush1.xpose.msra.mxu0 0.0
  %1219 = vmatprep.subr.mxu0 0.0
  %1220 = vmatpush1.xpose.msra.mxu0 0.0
  %1221 = vmatprep.subr.mxu0 0.0
  %1222 = vmatpush1.xpose.msra.mxu0 0.0
  %1223 = vmatprep.subr.mxu0 0.0
  %1224 = vmatpush1.xpose.msra.mxu0 0.0
  %1225 = vmatprep.subr.mxu0 0.0
  %1226 = vmatpush1.xpose.msra.mxu0 0.0
  %1227 = vmatprep.subr.mxu0 0.0
  %1228 = vmatpush1.xpose.msra.mxu0 0.0
  %1229 = vmatprep.subr.mxu0 0.0
  %1230 = vmatpush1.xpose.msra.mxu0 0.0
  %1231 = vmatprep.subr.mxu0 0.0
  %1232 = vmatpush1.xpose.msra.mxu0 0.0
  %1233 = vmatprep.subr.mxu0 0.0
  %1234 = vmatpush1.xpose.msra.mxu0 0.0
  %1235 = vmatprep.subr.mxu0 0.0
  %1236 = vmatpush1.xpose.msra.mxu0 0.0
  %1237 = vmatprep.subr.mxu0 0.0
  %1238 = vmatpush1.xpose.msra.mxu0 0.0
  %1239 = vmatprep.subr.mxu0 0.0
  %1240 = vmatpush1.xpose.msra.mxu0 0.0
  %1241 = vmatprep.subr.mxu0 0.0
  %1242 = vmatpush1.xpose.msra.mxu0 0.0
  %1243 = vmatprep.subr.mxu0 0.0
  %1244 = vmatpush1.xpose.msra.mxu0 0.0
  %1245 = vmatprep.subr.mxu0 0.0
  %1246 = vmatpush1.xpose.msra.mxu0 0.0
  %1247 = vmatprep.subr.mxu0 0.0
  %1248 = vmatpush1.xpose.msra.mxu0 0.0
  %1249 = vmatprep.subr.mxu0 0.0
  %1250 = vmatpush1.xpose.msra.mxu0 0.0
  %1251 = vmatprep.subr.mxu0 0.0
  %1252 = vmatpush1.xpose.msra.mxu0 0.0
  %1253 = vmatprep.subr.mxu0 0.0
  %1254 = vmatpush1.xpose.msra.mxu0 0.0
  %1255 = vmatprep.subr.mxu0 0.0
  %1256 = vmatpush1.xpose.msra.mxu0 0.0
  %1257 = vmatprep.subr.mxu0 0.0
  %1258 = vmatpush1.xpose.msra.mxu0 0.0
  %1259 = vmatprep.subr.mxu0 0.0
  %1260 = vmatpush1.xpose.msra.mxu0 0.0
  %1261 = vmatprep.subr.mxu0 0.0
  %1262 = vmatpush1.xpose.msra.mxu0 0.0
  %1263 = vmatprep.subr.mxu0 0.0
  %1264 = vmatpush1.xpose.msra.mxu0 0.0
  %1265 = vmatprep.subr.mxu0 0.0
  %1266 = vmatpush1.xpose.msra.mxu0 0.0
  %1267 = vmatprep.subr.mxu0 0.0
  %1268 = vmatpush1.xpose.msra.mxu0 0.0
  %1269 = vmatprep.subr.mxu0 0.0
  %1270 = vmatpush1.xpose.msra.mxu0 0.0
  %1271 = vmatprep.mubr.f32.mxu0 0.0
  %1272 = vmatmul.mubr.f32.gmra.mrb[0].mxu0 %v1195
  %v1273 = vpop.f32.mrb[0].mxu0
  %v1274 = vadd.f32 %v1180, %v1273
  %v1275 = vpop.f32.mrb[0].mxu0
  %1276 = vmatprep.mubr.f32.mxu0 0.0
  %1277 = vmatmul.mubr.f32.gmra.mrb[0].mxu0 %v1197
  %v1278 = vpop.f32.mrb[0].mxu0
  %v1279 = vadd.f32 %v1181, %v1278
  %v1280 = vpop.f32.mrb[0].mxu0
  %1281 = vmatprep.mubr.f32.mxu0 0.0
  %1282 = vmatmul.mubr.f32.gmra.mrb[0].mxu0 %v1199
  %v1283 = vpop.f32.mrb[0].mxu0
  %v1284 = vadd.f32 %v1182, %v1283
  %v1285 = vpop.f32.mrb[0].mxu0
  %1286 = vdwg.mxu0
  %v1287 = vsel %vm564, %v1274, -inf
  %1288 = vmax.xlane.f32.xlu0 %v1287
  %v1289 = vpop.xlane.xlu0 %1288
  %v1290 = vsel %vm564, %v1279, -inf
  %1291 = vmax.xlane.f32.xlu0 %v1290
  %v1292 = vpop.xlane.xlu0 %1291
  %v1293 = vsel %vm571, %v1284, -inf
  %1294 = vmax.xlane.f32.xlu0 %v1293
  %v1295 = vpop.xlane.xlu0 %1294
  %v1296 = vsub.f32 %v1274, %v1289
  %v1297 = vsub.f32 %v1279, %v1292
  %v1298 = vsub.f32 %v1284, %v1295
  %v1299 = vmul.f32 %v1296, 1.442695
  %v1300 = vpow.pop %v1299
  %v1301 = vmul.f32 %v1297, 1.442695
  %v1302 = vpow.pop %v1301
  %v1303 = vmul.f32 %v1298, 1.442695
  %v1304 = vpow.pop %v1303
  %v1305 = vsel %vm564, %v1300, 0.0
  %1306 = vadd.xlane.f32.xlu0 %v1305
  %v1307 = vpop.xlane.xlu0 %1306
  %v1308 = vsel %vm564, %v1302, 0.0
  %1309 = vadd.xlane.f32.xlu0 %v1308
  %v1310 = vpop.xlane.xlu0 %1309
  %v1311 = vsel %vm571, %v1304, 0.0
  %1312 = vadd.xlane.f32.xlu0 %v1311
  %v1313 = vpop.xlane.xlu0 %1312
  %v1314 = vrcp.pop %v1307
  %v1315 = vrcp.pop %v1310
  %v1316 = vrcp.pop %v1313
  %v1317 = vmul.f32 %v1300, %v1314
  %v1318 = vmul.f32 %v1302, %v1315
  %v1319 = vmul.f32 %v1304, %v1316
  %1320 = vrot.lane.b32.xlu0 %v446, 40
  %v1321 = vpop.permute.xlu0 %1320
  %1322 = vrot.lane.b32.xlu0 %v451, 40
  %v1323 = vpop.permute.xlu0 %1322
  %1324 = vrot.lane.b32.xlu0 %v456, 40
  %v1325 = vpop.permute.xlu0 %1324
  %v1329 = vsel %vm564, %v1317, 0
  %v1332 = vsel %vm564, %v1318, 0
  %v1335 = vsel %vm564, %v1319, 0
  %v1337 = vsel %vm616, %v1325, 0
  %1339 = vmatprep.subr.mxu0 0.0
  %1340 = vmatpush1.msra.mxu0 %v1321
  %1341 = vmatprep.subr.mxu0 0.0
  %1342 = vmatpush1.msra.mxu0 %v1323
  %1343 = vmatprep.subr.mxu0 0.0
  %1344 = vmatpush1.msra.mxu0 %v1337
  %1345 = vmatprep.subr.mxu0 0.0
  %1346 = vmatpush1.msra.mxu0 0.0
  %1347 = vmatprep.subr.mxu0 0.0
  %1348 = vmatpush1.msra.mxu0 0.0
  %1349 = vmatprep.subr.mxu0 0.0
  %1350 = vmatpush1.msra.mxu0 0.0
  %1351 = vmatprep.subr.mxu0 0.0
  %1352 = vmatpush1.msra.mxu0 0.0
  %1353 = vmatprep.subr.mxu0 0.0
  %1354 = vmatpush1.msra.mxu0 0.0
  %1355 = vmatprep.subr.mxu0 0.0
  %1356 = vmatpush1.msra.mxu0 0.0
  %1357 = vmatprep.subr.mxu0 0.0
  %1358 = vmatpush1.msra.mxu0 0.0
  %1359 = vmatprep.subr.mxu0 0.0
  %1360 = vmatpush1.msra.mxu0 0.0
  %1361 = vmatprep.subr.mxu0 0.0
  %1362 = vmatpush1.msra.mxu0 0.0
  %1363 = vmatprep.subr.mxu0 0.0
  %1364 = vmatpush1.msra.mxu0 0.0
  %1365 = vmatprep.subr.mxu0 0.0
  %1366 = vmatpush1.msra.mxu0 0.0
  %1367 = vmatprep.subr.mxu0 0.0
  %1368 = vmatpush1.msra.mxu0 0.0
  %1369 = vmatprep.subr.mxu0 0.0
  %1370 = vmatpush1.msra.mxu0 0.0
  %1371 = vmatprep.subr.mxu0 0.0
  %1372 = vmatpush1.msra.mxu0 0.0
  %1373 = vmatprep.subr.mxu0 0.0
  %1374 = vmatpush1.msra.mxu0 0.0
  %1375 = vmatprep.subr.mxu0 0.0
  %1376 = vmatpush1.msra.mxu0 0.0
  %1377 = vmatprep.subr.mxu0 0.0
  %1378 = vmatpush1.msra.mxu0 0.0
  %1379 = vmatprep.subr.mxu0 0.0
  %1380 = vmatpush1.msra.mxu0 0.0
  %1381 = vmatprep.subr.mxu0 0.0
  %1382 = vmatpush1.msra.mxu0 0.0
  %1383 = vmatprep.subr.mxu0 0.0
  %1384 = vmatpush1.msra.mxu0 0.0
  %1385 = vmatprep.subr.mxu0 0.0
  %1386 = vmatpush1.msra.mxu0 0.0
  %1387 = vmatprep.subr.mxu0 0.0
  %1388 = vmatpush1.msra.mxu0 0.0
  %1389 = vmatprep.subr.mxu0 0.0
  %1390 = vmatpush1.msra.mxu0 0.0
  %1391 = vmatprep.subr.mxu0 0.0
  %1392 = vmatpush1.msra.mxu0 0.0
  %1393 = vmatprep.subr.mxu0 0.0
  %1394 = vmatpush1.msra.mxu0 0.0
  %1395 = vmatprep.subr.mxu0 0.0
  %1396 = vmatpush1.msra.mxu0 0.0
  %1397 = vmatprep.subr.mxu0 0.0
  %1398 = vmatpush1.msra.mxu0 0.0
  %1399 = vmatprep.subr.mxu0 0.0
  %1400 = vmatpush1.msra.mxu0 0.0
  %1401 = vmatprep.subr.mxu0 0.0
  %1402 = vmatpush1.msra.mxu0 0.0
  %1403 = vmatprep.mubr.f32.mxu0 0.0
  %1404 = vmatmul.mubr.f32.gmra.mrb[0].mxu0 %v1329
  %v1405 = vpop.f32.mrb[0].mxu0
  %v1406 = vadd.f32 0.0, %v1405
  %v1407 = vpop.f32.mrb[0].mxu0
  %1408 = vmatprep.mubr.f32.mxu0 0.0
  %1409 = vmatmul.mubr.f32.gmra.mrb[0].mxu0 %v1332
  %v1410 = vpop.f32.mrb[0].mxu0
  %v1411 = vadd.f32 0.0, %v1410
  %v1412 = vpop.f32.mrb[0].mxu0
  %1413 = vmatprep.mubr.f32.mxu0 0.0
  %1414 = vmatmul.mubr.f32.gmra.mrb[0].mxu0 %v1335
  %v1415 = vpop.f32.mrb[0].mxu0
  %v1416 = vadd.f32 0.0, %v1415
  %v1417 = vpop.f32.mrb[0].mxu0
  %1418 = vdwg.mxu0
  %1422 = vrot.lane.b32.xlu0 %v926, 8
  %v1423 = vpop.permute.xlu0 %1422
  %1424 = vrot.lane.b32.xlu0 %v931, 8
  %v1425 = vpop.permute.xlu0 %1424
  %1426 = vrot.lane.b32.xlu0 %v936, 8
  %v1427 = vpop.permute.xlu0 %1426
  %1434 = vrot.lane.b32.xlu0 %v1166, 16
  %v1435 = vpop.permute.xlu0 %1434
  %1436 = vrot.lane.b32.xlu0 %v1171, 16
  %v1437 = vpop.permute.xlu0 %1436
  %1438 = vrot.lane.b32.xlu0 %v1176, 16
  %v1439 = vpop.permute.xlu0 %1438
  %1446 = vrot.lane.b32.xlu0 %v1406, 24
  %v1447 = vpop.permute.xlu0 %1446
  %1448 = vrot.lane.b32.xlu0 %v1411, 24
  %v1449 = vpop.permute.xlu0 %1448
  %1450 = vrot.lane.b32.xlu0 %v1416, 24
  %v1451 = vpop.permute.xlu0 %1450
  %v1455 = vsel %vm471, %v686, %v1423
  %v1456 = vsel %vm471, %v691, %v1425
  %v1457 = vsel %vm471, %v696, %v1427
  %vm1458 = vcmask 130048
  %v1459 = vsel %vm1458, %v1455, %v1435
  %v1460 = vsel %vm1458, %v1456, %v1437
  %v1461 = vsel %vm1458, %v1457, %v1439
  %vm1462 = vcmask 195584
  %v1463 = vsel %vm1462, %v1459, %v1447
  %v1464 = vsel %vm1462, %v1460, %v1449
  %v1465 = vsel %vm1462, %v1461, %v1451
  %v1466 = vld [vmem:[%s8] sm:$0xff]
  %v1467 = vld [vmem:[%s8 + $0x8] sm:$0xff]
  %v1468 = vld [vmem:[%s8 + $0x10] sm:$0xff]
  %v1469 = vld [vmem:[%s8 + $0x18] sm:$0xff]
  %v1471 = vsel %vm333, %v1463, 0
  %v1474 = vsel %vm333, %v1464, 0
  %v1477 = vsel %vm333, %v1465, 0
  %1479 = vmatprep.subr.mxu0 0.0
  %1480 = vmatpush1.msra.mxu0 %v1466
  %1481 = vmatprep.subr.mxu0 0.0
  %1482 = vmatpush1.msra.mxu0 %v1467
  %1483 = vmatprep.subr.mxu0 0.0
  %1484 = vmatpush1.msra.mxu0 %v1468
  %1485 = vmatprep.subr.mxu0 0.0
  %1486 = vmatpush1.msra.mxu0 %v1469
  %1487 = vmatprep.subr.mxu0 0.0
  %1488 = vmatpush1.msra.mxu0 0.0
  %1489 = vmatprep.subr.mxu0 0.0
  %1490 = vmatpush1.msra.mxu0 0.0
  %1491 = vmatprep.subr.mxu0 0.0
  %1492 = vmatpush1.msra.mxu0 0.0
  %1493 = vmatprep.subr.mxu0 0.0
  %1494 = vmatpush1.msra.mxu0 0.0
  %1495 = vmatprep.subr.mxu0 0.0
  %1496 = vmatpush1.msra.mxu0 0.0
  %1497 = vmatprep.subr.mxu0 0.0
  %1498 = vmatpush1.msra.mxu0 0.0
  %1499 = vmatprep.subr.mxu0 0.0
  %1500 = vmatpush1.msra.mxu0 0.0
  %1501 = vmatprep.subr.mxu0 0.0
  %1502 = vmatpush1.msra.mxu0 0.0
  %1503 = vmatprep.subr.mxu0 0.0
  %1504 = vmatpush1.msra.mxu0 0.0
  %1505 = vmatprep.subr.mxu0 0.0
  %1506 = vmatpush1.msra.mxu0 0.0
  %1507 = vmatprep.subr.mxu0 0.0
  %1508 = vmatpush1.msra.mxu0 0.0
  %1509 = vmatprep.subr.mxu0 0.0
  %1510 = vmatpush1.msra.mxu0 0.0
  %1511 = vmatprep.subr.mxu0 0.0
  %1512 = vmatpush1.msra.mxu0 0.0
  %1513 = vmatprep.subr.mxu0 0.0
  %1514 = vmatpush1.msra.mxu0 0.0
  %1515 = vmatprep.subr.mxu0 0.0
  %1516 = vmatpush1.msra.mxu0 0.0
  %1517 = vmatprep.subr.mxu0 0.0
  %1518 = vmatpush1.msra.mxu0 0.0
  %1519 = vmatprep.subr.mxu0 0.0
  %1520 = vmatpush1.msra.mxu0 0.0
  %1521 = vmatprep.subr.mxu0 0.0
  %1522 = vmatpush1.msra.mxu0 0.0
  %1523 = vmatprep.subr.mxu0 0.0
  %1524 = vmatpush1.msra.mxu0 0.0
  %1525 = vmatprep.subr.mxu0 0.0
  %1526 = vmatpush1.msra.mxu0 0.0
  %1527 = vmatprep.subr.mxu0 0.0
  %1528 = vmatpush1.msra.mxu0 0.0
  %1529 = vmatprep.subr.mxu0 0.0
  %1530 = vmatpush1.msra.mxu0 0.0
  %1531 = vmatprep.subr.mxu0 0.0
  %1532 = vmatpush1.msra.mxu0 0.0
  %1533 = vmatprep.subr.mxu0 0.0
  %1534 = vmatpush1.msra.mxu0 0.0
  %1535 = vmatprep.subr.mxu0 0.0
  %1536 = vmatpush1.msra.mxu0 0.0
  %1537 = vmatprep.subr.mxu0 0.0
  %1538 = vmatpush1.msra.mxu0 0.0
  %1539 = vmatprep.subr.mxu0 0.0
  %1540 = vmatpush1.msra.mxu0 0.0
  %1541 = vmatprep.subr.mxu0 0.0
  %1542 = vmatpush1.msra.mxu0 0.0
  %1543 = vmatprep.mubr.f32.mxu0 0.0
  %1544 = vmatmul.mubr.f32.gmra.mrb[0].mxu0 %v1471
  %v1545 = vpop.f32.mrb[0].mxu0
  %v1546 = vadd.f32 0.0, %v1545
  %v1547 = vpop.f32.mrb[0].mxu0
  %1548 = vmatprep.mubr.f32.mxu0 0.0
  %1549 = vmatmul.mubr.f32.gmra.mrb[0].mxu0 %v1474
  %v1550 = vpop.f32.mrb[0].mxu0
  %v1551 = vadd.f32 0.0, %v1550
  %v1552 = vpop.f32.mrb[0].mxu0
  %1553 = vmatprep.mubr.f32.mxu0 0.0
  %1554 = vmatmul.mubr.f32.gmra.mrb[0].mxu0 %v1477
  %v1555 = vpop.f32.mrb[0].mxu0
  %v1556 = vadd.f32 0.0, %v1555
  %v1557 = vpop.f32.mrb[0].mxu0
  %1558 = vdwg.mxu0
  %v1559 = vadd.f32 %v324, %v1546
  %v1560 = vadd.f32 %v326, %v1551
  %v1561 = vadd.f32 %v328, %v1556
  %v1562 = vld [vmem:[%s9] sm:$0x1]
  %v1563 = vmul.f32 %v1559, %v1559
  %v1564 = vmul.f32 %v1560, %v1560
  %v1565 = vmul.f32 %v1561, %v1561
  %v1566 = vsel %vm333, %v1563, 0.0
  %1567 = vadd.xlane.f32.xlu0 %v1566
  %v1568 = vpop.xlane.xlu0 %1567
  %v1569 = vsel %vm333, %v1564, 0.0
  %1570 = vadd.xlane.f32.xlu0 %v1569
  %v1571 = vpop.xlane.xlu0 %1570
  %v1572 = vsel %vm340, %v1565, 0.0
  %1573 = vadd.xlane.f32.xlu0 %v1572
  %v1574 = vpop.xlane.xlu0 %1573
  %v1575 = vmul.f32 %v1568, %v344
  %v1576 = vmul.f32 %v1571, %v344
  %v1577 = vmul.f32 %v1574, %v344
  %v1578 = vadd.f32 %v1575, 1e-06
  %v1579 = vadd.f32 %v1576, 1e-06
  %v1580 = vadd.f32 %v1577, 1e-06
  %v1581 = vrsqrt.pop %v1578
  %v1582 = vrsqrt.pop %v1579
  %v1583 = vrsqrt.pop %v1580
  %v1584 = vmul.f32 %v1559, %v1581
  %v1585 = vmul.f32 %v1560, %v1582
  %v1586 = vmul.f32 %v1561, %v1583
  %v1588 = vlaneseq
  %v1589 = vshrl.u32 %v1588, 7
  %v1590 = vsub.s32 0, %v1589
  %v1591 = vrot.slane %v1562, %v1590
  %v1593 = vmul.f32 %v1584, %v1591
  %v1594 = vmul.f32 %v1585, %v1591
  %v1595 = vmul.f32 %v1586, %v1591
  %v1596 = vld [vmem:[%s10] sm:$0xff]
  %v1597 = vld [vmem:[%s10 + $0x8] sm:$0xff]
  %v1598 = vld [vmem:[%s10 + $0x10] sm:$0xff]
  %v1599 = vld [vmem:[%s10 + $0x18] sm:$0xff]
  %v1601 = vsel %vm333, %v1593, 0
  %v1604 = vsel %vm333, %v1594, 0
  %v1607 = vsel %vm333, %v1595, 0
  %1609 = vmatprep.subr.mxu0 0.0
  %1610 = vmatpush1.msra.mxu0 %v1596
  %1611 = vmatprep.subr.mxu0 0.0
  %1612 = vmatpush1.msra.mxu0 %v1597
  %1613 = vmatprep.subr.mxu0 0.0
  %1614 = vmatpush1.msra.mxu0 %v1598
  %1615 = vmatprep.subr.mxu0 0.0
  %1616 = vmatpush1.msra.mxu0 %v1599
  %1617 = vmatprep.subr.mxu0 0.0
  %1618 = vmatpush1.msra.mxu0 0.0
  %1619 = vmatprep.subr.mxu0 0.0
  %1620 = vmatpush1.msra.mxu0 0.0
  %1621 = vmatprep.subr.mxu0 0.0
  %1622 = vmatpush1.msra.mxu0 0.0
  %1623 = vmatprep.subr.mxu0 0.0
  %1624 = vmatpush1.msra.mxu0 0.0
  %1625 = vmatprep.subr.mxu0 0.0
  %1626 = vmatpush1.msra.mxu0 0.0
  %1627 = vmatprep.subr.mxu0 0.0
  %1628 = vmatpush1.msra.mxu0 0.0
  %1629 = vmatprep.subr.mxu0 0.0
  %1630 = vmatpush1.msra.mxu0 0.0
  %1631 = vmatprep.subr.mxu0 0.0
  %1632 = vmatpush1.msra.mxu0 0.0
  %1633 = vmatprep.subr.mxu0 0.0
  %1634 = vmatpush1.msra.mxu0 0.0
  %1635 = vmatprep.subr.mxu0 0.0
  %1636 = vmatpush1.msra.mxu0 0.0
  %1637 = vmatprep.subr.mxu0 0.0
  %1638 = vmatpush1.msra.mxu0 0.0
  %1639 = vmatprep.subr.mxu0 0.0
  %1640 = vmatpush1.msra.mxu0 0.0
  %1641 = vmatprep.subr.mxu0 0.0
  %1642 = vmatpush1.msra.mxu0 0.0
  %1643 = vmatprep.subr.mxu0 0.0
  %1644 = vmatpush1.msra.mxu0 0.0
  %1645 = vmatprep.subr.mxu0 0.0
  %1646 = vmatpush1.msra.mxu0 0.0
  %1647 = vmatprep.subr.mxu0 0.0
  %1648 = vmatpush1.msra.mxu0 0.0
  %1649 = vmatprep.subr.mxu0 0.0
  %1650 = vmatpush1.msra.mxu0 0.0
  %1651 = vmatprep.subr.mxu0 0.0
  %1652 = vmatpush1.msra.mxu0 0.0
  %1653 = vmatprep.subr.mxu0 0.0
  %1654 = vmatpush1.msra.mxu0 0.0
  %1655 = vmatprep.subr.mxu0 0.0
  %1656 = vmatpush1.msra.mxu0 0.0
  %1657 = vmatprep.subr.mxu0 0.0
  %1658 = vmatpush1.msra.mxu0 0.0
  %1659 = vmatprep.subr.mxu0 0.0
  %1660 = vmatpush1.msra.mxu0 0.0
  %1661 = vmatprep.subr.mxu0 0.0
  %1662 = vmatpush1.msra.mxu0 0.0
  %1663 = vmatprep.subr.mxu0 0.0
  %1664 = vmatpush1.msra.mxu0 0.0
  %1665 = vmatprep.subr.mxu0 0.0
  %1666 = vmatpush1.msra.mxu0 0.0
  %1667 = vmatprep.subr.mxu0 0.0
  %1668 = vmatpush1.msra.mxu0 0.0
  %1669 = vmatprep.subr.mxu0 0.0
  %1670 = vmatpush1.msra.mxu0 0.0
  %1671 = vmatprep.subr.mxu0 0.0
  %1672 = vmatpush1.msra.mxu0 0.0
  %1673 = vmatprep.mubr.f32.mxu0 0.0
  %1674 = vmatmul.mubr.f32.gmra.mrb[0].mxu0 %v1601
  %v1675 = vpop.f32.mrb[0].mxu0
  %v1676 = vadd.f32 0.0, %v1675
  %v1677 = vpop.f32.mrb[0].mxu0
  %1678 = vmatprep.mubr.f32.mxu0 0.0
  %1679 = vmatmul.mubr.f32.gmra.mrb[0].mxu0 %v1604
  %v1680 = vpop.f32.mrb[0].mxu0
  %v1681 = vadd.f32 0.0, %v1680
  %v1682 = vpop.f32.mrb[0].mxu0
  %1683 = vmatprep.mubr.f32.mxu0 0.0
  %1684 = vmatmul.mubr.f32.gmra.mrb[0].mxu0 %v1607
  %v1685 = vpop.f32.mrb[0].mxu0
  %v1686 = vadd.f32 0.0, %v1685
  %v1687 = vpop.f32.mrb[0].mxu0
  %1688 = vdwg.mxu0
  %v1689 = vmul.f32 %v1676, 0.5
  %v1690 = vmul.f32 %v1681, 0.5
  %v1691 = vmul.f32 %v1686, 0.5
  %v1692 = vmul.f32 %v1676, 0.044715
  %v1693 = vmul.f32 %v1681, 0.044715
  %v1694 = vmul.f32 %v1686, 0.044715
  %v1695 = vmul.f32 %v1692, %v1676
  %v1696 = vmul.f32 %v1693, %v1681
  %v1697 = vmul.f32 %v1694, %v1686
  %v1698 = vmul.f32 %v1695, %v1676
  %v1699 = vmul.f32 %v1696, %v1681
  %v1700 = vmul.f32 %v1697, %v1686
  %v1701 = vadd.f32 %v1676, %v1698
  %v1702 = vadd.f32 %v1681, %v1699
  %v1703 = vadd.f32 %v1686, %v1700
  %v1704 = vmul.f32 %v1701, 0.7978846
  %v1705 = vmul.f32 %v1702, 0.7978846
  %v1706 = vmul.f32 %v1703, 0.7978846
  %v1707 = vtanh.pop %v1704
  %v1708 = vtanh.pop %v1705
  %v1709 = vtanh.pop %v1706
  %v1710 = vadd.f32 %v1707, 1.0
  %v1711 = vadd.f32 %v1708, 1.0
  %v1712 = vadd.f32 %v1709, 1.0
  %v1713 = vmul.f32 %v1689, %v1710
  %v1714 = vmul.f32 %v1690, %v1711
  %v1715 = vmul.f32 %v1691, %v1712
  %1719 = vrot.lane.b32.xlu0 %v1676, 64
  %v1720 = vpop.permute.xlu0 %1719
  %1721 = vrot.lane.b32.xlu0 %v1681, 64
  %v1722 = vpop.permute.xlu0 %1721
  %1723 = vrot.lane.b32.xlu0 %v1686, 64
  %v1724 = vpop.permute.xlu0 %1723
  %v1728 = vmul.f32 %v1713, %v1720
  %v1729 = vmul.f32 %v1714, %v1722
  %v1730 = vmul.f32 %v1715, %v1724
  %v1731 = vld [vmem:[%s11] sm:$0xff]
  %v1732 = vld [vmem:[%s11 + $0x8] sm:$0xff]
  %v1733 = vld [vmem:[%s11 + $0x10] sm:$0xff]
  %v1734 = vld [vmem:[%s11 + $0x18] sm:$0xff]
  %v1735 = vld [vmem:[%s11 + $0x20] sm:$0xff]
  %v1736 = vld [vmem:[%s11 + $0x28] sm:$0xff]
  %v1737 = vld [vmem:[%s11 + $0x30] sm:$0xff]
  %v1738 = vld [vmem:[%s11 + $0x38] sm:$0xff]
  %v1740 = vsel %vm94, %v1728, 0
  %v1743 = vsel %vm94, %v1729, 0
  %v1746 = vsel %vm94, %v1730, 0
  %1748 = vmatprep.subr.mxu0 0.0
  %1749 = vmatpush1.msra.mxu0 %v1731
  %1750 = vmatprep.subr.mxu0 0.0
  %1751 = vmatpush1.msra.mxu0 %v1732
  %1752 = vmatprep.subr.mxu0 0.0
  %1753 = vmatpush1.msra.mxu0 %v1733
  %1754 = vmatprep.subr.mxu0 0.0
  %1755 = vmatpush1.msra.mxu0 %v1734
  %1756 = vmatprep.subr.mxu0 0.0
  %1757 = vmatpush1.msra.mxu0 %v1735
  %1758 = vmatprep.subr.mxu0 0.0
  %1759 = vmatpush1.msra.mxu0 %v1736
  %1760 = vmatprep.subr.mxu0 0.0
  %1761 = vmatpush1.msra.mxu0 %v1737
  %1762 = vmatprep.subr.mxu0 0.0
  %1763 = vmatpush1.msra.mxu0 %v1738
  %1764 = vmatprep.subr.mxu0 0.0
  %1765 = vmatpush1.msra.mxu0 0.0
  %1766 = vmatprep.subr.mxu0 0.0
  %1767 = vmatpush1.msra.mxu0 0.0
  %1768 = vmatprep.subr.mxu0 0.0
  %1769 = vmatpush1.msra.mxu0 0.0
  %1770 = vmatprep.subr.mxu0 0.0
  %1771 = vmatpush1.msra.mxu0 0.0
  %1772 = vmatprep.subr.mxu0 0.0
  %1773 = vmatpush1.msra.mxu0 0.0
  %1774 = vmatprep.subr.mxu0 0.0
  %1775 = vmatpush1.msra.mxu0 0.0
  %1776 = vmatprep.subr.mxu0 0.0
  %1777 = vmatpush1.msra.mxu0 0.0
  %1778 = vmatprep.subr.mxu0 0.0
  %1779 = vmatpush1.msra.mxu0 0.0
  %1780 = vmatprep.subr.mxu0 0.0
  %1781 = vmatpush1.msra.mxu0 0.0
  %1782 = vmatprep.subr.mxu0 0.0
  %1783 = vmatpush1.msra.mxu0 0.0
  %1784 = vmatprep.subr.mxu0 0.0
  %1785 = vmatpush1.msra.mxu0 0.0
  %1786 = vmatprep.subr.mxu0 0.0
  %1787 = vmatpush1.msra.mxu0 0.0
  %1788 = vmatprep.subr.mxu0 0.0
  %1789 = vmatpush1.msra.mxu0 0.0
  %1790 = vmatprep.subr.mxu0 0.0
  %1791 = vmatpush1.msra.mxu0 0.0
  %1792 = vmatprep.subr.mxu0 0.0
  %1793 = vmatpush1.msra.mxu0 0.0
  %1794 = vmatprep.subr.mxu0 0.0
  %1795 = vmatpush1.msra.mxu0 0.0
  %1796 = vmatprep.subr.mxu0 0.0
  %1797 = vmatpush1.msra.mxu0 0.0
  %1798 = vmatprep.subr.mxu0 0.0
  %1799 = vmatpush1.msra.mxu0 0.0
  %1800 = vmatprep.subr.mxu0 0.0
  %1801 = vmatpush1.msra.mxu0 0.0
  %1802 = vmatprep.subr.mxu0 0.0
  %1803 = vmatpush1.msra.mxu0 0.0
  %1804 = vmatprep.subr.mxu0 0.0
  %1805 = vmatpush1.msra.mxu0 0.0
  %1806 = vmatprep.subr.mxu0 0.0
  %1807 = vmatpush1.msra.mxu0 0.0
  %1808 = vmatprep.subr.mxu0 0.0
  %1809 = vmatpush1.msra.mxu0 0.0
  %1810 = vmatprep.subr.mxu0 0.0
  %1811 = vmatpush1.msra.mxu0 0.0
  %1812 = vmatprep.mubr.f32.mxu0 0.0
  %1813 = vmatmul.mubr.f32.gmra.mrb[0].mxu0 %v1740
  %v1814 = vpop.f32.mrb[0].mxu0
  %v1815 = vadd.f32 0.0, %v1814
  %v1816 = vpop.f32.mrb[0].mxu0
  %1817 = vmatprep.mubr.f32.mxu0 0.0
  %1818 = vmatmul.mubr.f32.gmra.mrb[0].mxu0 %v1743
  %v1819 = vpop.f32.mrb[0].mxu0
  %v1820 = vadd.f32 0.0, %v1819
  %v1821 = vpop.f32.mrb[0].mxu0
  %1822 = vmatprep.mubr.f32.mxu0 0.0
  %1823 = vmatmul.mubr.f32.gmra.mrb[0].mxu0 %v1746
  %v1824 = vpop.f32.mrb[0].mxu0
  %v1825 = vadd.f32 0.0, %v1824
  %v1826 = vpop.f32.mrb[0].mxu0
  %1827 = vdwg.mxu0
  %v1828 = vadd.f32 %v1559, %v1815
  %v1829 = vadd.f32 %v1560, %v1820
  %v1830 = vadd.f32 %v1561, %v1825
  %s1831 = scalar_lea.vmem %s6, 1
  %v1832 = vld [vmem:[%s1831] sm:$0x1]
  %v1833 = vmul.f32 %v1828, %v1828
  %v1834 = vmul.f32 %v1829, %v1829
  %v1835 = vmul.f32 %v1830, %v1830
  %v1836 = vsel %vm333, %v1833, 0.0
  %1837 = vadd.xlane.f32.xlu0 %v1836
  %v1838 = vpop.xlane.xlu0 %1837
  %v1839 = vsel %vm333, %v1834, 0.0
  %1840 = vadd.xlane.f32.xlu0 %v1839
  %v1841 = vpop.xlane.xlu0 %1840
  %v1842 = vsel %vm340, %v1835, 0.0
  %1843 = vadd.xlane.f32.xlu0 %v1842
  %v1844 = vpop.xlane.xlu0 %1843
  %v1845 = vmul.f32 %v1838, %v344
  %v1846 = vmul.f32 %v1841, %v344
  %v1847 = vmul.f32 %v1844, %v344
  %v1848 = vadd.f32 %v1845, 1e-06
  %v1849 = vadd.f32 %v1846, 1e-06
  %v1850 = vadd.f32 %v1847, 1e-06
  %v1851 = vrsqrt.pop %v1848
  %v1852 = vrsqrt.pop %v1849
  %v1853 = vrsqrt.pop %v1850
  %v1854 = vmul.f32 %v1828, %v1851
  %v1855 = vmul.f32 %v1829, %v1852
  %v1856 = vmul.f32 %v1830, %v1853
  %v1858 = vlaneseq
  %v1859 = vshrl.u32 %v1858, 7
  %v1860 = vsub.s32 0, %v1859
  %v1861 = vrot.slane %v1832, %v1860
  %v1863 = vmul.f32 %v1854, %v1861
  %v1864 = vmul.f32 %v1855, %v1861
  %v1865 = vmul.f32 %v1856, %v1861
  %s1866 = scalar_lea.vmem %s7, 32
  %v1867 = vld [vmem:[%s1866] sm:$0xff]
  %v1868 = vld [vmem:[%s1866 + $0x8] sm:$0xff]
  %v1869 = vld [vmem:[%s1866 + $0x10] sm:$0xff]
  %v1870 = vld [vmem:[%s1866 + $0x18] sm:$0xff]
  %v1872 = vsel %vm333, %v1863, 0
  %v1875 = vsel %vm333, %v1864, 0
  %v1878 = vsel %vm333, %v1865, 0
  %1880 = vmatprep.subr.mxu0 0.0
  %1881 = vmatpush1.msra.mxu0 %v1867
  %1882 = vmatprep.subr.mxu0 0.0
  %1883 = vmatpush1.msra.mxu0 %v1868
  %1884 = vmatprep.subr.mxu0 0.0
  %1885 = vmatpush1.msra.mxu0 %v1869
  %1886 = vmatprep.subr.mxu0 0.0
  %1887 = vmatpush1.msra.mxu0 %v1870
  %1888 = vmatprep.subr.mxu0 0.0
  %1889 = vmatpush1.msra.mxu0 0.0
  %1890 = vmatprep.subr.mxu0 0.0
  %1891 = vmatpush1.msra.mxu0 0.0
  %1892 = vmatprep.subr.mxu0 0.0
  %1893 = vmatpush1.msra.mxu0 0.0
  %1894 = vmatprep.subr.mxu0 0.0
  %1895 = vmatpush1.msra.mxu0 0.0
  %1896 = vmatprep.subr.mxu0 0.0
  %1897 = vmatpush1.msra.mxu0 0.0
  %1898 = vmatprep.subr.mxu0 0.0
  %1899 = vmatpush1.msra.mxu0 0.0
  %1900 = vmatprep.subr.mxu0 0.0
  %1901 = vmatpush1.msra.mxu0 0.0
  %1902 = vmatprep.subr.mxu0 0.0
  %1903 = vmatpush1.msra.mxu0 0.0
  %1904 = vmatprep.subr.mxu0 0.0
  %1905 = vmatpush1.msra.mxu0 0.0
  %1906 = vmatprep.subr.mxu0 0.0
  %1907 = vmatpush1.msra.mxu0 0.0
  %1908 = vmatprep.subr.mxu0 0.0
  %1909 = vmatpush1.msra.mxu0 0.0
  %1910 = vmatprep.subr.mxu0 0.0
  %1911 = vmatpush1.msra.mxu0 0.0
  %1912 = vmatprep.subr.mxu0 0.0
  %1913 = vmatpush1.msra.mxu0 0.0
  %1914 = vmatprep.subr.mxu0 0.0
  %1915 = vmatpush1.msra.mxu0 0.0
  %1916 = vmatprep.subr.mxu0 0.0
  %1917 = vmatpush1.msra.mxu0 0.0
  %1918 = vmatprep.subr.mxu0 0.0
  %1919 = vmatpush1.msra.mxu0 0.0
  %1920 = vmatprep.subr.mxu0 0.0
  %1921 = vmatpush1.msra.mxu0 0.0
  %1922 = vmatprep.subr.mxu0 0.0
  %1923 = vmatpush1.msra.mxu0 0.0
  %1924 = vmatprep.subr.mxu0 0.0
  %1925 = vmatpush1.msra.mxu0 0.0
  %1926 = vmatprep.subr.mxu0 0.0
  %1927 = vmatpush1.msra.mxu0 0.0
  %1928 = vmatprep.subr.mxu0 0.0
  %1929 = vmatpush1.msra.mxu0 0.0
  %1930 = vmatprep.subr.mxu0 0.0
  %1931 = vmatpush1.msra.mxu0 0.0
  %1932 = vmatprep.subr.mxu0 0.0
  %1933 = vmatpush1.msra.mxu0 0.0
  %1934 = vmatprep.subr.mxu0 0.0
  %1935 = vmatpush1.msra.mxu0 0.0
  %1936 = vmatprep.subr.mxu0 0.0
  %1937 = vmatpush1.msra.mxu0 0.0
  %1938 = vmatprep.subr.mxu0 0.0
  %1939 = vmatpush1.msra.mxu0 0.0
  %1940 = vmatprep.subr.mxu0 0.0
  %1941 = vmatpush1.msra.mxu0 0.0
  %1942 = vmatprep.subr.mxu0 0.0
  %1943 = vmatpush1.msra.mxu0 0.0
  %1944 = vmatprep.mubr.f32.mxu0 0.0
  %1945 = vmatmul.mubr.f32.gmra.mrb[0].mxu0 %v1872
  %v1946 = vpop.f32.mrb[0].mxu0
  %v1947 = vadd.f32 0.0, %v1946
  %v1948 = vpop.f32.mrb[0].mxu0
  %1949 = vmatprep.mubr.f32.mxu0 0.0
  %1950 = vmatmul.mubr.f32.gmra.mrb[0].mxu0 %v1875
  %v1951 = vpop.f32.mrb[0].mxu0
  %v1952 = vadd.f32 0.0, %v1951
  %v1953 = vpop.f32.mrb[0].mxu0
  %1954 = vmatprep.mubr.f32.mxu0 0.0
  %1955 = vmatmul.mubr.f32.gmra.mrb[0].mxu0 %v1878
  %v1956 = vpop.f32.mrb[0].mxu0
  %v1957 = vadd.f32 0.0, %v1956
  %v1958 = vpop.f32.mrb[0].mxu0
  %1959 = vdwg.mxu0
  %1963 = vrot.lane.b32.xlu0 %v1947, 96
  %v1964 = vpop.permute.xlu0 %1963
  %1965 = vrot.lane.b32.xlu0 %v1952, 96
  %v1966 = vpop.permute.xlu0 %1965
  %1967 = vrot.lane.b32.xlu0 %v1957, 96
  %v1968 = vpop.permute.xlu0 %1967
  %v1969 = vsel %vm471, %v1947, 0
  %v1971 = vsel %vm471, %v1952, 0
  %v1973 = vsel %vm471, %v1957, 0
  %v1975 = vsel %vm471, %v1964, 0
  %v1977 = vsel %vm471, %v1966, 0
  %v1979 = vsel %vm471, %v1968, 0
  %1981 = vmatprep.subr.mxu0 0.0
  %1982 = vmatpush1.xpose.msra.mxu0 %v1975
  %1983 = vmatprep.subr.mxu0 0.0
  %1984 = vmatpush1.xpose.msra.mxu0 %v1977
  %1985 = vmatprep.subr.mxu0 0.0
  %1986 = vmatpush1.xpose.msra.mxu0 %v1979
  %1987 = vmatprep.subr.mxu0 0.0
  %1988 = vmatpush1.xpose.msra.mxu0 0.0
  %1989 = vmatprep.subr.mxu0 0.0
  %1990 = vmatpush1.xpose.msra.mxu0 0.0
  %1991 = vmatprep.subr.mxu0 0.0
  %1992 = vmatpush1.xpose.msra.mxu0 0.0
  %1993 = vmatprep.subr.mxu0 0.0
  %1994 = vmatpush1.xpose.msra.mxu0 0.0
  %1995 = vmatprep.subr.mxu0 0.0
  %1996 = vmatpush1.xpose.msra.mxu0 0.0
  %1997 = vmatprep.subr.mxu0 0.0
  %1998 = vmatpush1.xpose.msra.mxu0 0.0
  %1999 = vmatprep.subr.mxu0 0.0
  %2000 = vmatpush1.xpose.msra.mxu0 0.0
  %2001 = vmatprep.subr.mxu0 0.0
  %2002 = vmatpush1.xpose.msra.mxu0 0.0
  %2003 = vmatprep.subr.mxu0 0.0
  %2004 = vmatpush1.xpose.msra.mxu0 0.0
  %2005 = vmatprep.subr.mxu0 0.0
  %2006 = vmatpush1.xpose.msra.mxu0 0.0
  %2007 = vmatprep.subr.mxu0 0.0
  %2008 = vmatpush1.xpose.msra.mxu0 0.0
  %2009 = vmatprep.subr.mxu0 0.0
  %2010 = vmatpush1.xpose.msra.mxu0 0.0
  %2011 = vmatprep.subr.mxu0 0.0
  %2012 = vmatpush1.xpose.msra.mxu0 0.0
  %2013 = vmatprep.subr.mxu0 0.0
  %2014 = vmatpush1.xpose.msra.mxu0 0.0
  %2015 = vmatprep.subr.mxu0 0.0
  %2016 = vmatpush1.xpose.msra.mxu0 0.0
  %2017 = vmatprep.subr.mxu0 0.0
  %2018 = vmatpush1.xpose.msra.mxu0 0.0
  %2019 = vmatprep.subr.mxu0 0.0
  %2020 = vmatpush1.xpose.msra.mxu0 0.0
  %2021 = vmatprep.subr.mxu0 0.0
  %2022 = vmatpush1.xpose.msra.mxu0 0.0
  %2023 = vmatprep.subr.mxu0 0.0
  %2024 = vmatpush1.xpose.msra.mxu0 0.0
  %2025 = vmatprep.subr.mxu0 0.0
  %2026 = vmatpush1.xpose.msra.mxu0 0.0
  %2027 = vmatprep.subr.mxu0 0.0
  %2028 = vmatpush1.xpose.msra.mxu0 0.0
  %2029 = vmatprep.subr.mxu0 0.0
  %2030 = vmatpush1.xpose.msra.mxu0 0.0
  %2031 = vmatprep.subr.mxu0 0.0
  %2032 = vmatpush1.xpose.msra.mxu0 0.0
  %2033 = vmatprep.subr.mxu0 0.0
  %2034 = vmatpush1.xpose.msra.mxu0 0.0
  %2035 = vmatprep.subr.mxu0 0.0
  %2036 = vmatpush1.xpose.msra.mxu0 0.0
  %2037 = vmatprep.subr.mxu0 0.0
  %2038 = vmatpush1.xpose.msra.mxu0 0.0
  %2039 = vmatprep.subr.mxu0 0.0
  %2040 = vmatpush1.xpose.msra.mxu0 0.0
  %2041 = vmatprep.subr.mxu0 0.0
  %2042 = vmatpush1.xpose.msra.mxu0 0.0
  %2043 = vmatprep.subr.mxu0 0.0
  %2044 = vmatpush1.xpose.msra.mxu0 0.0
  %2045 = vmatprep.mubr.f32.mxu0 0.0
  %2046 = vmatmul.mubr.f32.gmra.mrb[0].mxu0 %v1969
  %v2047 = vpop.f32.mrb[0].mxu0
  %v2048 = vadd.f32 %v459, %v2047
  %v2049 = vpop.f32.mrb[0].mxu0
  %2050 = vmatprep.mubr.f32.mxu0 0.0
  %2051 = vmatmul.mubr.f32.gmra.mrb[0].mxu0 %v1971
  %v2052 = vpop.f32.mrb[0].mxu0
  %v2053 = vadd.f32 %v460, %v2052
  %v2054 = vpop.f32.mrb[0].mxu0
  %2055 = vmatprep.mubr.f32.mxu0 0.0
  %2056 = vmatmul.mubr.f32.gmra.mrb[0].mxu0 %v1973
  %v2057 = vpop.f32.mrb[0].mxu0
  %v2058 = vadd.f32 %v461, %v2057
  %v2059 = vpop.f32.mrb[0].mxu0
  %2060 = vdwg.mxu0
  %v2061 = vsel %vm564, %v2048, -inf
  %2062 = vmax.xlane.f32.xlu0 %v2061
  %v2063 = vpop.xlane.xlu0 %2062
  %v2064 = vsel %vm564, %v2053, -inf
  %2065 = vmax.xlane.f32.xlu0 %v2064
  %v2066 = vpop.xlane.xlu0 %2065
  %v2067 = vsel %vm571, %v2058, -inf
  %2068 = vmax.xlane.f32.xlu0 %v2067
  %v2069 = vpop.xlane.xlu0 %2068
  %v2070 = vsub.f32 %v2048, %v2063
  %v2071 = vsub.f32 %v2053, %v2066
  %v2072 = vsub.f32 %v2058, %v2069
  %v2073 = vmul.f32 %v2070, 1.442695
  %v2074 = vpow.pop %v2073
  %v2075 = vmul.f32 %v2071, 1.442695
  %v2076 = vpow.pop %v2075
  %v2077 = vmul.f32 %v2072, 1.442695
  %v2078 = vpow.pop %v2077
  %v2079 = vsel %vm564, %v2074, 0.0
  %2080 = vadd.xlane.f32.xlu0 %v2079
  %v2081 = vpop.xlane.xlu0 %2080
  %v2082 = vsel %vm564, %v2076, 0.0
  %2083 = vadd.xlane.f32.xlu0 %v2082
  %v2084 = vpop.xlane.xlu0 %2083
  %v2085 = vsel %vm571, %v2078, 0.0
  %2086 = vadd.xlane.f32.xlu0 %v2085
  %v2087 = vpop.xlane.xlu0 %2086
  %v2088 = vrcp.pop %v2081
  %v2089 = vrcp.pop %v2084
  %v2090 = vrcp.pop %v2087
  %v2091 = vmul.f32 %v2074, %v2088
  %v2092 = vmul.f32 %v2076, %v2089
  %v2093 = vmul.f32 %v2078, %v2090
  %2094 = vrot.lane.b32.xlu0 %v1947, 64
  %v2095 = vpop.permute.xlu0 %2094
  %2096 = vrot.lane.b32.xlu0 %v1952, 64
  %v2097 = vpop.permute.xlu0 %2096
  %2098 = vrot.lane.b32.xlu0 %v1957, 64
  %v2099 = vpop.permute.xlu0 %2098
  %v2103 = vsel %vm564, %v2091, 0
  %v2106 = vsel %vm564, %v2092, 0
  %v2109 = vsel %vm564, %v2093, 0
  %v2111 = vsel %vm616, %v2099, 0
  %2113 = vmatprep.subr.mxu0 0.0
  %2114 = vmatpush1.msra.mxu0 %v2095
  %2115 = vmatprep.subr.mxu0 0.0
  %2116 = vmatpush1.msra.mxu0 %v2097
  %2117 = vmatprep.subr.mxu0 0.0
  %2118 = vmatpush1.msra.mxu0 %v2111
  %2119 = vmatprep.subr.mxu0 0.0
  %2120 = vmatpush1.msra.mxu0 0.0
  %2121 = vmatprep.subr.mxu0 0.0
  %2122 = vmatpush1.msra.mxu0 0.0
  %2123 = vmatprep.subr.mxu0 0.0
  %2124 = vmatpush1.msra.mxu0 0.0
  %2125 = vmatprep.subr.mxu0 0.0
  %2126 = vmatpush1.msra.mxu0 0.0
  %2127 = vmatprep.subr.mxu0 0.0
  %2128 = vmatpush1.msra.mxu0 0.0
  %2129 = vmatprep.subr.mxu0 0.0
  %2130 = vmatpush1.msra.mxu0 0.0
  %2131 = vmatprep.subr.mxu0 0.0
  %2132 = vmatpush1.msra.mxu0 0.0
  %2133 = vmatprep.subr.mxu0 0.0
  %2134 = vmatpush1.msra.mxu0 0.0
  %2135 = vmatprep.subr.mxu0 0.0
  %2136 = vmatpush1.msra.mxu0 0.0
  %2137 = vmatprep.subr.mxu0 0.0
  %2138 = vmatpush1.msra.mxu0 0.0
  %2139 = vmatprep.subr.mxu0 0.0
  %2140 = vmatpush1.msra.mxu0 0.0
  %2141 = vmatprep.subr.mxu0 0.0
  %2142 = vmatpush1.msra.mxu0 0.0
  %2143 = vmatprep.subr.mxu0 0.0
  %2144 = vmatpush1.msra.mxu0 0.0
  %2145 = vmatprep.subr.mxu0 0.0
  %2146 = vmatpush1.msra.mxu0 0.0
  %2147 = vmatprep.subr.mxu0 0.0
  %2148 = vmatpush1.msra.mxu0 0.0
  %2149 = vmatprep.subr.mxu0 0.0
  %2150 = vmatpush1.msra.mxu0 0.0
  %2151 = vmatprep.subr.mxu0 0.0
  %2152 = vmatpush1.msra.mxu0 0.0
  %2153 = vmatprep.subr.mxu0 0.0
  %2154 = vmatpush1.msra.mxu0 0.0
  %2155 = vmatprep.subr.mxu0 0.0
  %2156 = vmatpush1.msra.mxu0 0.0
  %2157 = vmatprep.subr.mxu0 0.0
  %2158 = vmatpush1.msra.mxu0 0.0
  %2159 = vmatprep.subr.mxu0 0.0
  %2160 = vmatpush1.msra.mxu0 0.0
  %2161 = vmatprep.subr.mxu0 0.0
  %2162 = vmatpush1.msra.mxu0 0.0
  %2163 = vmatprep.subr.mxu0 0.0
  %2164 = vmatpush1.msra.mxu0 0.0
  %2165 = vmatprep.subr.mxu0 0.0
  %2166 = vmatpush1.msra.mxu0 0.0
  %2167 = vmatprep.subr.mxu0 0.0
  %2168 = vmatpush1.msra.mxu0 0.0
  %2169 = vmatprep.subr.mxu0 0.0
  %2170 = vmatpush1.msra.mxu0 0.0
  %2171 = vmatprep.subr.mxu0 0.0
  %2172 = vmatpush1.msra.mxu0 0.0
  %2173 = vmatprep.subr.mxu0 0.0
  %2174 = vmatpush1.msra.mxu0 0.0
  %2175 = vmatprep.subr.mxu0 0.0
  %2176 = vmatpush1.msra.mxu0 0.0
  %2177 = vmatprep.mubr.f32.mxu0 0.0
  %2178 = vmatmul.mubr.f32.gmra.mrb[0].mxu0 %v2103
  %v2179 = vpop.f32.mrb[0].mxu0
  %v2180 = vadd.f32 0.0, %v2179
  %v2181 = vpop.f32.mrb[0].mxu0
  %2182 = vmatprep.mubr.f32.mxu0 0.0
  %2183 = vmatmul.mubr.f32.gmra.mrb[0].mxu0 %v2106
  %v2184 = vpop.f32.mrb[0].mxu0
  %v2185 = vadd.f32 0.0, %v2184
  %v2186 = vpop.f32.mrb[0].mxu0
  %2187 = vmatprep.mubr.f32.mxu0 0.0
  %2188 = vmatmul.mubr.f32.gmra.mrb[0].mxu0 %v2109
  %v2189 = vpop.f32.mrb[0].mxu0
  %v2190 = vadd.f32 0.0, %v2189
  %v2191 = vpop.f32.mrb[0].mxu0
  %2192 = vdwg.mxu0
  %2193 = vrot.lane.b32.xlu0 %v1947, 120
  %v2194 = vpop.permute.xlu0 %2193
  %2195 = vrot.lane.b32.xlu0 %v1952, 120
  %v2196 = vpop.permute.xlu0 %2195
  %2197 = vrot.lane.b32.xlu0 %v1957, 120
  %v2198 = vpop.permute.xlu0 %2197
  %2199 = vrot.lane.b32.xlu0 %v1947, 88
  %v2200 = vpop.permute.xlu0 %2199
  %2201 = vrot.lane.b32.xlu0 %v1952, 88
  %v2202 = vpop.permute.xlu0 %2201
  %2203 = vrot.lane.b32.xlu0 %v1957, 88
  %v2204 = vpop.permute.xlu0 %2203
  %v2205 = vsel %vm471, %v2194, 0
  %v2207 = vsel %vm471, %v2196, 0
  %v2209 = vsel %vm471, %v2198, 0
  %v2211 = vsel %vm471, %v2200, 0
  %v2213 = vsel %vm471, %v2202, 0
  %v2215 = vsel %vm471, %v2204, 0
  %2217 = vmatprep.subr.mxu0 0.0
  %2218 = vmatpush1.xpose.msra.mxu0 %v2211
  %2219 = vmatprep.subr.mxu0 0.0
  %2220 = vmatpush1.xpose.msra.mxu0 %v2213
  %2221 = vmatprep.subr.mxu0 0.0
  %2222 = vmatpush1.xpose.msra.mxu0 %v2215
  %2223 = vmatprep.subr.mxu0 0.0
  %2224 = vmatpush1.xpose.msra.mxu0 0.0
  %2225 = vmatprep.subr.mxu0 0.0
  %2226 = vmatpush1.xpose.msra.mxu0 0.0
  %2227 = vmatprep.subr.mxu0 0.0
  %2228 = vmatpush1.xpose.msra.mxu0 0.0
  %2229 = vmatprep.subr.mxu0 0.0
  %2230 = vmatpush1.xpose.msra.mxu0 0.0
  %2231 = vmatprep.subr.mxu0 0.0
  %2232 = vmatpush1.xpose.msra.mxu0 0.0
  %2233 = vmatprep.subr.mxu0 0.0
  %2234 = vmatpush1.xpose.msra.mxu0 0.0
  %2235 = vmatprep.subr.mxu0 0.0
  %2236 = vmatpush1.xpose.msra.mxu0 0.0
  %2237 = vmatprep.subr.mxu0 0.0
  %2238 = vmatpush1.xpose.msra.mxu0 0.0
  %2239 = vmatprep.subr.mxu0 0.0
  %2240 = vmatpush1.xpose.msra.mxu0 0.0
  %2241 = vmatprep.subr.mxu0 0.0
  %2242 = vmatpush1.xpose.msra.mxu0 0.0
  %2243 = vmatprep.subr.mxu0 0.0
  %2244 = vmatpush1.xpose.msra.mxu0 0.0
  %2245 = vmatprep.subr.mxu0 0.0
  %2246 = vmatpush1.xpose.msra.mxu0 0.0
  %2247 = vmatprep.subr.mxu0 0.0
  %2248 = vmatpush1.xpose.msra.mxu0 0.0
  %2249 = vmatprep.subr.mxu0 0.0
  %2250 = vmatpush1.xpose.msra.mxu0 0.0
  %2251 = vmatprep.subr.mxu0 0.0
  %2252 = vmatpush1.xpose.msra.mxu0 0.0
  %2253 = vmatprep.subr.mxu0 0.0
  %2254 = vmatpush1.xpose.msra.mxu0 0.0
  %2255 = vmatprep.subr.mxu0 0.0
  %2256 = vmatpush1.xpose.msra.mxu0 0.0
  %2257 = vmatprep.subr.mxu0 0.0
  %2258 = vmatpush1.xpose.msra.mxu0 0.0
  %2259 = vmatprep.subr.mxu0 0.0
  %2260 = vmatpush1.xpose.msra.mxu0 0.0
  %2261 = vmatprep.subr.mxu0 0.0
  %2262 = vmatpush1.xpose.msra.mxu0 0.0
  %2263 = vmatprep.subr.mxu0 0.0
  %2264 = vmatpush1.xpose.msra.mxu0 0.0
  %2265 = vmatprep.subr.mxu0 0.0
  %2266 = vmatpush1.xpose.msra.mxu0 0.0
  %2267 = vmatprep.subr.mxu0 0.0
  %2268 = vmatpush1.xpose.msra.mxu0 0.0
  %2269 = vmatprep.subr.mxu0 0.0
  %2270 = vmatpush1.xpose.msra.mxu0 0.0
  %2271 = vmatprep.subr.mxu0 0.0
  %2272 = vmatpush1.xpose.msra.mxu0 0.0
  %2273 = vmatprep.subr.mxu0 0.0
  %2274 = vmatpush1.xpose.msra.mxu0 0.0
  %2275 = vmatprep.subr.mxu0 0.0
  %2276 = vmatpush1.xpose.msra.mxu0 0.0
  %2277 = vmatprep.subr.mxu0 0.0
  %2278 = vmatpush1.xpose.msra.mxu0 0.0
  %2279 = vmatprep.subr.mxu0 0.0
  %2280 = vmatpush1.xpose.msra.mxu0 0.0
  %2281 = vmatprep.mubr.f32.mxu0 0.0
  %2282 = vmatmul.mubr.f32.gmra.mrb[0].mxu0 %v2205
  %v2283 = vpop.f32.mrb[0].mxu0
  %v2284 = vadd.f32 %v700, %v2283
  %v2285 = vpop.f32.mrb[0].mxu0
  %2286 = vmatprep.mubr.f32.mxu0 0.0
  %2287 = vmatmul.mubr.f32.gmra.mrb[0].mxu0 %v2207
  %v2288 = vpop.f32.mrb[0].mxu0
  %v2289 = vadd.f32 %v701, %v2288
  %v2290 = vpop.f32.mrb[0].mxu0
  %2291 = vmatprep.mubr.f32.mxu0 0.0
  %2292 = vmatmul.mubr.f32.gmra.mrb[0].mxu0 %v2209
  %v2293 = vpop.f32.mrb[0].mxu0
  %v2294 = vadd.f32 %v702, %v2293
  %v2295 = vpop.f32.mrb[0].mxu0
  %2296 = vdwg.mxu0
  %v2297 = vsel %vm564, %v2284, -inf
  %2298 = vmax.xlane.f32.xlu0 %v2297
  %v2299 = vpop.xlane.xlu0 %2298
  %v2300 = vsel %vm564, %v2289, -inf
  %2301 = vmax.xlane.f32.xlu0 %v2300
  %v2302 = vpop.xlane.xlu0 %2301
  %v2303 = vsel %vm571, %v2294, -inf
  %2304 = vmax.xlane.f32.xlu0 %v2303
  %v2305 = vpop.xlane.xlu0 %2304
  %v2306 = vsub.f32 %v2284, %v2299
  %v2307 = vsub.f32 %v2289, %v2302
  %v2308 = vsub.f32 %v2294, %v2305
  %v2309 = vmul.f32 %v2306, 1.442695
  %v2310 = vpow.pop %v2309
  %v2311 = vmul.f32 %v2307, 1.442695
  %v2312 = vpow.pop %v2311
  %v2313 = vmul.f32 %v2308, 1.442695
  %v2314 = vpow.pop %v2313
  %v2315 = vsel %vm564, %v2310, 0.0
  %2316 = vadd.xlane.f32.xlu0 %v2315
  %v2317 = vpop.xlane.xlu0 %2316
  %v2318 = vsel %vm564, %v2312, 0.0
  %2319 = vadd.xlane.f32.xlu0 %v2318
  %v2320 = vpop.xlane.xlu0 %2319
  %v2321 = vsel %vm571, %v2314, 0.0
  %2322 = vadd.xlane.f32.xlu0 %v2321
  %v2323 = vpop.xlane.xlu0 %2322
  %v2324 = vrcp.pop %v2317
  %v2325 = vrcp.pop %v2320
  %v2326 = vrcp.pop %v2323
  %v2327 = vmul.f32 %v2310, %v2324
  %v2328 = vmul.f32 %v2312, %v2325
  %v2329 = vmul.f32 %v2314, %v2326
  %2330 = vrot.lane.b32.xlu0 %v1947, 56
  %v2331 = vpop.permute.xlu0 %2330
  %2332 = vrot.lane.b32.xlu0 %v1952, 56
  %v2333 = vpop.permute.xlu0 %2332
  %2334 = vrot.lane.b32.xlu0 %v1957, 56
  %v2335 = vpop.permute.xlu0 %2334
  %v2339 = vsel %vm564, %v2327, 0
  %v2342 = vsel %vm564, %v2328, 0
  %v2345 = vsel %vm564, %v2329, 0
  %v2347 = vsel %vm616, %v2335, 0
  %2349 = vmatprep.subr.mxu0 0.0
  %2350 = vmatpush1.msra.mxu0 %v2331
  %2351 = vmatprep.subr.mxu0 0.0
  %2352 = vmatpush1.msra.mxu0 %v2333
  %2353 = vmatprep.subr.mxu0 0.0
  %2354 = vmatpush1.msra.mxu0 %v2347
  %2355 = vmatprep.subr.mxu0 0.0
  %2356 = vmatpush1.msra.mxu0 0.0
  %2357 = vmatprep.subr.mxu0 0.0
  %2358 = vmatpush1.msra.mxu0 0.0
  %2359 = vmatprep.subr.mxu0 0.0
  %2360 = vmatpush1.msra.mxu0 0.0
  %2361 = vmatprep.subr.mxu0 0.0
  %2362 = vmatpush1.msra.mxu0 0.0
  %2363 = vmatprep.subr.mxu0 0.0
  %2364 = vmatpush1.msra.mxu0 0.0
  %2365 = vmatprep.subr.mxu0 0.0
  %2366 = vmatpush1.msra.mxu0 0.0
  %2367 = vmatprep.subr.mxu0 0.0
  %2368 = vmatpush1.msra.mxu0 0.0
  %2369 = vmatprep.subr.mxu0 0.0
  %2370 = vmatpush1.msra.mxu0 0.0
  %2371 = vmatprep.subr.mxu0 0.0
  %2372 = vmatpush1.msra.mxu0 0.0
  %2373 = vmatprep.subr.mxu0 0.0
  %2374 = vmatpush1.msra.mxu0 0.0
  %2375 = vmatprep.subr.mxu0 0.0
  %2376 = vmatpush1.msra.mxu0 0.0
  %2377 = vmatprep.subr.mxu0 0.0
  %2378 = vmatpush1.msra.mxu0 0.0
  %2379 = vmatprep.subr.mxu0 0.0
  %2380 = vmatpush1.msra.mxu0 0.0
  %2381 = vmatprep.subr.mxu0 0.0
  %2382 = vmatpush1.msra.mxu0 0.0
  %2383 = vmatprep.subr.mxu0 0.0
  %2384 = vmatpush1.msra.mxu0 0.0
  %2385 = vmatprep.subr.mxu0 0.0
  %2386 = vmatpush1.msra.mxu0 0.0
  %2387 = vmatprep.subr.mxu0 0.0
  %2388 = vmatpush1.msra.mxu0 0.0
  %2389 = vmatprep.subr.mxu0 0.0
  %2390 = vmatpush1.msra.mxu0 0.0
  %2391 = vmatprep.subr.mxu0 0.0
  %2392 = vmatpush1.msra.mxu0 0.0
  %2393 = vmatprep.subr.mxu0 0.0
  %2394 = vmatpush1.msra.mxu0 0.0
  %2395 = vmatprep.subr.mxu0 0.0
  %2396 = vmatpush1.msra.mxu0 0.0
  %2397 = vmatprep.subr.mxu0 0.0
  %2398 = vmatpush1.msra.mxu0 0.0
  %2399 = vmatprep.subr.mxu0 0.0
  %2400 = vmatpush1.msra.mxu0 0.0
  %2401 = vmatprep.subr.mxu0 0.0
  %2402 = vmatpush1.msra.mxu0 0.0
  %2403 = vmatprep.subr.mxu0 0.0
  %2404 = vmatpush1.msra.mxu0 0.0
  %2405 = vmatprep.subr.mxu0 0.0
  %2406 = vmatpush1.msra.mxu0 0.0
  %2407 = vmatprep.subr.mxu0 0.0
  %2408 = vmatpush1.msra.mxu0 0.0
  %2409 = vmatprep.subr.mxu0 0.0
  %2410 = vmatpush1.msra.mxu0 0.0
  %2411 = vmatprep.subr.mxu0 0.0
  %2412 = vmatpush1.msra.mxu0 0.0
  %2413 = vmatprep.mubr.f32.mxu0 0.0
  %2414 = vmatmul.mubr.f32.gmra.mrb[0].mxu0 %v2339
  %v2415 = vpop.f32.mrb[0].mxu0
  %v2416 = vadd.f32 0.0, %v2415
  %v2417 = vpop.f32.mrb[0].mxu0
  %2418 = vmatprep.mubr.f32.mxu0 0.0
  %2419 = vmatmul.mubr.f32.gmra.mrb[0].mxu0 %v2342
  %v2420 = vpop.f32.mrb[0].mxu0
  %v2421 = vadd.f32 0.0, %v2420
  %v2422 = vpop.f32.mrb[0].mxu0
  %2423 = vmatprep.mubr.f32.mxu0 0.0
  %2424 = vmatmul.mubr.f32.gmra.mrb[0].mxu0 %v2345
  %v2425 = vpop.f32.mrb[0].mxu0
  %v2426 = vadd.f32 0.0, %v2425
  %v2427 = vpop.f32.mrb[0].mxu0
  %2428 = vdwg.mxu0
  %2429 = vrot.lane.b32.xlu0 %v1947, 112
  %v2430 = vpop.permute.xlu0 %2429
  %2431 = vrot.lane.b32.xlu0 %v1952, 112
  %v2432 = vpop.permute.xlu0 %2431
  %2433 = vrot.lane.b32.xlu0 %v1957, 112
  %v2434 = vpop.permute.xlu0 %2433
  %2435 = vrot.lane.b32.xlu0 %v1947, 80
  %v2436 = vpop.permute.xlu0 %2435
  %2437 = vrot.lane.b32.xlu0 %v1952, 80
  %v2438 = vpop.permute.xlu0 %2437
  %2439 = vrot.lane.b32.xlu0 %v1957, 80
  %v2440 = vpop.permute.xlu0 %2439
  %v2441 = vsel %vm471, %v2430, 0
  %v2443 = vsel %vm471, %v2432, 0
  %v2445 = vsel %vm471, %v2434, 0
  %v2447 = vsel %vm471, %v2436, 0
  %v2449 = vsel %vm471, %v2438, 0
  %v2451 = vsel %vm471, %v2440, 0
  %2453 = vmatprep.subr.mxu0 0.0
  %2454 = vmatpush1.xpose.msra.mxu0 %v2447
  %2455 = vmatprep.subr.mxu0 0.0
  %2456 = vmatpush1.xpose.msra.mxu0 %v2449
  %2457 = vmatprep.subr.mxu0 0.0
  %2458 = vmatpush1.xpose.msra.mxu0 %v2451
  %2459 = vmatprep.subr.mxu0 0.0
  %2460 = vmatpush1.xpose.msra.mxu0 0.0
  %2461 = vmatprep.subr.mxu0 0.0
  %2462 = vmatpush1.xpose.msra.mxu0 0.0
  %2463 = vmatprep.subr.mxu0 0.0
  %2464 = vmatpush1.xpose.msra.mxu0 0.0
  %2465 = vmatprep.subr.mxu0 0.0
  %2466 = vmatpush1.xpose.msra.mxu0 0.0
  %2467 = vmatprep.subr.mxu0 0.0
  %2468 = vmatpush1.xpose.msra.mxu0 0.0
  %2469 = vmatprep.subr.mxu0 0.0
  %2470 = vmatpush1.xpose.msra.mxu0 0.0
  %2471 = vmatprep.subr.mxu0 0.0
  %2472 = vmatpush1.xpose.msra.mxu0 0.0
  %2473 = vmatprep.subr.mxu0 0.0
  %2474 = vmatpush1.xpose.msra.mxu0 0.0
  %2475 = vmatprep.subr.mxu0 0.0
  %2476 = vmatpush1.xpose.msra.mxu0 0.0
  %2477 = vmatprep.subr.mxu0 0.0
  %2478 = vmatpush1.xpose.msra.mxu0 0.0
  %2479 = vmatprep.subr.mxu0 0.0
  %2480 = vmatpush1.xpose.msra.mxu0 0.0
  %2481 = vmatprep.subr.mxu0 0.0
  %2482 = vmatpush1.xpose.msra.mxu0 0.0
  %2483 = vmatprep.subr.mxu0 0.0
  %2484 = vmatpush1.xpose.msra.mxu0 0.0
  %2485 = vmatprep.subr.mxu0 0.0
  %2486 = vmatpush1.xpose.msra.mxu0 0.0
  %2487 = vmatprep.subr.mxu0 0.0
  %2488 = vmatpush1.xpose.msra.mxu0 0.0
  %2489 = vmatprep.subr.mxu0 0.0
  %2490 = vmatpush1.xpose.msra.mxu0 0.0
  %2491 = vmatprep.subr.mxu0 0.0
  %2492 = vmatpush1.xpose.msra.mxu0 0.0
  %2493 = vmatprep.subr.mxu0 0.0
  %2494 = vmatpush1.xpose.msra.mxu0 0.0
  %2495 = vmatprep.subr.mxu0 0.0
  %2496 = vmatpush1.xpose.msra.mxu0 0.0
  %2497 = vmatprep.subr.mxu0 0.0
  %2498 = vmatpush1.xpose.msra.mxu0 0.0
  %2499 = vmatprep.subr.mxu0 0.0
  %2500 = vmatpush1.xpose.msra.mxu0 0.0
  %2501 = vmatprep.subr.mxu0 0.0
  %2502 = vmatpush1.xpose.msra.mxu0 0.0
  %2503 = vmatprep.subr.mxu0 0.0
  %2504 = vmatpush1.xpose.msra.mxu0 0.0
  %2505 = vmatprep.subr.mxu0 0.0
  %2506 = vmatpush1.xpose.msra.mxu0 0.0
  %2507 = vmatprep.subr.mxu0 0.0
  %2508 = vmatpush1.xpose.msra.mxu0 0.0
  %2509 = vmatprep.subr.mxu0 0.0
  %2510 = vmatpush1.xpose.msra.mxu0 0.0
  %2511 = vmatprep.subr.mxu0 0.0
  %2512 = vmatpush1.xpose.msra.mxu0 0.0
  %2513 = vmatprep.subr.mxu0 0.0
  %2514 = vmatpush1.xpose.msra.mxu0 0.0
  %2515 = vmatprep.subr.mxu0 0.0
  %2516 = vmatpush1.xpose.msra.mxu0 0.0
  %2517 = vmatprep.mubr.f32.mxu0 0.0
  %2518 = vmatmul.mubr.f32.gmra.mrb[0].mxu0 %v2441
  %v2519 = vpop.f32.mrb[0].mxu0
  %v2520 = vadd.f32 %v940, %v2519
  %v2521 = vpop.f32.mrb[0].mxu0
  %2522 = vmatprep.mubr.f32.mxu0 0.0
  %2523 = vmatmul.mubr.f32.gmra.mrb[0].mxu0 %v2443
  %v2524 = vpop.f32.mrb[0].mxu0
  %v2525 = vadd.f32 %v941, %v2524
  %v2526 = vpop.f32.mrb[0].mxu0
  %2527 = vmatprep.mubr.f32.mxu0 0.0
  %2528 = vmatmul.mubr.f32.gmra.mrb[0].mxu0 %v2445
  %v2529 = vpop.f32.mrb[0].mxu0
  %v2530 = vadd.f32 %v942, %v2529
  %v2531 = vpop.f32.mrb[0].mxu0
  %2532 = vdwg.mxu0
  %v2533 = vsel %vm564, %v2520, -inf
  %2534 = vmax.xlane.f32.xlu0 %v2533
  %v2535 = vpop.xlane.xlu0 %2534
  %v2536 = vsel %vm564, %v2525, -inf
  %2537 = vmax.xlane.f32.xlu0 %v2536
  %v2538 = vpop.xlane.xlu0 %2537
  %v2539 = vsel %vm571, %v2530, -inf
  %2540 = vmax.xlane.f32.xlu0 %v2539
  %v2541 = vpop.xlane.xlu0 %2540
  %v2542 = vsub.f32 %v2520, %v2535
  %v2543 = vsub.f32 %v2525, %v2538
  %v2544 = vsub.f32 %v2530, %v2541
  %v2545 = vmul.f32 %v2542, 1.442695
  %v2546 = vpow.pop %v2545
  %v2547 = vmul.f32 %v2543, 1.442695
  %v2548 = vpow.pop %v2547
  %v2549 = vmul.f32 %v2544, 1.442695
  %v2550 = vpow.pop %v2549
  %v2551 = vsel %vm564, %v2546, 0.0
  %2552 = vadd.xlane.f32.xlu0 %v2551
  %v2553 = vpop.xlane.xlu0 %2552
  %v2554 = vsel %vm564, %v2548, 0.0
  %2555 = vadd.xlane.f32.xlu0 %v2554
  %v2556 = vpop.xlane.xlu0 %2555
  %v2557 = vsel %vm571, %v2550, 0.0
  %2558 = vadd.xlane.f32.xlu0 %v2557
  %v2559 = vpop.xlane.xlu0 %2558
  %v2560 = vrcp.pop %v2553
  %v2561 = vrcp.pop %v2556
  %v2562 = vrcp.pop %v2559
  %v2563 = vmul.f32 %v2546, %v2560
  %v2564 = vmul.f32 %v2548, %v2561
  %v2565 = vmul.f32 %v2550, %v2562
  %2566 = vrot.lane.b32.xlu0 %v1947, 48
  %v2567 = vpop.permute.xlu0 %2566
  %2568 = vrot.lane.b32.xlu0 %v1952, 48
  %v2569 = vpop.permute.xlu0 %2568
  %2570 = vrot.lane.b32.xlu0 %v1957, 48
  %v2571 = vpop.permute.xlu0 %2570
  %v2575 = vsel %vm564, %v2563, 0
  %v2578 = vsel %vm564, %v2564, 0
  %v2581 = vsel %vm564, %v2565, 0
  %v2583 = vsel %vm616, %v2571, 0
  %2585 = vmatprep.subr.mxu0 0.0
  %2586 = vmatpush1.msra.mxu0 %v2567
  %2587 = vmatprep.subr.mxu0 0.0
  %2588 = vmatpush1.msra.mxu0 %v2569
  %2589 = vmatprep.subr.mxu0 0.0
  %2590 = vmatpush1.msra.mxu0 %v2583
  %2591 = vmatprep.subr.mxu0 0.0
  %2592 = vmatpush1.msra.mxu0 0.0
  %2593 = vmatprep.subr.mxu0 0.0
  %2594 = vmatpush1.msra.mxu0 0.0
  %2595 = vmatprep.subr.mxu0 0.0
  %2596 = vmatpush1.msra.mxu0 0.0
  %2597 = vmatprep.subr.mxu0 0.0
  %2598 = vmatpush1.msra.mxu0 0.0
  %2599 = vmatprep.subr.mxu0 0.0
  %2600 = vmatpush1.msra.mxu0 0.0
  %2601 = vmatprep.subr.mxu0 0.0
  %2602 = vmatpush1.msra.mxu0 0.0
  %2603 = vmatprep.subr.mxu0 0.0
  %2604 = vmatpush1.msra.mxu0 0.0
  %2605 = vmatprep.subr.mxu0 0.0
  %2606 = vmatpush1.msra.mxu0 0.0
  %2607 = vmatprep.subr.mxu0 0.0
  %2608 = vmatpush1.msra.mxu0 0.0
  %2609 = vmatprep.subr.mxu0 0.0
  %2610 = vmatpush1.msra.mxu0 0.0
  %2611 = vmatprep.subr.mxu0 0.0
  %2612 = vmatpush1.msra.mxu0 0.0
  %2613 = vmatprep.subr.mxu0 0.0
  %2614 = vmatpush1.msra.mxu0 0.0
  %2615 = vmatprep.subr.mxu0 0.0
  %2616 = vmatpush1.msra.mxu0 0.0
  %2617 = vmatprep.subr.mxu0 0.0
  %2618 = vmatpush1.msra.mxu0 0.0
  %2619 = vmatprep.subr.mxu0 0.0
  %2620 = vmatpush1.msra.mxu0 0.0
  %2621 = vmatprep.subr.mxu0 0.0
  %2622 = vmatpush1.msra.mxu0 0.0
  %2623 = vmatprep.subr.mxu0 0.0
  %2624 = vmatpush1.msra.mxu0 0.0
  %2625 = vmatprep.subr.mxu0 0.0
  %2626 = vmatpush1.msra.mxu0 0.0
  %2627 = vmatprep.subr.mxu0 0.0
  %2628 = vmatpush1.msra.mxu0 0.0
  %2629 = vmatprep.subr.mxu0 0.0
  %2630 = vmatpush1.msra.mxu0 0.0
  %2631 = vmatprep.subr.mxu0 0.0
  %2632 = vmatpush1.msra.mxu0 0.0
  %2633 = vmatprep.subr.mxu0 0.0
  %2634 = vmatpush1.msra.mxu0 0.0
  %2635 = vmatprep.subr.mxu0 0.0
  %2636 = vmatpush1.msra.mxu0 0.0
  %2637 = vmatprep.subr.mxu0 0.0
  %2638 = vmatpush1.msra.mxu0 0.0
  %2639 = vmatprep.subr.mxu0 0.0
  %2640 = vmatpush1.msra.mxu0 0.0
  %2641 = vmatprep.subr.mxu0 0.0
  %2642 = vmatpush1.msra.mxu0 0.0
  %2643 = vmatprep.subr.mxu0 0.0
  %2644 = vmatpush1.msra.mxu0 0.0
  %2645 = vmatprep.subr.mxu0 0.0
  %2646 = vmatpush1.msra.mxu0 0.0
  %2647 = vmatprep.subr.mxu0 0.0
  %2648 = vmatpush1.msra.mxu0 0.0
  %2649 = vmatprep.mubr.f32.mxu0 0.0
  %2650 = vmatmul.mubr.f32.gmra.mrb[0].mxu0 %v2575
  %v2651 = vpop.f32.mrb[0].mxu0
  %v2652 = vadd.f32 0.0, %v2651
  %v2653 = vpop.f32.mrb[0].mxu0
  %2654 = vmatprep.mubr.f32.mxu0 0.0
  %2655 = vmatmul.mubr.f32.gmra.mrb[0].mxu0 %v2578
  %v2656 = vpop.f32.mrb[0].mxu0
  %v2657 = vadd.f32 0.0, %v2656
  %v2658 = vpop.f32.mrb[0].mxu0
  %2659 = vmatprep.mubr.f32.mxu0 0.0
  %2660 = vmatmul.mubr.f32.gmra.mrb[0].mxu0 %v2581
  %v2661 = vpop.f32.mrb[0].mxu0
  %v2662 = vadd.f32 0.0, %v2661
  %v2663 = vpop.f32.mrb[0].mxu0
  %2664 = vdwg.mxu0
  %2665 = vrot.lane.b32.xlu0 %v1947, 104
  %v2666 = vpop.permute.xlu0 %2665
  %2667 = vrot.lane.b32.xlu0 %v1952, 104
  %v2668 = vpop.permute.xlu0 %2667
  %2669 = vrot.lane.b32.xlu0 %v1957, 104
  %v2670 = vpop.permute.xlu0 %2669
  %2671 = vrot.lane.b32.xlu0 %v1947, 72
  %v2672 = vpop.permute.xlu0 %2671
  %2673 = vrot.lane.b32.xlu0 %v1952, 72
  %v2674 = vpop.permute.xlu0 %2673
  %2675 = vrot.lane.b32.xlu0 %v1957, 72
  %v2676 = vpop.permute.xlu0 %2675
  %v2677 = vsel %vm471, %v2666, 0
  %v2679 = vsel %vm471, %v2668, 0
  %v2681 = vsel %vm471, %v2670, 0
  %v2683 = vsel %vm471, %v2672, 0
  %v2685 = vsel %vm471, %v2674, 0
  %v2687 = vsel %vm471, %v2676, 0
  %2689 = vmatprep.subr.mxu0 0.0
  %2690 = vmatpush1.xpose.msra.mxu0 %v2683
  %2691 = vmatprep.subr.mxu0 0.0
  %2692 = vmatpush1.xpose.msra.mxu0 %v2685
  %2693 = vmatprep.subr.mxu0 0.0
  %2694 = vmatpush1.xpose.msra.mxu0 %v2687
  %2695 = vmatprep.subr.mxu0 0.0
  %2696 = vmatpush1.xpose.msra.mxu0 0.0
  %2697 = vmatprep.subr.mxu0 0.0
  %2698 = vmatpush1.xpose.msra.mxu0 0.0
  %2699 = vmatprep.subr.mxu0 0.0
  %2700 = vmatpush1.xpose.msra.mxu0 0.0
  %2701 = vmatprep.subr.mxu0 0.0
  %2702 = vmatpush1.xpose.msra.mxu0 0.0
  %2703 = vmatprep.subr.mxu0 0.0
  %2704 = vmatpush1.xpose.msra.mxu0 0.0
  %2705 = vmatprep.subr.mxu0 0.0
  %2706 = vmatpush1.xpose.msra.mxu0 0.0
  %2707 = vmatprep.subr.mxu0 0.0
  %2708 = vmatpush1.xpose.msra.mxu0 0.0
  %2709 = vmatprep.subr.mxu0 0.0
  %2710 = vmatpush1.xpose.msra.mxu0 0.0
  %2711 = vmatprep.subr.mxu0 0.0
  %2712 = vmatpush1.xpose.msra.mxu0 0.0
  %2713 = vmatprep.subr.mxu0 0.0
  %2714 = vmatpush1.xpose.msra.mxu0 0.0
  %2715 = vmatprep.subr.mxu0 0.0
  %2716 = vmatpush1.xpose.msra.mxu0 0.0
  %2717 = vmatprep.subr.mxu0 0.0
  %2718 = vmatpush1.xpose.msra.mxu0 0.0
  %2719 = vmatprep.subr.mxu0 0.0
  %2720 = vmatpush1.xpose.msra.mxu0 0.0
  %2721 = vmatprep.subr.mxu0 0.0
  %2722 = vmatpush1.xpose.msra.mxu0 0.0
  %2723 = vmatprep.subr.mxu0 0.0
  %2724 = vmatpush1.xpose.msra.mxu0 0.0
  %2725 = vmatprep.subr.mxu0 0.0
  %2726 = vmatpush1.xpose.msra.mxu0 0.0
  %2727 = vmatprep.subr.mxu0 0.0
  %2728 = vmatpush1.xpose.msra.mxu0 0.0
  %2729 = vmatprep.subr.mxu0 0.0
  %2730 = vmatpush1.xpose.msra.mxu0 0.0
  %2731 = vmatprep.subr.mxu0 0.0
  %2732 = vmatpush1.xpose.msra.mxu0 0.0
  %2733 = vmatprep.subr.mxu0 0.0
  %2734 = vmatpush1.xpose.msra.mxu0 0.0
  %2735 = vmatprep.subr.mxu0 0.0
  %2736 = vmatpush1.xpose.msra.mxu0 0.0
  %2737 = vmatprep.subr.mxu0 0.0
  %2738 = vmatpush1.xpose.msra.mxu0 0.0
  %2739 = vmatprep.subr.mxu0 0.0
  %2740 = vmatpush1.xpose.msra.mxu0 0.0
  %2741 = vmatprep.subr.mxu0 0.0
  %2742 = vmatpush1.xpose.msra.mxu0 0.0
  %2743 = vmatprep.subr.mxu0 0.0
  %2744 = vmatpush1.xpose.msra.mxu0 0.0
  %2745 = vmatprep.subr.mxu0 0.0
  %2746 = vmatpush1.xpose.msra.mxu0 0.0
  %2747 = vmatprep.subr.mxu0 0.0
  %2748 = vmatpush1.xpose.msra.mxu0 0.0
  %2749 = vmatprep.subr.mxu0 0.0
  %2750 = vmatpush1.xpose.msra.mxu0 0.0
  %2751 = vmatprep.subr.mxu0 0.0
  %2752 = vmatpush1.xpose.msra.mxu0 0.0
  %2753 = vmatprep.mubr.f32.mxu0 0.0
  %2754 = vmatmul.mubr.f32.gmra.mrb[0].mxu0 %v2677
  %v2755 = vpop.f32.mrb[0].mxu0
  %v2756 = vadd.f32 %v1180, %v2755
  %v2757 = vpop.f32.mrb[0].mxu0
  %2758 = vmatprep.mubr.f32.mxu0 0.0
  %2759 = vmatmul.mubr.f32.gmra.mrb[0].mxu0 %v2679
  %v2760 = vpop.f32.mrb[0].mxu0
  %v2761 = vadd.f32 %v1181, %v2760
  %v2762 = vpop.f32.mrb[0].mxu0
  %2763 = vmatprep.mubr.f32.mxu0 0.0
  %2764 = vmatmul.mubr.f32.gmra.mrb[0].mxu0 %v2681
  %v2765 = vpop.f32.mrb[0].mxu0
  %v2766 = vadd.f32 %v1182, %v2765
  %v2767 = vpop.f32.mrb[0].mxu0
  %2768 = vdwg.mxu0
  %v2769 = vsel %vm564, %v2756, -inf
  %2770 = vmax.xlane.f32.xlu0 %v2769
  %v2771 = vpop.xlane.xlu0 %2770
  %v2772 = vsel %vm564, %v2761, -inf
  %2773 = vmax.xlane.f32.xlu0 %v2772
  %v2774 = vpop.xlane.xlu0 %2773
  %v2775 = vsel %vm571, %v2766, -inf
  %2776 = vmax.xlane.f32.xlu0 %v2775
  %v2777 = vpop.xlane.xlu0 %2776
  %v2778 = vsub.f32 %v2756, %v2771
  %v2779 = vsub.f32 %v2761, %v2774
  %v2780 = vsub.f32 %v2766, %v2777
  %v2781 = vmul.f32 %v2778, 1.442695
  %v2782 = vpow.pop %v2781
  %v2783 = vmul.f32 %v2779, 1.442695
  %v2784 = vpow.pop %v2783
  %v2785 = vmul.f32 %v2780, 1.442695
  %v2786 = vpow.pop %v2785
  %v2787 = vsel %vm564, %v2782, 0.0
  %2788 = vadd.xlane.f32.xlu0 %v2787
  %v2789 = vpop.xlane.xlu0 %2788
  %v2790 = vsel %vm564, %v2784, 0.0
  %2791 = vadd.xlane.f32.xlu0 %v2790
  %v2792 = vpop.xlane.xlu0 %2791
  %v2793 = vsel %vm571, %v2786, 0.0
  %2794 = vadd.xlane.f32.xlu0 %v2793
  %v2795 = vpop.xlane.xlu0 %2794
  %v2796 = vrcp.pop %v2789
  %v2797 = vrcp.pop %v2792
  %v2798 = vrcp.pop %v2795
  %v2799 = vmul.f32 %v2782, %v2796
  %v2800 = vmul.f32 %v2784, %v2797
  %v2801 = vmul.f32 %v2786, %v2798
  %2802 = vrot.lane.b32.xlu0 %v1947, 40
  %v2803 = vpop.permute.xlu0 %2802
  %2804 = vrot.lane.b32.xlu0 %v1952, 40
  %v2805 = vpop.permute.xlu0 %2804
  %2806 = vrot.lane.b32.xlu0 %v1957, 40
  %v2807 = vpop.permute.xlu0 %2806
  %v2811 = vsel %vm564, %v2799, 0
  %v2814 = vsel %vm564, %v2800, 0
  %v2817 = vsel %vm564, %v2801, 0
  %v2819 = vsel %vm616, %v2807, 0
  %2821 = vmatprep.subr.mxu0 0.0
  %2822 = vmatpush1.msra.mxu0 %v2803
  %2823 = vmatprep.subr.mxu0 0.0
  %2824 = vmatpush1.msra.mxu0 %v2805
  %2825 = vmatprep.subr.mxu0 0.0
  %2826 = vmatpush1.msra.mxu0 %v2819
  %2827 = vmatprep.subr.mxu0 0.0
  %2828 = vmatpush1.msra.mxu0 0.0
  %2829 = vmatprep.subr.mxu0 0.0
  %2830 = vmatpush1.msra.mxu0 0.0
  %2831 = vmatprep.subr.mxu0 0.0
  %2832 = vmatpush1.msra.mxu0 0.0
  %2833 = vmatprep.subr.mxu0 0.0
  %2834 = vmatpush1.msra.mxu0 0.0
  %2835 = vmatprep.subr.mxu0 0.0
  %2836 = vmatpush1.msra.mxu0 0.0
  %2837 = vmatprep.subr.mxu0 0.0
  %2838 = vmatpush1.msra.mxu0 0.0
  %2839 = vmatprep.subr.mxu0 0.0
  %2840 = vmatpush1.msra.mxu0 0.0
  %2841 = vmatprep.subr.mxu0 0.0
  %2842 = vmatpush1.msra.mxu0 0.0
  %2843 = vmatprep.subr.mxu0 0.0
  %2844 = vmatpush1.msra.mxu0 0.0
  %2845 = vmatprep.subr.mxu0 0.0
  %2846 = vmatpush1.msra.mxu0 0.0
  %2847 = vmatprep.subr.mxu0 0.0
  %2848 = vmatpush1.msra.mxu0 0.0
  %2849 = vmatprep.subr.mxu0 0.0
  %2850 = vmatpush1.msra.mxu0 0.0
  %2851 = vmatprep.subr.mxu0 0.0
  %2852 = vmatpush1.msra.mxu0 0.0
  %2853 = vmatprep.subr.mxu0 0.0
  %2854 = vmatpush1.msra.mxu0 0.0
  %2855 = vmatprep.subr.mxu0 0.0
  %2856 = vmatpush1.msra.mxu0 0.0
  %2857 = vmatprep.subr.mxu0 0.0
  %2858 = vmatpush1.msra.mxu0 0.0
  %2859 = vmatprep.subr.mxu0 0.0
  %2860 = vmatpush1.msra.mxu0 0.0
  %2861 = vmatprep.subr.mxu0 0.0
  %2862 = vmatpush1.msra.mxu0 0.0
  %2863 = vmatprep.subr.mxu0 0.0
  %2864 = vmatpush1.msra.mxu0 0.0
  %2865 = vmatprep.subr.mxu0 0.0
  %2866 = vmatpush1.msra.mxu0 0.0
  %2867 = vmatprep.subr.mxu0 0.0
  %2868 = vmatpush1.msra.mxu0 0.0
  %2869 = vmatprep.subr.mxu0 0.0
  %2870 = vmatpush1.msra.mxu0 0.0
  %2871 = vmatprep.subr.mxu0 0.0
  %2872 = vmatpush1.msra.mxu0 0.0
  %2873 = vmatprep.subr.mxu0 0.0
  %2874 = vmatpush1.msra.mxu0 0.0
  %2875 = vmatprep.subr.mxu0 0.0
  %2876 = vmatpush1.msra.mxu0 0.0
  %2877 = vmatprep.subr.mxu0 0.0
  %2878 = vmatpush1.msra.mxu0 0.0
  %2879 = vmatprep.subr.mxu0 0.0
  %2880 = vmatpush1.msra.mxu0 0.0
  %2881 = vmatprep.subr.mxu0 0.0
  %2882 = vmatpush1.msra.mxu0 0.0
  %2883 = vmatprep.subr.mxu0 0.0
  %2884 = vmatpush1.msra.mxu0 0.0
  %2885 = vmatprep.mubr.f32.mxu0 0.0
  %2886 = vmatmul.mubr.f32.gmra.mrb[0].mxu0 %v2811
  %v2887 = vpop.f32.mrb[0].mxu0
  %v2888 = vadd.f32 0.0, %v2887
  %v2889 = vpop.f32.mrb[0].mxu0
  %2890 = vmatprep.mubr.f32.mxu0 0.0
  %2891 = vmatmul.mubr.f32.gmra.mrb[0].mxu0 %v2814
  %v2892 = vpop.f32.mrb[0].mxu0
  %v2893 = vadd.f32 0.0, %v2892
  %v2894 = vpop.f32.mrb[0].mxu0
  %2895 = vmatprep.mubr.f32.mxu0 0.0
  %2896 = vmatmul.mubr.f32.gmra.mrb[0].mxu0 %v2817
  %v2897 = vpop.f32.mrb[0].mxu0
  %v2898 = vadd.f32 0.0, %v2897
  %v2899 = vpop.f32.mrb[0].mxu0
  %2900 = vdwg.mxu0
  %2904 = vrot.lane.b32.xlu0 %v2416, 8
  %v2905 = vpop.permute.xlu0 %2904
  %2906 = vrot.lane.b32.xlu0 %v2421, 8
  %v2907 = vpop.permute.xlu0 %2906
  %2908 = vrot.lane.b32.xlu0 %v2426, 8
  %v2909 = vpop.permute.xlu0 %2908
  %2916 = vrot.lane.b32.xlu0 %v2652, 16
  %v2917 = vpop.permute.xlu0 %2916
  %2918 = vrot.lane.b32.xlu0 %v2657, 16
  %v2919 = vpop.permute.xlu0 %2918
  %2920 = vrot.lane.b32.xlu0 %v2662, 16
  %v2921 = vpop.permute.xlu0 %2920
  %2928 = vrot.lane.b32.xlu0 %v2888, 24
  %v2929 = vpop.permute.xlu0 %2928
  %2930 = vrot.lane.b32.xlu0 %v2893, 24
  %v2931 = vpop.permute.xlu0 %2930
  %2932 = vrot.lane.b32.xlu0 %v2898, 24
  %v2933 = vpop.permute.xlu0 %2932
  %v2937 = vsel %vm471, %v2180, %v2905
  %v2938 = vsel %vm471, %v2185, %v2907
  %v2939 = vsel %vm471, %v2190, %v2909
  %v2940 = vsel %vm1458, %v2937, %v2917
  %v2941 = vsel %vm1458, %v2938, %v2919
  %v2942 = vsel %vm1458, %v2939, %v2921
  %v2943 = vsel %vm1462, %v2940, %v2929
  %v2944 = vsel %vm1462, %v2941, %v2931
  %v2945 = vsel %vm1462, %v2942, %v2933
  %s2946 = scalar_lea.vmem %s8, 32
  %v2947 = vld [vmem:[%s2946] sm:$0xff]
  %v2948 = vld [vmem:[%s2946 + $0x8] sm:$0xff]
  %v2949 = vld [vmem:[%s2946 + $0x10] sm:$0xff]
  %v2950 = vld [vmem:[%s2946 + $0x18] sm:$0xff]
  %v2952 = vsel %vm333, %v2943, 0
  %v2955 = vsel %vm333, %v2944, 0
  %v2958 = vsel %vm333, %v2945, 0
  %2960 = vmatprep.subr.mxu0 0.0
  %2961 = vmatpush1.msra.mxu0 %v2947
  %2962 = vmatprep.subr.mxu0 0.0
  %2963 = vmatpush1.msra.mxu0 %v2948
  %2964 = vmatprep.subr.mxu0 0.0
  %2965 = vmatpush1.msra.mxu0 %v2949
  %2966 = vmatprep.subr.mxu0 0.0
  %2967 = vmatpush1.msra.mxu0 %v2950
  %2968 = vmatprep.subr.mxu0 0.0
  %2969 = vmatpush1.msra.mxu0 0.0
  %2970 = vmatprep.subr.mxu0 0.0
  %2971 = vmatpush1.msra.mxu0 0.0
  %2972 = vmatprep.subr.mxu0 0.0
  %2973 = vmatpush1.msra.mxu0 0.0
  %2974 = vmatprep.subr.mxu0 0.0
  %2975 = vmatpush1.msra.mxu0 0.0
  %2976 = vmatprep.subr.mxu0 0.0
  %2977 = vmatpush1.msra.mxu0 0.0
  %2978 = vmatprep.subr.mxu0 0.0
  %2979 = vmatpush1.msra.mxu0 0.0
  %2980 = vmatprep.subr.mxu0 0.0
  %2981 = vmatpush1.msra.mxu0 0.0
  %2982 = vmatprep.subr.mxu0 0.0
  %2983 = vmatpush1.msra.mxu0 0.0
  %2984 = vmatprep.subr.mxu0 0.0
  %2985 = vmatpush1.msra.mxu0 0.0
  %2986 = vmatprep.subr.mxu0 0.0
  %2987 = vmatpush1.msra.mxu0 0.0
  %2988 = vmatprep.subr.mxu0 0.0
  %2989 = vmatpush1.msra.mxu0 0.0
  %2990 = vmatprep.subr.mxu0 0.0
  %2991 = vmatpush1.msra.mxu0 0.0
  %2992 = vmatprep.subr.mxu0 0.0
  %2993 = vmatpush1.msra.mxu0 0.0
  %2994 = vmatprep.subr.mxu0 0.0
  %2995 = vmatpush1.msra.mxu0 0.0
  %2996 = vmatprep.subr.mxu0 0.0
  %2997 = vmatpush1.msra.mxu0 0.0
  %2998 = vmatprep.subr.mxu0 0.0
  %2999 = vmatpush1.msra.mxu0 0.0
  %3000 = vmatprep.subr.mxu0 0.0
  %3001 = vmatpush1.msra.mxu0 0.0
  %3002 = vmatprep.subr.mxu0 0.0
  %3003 = vmatpush1.msra.mxu0 0.0
  %3004 = vmatprep.subr.mxu0 0.0
  %3005 = vmatpush1.msra.mxu0 0.0
  %3006 = vmatprep.subr.mxu0 0.0
  %3007 = vmatpush1.msra.mxu0 0.0
  %3008 = vmatprep.subr.mxu0 0.0
  %3009 = vmatpush1.msra.mxu0 0.0
  %3010 = vmatprep.subr.mxu0 0.0
  %3011 = vmatpush1.msra.mxu0 0.0
  %3012 = vmatprep.subr.mxu0 0.0
  %3013 = vmatpush1.msra.mxu0 0.0
  %3014 = vmatprep.subr.mxu0 0.0
  %3015 = vmatpush1.msra.mxu0 0.0
  %3016 = vmatprep.subr.mxu0 0.0
  %3017 = vmatpush1.msra.mxu0 0.0
  %3018 = vmatprep.subr.mxu0 0.0
  %3019 = vmatpush1.msra.mxu0 0.0
  %3020 = vmatprep.subr.mxu0 0.0
  %3021 = vmatpush1.msra.mxu0 0.0
  %3022 = vmatprep.subr.mxu0 0.0
  %3023 = vmatpush1.msra.mxu0 0.0
  %3024 = vmatprep.mubr.f32.mxu0 0.0
  %3025 = vmatmul.mubr.f32.gmra.mrb[0].mxu0 %v2952
  %v3026 = vpop.f32.mrb[0].mxu0
  %v3027 = vadd.f32 0.0, %v3026
  %v3028 = vpop.f32.mrb[0].mxu0
  %3029 = vmatprep.mubr.f32.mxu0 0.0
  %3030 = vmatmul.mubr.f32.gmra.mrb[0].mxu0 %v2955
  %v3031 = vpop.f32.mrb[0].mxu0
  %v3032 = vadd.f32 0.0, %v3031
  %v3033 = vpop.f32.mrb[0].mxu0
  %3034 = vmatprep.mubr.f32.mxu0 0.0
  %3035 = vmatmul.mubr.f32.gmra.mrb[0].mxu0 %v2958
  %v3036 = vpop.f32.mrb[0].mxu0
  %v3037 = vadd.f32 0.0, %v3036
  %v3038 = vpop.f32.mrb[0].mxu0
  %3039 = vdwg.mxu0
  %v3040 = vadd.f32 %v1828, %v3027
  %v3041 = vadd.f32 %v1829, %v3032
  %v3042 = vadd.f32 %v1830, %v3037
  %s3043 = scalar_lea.vmem %s9, 1
  %v3044 = vld [vmem:[%s3043] sm:$0x1]
  %v3045 = vmul.f32 %v3040, %v3040
  %v3046 = vmul.f32 %v3041, %v3041
  %v3047 = vmul.f32 %v3042, %v3042
  %v3048 = vsel %vm333, %v3045, 0.0
  %3049 = vadd.xlane.f32.xlu0 %v3048
  %v3050 = vpop.xlane.xlu0 %3049
  %v3051 = vsel %vm333, %v3046, 0.0
  %3052 = vadd.xlane.f32.xlu0 %v3051
  %v3053 = vpop.xlane.xlu0 %3052
  %v3054 = vsel %vm340, %v3047, 0.0
  %3055 = vadd.xlane.f32.xlu0 %v3054
  %v3056 = vpop.xlane.xlu0 %3055
  %v3057 = vmul.f32 %v3050, %v344
  %v3058 = vmul.f32 %v3053, %v344
  %v3059 = vmul.f32 %v3056, %v344
  %v3060 = vadd.f32 %v3057, 1e-06
  %v3061 = vadd.f32 %v3058, 1e-06
  %v3062 = vadd.f32 %v3059, 1e-06
  %v3063 = vrsqrt.pop %v3060
  %v3064 = vrsqrt.pop %v3061
  %v3065 = vrsqrt.pop %v3062
  %v3066 = vmul.f32 %v3040, %v3063
  %v3067 = vmul.f32 %v3041, %v3064
  %v3068 = vmul.f32 %v3042, %v3065
  %v3070 = vlaneseq
  %v3071 = vshrl.u32 %v3070, 7
  %v3072 = vsub.s32 0, %v3071
  %v3073 = vrot.slane %v3044, %v3072
  %v3075 = vmul.f32 %v3066, %v3073
  %v3076 = vmul.f32 %v3067, %v3073
  %v3077 = vmul.f32 %v3068, %v3073
  %s3078 = scalar_lea.vmem %s10, 32
  %v3079 = vld [vmem:[%s3078] sm:$0xff]
  %v3080 = vld [vmem:[%s3078 + $0x8] sm:$0xff]
  %v3081 = vld [vmem:[%s3078 + $0x10] sm:$0xff]
  %v3082 = vld [vmem:[%s3078 + $0x18] sm:$0xff]
  %v3084 = vsel %vm333, %v3075, 0
  %v3087 = vsel %vm333, %v3076, 0
  %v3090 = vsel %vm333, %v3077, 0
  %3092 = vmatprep.subr.mxu0 0.0
  %3093 = vmatpush1.msra.mxu0 %v3079
  %3094 = vmatprep.subr.mxu0 0.0
  %3095 = vmatpush1.msra.mxu0 %v3080
  %3096 = vmatprep.subr.mxu0 0.0
  %3097 = vmatpush1.msra.mxu0 %v3081
  %3098 = vmatprep.subr.mxu0 0.0
  %3099 = vmatpush1.msra.mxu0 %v3082
  %3100 = vmatprep.subr.mxu0 0.0
  %3101 = vmatpush1.msra.mxu0 0.0
  %3102 = vmatprep.subr.mxu0 0.0
  %3103 = vmatpush1.msra.mxu0 0.0
  %3104 = vmatprep.subr.mxu0 0.0
  %3105 = vmatpush1.msra.mxu0 0.0
  %3106 = vmatprep.subr.mxu0 0.0
  %3107 = vmatpush1.msra.mxu0 0.0
  %3108 = vmatprep.subr.mxu0 0.0
  %3109 = vmatpush1.msra.mxu0 0.0
  %3110 = vmatprep.subr.mxu0 0.0
  %3111 = vmatpush1.msra.mxu0 0.0
  %3112 = vmatprep.subr.mxu0 0.0
  %3113 = vmatpush1.msra.mxu0 0.0
  %3114 = vmatprep.subr.mxu0 0.0
  %3115 = vmatpush1.msra.mxu0 0.0
  %3116 = vmatprep.subr.mxu0 0.0
  %3117 = vmatpush1.msra.mxu0 0.0
  %3118 = vmatprep.subr.mxu0 0.0
  %3119 = vmatpush1.msra.mxu0 0.0
  %3120 = vmatprep.subr.mxu0 0.0
  %3121 = vmatpush1.msra.mxu0 0.0
  %3122 = vmatprep.subr.mxu0 0.0
  %3123 = vmatpush1.msra.mxu0 0.0
  %3124 = vmatprep.subr.mxu0 0.0
  %3125 = vmatpush1.msra.mxu0 0.0
  %3126 = vmatprep.subr.mxu0 0.0
  %3127 = vmatpush1.msra.mxu0 0.0
  %3128 = vmatprep.subr.mxu0 0.0
  %3129 = vmatpush1.msra.mxu0 0.0
  %3130 = vmatprep.subr.mxu0 0.0
  %3131 = vmatpush1.msra.mxu0 0.0
  %3132 = vmatprep.subr.mxu0 0.0
  %3133 = vmatpush1.msra.mxu0 0.0
  %3134 = vmatprep.subr.mxu0 0.0
  %3135 = vmatpush1.msra.mxu0 0.0
  %3136 = vmatprep.subr.mxu0 0.0
  %3137 = vmatpush1.msra.mxu0 0.0
  %3138 = vmatprep.subr.mxu0 0.0
  %3139 = vmatpush1.msra.mxu0 0.0
  %3140 = vmatprep.subr.mxu0 0.0
  %3141 = vmatpush1.msra.mxu0 0.0
  %3142 = vmatprep.subr.mxu0 0.0
  %3143 = vmatpush1.msra.mxu0 0.0
  %3144 = vmatprep.subr.mxu0 0.0
  %3145 = vmatpush1.msra.mxu0 0.0
  %3146 = vmatprep.subr.mxu0 0.0
  %3147 = vmatpush1.msra.mxu0 0.0
  %3148 = vmatprep.subr.mxu0 0.0
  %3149 = vmatpush1.msra.mxu0 0.0
  %3150 = vmatprep.subr.mxu0 0.0
  %3151 = vmatpush1.msra.mxu0 0.0
  %3152 = vmatprep.subr.mxu0 0.0
  %3153 = vmatpush1.msra.mxu0 0.0
  %3154 = vmatprep.subr.mxu0 0.0
  %3155 = vmatpush1.msra.mxu0 0.0
  %3156 = vmatprep.mubr.f32.mxu0 0.0
  %3157 = vmatmul.mubr.f32.gmra.mrb[0].mxu0 %v3084
  %v3158 = vpop.f32.mrb[0].mxu0
  %v3159 = vadd.f32 0.0, %v3158
  %v3160 = vpop.f32.mrb[0].mxu0
  %3161 = vmatprep.mubr.f32.mxu0 0.0
  %3162 = vmatmul.mubr.f32.gmra.mrb[0].mxu0 %v3087
  %v3163 = vpop.f32.mrb[0].mxu0
  %v3164 = vadd.f32 0.0, %v3163
  %v3165 = vpop.f32.mrb[0].mxu0
  %3166 = vmatprep.mubr.f32.mxu0 0.0
  %3167 = vmatmul.mubr.f32.gmra.mrb[0].mxu0 %v3090
  %v3168 = vpop.f32.mrb[0].mxu0
  %v3169 = vadd.f32 0.0, %v3168
  %v3170 = vpop.f32.mrb[0].mxu0
  %3171 = vdwg.mxu0
  %v3172 = vmul.f32 %v3159, 0.5
  %v3173 = vmul.f32 %v3164, 0.5
  %v3174 = vmul.f32 %v3169, 0.5
  %v3175 = vmul.f32 %v3159, 0.044715
  %v3176 = vmul.f32 %v3164, 0.044715
  %v3177 = vmul.f32 %v3169, 0.044715
  %v3178 = vmul.f32 %v3175, %v3159
  %v3179 = vmul.f32 %v3176, %v3164
  %v3180 = vmul.f32 %v3177, %v3169
  %v3181 = vmul.f32 %v3178, %v3159
  %v3182 = vmul.f32 %v3179, %v3164
  %v3183 = vmul.f32 %v3180, %v3169
  %v3184 = vadd.f32 %v3159, %v3181
  %v3185 = vadd.f32 %v3164, %v3182
  %v3186 = vadd.f32 %v3169, %v3183
  %v3187 = vmul.f32 %v3184, 0.7978846
  %v3188 = vmul.f32 %v3185, 0.7978846
  %v3189 = vmul.f32 %v3186, 0.7978846
  %v3190 = vtanh.pop %v3187
  %v3191 = vtanh.pop %v3188
  %v3192 = vtanh.pop %v3189
  %v3193 = vadd.f32 %v3190, 1.0
  %v3194 = vadd.f32 %v3191, 1.0
  %v3195 = vadd.f32 %v3192, 1.0
  %v3196 = vmul.f32 %v3172, %v3193
  %v3197 = vmul.f32 %v3173, %v3194
  %v3198 = vmul.f32 %v3174, %v3195
  %3202 = vrot.lane.b32.xlu0 %v3159, 64
  %v3203 = vpop.permute.xlu0 %3202
  %3204 = vrot.lane.b32.xlu0 %v3164, 64
  %v3205 = vpop.permute.xlu0 %3204
  %3206 = vrot.lane.b32.xlu0 %v3169, 64
  %v3207 = vpop.permute.xlu0 %3206
  %v3211 = vmul.f32 %v3196, %v3203
  %v3212 = vmul.f32 %v3197, %v3205
  %v3213 = vmul.f32 %v3198, %v3207
  %s3214 = scalar_lea.vmem %s11, 64
  %v3215 = vld [vmem:[%s3214] sm:$0xff]
  %v3216 = vld [vmem:[%s3214 + $0x8] sm:$0xff]
  %v3217 = vld [vmem:[%s3214 + $0x10] sm:$0xff]
  %v3218 = vld [vmem:[%s3214 + $0x18] sm:$0xff]
  %v3219 = vld [vmem:[%s3214 + $0x20] sm:$0xff]
  %v3220 = vld [vmem:[%s3214 + $0x28] sm:$0xff]
  %v3221 = vld [vmem:[%s3214 + $0x30] sm:$0xff]
  %v3222 = vld [vmem:[%s3214 + $0x38] sm:$0xff]
  %v3224 = vsel %vm94, %v3211, 0
  %v3227 = vsel %vm94, %v3212, 0
  %v3230 = vsel %vm94, %v3213, 0
  %3232 = vmatprep.subr.mxu0 0.0
  %3233 = vmatpush1.msra.mxu0 %v3215
  %3234 = vmatprep.subr.mxu0 0.0
  %3235 = vmatpush1.msra.mxu0 %v3216
  %3236 = vmatprep.subr.mxu0 0.0
  %3237 = vmatpush1.msra.mxu0 %v3217
  %3238 = vmatprep.subr.mxu0 0.0
  %3239 = vmatpush1.msra.mxu0 %v3218
  %3240 = vmatprep.subr.mxu0 0.0
  %3241 = vmatpush1.msra.mxu0 %v3219
  %3242 = vmatprep.subr.mxu0 0.0
  %3243 = vmatpush1.msra.mxu0 %v3220
  %3244 = vmatprep.subr.mxu0 0.0
  %3245 = vmatpush1.msra.mxu0 %v3221
  %3246 = vmatprep.subr.mxu0 0.0
  %3247 = vmatpush1.msra.mxu0 %v3222
  %3248 = vmatprep.subr.mxu0 0.0
  %3249 = vmatpush1.msra.mxu0 0.0
  %3250 = vmatprep.subr.mxu0 0.0
  %3251 = vmatpush1.msra.mxu0 0.0
  %3252 = vmatprep.subr.mxu0 0.0
  %3253 = vmatpush1.msra.mxu0 0.0
  %3254 = vmatprep.subr.mxu0 0.0
  %3255 = vmatpush1.msra.mxu0 0.0
  %3256 = vmatprep.subr.mxu0 0.0
  %3257 = vmatpush1.msra.mxu0 0.0
  %3258 = vmatprep.subr.mxu0 0.0
  %3259 = vmatpush1.msra.mxu0 0.0
  %3260 = vmatprep.subr.mxu0 0.0
  %3261 = vmatpush1.msra.mxu0 0.0
  %3262 = vmatprep.subr.mxu0 0.0
  %3263 = vmatpush1.msra.mxu0 0.0
  %3264 = vmatprep.subr.mxu0 0.0
  %3265 = vmatpush1.msra.mxu0 0.0
  %3266 = vmatprep.subr.mxu0 0.0
  %3267 = vmatpush1.msra.mxu0 0.0
  %3268 = vmatprep.subr.mxu0 0.0
  %3269 = vmatpush1.msra.mxu0 0.0
  %3270 = vmatprep.subr.mxu0 0.0
  %3271 = vmatpush1.msra.mxu0 0.0
  %3272 = vmatprep.subr.mxu0 0.0
  %3273 = vmatpush1.msra.mxu0 0.0
  %3274 = vmatprep.subr.mxu0 0.0
  %3275 = vmatpush1.msra.mxu0 0.0
  %3276 = vmatprep.subr.mxu0 0.0
  %3277 = vmatpush1.msra.mxu0 0.0
  %3278 = vmatprep.subr.mxu0 0.0
  %3279 = vmatpush1.msra.mxu0 0.0
  %3280 = vmatprep.subr.mxu0 0.0
  %3281 = vmatpush1.msra.mxu0 0.0
  %3282 = vmatprep.subr.mxu0 0.0
  %3283 = vmatpush1.msra.mxu0 0.0
  %3284 = vmatprep.subr.mxu0 0.0
  %3285 = vmatpush1.msra.mxu0 0.0
  %3286 = vmatprep.subr.mxu0 0.0
  %3287 = vmatpush1.msra.mxu0 0.0
  %3288 = vmatprep.subr.mxu0 0.0
  %3289 = vmatpush1.msra.mxu0 0.0
  %3290 = vmatprep.subr.mxu0 0.0
  %3291 = vmatpush1.msra.mxu0 0.0
  %3292 = vmatprep.subr.mxu0 0.0
  %3293 = vmatpush1.msra.mxu0 0.0
  %3294 = vmatprep.subr.mxu0 0.0
  %3295 = vmatpush1.msra.mxu0 0.0
  %3296 = vmatprep.mubr.f32.mxu0 0.0
  %3297 = vmatmul.mubr.f32.gmra.mrb[0].mxu0 %v3224
  %v3298 = vpop.f32.mrb[0].mxu0
  %v3299 = vadd.f32 0.0, %v3298
  %v3300 = vpop.f32.mrb[0].mxu0
  %3301 = vmatprep.mubr.f32.mxu0 0.0
  %3302 = vmatmul.mubr.f32.gmra.mrb[0].mxu0 %v3227
  %v3303 = vpop.f32.mrb[0].mxu0
  %v3304 = vadd.f32 0.0, %v3303
  %v3305 = vpop.f32.mrb[0].mxu0
  %3306 = vmatprep.mubr.f32.mxu0 0.0
  %3307 = vmatmul.mubr.f32.gmra.mrb[0].mxu0 %v3230
  %v3308 = vpop.f32.mrb[0].mxu0
  %v3309 = vadd.f32 0.0, %v3308
  %v3310 = vpop.f32.mrb[0].mxu0
  %3311 = vdwg.mxu0
  %v3312 = vadd.f32 %v3040, %v3299
  %v3313 = vadd.f32 %v3041, %v3304
  %v3314 = vadd.f32 %v3042, %v3309
  %v3315 = vld [vmem:[%s12] sm:$0x1]
  %v3316 = vmul.f32 %v3312, %v3312
  %v3317 = vmul.f32 %v3313, %v3313
  %v3318 = vmul.f32 %v3314, %v3314
  %v3319 = vsel %vm333, %v3316, 0.0
  %3320 = vadd.xlane.f32.xlu0 %v3319
  %v3321 = vpop.xlane.xlu0 %3320
  %v3322 = vsel %vm333, %v3317, 0.0
  %3323 = vadd.xlane.f32.xlu0 %v3322
  %v3324 = vpop.xlane.xlu0 %3323
  %v3325 = vsel %vm340, %v3318, 0.0
  %3326 = vadd.xlane.f32.xlu0 %v3325
  %v3327 = vpop.xlane.xlu0 %3326
  %v3328 = vmul.f32 %v3321, %v344
  %v3329 = vmul.f32 %v3324, %v344
  %v3330 = vmul.f32 %v3327, %v344
  %v3331 = vadd.f32 %v3328, 1e-06
  %v3332 = vadd.f32 %v3329, 1e-06
  %v3333 = vadd.f32 %v3330, 1e-06
  %v3334 = vrsqrt.pop %v3331
  %v3335 = vrsqrt.pop %v3332
  %v3336 = vrsqrt.pop %v3333
  %v3337 = vmul.f32 %v3312, %v3334
  %v3338 = vmul.f32 %v3313, %v3335
  %v3339 = vmul.f32 %v3314, %v3336
  %v3341 = vlaneseq
  %v3342 = vshrl.u32 %v3341, 7
  %v3343 = vsub.s32 0, %v3342
  %v3344 = vrot.slane %v3315, %v3343
  %v3346 = vmul.f32 %v3337, %v3344
  %v3347 = vmul.f32 %v3338, %v3344
  %v3348 = vmul.f32 %v3339, %v3344
  %v3349 = vld [vmem:[%s13] sm:$0xff]
  %v3350 = vld [vmem:[%s13 + $0x8] sm:$0xff]
  %v3351 = vld [vmem:[%s14] sm:$0x1]
  %v3352 = vmul.f32 %v3349, %v3349
  %v3353 = vmul.f32 %v3350, %v3350
  %v3354 = vsel %vm333, %v3352, 0.0
  %3355 = vadd.xlane.f32.xlu0 %v3354
  %v3356 = vpop.xlane.xlu0 %3355
  %v3357 = vsel %vm333, %v3353, 0.0
  %3358 = vadd.xlane.f32.xlu0 %v3357
  %v3359 = vpop.xlane.xlu0 %3358
  %v3360 = vmul.f32 %v3356, %v344
  %v3361 = vmul.f32 %v3359, %v344
  %v3362 = vadd.f32 %v3360, 1e-06
  %v3363 = vadd.f32 %v3361, 1e-06
  %v3364 = vrsqrt.pop %v3362
  %v3365 = vrsqrt.pop %v3363
  %v3366 = vmul.f32 %v3349, %v3364
  %v3367 = vmul.f32 %v3350, %v3365
  %v3369 = vlaneseq
  %v3370 = vshrl.u32 %v3369, 7
  %v3371 = vsub.s32 0, %v3370
  %v3372 = vrot.slane %v3351, %v3371
  %v3374 = vmul.f32 %v3366, %v3372
  %v3375 = vmul.f32 %v3367, %v3372
  %v3376 = vld [vmem:[%s15] sm:$0xff]
  %v3377 = vld [vmem:[%s15 + $0x8] sm:$0xff]
  %v3378 = vld [vmem:[%s15 + $0x10] sm:$0xff]
  %v3379 = vld [vmem:[%s15 + $0x18] sm:$0xff]
  %v3381 = vsel %vm333, %v3374, 0
  %v3384 = vsel %vm333, %v3375, 0
  %3386 = vmatprep.subr.mxu0 0.0
  %3387 = vmatpush1.msra.mxu0 %v3376
  %3388 = vmatprep.subr.mxu0 0.0
  %3389 = vmatpush1.msra.mxu0 %v3377
  %3390 = vmatprep.subr.mxu0 0.0
  %3391 = vmatpush1.msra.mxu0 %v3378
  %3392 = vmatprep.subr.mxu0 0.0
  %3393 = vmatpush1.msra.mxu0 %v3379
  %3394 = vmatprep.subr.mxu0 0.0
  %3395 = vmatpush1.msra.mxu0 0.0
  %3396 = vmatprep.subr.mxu0 0.0
  %3397 = vmatpush1.msra.mxu0 0.0
  %3398 = vmatprep.subr.mxu0 0.0
  %3399 = vmatpush1.msra.mxu0 0.0
  %3400 = vmatprep.subr.mxu0 0.0
  %3401 = vmatpush1.msra.mxu0 0.0
  %3402 = vmatprep.subr.mxu0 0.0
  %3403 = vmatpush1.msra.mxu0 0.0
  %3404 = vmatprep.subr.mxu0 0.0
  %3405 = vmatpush1.msra.mxu0 0.0
  %3406 = vmatprep.subr.mxu0 0.0
  %3407 = vmatpush1.msra.mxu0 0.0
  %3408 = vmatprep.subr.mxu0 0.0
  %3409 = vmatpush1.msra.mxu0 0.0
  %3410 = vmatprep.subr.mxu0 0.0
  %3411 = vmatpush1.msra.mxu0 0.0
  %3412 = vmatprep.subr.mxu0 0.0
  %3413 = vmatpush1.msra.mxu0 0.0
  %3414 = vmatprep.subr.mxu0 0.0
  %3415 = vmatpush1.msra.mxu0 0.0
  %3416 = vmatprep.subr.mxu0 0.0
  %3417 = vmatpush1.msra.mxu0 0.0
  %3418 = vmatprep.subr.mxu0 0.0
  %3419 = vmatpush1.msra.mxu0 0.0
  %3420 = vmatprep.subr.mxu0 0.0
  %3421 = vmatpush1.msra.mxu0 0.0
  %3422 = vmatprep.subr.mxu0 0.0
  %3423 = vmatpush1.msra.mxu0 0.0
  %3424 = vmatprep.subr.mxu0 0.0
  %3425 = vmatpush1.msra.mxu0 0.0
  %3426 = vmatprep.subr.mxu0 0.0
  %3427 = vmatpush1.msra.mxu0 0.0
  %3428 = vmatprep.subr.mxu0 0.0
  %3429 = vmatpush1.msra.mxu0 0.0
  %3430 = vmatprep.subr.mxu0 0.0
  %3431 = vmatpush1.msra.mxu0 0.0
  %3432 = vmatprep.subr.mxu0 0.0
  %3433 = vmatpush1.msra.mxu0 0.0
  %3434 = vmatprep.subr.mxu0 0.0
  %3435 = vmatpush1.msra.mxu0 0.0
  %3436 = vmatprep.subr.mxu0 0.0
  %3437 = vmatpush1.msra.mxu0 0.0
  %3438 = vmatprep.subr.mxu0 0.0
  %3439 = vmatpush1.msra.mxu0 0.0
  %3440 = vmatprep.subr.mxu0 0.0
  %3441 = vmatpush1.msra.mxu0 0.0
  %3442 = vmatprep.subr.mxu0 0.0
  %3443 = vmatpush1.msra.mxu0 0.0
  %3444 = vmatprep.subr.mxu0 0.0
  %3445 = vmatpush1.msra.mxu0 0.0
  %3446 = vmatprep.subr.mxu0 0.0
  %3447 = vmatpush1.msra.mxu0 0.0
  %3448 = vmatprep.subr.mxu0 0.0
  %3449 = vmatpush1.msra.mxu0 0.0
  %3450 = vmatprep.mubr.f32.mxu0 0.0
  %3451 = vmatmul.mubr.f32.gmra.mrb[0].mxu0 %v3381
  %v3452 = vpop.f32.mrb[0].mxu0
  %v3453 = vadd.f32 0.0, %v3452
  %v3454 = vpop.f32.mrb[0].mxu0
  %3455 = vmatprep.mubr.f32.mxu0 0.0
  %3456 = vmatmul.mubr.f32.gmra.mrb[0].mxu0 %v3384
  %v3457 = vpop.f32.mrb[0].mxu0
  %v3458 = vadd.f32 0.0, %v3457
  %v3459 = vpop.f32.mrb[0].mxu0
  %3460 = vdwg.mxu0
  %v3461 = vld [vmem:[%s4] sm:$0xff]
  %v3462 = vld [vmem:[%s4 + $0x8] sm:$0xff]
  %3465 = vrot.lane.b32.xlu0 %v3453, 96
  %v3466 = vpop.permute.xlu0 %3465
  %3467 = vrot.lane.b32.xlu0 %v3458, 96
  %v3468 = vpop.permute.xlu0 %3467
  %v3469 = vsel %vm471, %v3453, 0
  %v3471 = vsel %vm471, %v3458, 0
  %v3473 = vsel %vm471, %v3466, 0
  %v3475 = vsel %vm471, %v3468, 0
  %3477 = vmatprep.subr.mxu0 0.0
  %3478 = vmatpush1.xpose.msra.mxu0 %v3473
  %3479 = vmatprep.subr.mxu0 0.0
  %3480 = vmatpush1.xpose.msra.mxu0 %v3475
  %3481 = vmatprep.subr.mxu0 0.0
  %3482 = vmatpush1.xpose.msra.mxu0 0.0
  %3483 = vmatprep.subr.mxu0 0.0
  %3484 = vmatpush1.xpose.msra.mxu0 0.0
  %3485 = vmatprep.subr.mxu0 0.0
  %3486 = vmatpush1.xpose.msra.mxu0 0.0
  %3487 = vmatprep.subr.mxu0 0.0
  %3488 = vmatpush1.xpose.msra.mxu0 0.0
  %3489 = vmatprep.subr.mxu0 0.0
  %3490 = vmatpush1.xpose.msra.mxu0 0.0
  %3491 = vmatprep.subr.mxu0 0.0
  %3492 = vmatpush1.xpose.msra.mxu0 0.0
  %3493 = vmatprep.subr.mxu0 0.0
  %3494 = vmatpush1.xpose.msra.mxu0 0.0
  %3495 = vmatprep.subr.mxu0 0.0
  %3496 = vmatpush1.xpose.msra.mxu0 0.0
  %3497 = vmatprep.subr.mxu0 0.0
  %3498 = vmatpush1.xpose.msra.mxu0 0.0
  %3499 = vmatprep.subr.mxu0 0.0
  %3500 = vmatpush1.xpose.msra.mxu0 0.0
  %3501 = vmatprep.subr.mxu0 0.0
  %3502 = vmatpush1.xpose.msra.mxu0 0.0
  %3503 = vmatprep.subr.mxu0 0.0
  %3504 = vmatpush1.xpose.msra.mxu0 0.0
  %3505 = vmatprep.subr.mxu0 0.0
  %3506 = vmatpush1.xpose.msra.mxu0 0.0
  %3507 = vmatprep.subr.mxu0 0.0
  %3508 = vmatpush1.xpose.msra.mxu0 0.0
  %3509 = vmatprep.subr.mxu0 0.0
  %3510 = vmatpush1.xpose.msra.mxu0 0.0
  %3511 = vmatprep.subr.mxu0 0.0
  %3512 = vmatpush1.xpose.msra.mxu0 0.0
  %3513 = vmatprep.subr.mxu0 0.0
  %3514 = vmatpush1.xpose.msra.mxu0 0.0
  %3515 = vmatprep.subr.mxu0 0.0
  %3516 = vmatpush1.xpose.msra.mxu0 0.0
  %3517 = vmatprep.subr.mxu0 0.0
  %3518 = vmatpush1.xpose.msra.mxu0 0.0
  %3519 = vmatprep.subr.mxu0 0.0
  %3520 = vmatpush1.xpose.msra.mxu0 0.0
  %3521 = vmatprep.subr.mxu0 0.0
  %3522 = vmatpush1.xpose.msra.mxu0 0.0
  %3523 = vmatprep.subr.mxu0 0.0
  %3524 = vmatpush1.xpose.msra.mxu0 0.0
  %3525 = vmatprep.subr.mxu0 0.0
  %3526 = vmatpush1.xpose.msra.mxu0 0.0
  %3527 = vmatprep.subr.mxu0 0.0
  %3528 = vmatpush1.xpose.msra.mxu0 0.0
  %3529 = vmatprep.subr.mxu0 0.0
  %3530 = vmatpush1.xpose.msra.mxu0 0.0
  %3531 = vmatprep.subr.mxu0 0.0
  %3532 = vmatpush1.xpose.msra.mxu0 0.0
  %3533 = vmatprep.subr.mxu0 0.0
  %3534 = vmatpush1.xpose.msra.mxu0 0.0
  %3535 = vmatprep.subr.mxu0 0.0
  %3536 = vmatpush1.xpose.msra.mxu0 0.0
  %3537 = vmatprep.subr.mxu0 0.0
  %3538 = vmatpush1.xpose.msra.mxu0 0.0
  %3539 = vmatprep.subr.mxu0 0.0
  %3540 = vmatpush1.xpose.msra.mxu0 0.0
  %3541 = vmatprep.mubr.f32.mxu0 0.0
  %3542 = vmatmul.mubr.f32.gmra.mrb[0].mxu0 %v3469
  %v3543 = vpop.f32.mrb[0].mxu0
  %v3544 = vadd.f32 %v3461, %v3543
  %v3545 = vpop.f32.mrb[0].mxu0
  %3546 = vmatprep.mubr.f32.mxu0 0.0
  %3547 = vmatmul.mubr.f32.gmra.mrb[0].mxu0 %v3471
  %v3548 = vpop.f32.mrb[0].mxu0
  %v3549 = vadd.f32 %v3462, %v3548
  %v3550 = vpop.f32.mrb[0].mxu0
  %3551 = vdwg.mxu0
  %v3552 = vsel %vm1458, %v3544, -inf
  %3553 = vmax.xlane.f32.xlu0 %v3552
  %v3554 = vpop.xlane.xlu0 %3553
  %v3555 = vsel %vm1458, %v3549, -inf
  %3556 = vmax.xlane.f32.xlu0 %v3555
  %v3557 = vpop.xlane.xlu0 %3556
  %v3558 = vsub.f32 %v3544, %v3554
  %v3559 = vsub.f32 %v3549, %v3557
  %v3560 = vmul.f32 %v3558, 1.442695
  %v3561 = vpow.pop %v3560
  %v3562 = vmul.f32 %v3559, 1.442695
  %v3563 = vpow.pop %v3562
  %v3564 = vsel %vm1458, %v3561, 0.0
  %3565 = vadd.xlane.f32.xlu0 %v3564
  %v3566 = vpop.xlane.xlu0 %3565
  %v3567 = vsel %vm1458, %v3563, 0.0
  %3568 = vadd.xlane.f32.xlu0 %v3567
  %v3569 = vpop.xlane.xlu0 %3568
  %v3570 = vrcp.pop %v3566
  %v3571 = vrcp.pop %v3569
  %v3572 = vmul.f32 %v3561, %v3570
  %v3573 = vmul.f32 %v3563, %v3571
  %3574 = vrot.lane.b32.xlu0 %v3453, 64
  %v3575 = vpop.permute.xlu0 %3574
  %3576 = vrot.lane.b32.xlu0 %v3458, 64
  %v3577 = vpop.permute.xlu0 %3576
  %v3581 = vsel %vm1458, %v3572, 0
  %v3584 = vsel %vm1458, %v3573, 0
  %3586 = vmatprep.subr.mxu0 0.0
  %3587 = vmatpush1.msra.mxu0 %v3575
  %3588 = vmatprep.subr.mxu0 0.0
  %3589 = vmatpush1.msra.mxu0 %v3577
  %3590 = vmatprep.subr.mxu0 0.0
  %3591 = vmatpush1.msra.mxu0 0.0
  %3592 = vmatprep.subr.mxu0 0.0
  %3593 = vmatpush1.msra.mxu0 0.0
  %3594 = vmatprep.subr.mxu0 0.0
  %3595 = vmatpush1.msra.mxu0 0.0
  %3596 = vmatprep.subr.mxu0 0.0
  %3597 = vmatpush1.msra.mxu0 0.0
  %3598 = vmatprep.subr.mxu0 0.0
  %3599 = vmatpush1.msra.mxu0 0.0
  %3600 = vmatprep.subr.mxu0 0.0
  %3601 = vmatpush1.msra.mxu0 0.0
  %3602 = vmatprep.subr.mxu0 0.0
  %3603 = vmatpush1.msra.mxu0 0.0
  %3604 = vmatprep.subr.mxu0 0.0
  %3605 = vmatpush1.msra.mxu0 0.0
  %3606 = vmatprep.subr.mxu0 0.0
  %3607 = vmatpush1.msra.mxu0 0.0
  %3608 = vmatprep.subr.mxu0 0.0
  %3609 = vmatpush1.msra.mxu0 0.0
  %3610 = vmatprep.subr.mxu0 0.0
  %3611 = vmatpush1.msra.mxu0 0.0
  %3612 = vmatprep.subr.mxu0 0.0
  %3613 = vmatpush1.msra.mxu0 0.0
  %3614 = vmatprep.subr.mxu0 0.0
  %3615 = vmatpush1.msra.mxu0 0.0
  %3616 = vmatprep.subr.mxu0 0.0
  %3617 = vmatpush1.msra.mxu0 0.0
  %3618 = vmatprep.subr.mxu0 0.0
  %3619 = vmatpush1.msra.mxu0 0.0
  %3620 = vmatprep.subr.mxu0 0.0
  %3621 = vmatpush1.msra.mxu0 0.0
  %3622 = vmatprep.subr.mxu0 0.0
  %3623 = vmatpush1.msra.mxu0 0.0
  %3624 = vmatprep.subr.mxu0 0.0
  %3625 = vmatpush1.msra.mxu0 0.0
  %3626 = vmatprep.subr.mxu0 0.0
  %3627 = vmatpush1.msra.mxu0 0.0
  %3628 = vmatprep.subr.mxu0 0.0
  %3629 = vmatpush1.msra.mxu0 0.0
  %3630 = vmatprep.subr.mxu0 0.0
  %3631 = vmatpush1.msra.mxu0 0.0
  %3632 = vmatprep.subr.mxu0 0.0
  %3633 = vmatpush1.msra.mxu0 0.0
  %3634 = vmatprep.subr.mxu0 0.0
  %3635 = vmatpush1.msra.mxu0 0.0
  %3636 = vmatprep.subr.mxu0 0.0
  %3637 = vmatpush1.msra.mxu0 0.0
  %3638 = vmatprep.subr.mxu0 0.0
  %3639 = vmatpush1.msra.mxu0 0.0
  %3640 = vmatprep.subr.mxu0 0.0
  %3641 = vmatpush1.msra.mxu0 0.0
  %3642 = vmatprep.subr.mxu0 0.0
  %3643 = vmatpush1.msra.mxu0 0.0
  %3644 = vmatprep.subr.mxu0 0.0
  %3645 = vmatpush1.msra.mxu0 0.0
  %3646 = vmatprep.subr.mxu0 0.0
  %3647 = vmatpush1.msra.mxu0 0.0
  %3648 = vmatprep.subr.mxu0 0.0
  %3649 = vmatpush1.msra.mxu0 0.0
  %3650 = vmatprep.mubr.f32.mxu0 0.0
  %3651 = vmatmul.mubr.f32.gmra.mrb[0].mxu0 %v3581
  %v3652 = vpop.f32.mrb[0].mxu0
  %v3653 = vadd.f32 0.0, %v3652
  %v3654 = vpop.f32.mrb[0].mxu0
  %3655 = vmatprep.mubr.f32.mxu0 0.0
  %3656 = vmatmul.mubr.f32.gmra.mrb[0].mxu0 %v3584
  %v3657 = vpop.f32.mrb[0].mxu0
  %v3658 = vadd.f32 0.0, %v3657
  %v3659 = vpop.f32.mrb[0].mxu0
  %3660 = vdwg.mxu0
  %s3661 = scalar_lea.vmem %s4, 16
  %v3662 = vld [vmem:[%s3661] sm:$0xff]
  %v3663 = vld [vmem:[%s3661 + $0x8] sm:$0xff]
  %3664 = vrot.lane.b32.xlu0 %v3453, 120
  %v3665 = vpop.permute.xlu0 %3664
  %3666 = vrot.lane.b32.xlu0 %v3458, 120
  %v3667 = vpop.permute.xlu0 %3666
  %3668 = vrot.lane.b32.xlu0 %v3453, 88
  %v3669 = vpop.permute.xlu0 %3668
  %3670 = vrot.lane.b32.xlu0 %v3458, 88
  %v3671 = vpop.permute.xlu0 %3670
  %v3672 = vsel %vm471, %v3665, 0
  %v3674 = vsel %vm471, %v3667, 0
  %v3676 = vsel %vm471, %v3669, 0
  %v3678 = vsel %vm471, %v3671, 0
  %3680 = vmatprep.subr.mxu0 0.0
  %3681 = vmatpush1.xpose.msra.mxu0 %v3676
  %3682 = vmatprep.subr.mxu0 0.0
  %3683 = vmatpush1.xpose.msra.mxu0 %v3678
  %3684 = vmatprep.subr.mxu0 0.0
  %3685 = vmatpush1.xpose.msra.mxu0 0.0
  %3686 = vmatprep.subr.mxu0 0.0
  %3687 = vmatpush1.xpose.msra.mxu0 0.0
  %3688 = vmatprep.subr.mxu0 0.0
  %3689 = vmatpush1.xpose.msra.mxu0 0.0
  %3690 = vmatprep.subr.mxu0 0.0
  %3691 = vmatpush1.xpose.msra.mxu0 0.0
  %3692 = vmatprep.subr.mxu0 0.0
  %3693 = vmatpush1.xpose.msra.mxu0 0.0
  %3694 = vmatprep.subr.mxu0 0.0
  %3695 = vmatpush1.xpose.msra.mxu0 0.0
  %3696 = vmatprep.subr.mxu0 0.0
  %3697 = vmatpush1.xpose.msra.mxu0 0.0
  %3698 = vmatprep.subr.mxu0 0.0
  %3699 = vmatpush1.xpose.msra.mxu0 0.0
  %3700 = vmatprep.subr.mxu0 0.0
  %3701 = vmatpush1.xpose.msra.mxu0 0.0
  %3702 = vmatprep.subr.mxu0 0.0
  %3703 = vmatpush1.xpose.msra.mxu0 0.0
  %3704 = vmatprep.subr.mxu0 0.0
  %3705 = vmatpush1.xpose.msra.mxu0 0.0
  %3706 = vmatprep.subr.mxu0 0.0
  %3707 = vmatpush1.xpose.msra.mxu0 0.0
  %3708 = vmatprep.subr.mxu0 0.0
  %3709 = vmatpush1.xpose.msra.mxu0 0.0
  %3710 = vmatprep.subr.mxu0 0.0
  %3711 = vmatpush1.xpose.msra.mxu0 0.0
  %3712 = vmatprep.subr.mxu0 0.0
  %3713 = vmatpush1.xpose.msra.mxu0 0.0
  %3714 = vmatprep.subr.mxu0 0.0
  %3715 = vmatpush1.xpose.msra.mxu0 0.0
  %3716 = vmatprep.subr.mxu0 0.0
  %3717 = vmatpush1.xpose.msra.mxu0 0.0
  %3718 = vmatprep.subr.mxu0 0.0
  %3719 = vmatpush1.xpose.msra.mxu0 0.0
  %3720 = vmatprep.subr.mxu0 0.0
  %3721 = vmatpush1.xpose.msra.mxu0 0.0
  %3722 = vmatprep.subr.mxu0 0.0
  %3723 = vmatpush1.xpose.msra.mxu0 0.0
  %3724 = vmatprep.subr.mxu0 0.0
  %3725 = vmatpush1.xpose.msra.mxu0 0.0
  %3726 = vmatprep.subr.mxu0 0.0
  %3727 = vmatpush1.xpose.msra.mxu0 0.0
  %3728 = vmatprep.subr.mxu0 0.0
  %3729 = vmatpush1.xpose.msra.mxu0 0.0
  %3730 = vmatprep.subr.mxu0 0.0
  %3731 = vmatpush1.xpose.msra.mxu0 0.0
  %3732 = vmatprep.subr.mxu0 0.0
  %3733 = vmatpush1.xpose.msra.mxu0 0.0
  %3734 = vmatprep.subr.mxu0 0.0
  %3735 = vmatpush1.xpose.msra.mxu0 0.0
  %3736 = vmatprep.subr.mxu0 0.0
  %3737 = vmatpush1.xpose.msra.mxu0 0.0
  %3738 = vmatprep.subr.mxu0 0.0
  %3739 = vmatpush1.xpose.msra.mxu0 0.0
  %3740 = vmatprep.subr.mxu0 0.0
  %3741 = vmatpush1.xpose.msra.mxu0 0.0
  %3742 = vmatprep.subr.mxu0 0.0
  %3743 = vmatpush1.xpose.msra.mxu0 0.0
  %3744 = vmatprep.mubr.f32.mxu0 0.0
  %3745 = vmatmul.mubr.f32.gmra.mrb[0].mxu0 %v3672
  %v3746 = vpop.f32.mrb[0].mxu0
  %v3747 = vadd.f32 %v3662, %v3746
  %v3748 = vpop.f32.mrb[0].mxu0
  %3749 = vmatprep.mubr.f32.mxu0 0.0
  %3750 = vmatmul.mubr.f32.gmra.mrb[0].mxu0 %v3674
  %v3751 = vpop.f32.mrb[0].mxu0
  %v3752 = vadd.f32 %v3663, %v3751
  %v3753 = vpop.f32.mrb[0].mxu0
  %3754 = vdwg.mxu0
  %v3755 = vsel %vm1458, %v3747, -inf
  %3756 = vmax.xlane.f32.xlu0 %v3755
  %v3757 = vpop.xlane.xlu0 %3756
  %v3758 = vsel %vm1458, %v3752, -inf
  %3759 = vmax.xlane.f32.xlu0 %v3758
  %v3760 = vpop.xlane.xlu0 %3759
  %v3761 = vsub.f32 %v3747, %v3757
  %v3762 = vsub.f32 %v3752, %v3760
  %v3763 = vmul.f32 %v3761, 1.442695
  %v3764 = vpow.pop %v3763
  %v3765 = vmul.f32 %v3762, 1.442695
  %v3766 = vpow.pop %v3765
  %v3767 = vsel %vm1458, %v3764, 0.0
  %3768 = vadd.xlane.f32.xlu0 %v3767
  %v3769 = vpop.xlane.xlu0 %3768
  %v3770 = vsel %vm1458, %v3766, 0.0
  %3771 = vadd.xlane.f32.xlu0 %v3770
  %v3772 = vpop.xlane.xlu0 %3771
  %v3773 = vrcp.pop %v3769
  %v3774 = vrcp.pop %v3772
  %v3775 = vmul.f32 %v3764, %v3773
  %v3776 = vmul.f32 %v3766, %v3774
  %3777 = vrot.lane.b32.xlu0 %v3453, 56
  %v3778 = vpop.permute.xlu0 %3777
  %3779 = vrot.lane.b32.xlu0 %v3458, 56
  %v3780 = vpop.permute.xlu0 %3779
  %v3784 = vsel %vm1458, %v3775, 0
  %v3787 = vsel %vm1458, %v3776, 0
  %3789 = vmatprep.subr.mxu0 0.0
  %3790 = vmatpush1.msra.mxu0 %v3778
  %3791 = vmatprep.subr.mxu0 0.0
  %3792 = vmatpush1.msra.mxu0 %v3780
  %3793 = vmatprep.subr.mxu0 0.0
  %3794 = vmatpush1.msra.mxu0 0.0
  %3795 = vmatprep.subr.mxu0 0.0
  %3796 = vmatpush1.msra.mxu0 0.0
  %3797 = vmatprep.subr.mxu0 0.0
  %3798 = vmatpush1.msra.mxu0 0.0
  %3799 = vmatprep.subr.mxu0 0.0
  %3800 = vmatpush1.msra.mxu0 0.0
  %3801 = vmatprep.subr.mxu0 0.0
  %3802 = vmatpush1.msra.mxu0 0.0
  %3803 = vmatprep.subr.mxu0 0.0
  %3804 = vmatpush1.msra.mxu0 0.0
  %3805 = vmatprep.subr.mxu0 0.0
  %3806 = vmatpush1.msra.mxu0 0.0
  %3807 = vmatprep.subr.mxu0 0.0
  %3808 = vmatpush1.msra.mxu0 0.0
  %3809 = vmatprep.subr.mxu0 0.0
  %3810 = vmatpush1.msra.mxu0 0.0
  %3811 = vmatprep.subr.mxu0 0.0
  %3812 = vmatpush1.msra.mxu0 0.0
  %3813 = vmatprep.subr.mxu0 0.0
  %3814 = vmatpush1.msra.mxu0 0.0
  %3815 = vmatprep.subr.mxu0 0.0
  %3816 = vmatpush1.msra.mxu0 0.0
  %3817 = vmatprep.subr.mxu0 0.0
  %3818 = vmatpush1.msra.mxu0 0.0
  %3819 = vmatprep.subr.mxu0 0.0
  %3820 = vmatpush1.msra.mxu0 0.0
  %3821 = vmatprep.subr.mxu0 0.0
  %3822 = vmatpush1.msra.mxu0 0.0
  %3823 = vmatprep.subr.mxu0 0.0
  %3824 = vmatpush1.msra.mxu0 0.0
  %3825 = vmatprep.subr.mxu0 0.0
  %3826 = vmatpush1.msra.mxu0 0.0
  %3827 = vmatprep.subr.mxu0 0.0
  %3828 = vmatpush1.msra.mxu0 0.0
  %3829 = vmatprep.subr.mxu0 0.0
  %3830 = vmatpush1.msra.mxu0 0.0
  %3831 = vmatprep.subr.mxu0 0.0
  %3832 = vmatpush1.msra.mxu0 0.0
  %3833 = vmatprep.subr.mxu0 0.0
  %3834 = vmatpush1.msra.mxu0 0.0
  %3835 = vmatprep.subr.mxu0 0.0
  %3836 = vmatpush1.msra.mxu0 0.0
  %3837 = vmatprep.subr.mxu0 0.0
  %3838 = vmatpush1.msra.mxu0 0.0
  %3839 = vmatprep.subr.mxu0 0.0
  %3840 = vmatpush1.msra.mxu0 0.0
  %3841 = vmatprep.subr.mxu0 0.0
  %3842 = vmatpush1.msra.mxu0 0.0
  %3843 = vmatprep.subr.mxu0 0.0
  %3844 = vmatpush1.msra.mxu0 0.0
  %3845 = vmatprep.subr.mxu0 0.0
  %3846 = vmatpush1.msra.mxu0 0.0
  %3847 = vmatprep.subr.mxu0 0.0
  %3848 = vmatpush1.msra.mxu0 0.0
  %3849 = vmatprep.subr.mxu0 0.0
  %3850 = vmatpush1.msra.mxu0 0.0
  %3851 = vmatprep.subr.mxu0 0.0
  %3852 = vmatpush1.msra.mxu0 0.0
  %3853 = vmatprep.mubr.f32.mxu0 0.0
  %3854 = vmatmul.mubr.f32.gmra.mrb[0].mxu0 %v3784
  %v3855 = vpop.f32.mrb[0].mxu0
  %v3856 = vadd.f32 0.0, %v3855
  %v3857 = vpop.f32.mrb[0].mxu0
  %3858 = vmatprep.mubr.f32.mxu0 0.0
  %3859 = vmatmul.mubr.f32.gmra.mrb[0].mxu0 %v3787
  %v3860 = vpop.f32.mrb[0].mxu0
  %v3861 = vadd.f32 0.0, %v3860
  %v3862 = vpop.f32.mrb[0].mxu0
  %3863 = vdwg.mxu0
  %s3864 = scalar_lea.vmem %s4, 32
  %v3865 = vld [vmem:[%s3864] sm:$0xff]
  %v3866 = vld [vmem:[%s3864 + $0x8] sm:$0xff]
  %3867 = vrot.lane.b32.xlu0 %v3453, 112
  %v3868 = vpop.permute.xlu0 %3867
  %3869 = vrot.lane.b32.xlu0 %v3458, 112
  %v3870 = vpop.permute.xlu0 %3869
  %3871 = vrot.lane.b32.xlu0 %v3453, 80
  %v3872 = vpop.permute.xlu0 %3871
  %3873 = vrot.lane.b32.xlu0 %v3458, 80
  %v3874 = vpop.permute.xlu0 %3873
  %v3875 = vsel %vm471, %v3868, 0
  %v3877 = vsel %vm471, %v3870, 0
  %v3879 = vsel %vm471, %v3872, 0
  %v3881 = vsel %vm471, %v3874, 0
  %3883 = vmatprep.subr.mxu0 0.0
  %3884 = vmatpush1.xpose.msra.mxu0 %v3879
  %3885 = vmatprep.subr.mxu0 0.0
  %3886 = vmatpush1.xpose.msra.mxu0 %v3881
  %3887 = vmatprep.subr.mxu0 0.0
  %3888 = vmatpush1.xpose.msra.mxu0 0.0
  %3889 = vmatprep.subr.mxu0 0.0
  %3890 = vmatpush1.xpose.msra.mxu0 0.0
  %3891 = vmatprep.subr.mxu0 0.0
  %3892 = vmatpush1.xpose.msra.mxu0 0.0
  %3893 = vmatprep.subr.mxu0 0.0
  %3894 = vmatpush1.xpose.msra.mxu0 0.0
  %3895 = vmatprep.subr.mxu0 0.0
  %3896 = vmatpush1.xpose.msra.mxu0 0.0
  %3897 = vmatprep.subr.mxu0 0.0
  %3898 = vmatpush1.xpose.msra.mxu0 0.0
  %3899 = vmatprep.subr.mxu0 0.0
  %3900 = vmatpush1.xpose.msra.mxu0 0.0
  %3901 = vmatprep.subr.mxu0 0.0
  %3902 = vmatpush1.xpose.msra.mxu0 0.0
  %3903 = vmatprep.subr.mxu0 0.0
  %3904 = vmatpush1.xpose.msra.mxu0 0.0
  %3905 = vmatprep.subr.mxu0 0.0
  %3906 = vmatpush1.xpose.msra.mxu0 0.0
  %3907 = vmatprep.subr.mxu0 0.0
  %3908 = vmatpush1.xpose.msra.mxu0 0.0
  %3909 = vmatprep.subr.mxu0 0.0
  %3910 = vmatpush1.xpose.msra.mxu0 0.0
  %3911 = vmatprep.subr.mxu0 0.0
  %3912 = vmatpush1.xpose.msra.mxu0 0.0
  %3913 = vmatprep.subr.mxu0 0.0
  %3914 = vmatpush1.xpose.msra.mxu0 0.0
  %3915 = vmatprep.subr.mxu0 0.0
  %3916 = vmatpush1.xpose.msra.mxu0 0.0
  %3917 = vmatprep.subr.mxu0 0.0
  %3918 = vmatpush1.xpose.msra.mxu0 0.0
  %3919 = vmatprep.subr.mxu0 0.0
  %3920 = vmatpush1.xpose.msra.mxu0 0.0
  %3921 = vmatprep.subr.mxu0 0.0
  %3922 = vmatpush1.xpose.msra.mxu0 0.0
  %3923 = vmatprep.subr.mxu0 0.0
  %3924 = vmatpush1.xpose.msra.mxu0 0.0
  %3925 = vmatprep.subr.mxu0 0.0
  %3926 = vmatpush1.xpose.msra.mxu0 0.0
  %3927 = vmatprep.subr.mxu0 0.0
  %3928 = vmatpush1.xpose.msra.mxu0 0.0
  %3929 = vmatprep.subr.mxu0 0.0
  %3930 = vmatpush1.xpose.msra.mxu0 0.0
  %3931 = vmatprep.subr.mxu0 0.0
  %3932 = vmatpush1.xpose.msra.mxu0 0.0
  %3933 = vmatprep.subr.mxu0 0.0
  %3934 = vmatpush1.xpose.msra.mxu0 0.0
  %3935 = vmatprep.subr.mxu0 0.0
  %3936 = vmatpush1.xpose.msra.mxu0 0.0
  %3937 = vmatprep.subr.mxu0 0.0
  %3938 = vmatpush1.xpose.msra.mxu0 0.0
  %3939 = vmatprep.subr.mxu0 0.0
  %3940 = vmatpush1.xpose.msra.mxu0 0.0
  %3941 = vmatprep.subr.mxu0 0.0
  %3942 = vmatpush1.xpose.msra.mxu0 0.0
  %3943 = vmatprep.subr.mxu0 0.0
  %3944 = vmatpush1.xpose.msra.mxu0 0.0
  %3945 = vmatprep.subr.mxu0 0.0
  %3946 = vmatpush1.xpose.msra.mxu0 0.0
  %3947 = vmatprep.mubr.f32.mxu0 0.0
  %3948 = vmatmul.mubr.f32.gmra.mrb[0].mxu0 %v3875
  %v3949 = vpop.f32.mrb[0].mxu0
  %v3950 = vadd.f32 %v3865, %v3949
  %v3951 = vpop.f32.mrb[0].mxu0
  %3952 = vmatprep.mubr.f32.mxu0 0.0
  %3953 = vmatmul.mubr.f32.gmra.mrb[0].mxu0 %v3877
  %v3954 = vpop.f32.mrb[0].mxu0
  %v3955 = vadd.f32 %v3866, %v3954
  %v3956 = vpop.f32.mrb[0].mxu0
  %3957 = vdwg.mxu0
  %v3958 = vsel %vm1458, %v3950, -inf
  %3959 = vmax.xlane.f32.xlu0 %v3958
  %v3960 = vpop.xlane.xlu0 %3959
  %v3961 = vsel %vm1458, %v3955, -inf
  %3962 = vmax.xlane.f32.xlu0 %v3961
  %v3963 = vpop.xlane.xlu0 %3962
  %v3964 = vsub.f32 %v3950, %v3960
  %v3965 = vsub.f32 %v3955, %v3963
  %v3966 = vmul.f32 %v3964, 1.442695
  %v3967 = vpow.pop %v3966
  %v3968 = vmul.f32 %v3965, 1.442695
  %v3969 = vpow.pop %v3968
  %v3970 = vsel %vm1458, %v3967, 0.0
  %3971 = vadd.xlane.f32.xlu0 %v3970
  %v3972 = vpop.xlane.xlu0 %3971
  %v3973 = vsel %vm1458, %v3969, 0.0
  %3974 = vadd.xlane.f32.xlu0 %v3973
  %v3975 = vpop.xlane.xlu0 %3974
  %v3976 = vrcp.pop %v3972
  %v3977 = vrcp.pop %v3975
  %v3978 = vmul.f32 %v3967, %v3976
  %v3979 = vmul.f32 %v3969, %v3977
  %3980 = vrot.lane.b32.xlu0 %v3453, 48
  %v3981 = vpop.permute.xlu0 %3980
  %3982 = vrot.lane.b32.xlu0 %v3458, 48
  %v3983 = vpop.permute.xlu0 %3982
  %v3987 = vsel %vm1458, %v3978, 0
  %v3990 = vsel %vm1458, %v3979, 0
  %3992 = vmatprep.subr.mxu0 0.0
  %3993 = vmatpush1.msra.mxu0 %v3981
  %3994 = vmatprep.subr.mxu0 0.0
  %3995 = vmatpush1.msra.mxu0 %v3983
  %3996 = vmatprep.subr.mxu0 0.0
  %3997 = vmatpush1.msra.mxu0 0.0
  %3998 = vmatprep.subr.mxu0 0.0
  %3999 = vmatpush1.msra.mxu0 0.0
  %4000 = vmatprep.subr.mxu0 0.0
  %4001 = vmatpush1.msra.mxu0 0.0
  %4002 = vmatprep.subr.mxu0 0.0
  %4003 = vmatpush1.msra.mxu0 0.0
  %4004 = vmatprep.subr.mxu0 0.0
  %4005 = vmatpush1.msra.mxu0 0.0
  %4006 = vmatprep.subr.mxu0 0.0
  %4007 = vmatpush1.msra.mxu0 0.0
  %4008 = vmatprep.subr.mxu0 0.0
  %4009 = vmatpush1.msra.mxu0 0.0
  %4010 = vmatprep.subr.mxu0 0.0
  %4011 = vmatpush1.msra.mxu0 0.0
  %4012 = vmatprep.subr.mxu0 0.0
  %4013 = vmatpush1.msra.mxu0 0.0
  %4014 = vmatprep.subr.mxu0 0.0
  %4015 = vmatpush1.msra.mxu0 0.0
  %4016 = vmatprep.subr.mxu0 0.0
  %4017 = vmatpush1.msra.mxu0 0.0
  %4018 = vmatprep.subr.mxu0 0.0
  %4019 = vmatpush1.msra.mxu0 0.0
  %4020 = vmatprep.subr.mxu0 0.0
  %4021 = vmatpush1.msra.mxu0 0.0
  %4022 = vmatprep.subr.mxu0 0.0
  %4023 = vmatpush1.msra.mxu0 0.0
  %4024 = vmatprep.subr.mxu0 0.0
  %4025 = vmatpush1.msra.mxu0 0.0
  %4026 = vmatprep.subr.mxu0 0.0
  %4027 = vmatpush1.msra.mxu0 0.0
  %4028 = vmatprep.subr.mxu0 0.0
  %4029 = vmatpush1.msra.mxu0 0.0
  %4030 = vmatprep.subr.mxu0 0.0
  %4031 = vmatpush1.msra.mxu0 0.0
  %4032 = vmatprep.subr.mxu0 0.0
  %4033 = vmatpush1.msra.mxu0 0.0
  %4034 = vmatprep.subr.mxu0 0.0
  %4035 = vmatpush1.msra.mxu0 0.0
  %4036 = vmatprep.subr.mxu0 0.0
  %4037 = vmatpush1.msra.mxu0 0.0
  %4038 = vmatprep.subr.mxu0 0.0
  %4039 = vmatpush1.msra.mxu0 0.0
  %4040 = vmatprep.subr.mxu0 0.0
  %4041 = vmatpush1.msra.mxu0 0.0
  %4042 = vmatprep.subr.mxu0 0.0
  %4043 = vmatpush1.msra.mxu0 0.0
  %4044 = vmatprep.subr.mxu0 0.0
  %4045 = vmatpush1.msra.mxu0 0.0
  %4046 = vmatprep.subr.mxu0 0.0
  %4047 = vmatpush1.msra.mxu0 0.0
  %4048 = vmatprep.subr.mxu0 0.0
  %4049 = vmatpush1.msra.mxu0 0.0
  %4050 = vmatprep.subr.mxu0 0.0
  %4051 = vmatpush1.msra.mxu0 0.0
  %4052 = vmatprep.subr.mxu0 0.0
  %4053 = vmatpush1.msra.mxu0 0.0
  %4054 = vmatprep.subr.mxu0 0.0
  %4055 = vmatpush1.msra.mxu0 0.0
  %4056 = vmatprep.mubr.f32.mxu0 0.0
  %4057 = vmatmul.mubr.f32.gmra.mrb[0].mxu0 %v3987
  %v4058 = vpop.f32.mrb[0].mxu0
  %v4059 = vadd.f32 0.0, %v4058
  %v4060 = vpop.f32.mrb[0].mxu0
  %4061 = vmatprep.mubr.f32.mxu0 0.0
  %4062 = vmatmul.mubr.f32.gmra.mrb[0].mxu0 %v3990
  %v4063 = vpop.f32.mrb[0].mxu0
  %v4064 = vadd.f32 0.0, %v4063
  %v4065 = vpop.f32.mrb[0].mxu0
  %4066 = vdwg.mxu0
  %s4067 = scalar_lea.vmem %s4, 48
  %v4068 = vld [vmem:[%s4067] sm:$0xff]
  %v4069 = vld [vmem:[%s4067 + $0x8] sm:$0xff]
  %4070 = vrot.lane.b32.xlu0 %v3453, 104
  %v4071 = vpop.permute.xlu0 %4070
  %4072 = vrot.lane.b32.xlu0 %v3458, 104
  %v4073 = vpop.permute.xlu0 %4072
  %4074 = vrot.lane.b32.xlu0 %v3453, 72
  %v4075 = vpop.permute.xlu0 %4074
  %4076 = vrot.lane.b32.xlu0 %v3458, 72
  %v4077 = vpop.permute.xlu0 %4076
  %v4078 = vsel %vm471, %v4071, 0
  %v4080 = vsel %vm471, %v4073, 0
  %v4082 = vsel %vm471, %v4075, 0
  %v4084 = vsel %vm471, %v4077, 0
  %4086 = vmatprep.subr.mxu0 0.0
  %4087 = vmatpush1.xpose.msra.mxu0 %v4082
  %4088 = vmatprep.subr.mxu0 0.0
  %4089 = vmatpush1.xpose.msra.mxu0 %v4084
  %4090 = vmatprep.subr.mxu0 0.0
  %4091 = vmatpush1.xpose.msra.mxu0 0.0
  %4092 = vmatprep.subr.mxu0 0.0
  %4093 = vmatpush1.xpose.msra.mxu0 0.0
  %4094 = vmatprep.subr.mxu0 0.0
  %4095 = vmatpush1.xpose.msra.mxu0 0.0
  %4096 = vmatprep.subr.mxu0 0.0
  %4097 = vmatpush1.xpose.msra.mxu0 0.0
  %4098 = vmatprep.subr.mxu0 0.0
  %4099 = vmatpush1.xpose.msra.mxu0 0.0
  %4100 = vmatprep.subr.mxu0 0.0
  %4101 = vmatpush1.xpose.msra.mxu0 0.0
  %4102 = vmatprep.subr.mxu0 0.0
  %4103 = vmatpush1.xpose.msra.mxu0 0.0
  %4104 = vmatprep.subr.mxu0 0.0
  %4105 = vmatpush1.xpose.msra.mxu0 0.0
  %4106 = vmatprep.subr.mxu0 0.0
  %4107 = vmatpush1.xpose.msra.mxu0 0.0
  %4108 = vmatprep.subr.mxu0 0.0
  %4109 = vmatpush1.xpose.msra.mxu0 0.0
  %4110 = vmatprep.subr.mxu0 0.0
  %4111 = vmatpush1.xpose.msra.mxu0 0.0
  %4112 = vmatprep.subr.mxu0 0.0
  %4113 = vmatpush1.xpose.msra.mxu0 0.0
  %4114 = vmatprep.subr.mxu0 0.0
  %4115 = vmatpush1.xpose.msra.mxu0 0.0
  %4116 = vmatprep.subr.mxu0 0.0
  %4117 = vmatpush1.xpose.msra.mxu0 0.0
  %4118 = vmatprep.subr.mxu0 0.0
  %4119 = vmatpush1.xpose.msra.mxu0 0.0
  %4120 = vmatprep.subr.mxu0 0.0
  %4121 = vmatpush1.xpose.msra.mxu0 0.0
  %4122 = vmatprep.subr.mxu0 0.0
  %4123 = vmatpush1.xpose.msra.mxu0 0.0
  %4124 = vmatprep.subr.mxu0 0.0
  %4125 = vmatpush1.xpose.msra.mxu0 0.0
  %4126 = vmatprep.subr.mxu0 0.0
  %4127 = vmatpush1.xpose.msra.mxu0 0.0
  %4128 = vmatprep.subr.mxu0 0.0
  %4129 = vmatpush1.xpose.msra.mxu0 0.0
  %4130 = vmatprep.subr.mxu0 0.0
  %4131 = vmatpush1.xpose.msra.mxu0 0.0
  %4132 = vmatprep.subr.mxu0 0.0
  %4133 = vmatpush1.xpose.msra.mxu0 0.0
  %4134 = vmatprep.subr.mxu0 0.0
  %4135 = vmatpush1.xpose.msra.mxu0 0.0
  %4136 = vmatprep.subr.mxu0 0.0
  %4137 = vmatpush1.xpose.msra.mxu0 0.0
  %4138 = vmatprep.subr.mxu0 0.0
  %4139 = vmatpush1.xpose.msra.mxu0 0.0
  %4140 = vmatprep.subr.mxu0 0.0
  %4141 = vmatpush1.xpose.msra.mxu0 0.0
  %4142 = vmatprep.subr.mxu0 0.0
  %4143 = vmatpush1.xpose.msra.mxu0 0.0
  %4144 = vmatprep.subr.mxu0 0.0
  %4145 = vmatpush1.xpose.msra.mxu0 0.0
  %4146 = vmatprep.subr.mxu0 0.0
  %4147 = vmatpush1.xpose.msra.mxu0 0.0
  %4148 = vmatprep.subr.mxu0 0.0
  %4149 = vmatpush1.xpose.msra.mxu0 0.0
  %4150 = vmatprep.mubr.f32.mxu0 0.0
  %4151 = vmatmul.mubr.f32.gmra.mrb[0].mxu0 %v4078
  %v4152 = vpop.f32.mrb[0].mxu0
  %v4153 = vadd.f32 %v4068, %v4152
  %v4154 = vpop.f32.mrb[0].mxu0
  %4155 = vmatprep.mubr.f32.mxu0 0.0
  %4156 = vmatmul.mubr.f32.gmra.mrb[0].mxu0 %v4080
  %v4157 = vpop.f32.mrb[0].mxu0
  %v4158 = vadd.f32 %v4069, %v4157
  %v4159 = vpop.f32.mrb[0].mxu0
  %4160 = vdwg.mxu0
  %v4161 = vsel %vm1458, %v4153, -inf
  %4162 = vmax.xlane.f32.xlu0 %v4161
  %v4163 = vpop.xlane.xlu0 %4162
  %v4164 = vsel %vm1458, %v4158, -inf
  %4165 = vmax.xlane.f32.xlu0 %v4164
  %v4166 = vpop.xlane.xlu0 %4165
  %v4167 = vsub.f32 %v4153, %v4163
  %v4168 = vsub.f32 %v4158, %v4166
  %v4169 = vmul.f32 %v4167, 1.442695
  %v4170 = vpow.pop %v4169
  %v4171 = vmul.f32 %v4168, 1.442695
  %v4172 = vpow.pop %v4171
  %v4173 = vsel %vm1458, %v4170, 0.0
  %4174 = vadd.xlane.f32.xlu0 %v4173
  %v4175 = vpop.xlane.xlu0 %4174
  %v4176 = vsel %vm1458, %v4172, 0.0
  %4177 = vadd.xlane.f32.xlu0 %v4176
  %v4178 = vpop.xlane.xlu0 %4177
  %v4179 = vrcp.pop %v4175
  %v4180 = vrcp.pop %v4178
  %v4181 = vmul.f32 %v4170, %v4179
  %v4182 = vmul.f32 %v4172, %v4180
  %4183 = vrot.lane.b32.xlu0 %v3453, 40
  %v4184 = vpop.permute.xlu0 %4183
  %4185 = vrot.lane.b32.xlu0 %v3458, 40
  %v4186 = vpop.permute.xlu0 %4185
  %v4190 = vsel %vm1458, %v4181, 0
  %v4193 = vsel %vm1458, %v4182, 0
  %4195 = vmatprep.subr.mxu0 0.0
  %4196 = vmatpush1.msra.mxu0 %v4184
  %4197 = vmatprep.subr.mxu0 0.0
  %4198 = vmatpush1.msra.mxu0 %v4186
  %4199 = vmatprep.subr.mxu0 0.0
  %4200 = vmatpush1.msra.mxu0 0.0
  %4201 = vmatprep.subr.mxu0 0.0
  %4202 = vmatpush1.msra.mxu0 0.0
  %4203 = vmatprep.subr.mxu0 0.0
  %4204 = vmatpush1.msra.mxu0 0.0
  %4205 = vmatprep.subr.mxu0 0.0
  %4206 = vmatpush1.msra.mxu0 0.0
  %4207 = vmatprep.subr.mxu0 0.0
  %4208 = vmatpush1.msra.mxu0 0.0
  %4209 = vmatprep.subr.mxu0 0.0
  %4210 = vmatpush1.msra.mxu0 0.0
  %4211 = vmatprep.subr.mxu0 0.0
  %4212 = vmatpush1.msra.mxu0 0.0
  %4213 = vmatprep.subr.mxu0 0.0
  %4214 = vmatpush1.msra.mxu0 0.0
  %4215 = vmatprep.subr.mxu0 0.0
  %4216 = vmatpush1.msra.mxu0 0.0
  %4217 = vmatprep.subr.mxu0 0.0
  %4218 = vmatpush1.msra.mxu0 0.0
  %4219 = vmatprep.subr.mxu0 0.0
  %4220 = vmatpush1.msra.mxu0 0.0
  %4221 = vmatprep.subr.mxu0 0.0
  %4222 = vmatpush1.msra.mxu0 0.0
  %4223 = vmatprep.subr.mxu0 0.0
  %4224 = vmatpush1.msra.mxu0 0.0
  %4225 = vmatprep.subr.mxu0 0.0
  %4226 = vmatpush1.msra.mxu0 0.0
  %4227 = vmatprep.subr.mxu0 0.0
  %4228 = vmatpush1.msra.mxu0 0.0
  %4229 = vmatprep.subr.mxu0 0.0
  %4230 = vmatpush1.msra.mxu0 0.0
  %4231 = vmatprep.subr.mxu0 0.0
  %4232 = vmatpush1.msra.mxu0 0.0
  %4233 = vmatprep.subr.mxu0 0.0
  %4234 = vmatpush1.msra.mxu0 0.0
  %4235 = vmatprep.subr.mxu0 0.0
  %4236 = vmatpush1.msra.mxu0 0.0
  %4237 = vmatprep.subr.mxu0 0.0
  %4238 = vmatpush1.msra.mxu0 0.0
  %4239 = vmatprep.subr.mxu0 0.0
  %4240 = vmatpush1.msra.mxu0 0.0
  %4241 = vmatprep.subr.mxu0 0.0
  %4242 = vmatpush1.msra.mxu0 0.0
  %4243 = vmatprep.subr.mxu0 0.0
  %4244 = vmatpush1.msra.mxu0 0.0
  %4245 = vmatprep.subr.mxu0 0.0
  %4246 = vmatpush1.msra.mxu0 0.0
  %4247 = vmatprep.subr.mxu0 0.0
  %4248 = vmatpush1.msra.mxu0 0.0
  %4249 = vmatprep.subr.mxu0 0.0
  %4250 = vmatpush1.msra.mxu0 0.0
  %4251 = vmatprep.subr.mxu0 0.0
  %4252 = vmatpush1.msra.mxu0 0.0
  %4253 = vmatprep.subr.mxu0 0.0
  %4254 = vmatpush1.msra.mxu0 0.0
  %4255 = vmatprep.subr.mxu0 0.0
  %4256 = vmatpush1.msra.mxu0 0.0
  %4257 = vmatprep.subr.mxu0 0.0
  %4258 = vmatpush1.msra.mxu0 0.0
  %4259 = vmatprep.mubr.f32.mxu0 0.0
  %4260 = vmatmul.mubr.f32.gmra.mrb[0].mxu0 %v4190
  %v4261 = vpop.f32.mrb[0].mxu0
  %v4262 = vadd.f32 0.0, %v4261
  %v4263 = vpop.f32.mrb[0].mxu0
  %4264 = vmatprep.mubr.f32.mxu0 0.0
  %4265 = vmatmul.mubr.f32.gmra.mrb[0].mxu0 %v4193
  %v4266 = vpop.f32.mrb[0].mxu0
  %v4267 = vadd.f32 0.0, %v4266
  %v4268 = vpop.f32.mrb[0].mxu0
  %4269 = vdwg.mxu0
  %4272 = vrot.lane.b32.xlu0 %v3856, 8
  %v4273 = vpop.permute.xlu0 %4272
  %4274 = vrot.lane.b32.xlu0 %v3861, 8
  %v4275 = vpop.permute.xlu0 %4274
  %4280 = vrot.lane.b32.xlu0 %v4059, 16
  %v4281 = vpop.permute.xlu0 %4280
  %4282 = vrot.lane.b32.xlu0 %v4064, 16
  %v4283 = vpop.permute.xlu0 %4282
  %4288 = vrot.lane.b32.xlu0 %v4262, 24
  %v4289 = vpop.permute.xlu0 %4288
  %4290 = vrot.lane.b32.xlu0 %v4267, 24
  %v4291 = vpop.permute.xlu0 %4290
  %v4294 = vsel %vm471, %v3653, %v4273
  %v4295 = vsel %vm471, %v3658, %v4275
  %v4296 = vsel %vm1458, %v4294, %v4281
  %v4297 = vsel %vm1458, %v4295, %v4283
  %v4298 = vsel %vm1462, %v4296, %v4289
  %v4299 = vsel %vm1462, %v4297, %v4291
  %v4300 = vld [vmem:[%s16] sm:$0xff]
  %v4301 = vld [vmem:[%s16 + $0x8] sm:$0xff]
  %v4302 = vld [vmem:[%s16 + $0x10] sm:$0xff]
  %v4303 = vld [vmem:[%s16 + $0x18] sm:$0xff]
  %v4305 = vsel %vm333, %v4298, 0
  %v4308 = vsel %vm333, %v4299, 0
  %4310 = vmatprep.subr.mxu0 0.0
  %4311 = vmatpush1.msra.mxu0 %v4300
  %4312 = vmatprep.subr.mxu0 0.0
  %4313 = vmatpush1.msra.mxu0 %v4301
  %4314 = vmatprep.subr.mxu0 0.0
  %4315 = vmatpush1.msra.mxu0 %v4302
  %4316 = vmatprep.subr.mxu0 0.0
  %4317 = vmatpush1.msra.mxu0 %v4303
  %4318 = vmatprep.subr.mxu0 0.0
  %4319 = vmatpush1.msra.mxu0 0.0
  %4320 = vmatprep.subr.mxu0 0.0
  %4321 = vmatpush1.msra.mxu0 0.0
  %4322 = vmatprep.subr.mxu0 0.0
  %4323 = vmatpush1.msra.mxu0 0.0
  %4324 = vmatprep.subr.mxu0 0.0
  %4325 = vmatpush1.msra.mxu0 0.0
  %4326 = vmatprep.subr.mxu0 0.0
  %4327 = vmatpush1.msra.mxu0 0.0
  %4328 = vmatprep.subr.mxu0 0.0
  %4329 = vmatpush1.msra.mxu0 0.0
  %4330 = vmatprep.subr.mxu0 0.0
  %4331 = vmatpush1.msra.mxu0 0.0
  %4332 = vmatprep.subr.mxu0 0.0
  %4333 = vmatpush1.msra.mxu0 0.0
  %4334 = vmatprep.subr.mxu0 0.0
  %4335 = vmatpush1.msra.mxu0 0.0
  %4336 = vmatprep.subr.mxu0 0.0
  %4337 = vmatpush1.msra.mxu0 0.0
  %4338 = vmatprep.subr.mxu0 0.0
  %4339 = vmatpush1.msra.mxu0 0.0
  %4340 = vmatprep.subr.mxu0 0.0
  %4341 = vmatpush1.msra.mxu0 0.0
  %4342 = vmatprep.subr.mxu0 0.0
  %4343 = vmatpush1.msra.mxu0 0.0
  %4344 = vmatprep.subr.mxu0 0.0
  %4345 = vmatpush1.msra.mxu0 0.0
  %4346 = vmatprep.subr.mxu0 0.0
  %4347 = vmatpush1.msra.mxu0 0.0
  %4348 = vmatprep.subr.mxu0 0.0
  %4349 = vmatpush1.msra.mxu0 0.0
  %4350 = vmatprep.subr.mxu0 0.0
  %4351 = vmatpush1.msra.mxu0 0.0
  %4352 = vmatprep.subr.mxu0 0.0
  %4353 = vmatpush1.msra.mxu0 0.0
  %4354 = vmatprep.subr.mxu0 0.0
  %4355 = vmatpush1.msra.mxu0 0.0
  %4356 = vmatprep.subr.mxu0 0.0
  %4357 = vmatpush1.msra.mxu0 0.0
  %4358 = vmatprep.subr.mxu0 0.0
  %4359 = vmatpush1.msra.mxu0 0.0
  %4360 = vmatprep.subr.mxu0 0.0
  %4361 = vmatpush1.msra.mxu0 0.0
  %4362 = vmatprep.subr.mxu0 0.0
  %4363 = vmatpush1.msra.mxu0 0.0
  %4364 = vmatprep.subr.mxu0 0.0
  %4365 = vmatpush1.msra.mxu0 0.0
  %4366 = vmatprep.subr.mxu0 0.0
  %4367 = vmatpush1.msra.mxu0 0.0
  %4368 = vmatprep.subr.mxu0 0.0
  %4369 = vmatpush1.msra.mxu0 0.0
  %4370 = vmatprep.subr.mxu0 0.0
  %4371 = vmatpush1.msra.mxu0 0.0
  %4372 = vmatprep.subr.mxu0 0.0
  %4373 = vmatpush1.msra.mxu0 0.0
  %4374 = vmatprep.mubr.f32.mxu0 0.0
  %4375 = vmatmul.mubr.f32.gmra.mrb[0].mxu0 %v4305
  %v4376 = vpop.f32.mrb[0].mxu0
  %v4377 = vadd.f32 0.0, %v4376
  %v4378 = vpop.f32.mrb[0].mxu0
  %4379 = vmatprep.mubr.f32.mxu0 0.0
  %4380 = vmatmul.mubr.f32.gmra.mrb[0].mxu0 %v4308
  %v4381 = vpop.f32.mrb[0].mxu0
  %v4382 = vadd.f32 0.0, %v4381
  %v4383 = vpop.f32.mrb[0].mxu0
  %4384 = vdwg.mxu0
  %v4385 = vadd.f32 %v3349, %v4377
  %v4386 = vadd.f32 %v3350, %v4382
  %v4387 = vld [vmem:[%s17] sm:$0x1]
  %v4388 = vmul.f32 %v4385, %v4385
  %v4389 = vmul.f32 %v4386, %v4386
  %v4390 = vsel %vm333, %v4388, 0.0
  %4391 = vadd.xlane.f32.xlu0 %v4390
  %v4392 = vpop.xlane.xlu0 %4391
  %v4393 = vsel %vm333, %v4389, 0.0
  %4394 = vadd.xlane.f32.xlu0 %v4393
  %v4395 = vpop.xlane.xlu0 %4394
  %v4396 = vmul.f32 %v4392, %v344
  %v4397 = vmul.f32 %v4395, %v344
  %v4398 = vadd.f32 %v4396, 1e-06
  %v4399 = vadd.f32 %v4397, 1e-06
  %v4400 = vrsqrt.pop %v4398
  %v4401 = vrsqrt.pop %v4399
  %v4402 = vmul.f32 %v4385, %v4400
  %v4403 = vmul.f32 %v4386, %v4401
  %v4405 = vlaneseq
  %v4406 = vshrl.u32 %v4405, 7
  %v4407 = vsub.s32 0, %v4406
  %v4408 = vrot.slane %v4387, %v4407
  %v4410 = vmul.f32 %v4402, %v4408
  %v4411 = vmul.f32 %v4403, %v4408
  %v4412 = vld [vmem:[%s18] sm:$0xff]
  %v4413 = vld [vmem:[%s18 + $0x8] sm:$0xff]
  %v4414 = vld [vmem:[%s18 + $0x10] sm:$0xff]
  %v4415 = vld [vmem:[%s18 + $0x18] sm:$0xff]
  %v4417 = vsel %vm333, %v4410, 0
  %v4420 = vsel %vm333, %v4411, 0
  %4422 = vmatprep.subr.mxu0 0.0
  %4423 = vmatpush1.msra.mxu0 %v4412
  %4424 = vmatprep.subr.mxu0 0.0
  %4425 = vmatpush1.msra.mxu0 %v4413
  %4426 = vmatprep.subr.mxu0 0.0
  %4427 = vmatpush1.msra.mxu0 %v4414
  %4428 = vmatprep.subr.mxu0 0.0
  %4429 = vmatpush1.msra.mxu0 %v4415
  %4430 = vmatprep.subr.mxu0 0.0
  %4431 = vmatpush1.msra.mxu0 0.0
  %4432 = vmatprep.subr.mxu0 0.0
  %4433 = vmatpush1.msra.mxu0 0.0
  %4434 = vmatprep.subr.mxu0 0.0
  %4435 = vmatpush1.msra.mxu0 0.0
  %4436 = vmatprep.subr.mxu0 0.0
  %4437 = vmatpush1.msra.mxu0 0.0
  %4438 = vmatprep.subr.mxu0 0.0
  %4439 = vmatpush1.msra.mxu0 0.0
  %4440 = vmatprep.subr.mxu0 0.0
  %4441 = vmatpush1.msra.mxu0 0.0
  %4442 = vmatprep.subr.mxu0 0.0
  %4443 = vmatpush1.msra.mxu0 0.0
  %4444 = vmatprep.subr.mxu0 0.0
  %4445 = vmatpush1.msra.mxu0 0.0
  %4446 = vmatprep.subr.mxu0 0.0
  %4447 = vmatpush1.msra.mxu0 0.0
  %4448 = vmatprep.subr.mxu0 0.0
  %4449 = vmatpush1.msra.mxu0 0.0
  %4450 = vmatprep.subr.mxu0 0.0
  %4451 = vmatpush1.msra.mxu0 0.0
  %4452 = vmatprep.subr.mxu0 0.0
  %4453 = vmatpush1.msra.mxu0 0.0
  %4454 = vmatprep.subr.mxu0 0.0
  %4455 = vmatpush1.msra.mxu0 0.0
  %4456 = vmatprep.subr.mxu0 0.0
  %4457 = vmatpush1.msra.mxu0 0.0
  %4458 = vmatprep.subr.mxu0 0.0
  %4459 = vmatpush1.msra.mxu0 0.0
  %4460 = vmatprep.subr.mxu0 0.0
  %4461 = vmatpush1.msra.mxu0 0.0
  %4462 = vmatprep.subr.mxu0 0.0
  %4463 = vmatpush1.msra.mxu0 0.0
  %4464 = vmatprep.subr.mxu0 0.0
  %4465 = vmatpush1.msra.mxu0 0.0
  %4466 = vmatprep.subr.mxu0 0.0
  %4467 = vmatpush1.msra.mxu0 0.0
  %4468 = vmatprep.subr.mxu0 0.0
  %4469 = vmatpush1.msra.mxu0 0.0
  %4470 = vmatprep.subr.mxu0 0.0
  %4471 = vmatpush1.msra.mxu0 0.0
  %4472 = vmatprep.subr.mxu0 0.0
  %4473 = vmatpush1.msra.mxu0 0.0
  %4474 = vmatprep.subr.mxu0 0.0
  %4475 = vmatpush1.msra.mxu0 0.0
  %4476 = vmatprep.subr.mxu0 0.0
  %4477 = vmatpush1.msra.mxu0 0.0
  %4478 = vmatprep.subr.mxu0 0.0
  %4479 = vmatpush1.msra.mxu0 0.0
  %4480 = vmatprep.subr.mxu0 0.0
  %4481 = vmatpush1.msra.mxu0 0.0
  %4482 = vmatprep.subr.mxu0 0.0
  %4483 = vmatpush1.msra.mxu0 0.0
  %4484 = vmatprep.subr.mxu0 0.0
  %4485 = vmatpush1.msra.mxu0 0.0
  %4486 = vmatprep.mubr.f32.mxu0 0.0
  %4487 = vmatmul.mubr.f32.gmra.mrb[0].mxu0 %v4417
  %v4488 = vpop.f32.mrb[0].mxu0
  %v4489 = vadd.f32 0.0, %v4488
  %v4490 = vpop.f32.mrb[0].mxu0
  %4491 = vmatprep.mubr.f32.mxu0 0.0
  %4492 = vmatmul.mubr.f32.gmra.mrb[0].mxu0 %v4420
  %v4493 = vpop.f32.mrb[0].mxu0
  %v4494 = vadd.f32 0.0, %v4493
  %v4495 = vpop.f32.mrb[0].mxu0
  %4496 = vdwg.mxu0
  %v4497 = vld [vmem:[%s19] sm:$0xff]
  %v4498 = vld [vmem:[%s19 + $0x8] sm:$0xff]
  %v4499 = vld [vmem:[%s19 + $0x10] sm:$0xff]
  %v4500 = vld [vmem:[%s19 + $0x18] sm:$0xff]
  %v4502 = vsel %vm333, %v3346, 0
  %v4505 = vsel %vm333, %v3347, 0
  %v4508 = vsel %vm333, %v3348, 0
  %4510 = vmatprep.subr.mxu0 0.0
  %4511 = vmatpush1.msra.mxu0 %v4497
  %4512 = vmatprep.subr.mxu0 0.0
  %4513 = vmatpush1.msra.mxu0 %v4498
  %4514 = vmatprep.subr.mxu0 0.0
  %4515 = vmatpush1.msra.mxu0 %v4499
  %4516 = vmatprep.subr.mxu0 0.0
  %4517 = vmatpush1.msra.mxu0 %v4500
  %4518 = vmatprep.subr.mxu0 0.0
  %4519 = vmatpush1.msra.mxu0 0.0
  %4520 = vmatprep.subr.mxu0 0.0
  %4521 = vmatpush1.msra.mxu0 0.0
  %4522 = vmatprep.subr.mxu0 0.0
  %4523 = vmatpush1.msra.mxu0 0.0
  %4524 = vmatprep.subr.mxu0 0.0
  %4525 = vmatpush1.msra.mxu0 0.0
  %4526 = vmatprep.subr.mxu0 0.0
  %4527 = vmatpush1.msra.mxu0 0.0
  %4528 = vmatprep.subr.mxu0 0.0
  %4529 = vmatpush1.msra.mxu0 0.0
  %4530 = vmatprep.subr.mxu0 0.0
  %4531 = vmatpush1.msra.mxu0 0.0
  %4532 = vmatprep.subr.mxu0 0.0
  %4533 = vmatpush1.msra.mxu0 0.0
  %4534 = vmatprep.subr.mxu0 0.0
  %4535 = vmatpush1.msra.mxu0 0.0
  %4536 = vmatprep.subr.mxu0 0.0
  %4537 = vmatpush1.msra.mxu0 0.0
  %4538 = vmatprep.subr.mxu0 0.0
  %4539 = vmatpush1.msra.mxu0 0.0
  %4540 = vmatprep.subr.mxu0 0.0
  %4541 = vmatpush1.msra.mxu0 0.0
  %4542 = vmatprep.subr.mxu0 0.0
  %4543 = vmatpush1.msra.mxu0 0.0
  %4544 = vmatprep.subr.mxu0 0.0
  %4545 = vmatpush1.msra.mxu0 0.0
  %4546 = vmatprep.subr.mxu0 0.0
  %4547 = vmatpush1.msra.mxu0 0.0
  %4548 = vmatprep.subr.mxu0 0.0
  %4549 = vmatpush1.msra.mxu0 0.0
  %4550 = vmatprep.subr.mxu0 0.0
  %4551 = vmatpush1.msra.mxu0 0.0
  %4552 = vmatprep.subr.mxu0 0.0
  %4553 = vmatpush1.msra.mxu0 0.0
  %4554 = vmatprep.subr.mxu0 0.0
  %4555 = vmatpush1.msra.mxu0 0.0
  %4556 = vmatprep.subr.mxu0 0.0
  %4557 = vmatpush1.msra.mxu0 0.0
  %4558 = vmatprep.subr.mxu0 0.0
  %4559 = vmatpush1.msra.mxu0 0.0
  %4560 = vmatprep.subr.mxu0 0.0
  %4561 = vmatpush1.msra.mxu0 0.0
  %4562 = vmatprep.subr.mxu0 0.0
  %4563 = vmatpush1.msra.mxu0 0.0
  %4564 = vmatprep.subr.mxu0 0.0
  %4565 = vmatpush1.msra.mxu0 0.0
  %4566 = vmatprep.subr.mxu0 0.0
  %4567 = vmatpush1.msra.mxu0 0.0
  %4568 = vmatprep.subr.mxu0 0.0
  %4569 = vmatpush1.msra.mxu0 0.0
  %4570 = vmatprep.subr.mxu0 0.0
  %4571 = vmatpush1.msra.mxu0 0.0
  %4572 = vmatprep.subr.mxu0 0.0
  %4573 = vmatpush1.msra.mxu0 0.0
  %4574 = vmatprep.mubr.f32.mxu0 0.0
  %4575 = vmatmul.mubr.f32.gmra.mrb[0].mxu0 %v4502
  %v4576 = vpop.f32.mrb[0].mxu0
  %v4577 = vadd.f32 0.0, %v4576
  %v4578 = vpop.f32.mrb[0].mxu0
  %4579 = vmatprep.mubr.f32.mxu0 0.0
  %4580 = vmatmul.mubr.f32.gmra.mrb[0].mxu0 %v4505
  %v4581 = vpop.f32.mrb[0].mxu0
  %v4582 = vadd.f32 0.0, %v4581
  %v4583 = vpop.f32.mrb[0].mxu0
  %4584 = vmatprep.mubr.f32.mxu0 0.0
  %4585 = vmatmul.mubr.f32.gmra.mrb[0].mxu0 %v4508
  %v4586 = vpop.f32.mrb[0].mxu0
  %v4587 = vadd.f32 0.0, %v4586
  %v4588 = vpop.f32.mrb[0].mxu0
  %4589 = vdwg.mxu0
  %v4590 = vld [vmem:[%s5] sm:$0xff]
  %v4591 = vld [vmem:[%s5 + $0x8] sm:$0xff]
  %v4593 = vsel %vm471, %v4489, 0
  %v4596 = vsel %vm471, %v4494, 0
  %v4599 = vsel %vm471, %v4577, 0
  %v4602 = vsel %vm471, %v4582, 0
  %v4605 = vsel %vm471, %v4587, 0
  %4607 = vmatprep.subr.mxu0 0.0
  %4608 = vmatpush1.xpose.msra.mxu0 %v4599
  %4609 = vmatprep.subr.mxu0 0.0
  %4610 = vmatpush1.xpose.msra.mxu0 %v4602
  %4611 = vmatprep.subr.mxu0 0.0
  %4612 = vmatpush1.xpose.msra.mxu0 %v4605
  %4613 = vmatprep.subr.mxu0 0.0
  %4614 = vmatpush1.xpose.msra.mxu0 0.0
  %4615 = vmatprep.subr.mxu0 0.0
  %4616 = vmatpush1.xpose.msra.mxu0 0.0
  %4617 = vmatprep.subr.mxu0 0.0
  %4618 = vmatpush1.xpose.msra.mxu0 0.0
  %4619 = vmatprep.subr.mxu0 0.0
  %4620 = vmatpush1.xpose.msra.mxu0 0.0
  %4621 = vmatprep.subr.mxu0 0.0
  %4622 = vmatpush1.xpose.msra.mxu0 0.0
  %4623 = vmatprep.subr.mxu0 0.0
  %4624 = vmatpush1.xpose.msra.mxu0 0.0
  %4625 = vmatprep.subr.mxu0 0.0
  %4626 = vmatpush1.xpose.msra.mxu0 0.0
  %4627 = vmatprep.subr.mxu0 0.0
  %4628 = vmatpush1.xpose.msra.mxu0 0.0
  %4629 = vmatprep.subr.mxu0 0.0
  %4630 = vmatpush1.xpose.msra.mxu0 0.0
  %4631 = vmatprep.subr.mxu0 0.0
  %4632 = vmatpush1.xpose.msra.mxu0 0.0
  %4633 = vmatprep.subr.mxu0 0.0
  %4634 = vmatpush1.xpose.msra.mxu0 0.0
  %4635 = vmatprep.subr.mxu0 0.0
  %4636 = vmatpush1.xpose.msra.mxu0 0.0
  %4637 = vmatprep.subr.mxu0 0.0
  %4638 = vmatpush1.xpose.msra.mxu0 0.0
  %4639 = vmatprep.subr.mxu0 0.0
  %4640 = vmatpush1.xpose.msra.mxu0 0.0
  %4641 = vmatprep.subr.mxu0 0.0
  %4642 = vmatpush1.xpose.msra.mxu0 0.0
  %4643 = vmatprep.subr.mxu0 0.0
  %4644 = vmatpush1.xpose.msra.mxu0 0.0
  %4645 = vmatprep.subr.mxu0 0.0
  %4646 = vmatpush1.xpose.msra.mxu0 0.0
  %4647 = vmatprep.subr.mxu0 0.0
  %4648 = vmatpush1.xpose.msra.mxu0 0.0
  %4649 = vmatprep.subr.mxu0 0.0
  %4650 = vmatpush1.xpose.msra.mxu0 0.0
  %4651 = vmatprep.subr.mxu0 0.0
  %4652 = vmatpush1.xpose.msra.mxu0 0.0
  %4653 = vmatprep.subr.mxu0 0.0
  %4654 = vmatpush1.xpose.msra.mxu0 0.0
  %4655 = vmatprep.subr.mxu0 0.0
  %4656 = vmatpush1.xpose.msra.mxu0 0.0
  %4657 = vmatprep.subr.mxu0 0.0
  %4658 = vmatpush1.xpose.msra.mxu0 0.0
  %4659 = vmatprep.subr.mxu0 0.0
  %4660 = vmatpush1.xpose.msra.mxu0 0.0
  %4661 = vmatprep.subr.mxu0 0.0
  %4662 = vmatpush1.xpose.msra.mxu0 0.0
  %4663 = vmatprep.subr.mxu0 0.0
  %4664 = vmatpush1.xpose.msra.mxu0 0.0
  %4665 = vmatprep.subr.mxu0 0.0
  %4666 = vmatpush1.xpose.msra.mxu0 0.0
  %4667 = vmatprep.subr.mxu0 0.0
  %4668 = vmatpush1.xpose.msra.mxu0 0.0
  %4669 = vmatprep.subr.mxu0 0.0
  %4670 = vmatpush1.xpose.msra.mxu0 0.0
  %4671 = vmatprep.mubr.f32.mxu0 0.0
  %4672 = vmatmul.mubr.f32.gmra.mrb[0].mxu0 %v4593
  %v4673 = vpop.f32.mrb[0].mxu0
  %v4674 = vadd.f32 %v4590, %v4673
  %v4675 = vpop.f32.mrb[0].mxu0
  %4676 = vmatprep.mubr.f32.mxu0 0.0
  %4677 = vmatmul.mubr.f32.gmra.mrb[0].mxu0 %v4596
  %v4678 = vpop.f32.mrb[0].mxu0
  %v4679 = vadd.f32 %v4591, %v4678
  %v4680 = vpop.f32.mrb[0].mxu0
  %4681 = vdwg.mxu0
  %v4682 = vsel %vm564, %v4674, -inf
  %4683 = vmax.xlane.f32.xlu0 %v4682
  %v4684 = vpop.xlane.xlu0 %4683
  %v4685 = vsel %vm564, %v4679, -inf
  %4686 = vmax.xlane.f32.xlu0 %v4685
  %v4687 = vpop.xlane.xlu0 %4686
  %v4688 = vsub.f32 %v4674, %v4684
  %v4689 = vsub.f32 %v4679, %v4687
  %v4690 = vmul.f32 %v4688, 1.442695
  %v4691 = vpow.pop %v4690
  %v4692 = vmul.f32 %v4689, 1.442695
  %v4693 = vpow.pop %v4692
  %v4694 = vsel %vm564, %v4691, 0.0
  %4695 = vadd.xlane.f32.xlu0 %v4694
  %v4696 = vpop.xlane.xlu0 %4695
  %v4697 = vsel %vm564, %v4693, 0.0
  %4698 = vadd.xlane.f32.xlu0 %v4697
  %v4699 = vpop.xlane.xlu0 %4698
  %v4700 = vrcp.pop %v4696
  %v4701 = vrcp.pop %v4699
  %v4702 = vmul.f32 %v4691, %v4700
  %v4703 = vmul.f32 %v4693, %v4701
  %4704 = vrot.lane.b32.xlu0 %v4577, 96
  %v4705 = vpop.permute.xlu0 %4704
  %4706 = vrot.lane.b32.xlu0 %v4582, 96
  %v4707 = vpop.permute.xlu0 %4706
  %4708 = vrot.lane.b32.xlu0 %v4587, 96
  %v4709 = vpop.permute.xlu0 %4708
  %v4713 = vsel %vm564, %v4702, 0
  %v4716 = vsel %vm564, %v4703, 0
  %v4718 = vsel %vm616, %v4709, 0
  %4720 = vmatprep.subr.mxu0 0.0
  %4721 = vmatpush1.msra.mxu0 %v4705
  %4722 = vmatprep.subr.mxu0 0.0
  %4723 = vmatpush1.msra.mxu0 %v4707
  %4724 = vmatprep.subr.mxu0 0.0
  %4725 = vmatpush1.msra.mxu0 %v4718
  %4726 = vmatprep.subr.mxu0 0.0
  %4727 = vmatpush1.msra.mxu0 0.0
  %4728 = vmatprep.subr.mxu0 0.0
  %4729 = vmatpush1.msra.mxu0 0.0
  %4730 = vmatprep.subr.mxu0 0.0
  %4731 = vmatpush1.msra.mxu0 0.0
  %4732 = vmatprep.subr.mxu0 0.0
  %4733 = vmatpush1.msra.mxu0 0.0
  %4734 = vmatprep.subr.mxu0 0.0
  %4735 = vmatpush1.msra.mxu0 0.0
  %4736 = vmatprep.subr.mxu0 0.0
  %4737 = vmatpush1.msra.mxu0 0.0
  %4738 = vmatprep.subr.mxu0 0.0
  %4739 = vmatpush1.msra.mxu0 0.0
  %4740 = vmatprep.subr.mxu0 0.0
  %4741 = vmatpush1.msra.mxu0 0.0
  %4742 = vmatprep.subr.mxu0 0.0
  %4743 = vmatpush1.msra.mxu0 0.0
  %4744 = vmatprep.subr.mxu0 0.0
  %4745 = vmatpush1.msra.mxu0 0.0
  %4746 = vmatprep.subr.mxu0 0.0
  %4747 = vmatpush1.msra.mxu0 0.0
  %4748 = vmatprep.subr.mxu0 0.0
  %4749 = vmatpush1.msra.mxu0 0.0
  %4750 = vmatprep.subr.mxu0 0.0
  %4751 = vmatpush1.msra.mxu0 0.0
  %4752 = vmatprep.subr.mxu0 0.0
  %4753 = vmatpush1.msra.mxu0 0.0
  %4754 = vmatprep.subr.mxu0 0.0
  %4755 = vmatpush1.msra.mxu0 0.0
  %4756 = vmatprep.subr.mxu0 0.0
  %4757 = vmatpush1.msra.mxu0 0.0
  %4758 = vmatprep.subr.mxu0 0.0
  %4759 = vmatpush1.msra.mxu0 0.0
  %4760 = vmatprep.subr.mxu0 0.0
  %4761 = vmatpush1.msra.mxu0 0.0
  %4762 = vmatprep.subr.mxu0 0.0
  %4763 = vmatpush1.msra.mxu0 0.0
  %4764 = vmatprep.subr.mxu0 0.0
  %4765 = vmatpush1.msra.mxu0 0.0
  %4766 = vmatprep.subr.mxu0 0.0
  %4767 = vmatpush1.msra.mxu0 0.0
  %4768 = vmatprep.subr.mxu0 0.0
  %4769 = vmatpush1.msra.mxu0 0.0
  %4770 = vmatprep.subr.mxu0 0.0
  %4771 = vmatpush1.msra.mxu0 0.0
  %4772 = vmatprep.subr.mxu0 0.0
  %4773 = vmatpush1.msra.mxu0 0.0
  %4774 = vmatprep.subr.mxu0 0.0
  %4775 = vmatpush1.msra.mxu0 0.0
  %4776 = vmatprep.subr.mxu0 0.0
  %4777 = vmatpush1.msra.mxu0 0.0
  %4778 = vmatprep.subr.mxu0 0.0
  %4779 = vmatpush1.msra.mxu0 0.0
  %4780 = vmatprep.subr.mxu0 0.0
  %4781 = vmatpush1.msra.mxu0 0.0
  %4782 = vmatprep.subr.mxu0 0.0
  %4783 = vmatpush1.msra.mxu0 0.0
  %4784 = vmatprep.mubr.f32.mxu0 0.0
  %4785 = vmatmul.mubr.f32.gmra.mrb[0].mxu0 %v4713
  %v4786 = vpop.f32.mrb[0].mxu0
  %v4787 = vadd.f32 0.0, %v4786
  %v4788 = vpop.f32.mrb[0].mxu0
  %4789 = vmatprep.mubr.f32.mxu0 0.0
  %4790 = vmatmul.mubr.f32.gmra.mrb[0].mxu0 %v4716
  %v4791 = vpop.f32.mrb[0].mxu0
  %v4792 = vadd.f32 0.0, %v4791
  %v4793 = vpop.f32.mrb[0].mxu0
  %4794 = vdwg.mxu0
  %4795 = vrot.lane.b32.xlu0 %v4489, 120
  %v4796 = vpop.permute.xlu0 %4795
  %4797 = vrot.lane.b32.xlu0 %v4494, 120
  %v4798 = vpop.permute.xlu0 %4797
  %4799 = vrot.lane.b32.xlu0 %v4577, 120
  %v4800 = vpop.permute.xlu0 %4799
  %4801 = vrot.lane.b32.xlu0 %v4582, 120
  %v4802 = vpop.permute.xlu0 %4801
  %4803 = vrot.lane.b32.xlu0 %v4587, 120
  %v4804 = vpop.permute.xlu0 %4803
  %v4805 = vsel %vm471, %v4796, 0
  %v4807 = vsel %vm471, %v4798, 0
  %v4809 = vsel %vm471, %v4800, 0
  %v4811 = vsel %vm471, %v4802, 0
  %v4813 = vsel %vm471, %v4804, 0
  %4815 = vmatprep.subr.mxu0 0.0
  %4816 = vmatpush1.xpose.msra.mxu0 %v4809
  %4817 = vmatprep.subr.mxu0 0.0
  %4818 = vmatpush1.xpose.msra.mxu0 %v4811
  %4819 = vmatprep.subr.mxu0 0.0
  %4820 = vmatpush1.xpose.msra.mxu0 %v4813
  %4821 = vmatprep.subr.mxu0 0.0
  %4822 = vmatpush1.xpose.msra.mxu0 0.0
  %4823 = vmatprep.subr.mxu0 0.0
  %4824 = vmatpush1.xpose.msra.mxu0 0.0
  %4825 = vmatprep.subr.mxu0 0.0
  %4826 = vmatpush1.xpose.msra.mxu0 0.0
  %4827 = vmatprep.subr.mxu0 0.0
  %4828 = vmatpush1.xpose.msra.mxu0 0.0
  %4829 = vmatprep.subr.mxu0 0.0
  %4830 = vmatpush1.xpose.msra.mxu0 0.0
  %4831 = vmatprep.subr.mxu0 0.0
  %4832 = vmatpush1.xpose.msra.mxu0 0.0
  %4833 = vmatprep.subr.mxu0 0.0
  %4834 = vmatpush1.xpose.msra.mxu0 0.0
  %4835 = vmatprep.subr.mxu0 0.0
  %4836 = vmatpush1.xpose.msra.mxu0 0.0
  %4837 = vmatprep.subr.mxu0 0.0
  %4838 = vmatpush1.xpose.msra.mxu0 0.0
  %4839 = vmatprep.subr.mxu0 0.0
  %4840 = vmatpush1.xpose.msra.mxu0 0.0
  %4841 = vmatprep.subr.mxu0 0.0
  %4842 = vmatpush1.xpose.msra.mxu0 0.0
  %4843 = vmatprep.subr.mxu0 0.0
  %4844 = vmatpush1.xpose.msra.mxu0 0.0
  %4845 = vmatprep.subr.mxu0 0.0
  %4846 = vmatpush1.xpose.msra.mxu0 0.0
  %4847 = vmatprep.subr.mxu0 0.0
  %4848 = vmatpush1.xpose.msra.mxu0 0.0
  %4849 = vmatprep.subr.mxu0 0.0
  %4850 = vmatpush1.xpose.msra.mxu0 0.0
  %4851 = vmatprep.subr.mxu0 0.0
  %4852 = vmatpush1.xpose.msra.mxu0 0.0
  %4853 = vmatprep.subr.mxu0 0.0
  %4854 = vmatpush1.xpose.msra.mxu0 0.0
  %4855 = vmatprep.subr.mxu0 0.0
  %4856 = vmatpush1.xpose.msra.mxu0 0.0
  %4857 = vmatprep.subr.mxu0 0.0
  %4858 = vmatpush1.xpose.msra.mxu0 0.0
  %4859 = vmatprep.subr.mxu0 0.0
  %4860 = vmatpush1.xpose.msra.mxu0 0.0
  %4861 = vmatprep.subr.mxu0 0.0
  %4862 = vmatpush1.xpose.msra.mxu0 0.0
  %4863 = vmatprep.subr.mxu0 0.0
  %4864 = vmatpush1.xpose.msra.mxu0 0.0
  %4865 = vmatprep.subr.mxu0 0.0
  %4866 = vmatpush1.xpose.msra.mxu0 0.0
  %4867 = vmatprep.subr.mxu0 0.0
  %4868 = vmatpush1.xpose.msra.mxu0 0.0
  %4869 = vmatprep.subr.mxu0 0.0
  %4870 = vmatpush1.xpose.msra.mxu0 0.0
  %4871 = vmatprep.subr.mxu0 0.0
  %4872 = vmatpush1.xpose.msra.mxu0 0.0
  %4873 = vmatprep.subr.mxu0 0.0
  %4874 = vmatpush1.xpose.msra.mxu0 0.0
  %4875 = vmatprep.subr.mxu0 0.0
  %4876 = vmatpush1.xpose.msra.mxu0 0.0
  %4877 = vmatprep.subr.mxu0 0.0
  %4878 = vmatpush1.xpose.msra.mxu0 0.0
  %4879 = vmatprep.mubr.f32.mxu0 0.0
  %4880 = vmatmul.mubr.f32.gmra.mrb[0].mxu0 %v4805
  %v4881 = vpop.f32.mrb[0].mxu0
  %v4882 = vadd.f32 %v4590, %v4881
  %v4883 = vpop.f32.mrb[0].mxu0
  %4884 = vmatprep.mubr.f32.mxu0 0.0
  %4885 = vmatmul.mubr.f32.gmra.mrb[0].mxu0 %v4807
  %v4886 = vpop.f32.mrb[0].mxu0
  %v4887 = vadd.f32 %v4591, %v4886
  %v4888 = vpop.f32.mrb[0].mxu0
  %4889 = vdwg.mxu0
  %v4890 = vsel %vm564, %v4882, -inf
  %4891 = vmax.xlane.f32.xlu0 %v4890
  %v4892 = vpop.xlane.xlu0 %4891
  %v4893 = vsel %vm564, %v4887, -inf
  %4894 = vmax.xlane.f32.xlu0 %v4893
  %v4895 = vpop.xlane.xlu0 %4894
  %v4896 = vsub.f32 %v4882, %v4892
  %v4897 = vsub.f32 %v4887, %v4895
  %v4898 = vmul.f32 %v4896, 1.442695
  %v4899 = vpow.pop %v4898
  %v4900 = vmul.f32 %v4897, 1.442695
  %v4901 = vpow.pop %v4900
  %v4902 = vsel %vm564, %v4899, 0.0
  %4903 = vadd.xlane.f32.xlu0 %v4902
  %v4904 = vpop.xlane.xlu0 %4903
  %v4905 = vsel %vm564, %v4901, 0.0
  %4906 = vadd.xlane.f32.xlu0 %v4905
  %v4907 = vpop.xlane.xlu0 %4906
  %v4908 = vrcp.pop %v4904
  %v4909 = vrcp.pop %v4907
  %v4910 = vmul.f32 %v4899, %v4908
  %v4911 = vmul.f32 %v4901, %v4909
  %4912 = vrot.lane.b32.xlu0 %v4577, 88
  %v4913 = vpop.permute.xlu0 %4912
  %4914 = vrot.lane.b32.xlu0 %v4582, 88
  %v4915 = vpop.permute.xlu0 %4914
  %4916 = vrot.lane.b32.xlu0 %v4587, 88
  %v4917 = vpop.permute.xlu0 %4916
  %v4921 = vsel %vm564, %v4910, 0
  %v4924 = vsel %vm564, %v4911, 0
  %v4926 = vsel %vm616, %v4917, 0
  %4928 = vmatprep.subr.mxu0 0.0
  %4929 = vmatpush1.msra.mxu0 %v4913
  %4930 = vmatprep.subr.mxu0 0.0
  %4931 = vmatpush1.msra.mxu0 %v4915
  %4932 = vmatprep.subr.mxu0 0.0
  %4933 = vmatpush1.msra.mxu0 %v4926
  %4934 = vmatprep.subr.mxu0 0.0
  %4935 = vmatpush1.msra.mxu0 0.0
  %4936 = vmatprep.subr.mxu0 0.0
  %4937 = vmatpush1.msra.mxu0 0.0
  %4938 = vmatprep.subr.mxu0 0.0
  %4939 = vmatpush1.msra.mxu0 0.0
  %4940 = vmatprep.subr.mxu0 0.0
  %4941 = vmatpush1.msra.mxu0 0.0
  %4942 = vmatprep.subr.mxu0 0.0
  %4943 = vmatpush1.msra.mxu0 0.0
  %4944 = vmatprep.subr.mxu0 0.0
  %4945 = vmatpush1.msra.mxu0 0.0
  %4946 = vmatprep.subr.mxu0 0.0
  %4947 = vmatpush1.msra.mxu0 0.0
  %4948 = vmatprep.subr.mxu0 0.0
  %4949 = vmatpush1.msra.mxu0 0.0
  %4950 = vmatprep.subr.mxu0 0.0
  %4951 = vmatpush1.msra.mxu0 0.0
  %4952 = vmatprep.subr.mxu0 0.0
  %4953 = vmatpush1.msra.mxu0 0.0
  %4954 = vmatprep.subr.mxu0 0.0
  %4955 = vmatpush1.msra.mxu0 0.0
  %4956 = vmatprep.subr.mxu0 0.0
  %4957 = vmatpush1.msra.mxu0 0.0
  %4958 = vmatprep.subr.mxu0 0.0
  %4959 = vmatpush1.msra.mxu0 0.0
  %4960 = vmatprep.subr.mxu0 0.0
  %4961 = vmatpush1.msra.mxu0 0.0
  %4962 = vmatprep.subr.mxu0 0.0
  %4963 = vmatpush1.msra.mxu0 0.0
  %4964 = vmatprep.subr.mxu0 0.0
  %4965 = vmatpush1.msra.mxu0 0.0
  %4966 = vmatprep.subr.mxu0 0.0
  %4967 = vmatpush1.msra.mxu0 0.0
  %4968 = vmatprep.subr.mxu0 0.0
  %4969 = vmatpush1.msra.mxu0 0.0
  %4970 = vmatprep.subr.mxu0 0.0
  %4971 = vmatpush1.msra.mxu0 0.0
  %4972 = vmatprep.subr.mxu0 0.0
  %4973 = vmatpush1.msra.mxu0 0.0
  %4974 = vmatprep.subr.mxu0 0.0
  %4975 = vmatpush1.msra.mxu0 0.0
  %4976 = vmatprep.subr.mxu0 0.0
  %4977 = vmatpush1.msra.mxu0 0.0
  %4978 = vmatprep.subr.mxu0 0.0
  %4979 = vmatpush1.msra.mxu0 0.0
  %4980 = vmatprep.subr.mxu0 0.0
  %4981 = vmatpush1.msra.mxu0 0.0
  %4982 = vmatprep.subr.mxu0 0.0
  %4983 = vmatpush1.msra.mxu0 0.0
  %4984 = vmatprep.subr.mxu0 0.0
  %4985 = vmatpush1.msra.mxu0 0.0
  %4986 = vmatprep.subr.mxu0 0.0
  %4987 = vmatpush1.msra.mxu0 0.0
  %4988 = vmatprep.subr.mxu0 0.0
  %4989 = vmatpush1.msra.mxu0 0.0
  %4990 = vmatprep.subr.mxu0 0.0
  %4991 = vmatpush1.msra.mxu0 0.0
  %4992 = vmatprep.mubr.f32.mxu0 0.0
  %4993 = vmatmul.mubr.f32.gmra.mrb[0].mxu0 %v4921
  %v4994 = vpop.f32.mrb[0].mxu0
  %v4995 = vadd.f32 0.0, %v4994
  %v4996 = vpop.f32.mrb[0].mxu0
  %4997 = vmatprep.mubr.f32.mxu0 0.0
  %4998 = vmatmul.mubr.f32.gmra.mrb[0].mxu0 %v4924
  %v4999 = vpop.f32.mrb[0].mxu0
  %v5000 = vadd.f32 0.0, %v4999
  %v5001 = vpop.f32.mrb[0].mxu0
  %5002 = vdwg.mxu0
  %5003 = vrot.lane.b32.xlu0 %v4489, 112
  %v5004 = vpop.permute.xlu0 %5003
  %5005 = vrot.lane.b32.xlu0 %v4494, 112
  %v5006 = vpop.permute.xlu0 %5005
  %5007 = vrot.lane.b32.xlu0 %v4577, 112
  %v5008 = vpop.permute.xlu0 %5007
  %5009 = vrot.lane.b32.xlu0 %v4582, 112
  %v5010 = vpop.permute.xlu0 %5009
  %5011 = vrot.lane.b32.xlu0 %v4587, 112
  %v5012 = vpop.permute.xlu0 %5011
  %v5013 = vsel %vm471, %v5004, 0
  %v5015 = vsel %vm471, %v5006, 0
  %v5017 = vsel %vm471, %v5008, 0
  %v5019 = vsel %vm471, %v5010, 0
  %v5021 = vsel %vm471, %v5012, 0
  %5023 = vmatprep.subr.mxu0 0.0
  %5024 = vmatpush1.xpose.msra.mxu0 %v5017
  %5025 = vmatprep.subr.mxu0 0.0
  %5026 = vmatpush1.xpose.msra.mxu0 %v5019
  %5027 = vmatprep.subr.mxu0 0.0
  %5028 = vmatpush1.xpose.msra.mxu0 %v5021
  %5029 = vmatprep.subr.mxu0 0.0
  %5030 = vmatpush1.xpose.msra.mxu0 0.0
  %5031 = vmatprep.subr.mxu0 0.0
  %5032 = vmatpush1.xpose.msra.mxu0 0.0
  %5033 = vmatprep.subr.mxu0 0.0
  %5034 = vmatpush1.xpose.msra.mxu0 0.0
  %5035 = vmatprep.subr.mxu0 0.0
  %5036 = vmatpush1.xpose.msra.mxu0 0.0
  %5037 = vmatprep.subr.mxu0 0.0
  %5038 = vmatpush1.xpose.msra.mxu0 0.0
  %5039 = vmatprep.subr.mxu0 0.0
  %5040 = vmatpush1.xpose.msra.mxu0 0.0
  %5041 = vmatprep.subr.mxu0 0.0
  %5042 = vmatpush1.xpose.msra.mxu0 0.0
  %5043 = vmatprep.subr.mxu0 0.0
  %5044 = vmatpush1.xpose.msra.mxu0 0.0
  %5045 = vmatprep.subr.mxu0 0.0
  %5046 = vmatpush1.xpose.msra.mxu0 0.0
  %5047 = vmatprep.subr.mxu0 0.0
  %5048 = vmatpush1.xpose.msra.mxu0 0.0
  %5049 = vmatprep.subr.mxu0 0.0
  %5050 = vmatpush1.xpose.msra.mxu0 0.0
  %5051 = vmatprep.subr.mxu0 0.0
  %5052 = vmatpush1.xpose.msra.mxu0 0.0
  %5053 = vmatprep.subr.mxu0 0.0
  %5054 = vmatpush1.xpose.msra.mxu0 0.0
  %5055 = vmatprep.subr.mxu0 0.0
  %5056 = vmatpush1.xpose.msra.mxu0 0.0
  %5057 = vmatprep.subr.mxu0 0.0
  %5058 = vmatpush1.xpose.msra.mxu0 0.0
  %5059 = vmatprep.subr.mxu0 0.0
  %5060 = vmatpush1.xpose.msra.mxu0 0.0
  %5061 = vmatprep.subr.mxu0 0.0
  %5062 = vmatpush1.xpose.msra.mxu0 0.0
  %5063 = vmatprep.subr.mxu0 0.0
  %5064 = vmatpush1.xpose.msra.mxu0 0.0
  %5065 = vmatprep.subr.mxu0 0.0
  %5066 = vmatpush1.xpose.msra.mxu0 0.0
  %5067 = vmatprep.subr.mxu0 0.0
  %5068 = vmatpush1.xpose.msra.mxu0 0.0
  %5069 = vmatprep.subr.mxu0 0.0
  %5070 = vmatpush1.xpose.msra.mxu0 0.0
  %5071 = vmatprep.subr.mxu0 0.0
  %5072 = vmatpush1.xpose.msra.mxu0 0.0
  %5073 = vmatprep.subr.mxu0 0.0
  %5074 = vmatpush1.xpose.msra.mxu0 0.0
  %5075 = vmatprep.subr.mxu0 0.0
  %5076 = vmatpush1.xpose.msra.mxu0 0.0
  %5077 = vmatprep.subr.mxu0 0.0
  %5078 = vmatpush1.xpose.msra.mxu0 0.0
  %5079 = vmatprep.subr.mxu0 0.0
  %5080 = vmatpush1.xpose.msra.mxu0 0.0
  %5081 = vmatprep.subr.mxu0 0.0
  %5082 = vmatpush1.xpose.msra.mxu0 0.0
  %5083 = vmatprep.subr.mxu0 0.0
  %5084 = vmatpush1.xpose.msra.mxu0 0.0
  %5085 = vmatprep.subr.mxu0 0.0
  %5086 = vmatpush1.xpose.msra.mxu0 0.0
  %5087 = vmatprep.mubr.f32.mxu0 0.0
  %5088 = vmatmul.mubr.f32.gmra.mrb[0].mxu0 %v5013
  %v5089 = vpop.f32.mrb[0].mxu0
  %v5090 = vadd.f32 %v4590, %v5089
  %v5091 = vpop.f32.mrb[0].mxu0
  %5092 = vmatprep.mubr.f32.mxu0 0.0
  %5093 = vmatmul.mubr.f32.gmra.mrb[0].mxu0 %v5015
  %v5094 = vpop.f32.mrb[0].mxu0
  %v5095 = vadd.f32 %v4591, %v5094
  %v5096 = vpop.f32.mrb[0].mxu0
  %5097 = vdwg.mxu0
  %v5098 = vsel %vm564, %v5090, -inf
  %5099 = vmax.xlane.f32.xlu0 %v5098
  %v5100 = vpop.xlane.xlu0 %5099
  %v5101 = vsel %vm564, %v5095, -inf
  %5102 = vmax.xlane.f32.xlu0 %v5101
  %v5103 = vpop.xlane.xlu0 %5102
  %v5104 = vsub.f32 %v5090, %v5100
  %v5105 = vsub.f32 %v5095, %v5103
  %v5106 = vmul.f32 %v5104, 1.442695
  %v5107 = vpow.pop %v5106
  %v5108 = vmul.f32 %v5105, 1.442695
  %v5109 = vpow.pop %v5108
  %v5110 = vsel %vm564, %v5107, 0.0
  %5111 = vadd.xlane.f32.xlu0 %v5110
  %v5112 = vpop.xlane.xlu0 %5111
  %v5113 = vsel %vm564, %v5109, 0.0
  %5114 = vadd.xlane.f32.xlu0 %v5113
  %v5115 = vpop.xlane.xlu0 %5114
  %v5116 = vrcp.pop %v5112
  %v5117 = vrcp.pop %v5115
  %v5118 = vmul.f32 %v5107, %v5116
  %v5119 = vmul.f32 %v5109, %v5117
  %5120 = vrot.lane.b32.xlu0 %v4577, 80
  %v5121 = vpop.permute.xlu0 %5120
  %5122 = vrot.lane.b32.xlu0 %v4582, 80
  %v5123 = vpop.permute.xlu0 %5122
  %5124 = vrot.lane.b32.xlu0 %v4587, 80
  %v5125 = vpop.permute.xlu0 %5124
  %v5129 = vsel %vm564, %v5118, 0
  %v5132 = vsel %vm564, %v5119, 0
  %v5134 = vsel %vm616, %v5125, 0
  %5136 = vmatprep.subr.mxu0 0.0
  %5137 = vmatpush1.msra.mxu0 %v5121
  %5138 = vmatprep.subr.mxu0 0.0
  %5139 = vmatpush1.msra.mxu0 %v5123
  %5140 = vmatprep.subr.mxu0 0.0
  %5141 = vmatpush1.msra.mxu0 %v5134
  %5142 = vmatprep.subr.mxu0 0.0
  %5143 = vmatpush1.msra.mxu0 0.0
  %5144 = vmatprep.subr.mxu0 0.0
  %5145 = vmatpush1.msra.mxu0 0.0
  %5146 = vmatprep.subr.mxu0 0.0
  %5147 = vmatpush1.msra.mxu0 0.0
  %5148 = vmatprep.subr.mxu0 0.0
  %5149 = vmatpush1.msra.mxu0 0.0
  %5150 = vmatprep.subr.mxu0 0.0
  %5151 = vmatpush1.msra.mxu0 0.0
  %5152 = vmatprep.subr.mxu0 0.0
  %5153 = vmatpush1.msra.mxu0 0.0
  %5154 = vmatprep.subr.mxu0 0.0
  %5155 = vmatpush1.msra.mxu0 0.0
  %5156 = vmatprep.subr.mxu0 0.0
  %5157 = vmatpush1.msra.mxu0 0.0
  %5158 = vmatprep.subr.mxu0 0.0
  %5159 = vmatpush1.msra.mxu0 0.0
  %5160 = vmatprep.subr.mxu0 0.0
  %5161 = vmatpush1.msra.mxu0 0.0
  %5162 = vmatprep.subr.mxu0 0.0
  %5163 = vmatpush1.msra.mxu0 0.0
  %5164 = vmatprep.subr.mxu0 0.0
  %5165 = vmatpush1.msra.mxu0 0.0
  %5166 = vmatprep.subr.mxu0 0.0
  %5167 = vmatpush1.msra.mxu0 0.0
  %5168 = vmatprep.subr.mxu0 0.0
  %5169 = vmatpush1.msra.mxu0 0.0
  %5170 = vmatprep.subr.mxu0 0.0
  %5171 = vmatpush1.msra.mxu0 0.0
  %5172 = vmatprep.subr.mxu0 0.0
  %5173 = vmatpush1.msra.mxu0 0.0
  %5174 = vmatprep.subr.mxu0 0.0
  %5175 = vmatpush1.msra.mxu0 0.0
  %5176 = vmatprep.subr.mxu0 0.0
  %5177 = vmatpush1.msra.mxu0 0.0
  %5178 = vmatprep.subr.mxu0 0.0
  %5179 = vmatpush1.msra.mxu0 0.0
  %5180 = vmatprep.subr.mxu0 0.0
  %5181 = vmatpush1.msra.mxu0 0.0
  %5182 = vmatprep.subr.mxu0 0.0
  %5183 = vmatpush1.msra.mxu0 0.0
  %5184 = vmatprep.subr.mxu0 0.0
  %5185 = vmatpush1.msra.mxu0 0.0
  %5186 = vmatprep.subr.mxu0 0.0
  %5187 = vmatpush1.msra.mxu0 0.0
  %5188 = vmatprep.subr.mxu0 0.0
  %5189 = vmatpush1.msra.mxu0 0.0
  %5190 = vmatprep.subr.mxu0 0.0
  %5191 = vmatpush1.msra.mxu0 0.0
  %5192 = vmatprep.subr.mxu0 0.0
  %5193 = vmatpush1.msra.mxu0 0.0
  %5194 = vmatprep.subr.mxu0 0.0
  %5195 = vmatpush1.msra.mxu0 0.0
  %5196 = vmatprep.subr.mxu0 0.0
  %5197 = vmatpush1.msra.mxu0 0.0
  %5198 = vmatprep.subr.mxu0 0.0
  %5199 = vmatpush1.msra.mxu0 0.0
  %5200 = vmatprep.mubr.f32.mxu0 0.0
  %5201 = vmatmul.mubr.f32.gmra.mrb[0].mxu0 %v5129
  %v5202 = vpop.f32.mrb[0].mxu0
  %v5203 = vadd.f32 0.0, %v5202
  %v5204 = vpop.f32.mrb[0].mxu0
  %5205 = vmatprep.mubr.f32.mxu0 0.0
  %5206 = vmatmul.mubr.f32.gmra.mrb[0].mxu0 %v5132
  %v5207 = vpop.f32.mrb[0].mxu0
  %v5208 = vadd.f32 0.0, %v5207
  %v5209 = vpop.f32.mrb[0].mxu0
  %5210 = vdwg.mxu0
  %5211 = vrot.lane.b32.xlu0 %v4489, 104
  %v5212 = vpop.permute.xlu0 %5211
  %5213 = vrot.lane.b32.xlu0 %v4494, 104
  %v5214 = vpop.permute.xlu0 %5213
  %5215 = vrot.lane.b32.xlu0 %v4577, 104
  %v5216 = vpop.permute.xlu0 %5215
  %5217 = vrot.lane.b32.xlu0 %v4582, 104
  %v5218 = vpop.permute.xlu0 %5217
  %5219 = vrot.lane.b32.xlu0 %v4587, 104
  %v5220 = vpop.permute.xlu0 %5219
  %v5221 = vsel %vm471, %v5212, 0
  %v5223 = vsel %vm471, %v5214, 0
  %v5225 = vsel %vm471, %v5216, 0
  %v5227 = vsel %vm471, %v5218, 0
  %v5229 = vsel %vm471, %v5220, 0
  %5231 = vmatprep.subr.mxu0 0.0
  %5232 = vmatpush1.xpose.msra.mxu0 %v5225
  %5233 = vmatprep.subr.mxu0 0.0
  %5234 = vmatpush1.xpose.msra.mxu0 %v5227
  %5235 = vmatprep.subr.mxu0 0.0
  %5236 = vmatpush1.xpose.msra.mxu0 %v5229
  %5237 = vmatprep.subr.mxu0 0.0
  %5238 = vmatpush1.xpose.msra.mxu0 0.0
  %5239 = vmatprep.subr.mxu0 0.0
  %5240 = vmatpush1.xpose.msra.mxu0 0.0
  %5241 = vmatprep.subr.mxu0 0.0
  %5242 = vmatpush1.xpose.msra.mxu0 0.0
  %5243 = vmatprep.subr.mxu0 0.0
  %5244 = vmatpush1.xpose.msra.mxu0 0.0
  %5245 = vmatprep.subr.mxu0 0.0
  %5246 = vmatpush1.xpose.msra.mxu0 0.0
  %5247 = vmatprep.subr.mxu0 0.0
  %5248 = vmatpush1.xpose.msra.mxu0 0.0
  %5249 = vmatprep.subr.mxu0 0.0
  %5250 = vmatpush1.xpose.msra.mxu0 0.0
  %5251 = vmatprep.subr.mxu0 0.0
  %5252 = vmatpush1.xpose.msra.mxu0 0.0
  %5253 = vmatprep.subr.mxu0 0.0
  %5254 = vmatpush1.xpose.msra.mxu0 0.0
  %5255 = vmatprep.subr.mxu0 0.0
  %5256 = vmatpush1.xpose.msra.mxu0 0.0
  %5257 = vmatprep.subr.mxu0 0.0
  %5258 = vmatpush1.xpose.msra.mxu0 0.0
  %5259 = vmatprep.subr.mxu0 0.0
  %5260 = vmatpush1.xpose.msra.mxu0 0.0
  %5261 = vmatprep.subr.mxu0 0.0
  %5262 = vmatpush1.xpose.msra.mxu0 0.0
  %5263 = vmatprep.subr.mxu0 0.0
  %5264 = vmatpush1.xpose.msra.mxu0 0.0
  %5265 = vmatprep.subr.mxu0 0.0
  %5266 = vmatpush1.xpose.msra.mxu0 0.0
  %5267 = vmatprep.subr.mxu0 0.0
  %5268 = vmatpush1.xpose.msra.mxu0 0.0
  %5269 = vmatprep.subr.mxu0 0.0
  %5270 = vmatpush1.xpose.msra.mxu0 0.0
  %5271 = vmatprep.subr.mxu0 0.0
  %5272 = vmatpush1.xpose.msra.mxu0 0.0
  %5273 = vmatprep.subr.mxu0 0.0
  %5274 = vmatpush1.xpose.msra.mxu0 0.0
  %5275 = vmatprep.subr.mxu0 0.0
  %5276 = vmatpush1.xpose.msra.mxu0 0.0
  %5277 = vmatprep.subr.mxu0 0.0
  %5278 = vmatpush1.xpose.msra.mxu0 0.0
  %5279 = vmatprep.subr.mxu0 0.0
  %5280 = vmatpush1.xpose.msra.mxu0 0.0
  %5281 = vmatprep.subr.mxu0 0.0
  %5282 = vmatpush1.xpose.msra.mxu0 0.0
  %5283 = vmatprep.subr.mxu0 0.0
  %5284 = vmatpush1.xpose.msra.mxu0 0.0
  %5285 = vmatprep.subr.mxu0 0.0
  %5286 = vmatpush1.xpose.msra.mxu0 0.0
  %5287 = vmatprep.subr.mxu0 0.0
  %5288 = vmatpush1.xpose.msra.mxu0 0.0
  %5289 = vmatprep.subr.mxu0 0.0
  %5290 = vmatpush1.xpose.msra.mxu0 0.0
  %5291 = vmatprep.subr.mxu0 0.0
  %5292 = vmatpush1.xpose.msra.mxu0 0.0
  %5293 = vmatprep.subr.mxu0 0.0
  %5294 = vmatpush1.xpose.msra.mxu0 0.0
  %5295 = vmatprep.mubr.f32.mxu0 0.0
  %5296 = vmatmul.mubr.f32.gmra.mrb[0].mxu0 %v5221
  %v5297 = vpop.f32.mrb[0].mxu0
  %v5298 = vadd.f32 %v4590, %v5297
  %v5299 = vpop.f32.mrb[0].mxu0
  %5300 = vmatprep.mubr.f32.mxu0 0.0
  %5301 = vmatmul.mubr.f32.gmra.mrb[0].mxu0 %v5223
  %v5302 = vpop.f32.mrb[0].mxu0
  %v5303 = vadd.f32 %v4591, %v5302
  %v5304 = vpop.f32.mrb[0].mxu0
  %5305 = vdwg.mxu0
  %v5306 = vsel %vm564, %v5298, -inf
  %5307 = vmax.xlane.f32.xlu0 %v5306
  %v5308 = vpop.xlane.xlu0 %5307
  %v5309 = vsel %vm564, %v5303, -inf
  %5310 = vmax.xlane.f32.xlu0 %v5309
  %v5311 = vpop.xlane.xlu0 %5310
  %v5312 = vsub.f32 %v5298, %v5308
  %v5313 = vsub.f32 %v5303, %v5311
  %v5314 = vmul.f32 %v5312, 1.442695
  %v5315 = vpow.pop %v5314
  %v5316 = vmul.f32 %v5313, 1.442695
  %v5317 = vpow.pop %v5316
  %v5318 = vsel %vm564, %v5315, 0.0
  %5319 = vadd.xlane.f32.xlu0 %v5318
  %v5320 = vpop.xlane.xlu0 %5319
  %v5321 = vsel %vm564, %v5317, 0.0
  %5322 = vadd.xlane.f32.xlu0 %v5321
  %v5323 = vpop.xlane.xlu0 %5322
  %v5324 = vrcp.pop %v5320
  %v5325 = vrcp.pop %v5323
  %v5326 = vmul.f32 %v5315, %v5324
  %v5327 = vmul.f32 %v5317, %v5325
  %5328 = vrot.lane.b32.xlu0 %v4577, 72
  %v5329 = vpop.permute.xlu0 %5328
  %5330 = vrot.lane.b32.xlu0 %v4582, 72
  %v5331 = vpop.permute.xlu0 %5330
  %5332 = vrot.lane.b32.xlu0 %v4587, 72
  %v5333 = vpop.permute.xlu0 %5332
  %v5337 = vsel %vm564, %v5326, 0
  %v5340 = vsel %vm564, %v5327, 0
  %v5342 = vsel %vm616, %v5333, 0
  %5344 = vmatprep.subr.mxu0 0.0
  %5345 = vmatpush1.msra.mxu0 %v5329
  %5346 = vmatprep.subr.mxu0 0.0
  %5347 = vmatpush1.msra.mxu0 %v5331
  %5348 = vmatprep.subr.mxu0 0.0
  %5349 = vmatpush1.msra.mxu0 %v5342
  %5350 = vmatprep.subr.mxu0 0.0
  %5351 = vmatpush1.msra.mxu0 0.0
  %5352 = vmatprep.subr.mxu0 0.0
  %5353 = vmatpush1.msra.mxu0 0.0
  %5354 = vmatprep.subr.mxu0 0.0
  %5355 = vmatpush1.msra.mxu0 0.0
  %5356 = vmatprep.subr.mxu0 0.0
  %5357 = vmatpush1.msra.mxu0 0.0
  %5358 = vmatprep.subr.mxu0 0.0
  %5359 = vmatpush1.msra.mxu0 0.0
  %5360 = vmatprep.subr.mxu0 0.0
  %5361 = vmatpush1.msra.mxu0 0.0
  %5362 = vmatprep.subr.mxu0 0.0
  %5363 = vmatpush1.msra.mxu0 0.0
  %5364 = vmatprep.subr.mxu0 0.0
  %5365 = vmatpush1.msra.mxu0 0.0
  %5366 = vmatprep.subr.mxu0 0.0
  %5367 = vmatpush1.msra.mxu0 0.0
  %5368 = vmatprep.subr.mxu0 0.0
  %5369 = vmatpush1.msra.mxu0 0.0
  %5370 = vmatprep.subr.mxu0 0.0
  %5371 = vmatpush1.msra.mxu0 0.0
  %5372 = vmatprep.subr.mxu0 0.0
  %5373 = vmatpush1.msra.mxu0 0.0
  %5374 = vmatprep.subr.mxu0 0.0
  %5375 = vmatpush1.msra.mxu0 0.0
  %5376 = vmatprep.subr.mxu0 0.0
  %5377 = vmatpush1.msra.mxu0 0.0
  %5378 = vmatprep.subr.mxu0 0.0
  %5379 = vmatpush1.msra.mxu0 0.0
  %5380 = vmatprep.subr.mxu0 0.0
  %5381 = vmatpush1.msra.mxu0 0.0
  %5382 = vmatprep.subr.mxu0 0.0
  %5383 = vmatpush1.msra.mxu0 0.0
  %5384 = vmatprep.subr.mxu0 0.0
  %5385 = vmatpush1.msra.mxu0 0.0
  %5386 = vmatprep.subr.mxu0 0.0
  %5387 = vmatpush1.msra.mxu0 0.0
  %5388 = vmatprep.subr.mxu0 0.0
  %5389 = vmatpush1.msra.mxu0 0.0
  %5390 = vmatprep.subr.mxu0 0.0
  %5391 = vmatpush1.msra.mxu0 0.0
  %5392 = vmatprep.subr.mxu0 0.0
  %5393 = vmatpush1.msra.mxu0 0.0
  %5394 = vmatprep.subr.mxu0 0.0
  %5395 = vmatpush1.msra.mxu0 0.0
  %5396 = vmatprep.subr.mxu0 0.0
  %5397 = vmatpush1.msra.mxu0 0.0
  %5398 = vmatprep.subr.mxu0 0.0
  %5399 = vmatpush1.msra.mxu0 0.0
  %5400 = vmatprep.subr.mxu0 0.0
  %5401 = vmatpush1.msra.mxu0 0.0
  %5402 = vmatprep.subr.mxu0 0.0
  %5403 = vmatpush1.msra.mxu0 0.0
  %5404 = vmatprep.subr.mxu0 0.0
  %5405 = vmatpush1.msra.mxu0 0.0
  %5406 = vmatprep.subr.mxu0 0.0
  %5407 = vmatpush1.msra.mxu0 0.0
  %5408 = vmatprep.mubr.f32.mxu0 0.0
  %5409 = vmatmul.mubr.f32.gmra.mrb[0].mxu0 %v5337
  %v5410 = vpop.f32.mrb[0].mxu0
  %v5411 = vadd.f32 0.0, %v5410
  %v5412 = vpop.f32.mrb[0].mxu0
  %5413 = vmatprep.mubr.f32.mxu0 0.0
  %5414 = vmatmul.mubr.f32.gmra.mrb[0].mxu0 %v5340
  %v5415 = vpop.f32.mrb[0].mxu0
  %v5416 = vadd.f32 0.0, %v5415
  %v5417 = vpop.f32.mrb[0].mxu0
  %5418 = vdwg.mxu0
  %5421 = vrot.lane.b32.xlu0 %v4995, 8
  %v5422 = vpop.permute.xlu0 %5421
  %5423 = vrot.lane.b32.xlu0 %v5000, 8
  %v5424 = vpop.permute.xlu0 %5423
  %5429 = vrot.lane.b32.xlu0 %v5203, 16
  %v5430 = vpop.permute.xlu0 %5429
  %5431 = vrot.lane.b32.xlu0 %v5208, 16
  %v5432 = vpop.permute.xlu0 %5431
  %5437 = vrot.lane.b32.xlu0 %v5411, 24
  %v5438 = vpop.permute.xlu0 %5437
  %5439 = vrot.lane.b32.xlu0 %v5416, 24
  %v5440 = vpop.permute.xlu0 %5439
  %v5443 = vsel %vm471, %v4787, %v5422
  %v5444 = vsel %vm471, %v4792, %v5424
  %v5445 = vsel %vm1458, %v5443, %v5430
  %v5446 = vsel %vm1458, %v5444, %v5432
  %v5447 = vsel %vm1462, %v5445, %v5438
  %v5448 = vsel %vm1462, %v5446, %v5440
  %v5449 = vld [vmem:[%s20] sm:$0xff]
  %v5450 = vld [vmem:[%s20 + $0x8] sm:$0xff]
  %v5451 = vld [vmem:[%s20 + $0x10] sm:$0xff]
  %v5452 = vld [vmem:[%s20 + $0x18] sm:$0xff]
  %v5454 = vsel %vm333, %v5447, 0
  %v5457 = vsel %vm333, %v5448, 0
  %5459 = vmatprep.subr.mxu0 0.0
  %5460 = vmatpush1.msra.mxu0 %v5449
  %5461 = vmatprep.subr.mxu0 0.0
  %5462 = vmatpush1.msra.mxu0 %v5450
  %5463 = vmatprep.subr.mxu0 0.0
  %5464 = vmatpush1.msra.mxu0 %v5451
  %5465 = vmatprep.subr.mxu0 0.0
  %5466 = vmatpush1.msra.mxu0 %v5452
  %5467 = vmatprep.subr.mxu0 0.0
  %5468 = vmatpush1.msra.mxu0 0.0
  %5469 = vmatprep.subr.mxu0 0.0
  %5470 = vmatpush1.msra.mxu0 0.0
  %5471 = vmatprep.subr.mxu0 0.0
  %5472 = vmatpush1.msra.mxu0 0.0
  %5473 = vmatprep.subr.mxu0 0.0
  %5474 = vmatpush1.msra.mxu0 0.0
  %5475 = vmatprep.subr.mxu0 0.0
  %5476 = vmatpush1.msra.mxu0 0.0
  %5477 = vmatprep.subr.mxu0 0.0
  %5478 = vmatpush1.msra.mxu0 0.0
  %5479 = vmatprep.subr.mxu0 0.0
  %5480 = vmatpush1.msra.mxu0 0.0
  %5481 = vmatprep.subr.mxu0 0.0
  %5482 = vmatpush1.msra.mxu0 0.0
  %5483 = vmatprep.subr.mxu0 0.0
  %5484 = vmatpush1.msra.mxu0 0.0
  %5485 = vmatprep.subr.mxu0 0.0
  %5486 = vmatpush1.msra.mxu0 0.0
  %5487 = vmatprep.subr.mxu0 0.0
  %5488 = vmatpush1.msra.mxu0 0.0
  %5489 = vmatprep.subr.mxu0 0.0
  %5490 = vmatpush1.msra.mxu0 0.0
  %5491 = vmatprep.subr.mxu0 0.0
  %5492 = vmatpush1.msra.mxu0 0.0
  %5493 = vmatprep.subr.mxu0 0.0
  %5494 = vmatpush1.msra.mxu0 0.0
  %5495 = vmatprep.subr.mxu0 0.0
  %5496 = vmatpush1.msra.mxu0 0.0
  %5497 = vmatprep.subr.mxu0 0.0
  %5498 = vmatpush1.msra.mxu0 0.0
  %5499 = vmatprep.subr.mxu0 0.0
  %5500 = vmatpush1.msra.mxu0 0.0
  %5501 = vmatprep.subr.mxu0 0.0
  %5502 = vmatpush1.msra.mxu0 0.0
  %5503 = vmatprep.subr.mxu0 0.0
  %5504 = vmatpush1.msra.mxu0 0.0
  %5505 = vmatprep.subr.mxu0 0.0
  %5506 = vmatpush1.msra.mxu0 0.0
  %5507 = vmatprep.subr.mxu0 0.0
  %5508 = vmatpush1.msra.mxu0 0.0
  %5509 = vmatprep.subr.mxu0 0.0
  %5510 = vmatpush1.msra.mxu0 0.0
  %5511 = vmatprep.subr.mxu0 0.0
  %5512 = vmatpush1.msra.mxu0 0.0
  %5513 = vmatprep.subr.mxu0 0.0
  %5514 = vmatpush1.msra.mxu0 0.0
  %5515 = vmatprep.subr.mxu0 0.0
  %5516 = vmatpush1.msra.mxu0 0.0
  %5517 = vmatprep.subr.mxu0 0.0
  %5518 = vmatpush1.msra.mxu0 0.0
  %5519 = vmatprep.subr.mxu0 0.0
  %5520 = vmatpush1.msra.mxu0 0.0
  %5521 = vmatprep.subr.mxu0 0.0
  %5522 = vmatpush1.msra.mxu0 0.0
  %5523 = vmatprep.mubr.f32.mxu0 0.0
  %5524 = vmatmul.mubr.f32.gmra.mrb[0].mxu0 %v5454
  %v5525 = vpop.f32.mrb[0].mxu0
  %v5526 = vadd.f32 0.0, %v5525
  %v5527 = vpop.f32.mrb[0].mxu0
  %5528 = vmatprep.mubr.f32.mxu0 0.0
  %5529 = vmatmul.mubr.f32.gmra.mrb[0].mxu0 %v5457
  %v5530 = vpop.f32.mrb[0].mxu0
  %v5531 = vadd.f32 0.0, %v5530
  %v5532 = vpop.f32.mrb[0].mxu0
  %5533 = vdwg.mxu0
  %v5534 = vadd.f32 %v4385, %v5526
  %v5535 = vadd.f32 %v4386, %v5531
  %v5536 = vld [vmem:[%s21] sm:$0x1]
  %v5537 = vmul.f32 %v5534, %v5534
  %v5538 = vmul.f32 %v5535, %v5535
  %v5539 = vsel %vm333, %v5537, 0.0
  %5540 = vadd.xlane.f32.xlu0 %v5539
  %v5541 = vpop.xlane.xlu0 %5540
  %v5542 = vsel %vm333, %v5538, 0.0
  %5543 = vadd.xlane.f32.xlu0 %v5542
  %v5544 = vpop.xlane.xlu0 %5543
  %v5545 = vmul.f32 %v5541, %v344
  %v5546 = vmul.f32 %v5544, %v344
  %v5547 = vadd.f32 %v5545, 1e-06
  %v5548 = vadd.f32 %v5546, 1e-06
  %v5549 = vrsqrt.pop %v5547
  %v5550 = vrsqrt.pop %v5548
  %v5551 = vmul.f32 %v5534, %v5549
  %v5552 = vmul.f32 %v5535, %v5550
  %v5554 = vlaneseq
  %v5555 = vshrl.u32 %v5554, 7
  %v5556 = vsub.s32 0, %v5555
  %v5557 = vrot.slane %v5536, %v5556
  %v5559 = vmul.f32 %v5551, %v5557
  %v5560 = vmul.f32 %v5552, %v5557
  %v5561 = vld [vmem:[%s22] sm:$0xff]
  %v5562 = vld [vmem:[%s22 + $0x8] sm:$0xff]
  %v5563 = vld [vmem:[%s22 + $0x10] sm:$0xff]
  %v5564 = vld [vmem:[%s22 + $0x18] sm:$0xff]
  %v5566 = vsel %vm333, %v5559, 0
  %v5569 = vsel %vm333, %v5560, 0
  %5571 = vmatprep.subr.mxu0 0.0
  %5572 = vmatpush1.msra.mxu0 %v5561
  %5573 = vmatprep.subr.mxu0 0.0
  %5574 = vmatpush1.msra.mxu0 %v5562
  %5575 = vmatprep.subr.mxu0 0.0
  %5576 = vmatpush1.msra.mxu0 %v5563
  %5577 = vmatprep.subr.mxu0 0.0
  %5578 = vmatpush1.msra.mxu0 %v5564
  %5579 = vmatprep.subr.mxu0 0.0
  %5580 = vmatpush1.msra.mxu0 0.0
  %5581 = vmatprep.subr.mxu0 0.0
  %5582 = vmatpush1.msra.mxu0 0.0
  %5583 = vmatprep.subr.mxu0 0.0
  %5584 = vmatpush1.msra.mxu0 0.0
  %5585 = vmatprep.subr.mxu0 0.0
  %5586 = vmatpush1.msra.mxu0 0.0
  %5587 = vmatprep.subr.mxu0 0.0
  %5588 = vmatpush1.msra.mxu0 0.0
  %5589 = vmatprep.subr.mxu0 0.0
  %5590 = vmatpush1.msra.mxu0 0.0
  %5591 = vmatprep.subr.mxu0 0.0
  %5592 = vmatpush1.msra.mxu0 0.0
  %5593 = vmatprep.subr.mxu0 0.0
  %5594 = vmatpush1.msra.mxu0 0.0
  %5595 = vmatprep.subr.mxu0 0.0
  %5596 = vmatpush1.msra.mxu0 0.0
  %5597 = vmatprep.subr.mxu0 0.0
  %5598 = vmatpush1.msra.mxu0 0.0
  %5599 = vmatprep.subr.mxu0 0.0
  %5600 = vmatpush1.msra.mxu0 0.0
  %5601 = vmatprep.subr.mxu0 0.0
  %5602 = vmatpush1.msra.mxu0 0.0
  %5603 = vmatprep.subr.mxu0 0.0
  %5604 = vmatpush1.msra.mxu0 0.0
  %5605 = vmatprep.subr.mxu0 0.0
  %5606 = vmatpush1.msra.mxu0 0.0
  %5607 = vmatprep.subr.mxu0 0.0
  %5608 = vmatpush1.msra.mxu0 0.0
  %5609 = vmatprep.subr.mxu0 0.0
  %5610 = vmatpush1.msra.mxu0 0.0
  %5611 = vmatprep.subr.mxu0 0.0
  %5612 = vmatpush1.msra.mxu0 0.0
  %5613 = vmatprep.subr.mxu0 0.0
  %5614 = vmatpush1.msra.mxu0 0.0
  %5615 = vmatprep.subr.mxu0 0.0
  %5616 = vmatpush1.msra.mxu0 0.0
  %5617 = vmatprep.subr.mxu0 0.0
  %5618 = vmatpush1.msra.mxu0 0.0
  %5619 = vmatprep.subr.mxu0 0.0
  %5620 = vmatpush1.msra.mxu0 0.0
  %5621 = vmatprep.subr.mxu0 0.0
  %5622 = vmatpush1.msra.mxu0 0.0
  %5623 = vmatprep.subr.mxu0 0.0
  %5624 = vmatpush1.msra.mxu0 0.0
  %5625 = vmatprep.subr.mxu0 0.0
  %5626 = vmatpush1.msra.mxu0 0.0
  %5627 = vmatprep.subr.mxu0 0.0
  %5628 = vmatpush1.msra.mxu0 0.0
  %5629 = vmatprep.subr.mxu0 0.0
  %5630 = vmatpush1.msra.mxu0 0.0
  %5631 = vmatprep.subr.mxu0 0.0
  %5632 = vmatpush1.msra.mxu0 0.0
  %5633 = vmatprep.subr.mxu0 0.0
  %5634 = vmatpush1.msra.mxu0 0.0
  %5635 = vmatprep.mubr.f32.mxu0 0.0
  %5636 = vmatmul.mubr.f32.gmra.mrb[0].mxu0 %v5566
  %v5637 = vpop.f32.mrb[0].mxu0
  %v5638 = vadd.f32 0.0, %v5637
  %v5639 = vpop.f32.mrb[0].mxu0
  %5640 = vmatprep.mubr.f32.mxu0 0.0
  %5641 = vmatmul.mubr.f32.gmra.mrb[0].mxu0 %v5569
  %v5642 = vpop.f32.mrb[0].mxu0
  %v5643 = vadd.f32 0.0, %v5642
  %v5644 = vpop.f32.mrb[0].mxu0
  %5645 = vdwg.mxu0
  %v5646 = vmul.f32 %v5638, 0.5
  %v5647 = vmul.f32 %v5643, 0.5
  %v5648 = vmul.f32 %v5638, 0.044715
  %v5649 = vmul.f32 %v5643, 0.044715
  %v5650 = vmul.f32 %v5648, %v5638
  %v5651 = vmul.f32 %v5649, %v5643
  %v5652 = vmul.f32 %v5650, %v5638
  %v5653 = vmul.f32 %v5651, %v5643
  %v5654 = vadd.f32 %v5638, %v5652
  %v5655 = vadd.f32 %v5643, %v5653
  %v5656 = vmul.f32 %v5654, 0.7978846
  %v5657 = vmul.f32 %v5655, 0.7978846
  %v5658 = vtanh.pop %v5656
  %v5659 = vtanh.pop %v5657
  %v5660 = vadd.f32 %v5658, 1.0
  %v5661 = vadd.f32 %v5659, 1.0
  %v5662 = vmul.f32 %v5646, %v5660
  %v5663 = vmul.f32 %v5647, %v5661
  %5666 = vrot.lane.b32.xlu0 %v5638, 64
  %v5667 = vpop.permute.xlu0 %5666
  %5668 = vrot.lane.b32.xlu0 %v5643, 64
  %v5669 = vpop.permute.xlu0 %5668
  %v5672 = vmul.f32 %v5662, %v5667
  %v5673 = vmul.f32 %v5663, %v5669
  %v5674 = vld [vmem:[%s23] sm:$0xff]
  %v5675 = vld [vmem:[%s23 + $0x8] sm:$0xff]
  %v5676 = vld [vmem:[%s23 + $0x10] sm:$0xff]
  %v5677 = vld [vmem:[%s23 + $0x18] sm:$0xff]
  %v5678 = vld [vmem:[%s23 + $0x20] sm:$0xff]
  %v5679 = vld [vmem:[%s23 + $0x28] sm:$0xff]
  %v5680 = vld [vmem:[%s23 + $0x30] sm:$0xff]
  %v5681 = vld [vmem:[%s23 + $0x38] sm:$0xff]
  %v5683 = vsel %vm94, %v5672, 0
  %v5686 = vsel %vm94, %v5673, 0
  %5688 = vmatprep.subr.mxu0 0.0
  %5689 = vmatpush1.msra.mxu0 %v5674
  %5690 = vmatprep.subr.mxu0 0.0
  %5691 = vmatpush1.msra.mxu0 %v5675
  %5692 = vmatprep.subr.mxu0 0.0
  %5693 = vmatpush1.msra.mxu0 %v5676
  %5694 = vmatprep.subr.mxu0 0.0
  %5695 = vmatpush1.msra.mxu0 %v5677
  %5696 = vmatprep.subr.mxu0 0.0
  %5697 = vmatpush1.msra.mxu0 %v5678
  %5698 = vmatprep.subr.mxu0 0.0
  %5699 = vmatpush1.msra.mxu0 %v5679
  %5700 = vmatprep.subr.mxu0 0.0
  %5701 = vmatpush1.msra.mxu0 %v5680
  %5702 = vmatprep.subr.mxu0 0.0
  %5703 = vmatpush1.msra.mxu0 %v5681
  %5704 = vmatprep.subr.mxu0 0.0
  %5705 = vmatpush1.msra.mxu0 0.0
  %5706 = vmatprep.subr.mxu0 0.0
  %5707 = vmatpush1.msra.mxu0 0.0
  %5708 = vmatprep.subr.mxu0 0.0
  %5709 = vmatpush1.msra.mxu0 0.0
  %5710 = vmatprep.subr.mxu0 0.0
  %5711 = vmatpush1.msra.mxu0 0.0
  %5712 = vmatprep.subr.mxu0 0.0
  %5713 = vmatpush1.msra.mxu0 0.0
  %5714 = vmatprep.subr.mxu0 0.0
  %5715 = vmatpush1.msra.mxu0 0.0
  %5716 = vmatprep.subr.mxu0 0.0
  %5717 = vmatpush1.msra.mxu0 0.0
  %5718 = vmatprep.subr.mxu0 0.0
  %5719 = vmatpush1.msra.mxu0 0.0
  %5720 = vmatprep.subr.mxu0 0.0
  %5721 = vmatpush1.msra.mxu0 0.0
  %5722 = vmatprep.subr.mxu0 0.0
  %5723 = vmatpush1.msra.mxu0 0.0
  %5724 = vmatprep.subr.mxu0 0.0
  %5725 = vmatpush1.msra.mxu0 0.0
  %5726 = vmatprep.subr.mxu0 0.0
  %5727 = vmatpush1.msra.mxu0 0.0
  %5728 = vmatprep.subr.mxu0 0.0
  %5729 = vmatpush1.msra.mxu0 0.0
  %5730 = vmatprep.subr.mxu0 0.0
  %5731 = vmatpush1.msra.mxu0 0.0
  %5732 = vmatprep.subr.mxu0 0.0
  %5733 = vmatpush1.msra.mxu0 0.0
  %5734 = vmatprep.subr.mxu0 0.0
  %5735 = vmatpush1.msra.mxu0 0.0
  %5736 = vmatprep.subr.mxu0 0.0
  %5737 = vmatpush1.msra.mxu0 0.0
  %5738 = vmatprep.subr.mxu0 0.0
  %5739 = vmatpush1.msra.mxu0 0.0
  %5740 = vmatprep.subr.mxu0 0.0
  %5741 = vmatpush1.msra.mxu0 0.0
  %5742 = vmatprep.subr.mxu0 0.0
  %5743 = vmatpush1.msra.mxu0 0.0
  %5744 = vmatprep.subr.mxu0 0.0
  %5745 = vmatpush1.msra.mxu0 0.0
  %5746 = vmatprep.subr.mxu0 0.0
  %5747 = vmatpush1.msra.mxu0 0.0
  %5748 = vmatprep.subr.mxu0 0.0
  %5749 = vmatpush1.msra.mxu0 0.0
  %5750 = vmatprep.subr.mxu0 0.0
  %5751 = vmatpush1.msra.mxu0 0.0
  %5752 = vmatprep.mubr.f32.mxu0 0.0
  %5753 = vmatmul.mubr.f32.gmra.mrb[0].mxu0 %v5683
  %v5754 = vpop.f32.mrb[0].mxu0
  %v5755 = vadd.f32 0.0, %v5754
  %v5756 = vpop.f32.mrb[0].mxu0
  %5757 = vmatprep.mubr.f32.mxu0 0.0
  %5758 = vmatmul.mubr.f32.gmra.mrb[0].mxu0 %v5686
  %v5759 = vpop.f32.mrb[0].mxu0
  %v5760 = vadd.f32 0.0, %v5759
  %v5761 = vpop.f32.mrb[0].mxu0
  %5762 = vdwg.mxu0
  %v5763 = vadd.f32 %v5534, %v5755
  %v5764 = vadd.f32 %v5535, %v5760
  %s5765 = scalar_lea.vmem %s14, 1
  %v5766 = vld [vmem:[%s5765] sm:$0x1]
  %v5767 = vmul.f32 %v5763, %v5763
  %v5768 = vmul.f32 %v5764, %v5764
  %v5769 = vsel %vm333, %v5767, 0.0
  %5770 = vadd.xlane.f32.xlu0 %v5769
  %v5771 = vpop.xlane.xlu0 %5770
  %v5772 = vsel %vm333, %v5768, 0.0
  %5773 = vadd.xlane.f32.xlu0 %v5772
  %v5774 = vpop.xlane.xlu0 %5773
  %v5775 = vmul.f32 %v5771, %v344
  %v5776 = vmul.f32 %v5774, %v344
  %v5777 = vadd.f32 %v5775, 1e-06
  %v5778 = vadd.f32 %v5776, 1e-06
  %v5779 = vrsqrt.pop %v5777
  %v5780 = vrsqrt.pop %v5778
  %v5781 = vmul.f32 %v5763, %v5779
  %v5782 = vmul.f32 %v5764, %v5780
  %v5784 = vlaneseq
  %v5785 = vshrl.u32 %v5784, 7
  %v5786 = vsub.s32 0, %v5785
  %v5787 = vrot.slane %v5766, %v5786
  %v5789 = vmul.f32 %v5781, %v5787
  %v5790 = vmul.f32 %v5782, %v5787
  %s5791 = scalar_lea.vmem %s15, 32
  %v5792 = vld [vmem:[%s5791] sm:$0xff]
  %v5793 = vld [vmem:[%s5791 + $0x8] sm:$0xff]
  %v5794 = vld [vmem:[%s5791 + $0x10] sm:$0xff]
  %v5795 = vld [vmem:[%s5791 + $0x18] sm:$0xff]
  %v5797 = vsel %vm333, %v5789, 0
  %v5800 = vsel %vm333, %v5790, 0
  %5802 = vmatprep.subr.mxu0 0.0
  %5803 = vmatpush1.msra.mxu0 %v5792
  %5804 = vmatprep.subr.mxu0 0.0
  %5805 = vmatpush1.msra.mxu0 %v5793
  %5806 = vmatprep.subr.mxu0 0.0
  %5807 = vmatpush1.msra.mxu0 %v5794
  %5808 = vmatprep.subr.mxu0 0.0
  %5809 = vmatpush1.msra.mxu0 %v5795
  %5810 = vmatprep.subr.mxu0 0.0
  %5811 = vmatpush1.msra.mxu0 0.0
  %5812 = vmatprep.subr.mxu0 0.0
  %5813 = vmatpush1.msra.mxu0 0.0
  %5814 = vmatprep.subr.mxu0 0.0
  %5815 = vmatpush1.msra.mxu0 0.0
  %5816 = vmatprep.subr.mxu0 0.0
  %5817 = vmatpush1.msra.mxu0 0.0
  %5818 = vmatprep.subr.mxu0 0.0
  %5819 = vmatpush1.msra.mxu0 0.0
  %5820 = vmatprep.subr.mxu0 0.0
  %5821 = vmatpush1.msra.mxu0 0.0
  %5822 = vmatprep.subr.mxu0 0.0
  %5823 = vmatpush1.msra.mxu0 0.0
  %5824 = vmatprep.subr.mxu0 0.0
  %5825 = vmatpush1.msra.mxu0 0.0
  %5826 = vmatprep.subr.mxu0 0.0
  %5827 = vmatpush1.msra.mxu0 0.0
  %5828 = vmatprep.subr.mxu0 0.0
  %5829 = vmatpush1.msra.mxu0 0.0
  %5830 = vmatprep.subr.mxu0 0.0
  %5831 = vmatpush1.msra.mxu0 0.0
  %5832 = vmatprep.subr.mxu0 0.0
  %5833 = vmatpush1.msra.mxu0 0.0
  %5834 = vmatprep.subr.mxu0 0.0
  %5835 = vmatpush1.msra.mxu0 0.0
  %5836 = vmatprep.subr.mxu0 0.0
  %5837 = vmatpush1.msra.mxu0 0.0
  %5838 = vmatprep.subr.mxu0 0.0
  %5839 = vmatpush1.msra.mxu0 0.0
  %5840 = vmatprep.subr.mxu0 0.0
  %5841 = vmatpush1.msra.mxu0 0.0
  %5842 = vmatprep.subr.mxu0 0.0
  %5843 = vmatpush1.msra.mxu0 0.0
  %5844 = vmatprep.subr.mxu0 0.0
  %5845 = vmatpush1.msra.mxu0 0.0
  %5846 = vmatprep.subr.mxu0 0.0
  %5847 = vmatpush1.msra.mxu0 0.0
  %5848 = vmatprep.subr.mxu0 0.0
  %5849 = vmatpush1.msra.mxu0 0.0
  %5850 = vmatprep.subr.mxu0 0.0
  %5851 = vmatpush1.msra.mxu0 0.0
  %5852 = vmatprep.subr.mxu0 0.0
  %5853 = vmatpush1.msra.mxu0 0.0
  %5854 = vmatprep.subr.mxu0 0.0
  %5855 = vmatpush1.msra.mxu0 0.0
  %5856 = vmatprep.subr.mxu0 0.0
  %5857 = vmatpush1.msra.mxu0 0.0
  %5858 = vmatprep.subr.mxu0 0.0
  %5859 = vmatpush1.msra.mxu0 0.0
  %5860 = vmatprep.subr.mxu0 0.0
  %5861 = vmatpush1.msra.mxu0 0.0
  %5862 = vmatprep.subr.mxu0 0.0
  %5863 = vmatpush1.msra.mxu0 0.0
  %5864 = vmatprep.subr.mxu0 0.0
  %5865 = vmatpush1.msra.mxu0 0.0
  %5866 = vmatprep.mubr.f32.mxu0 0.0
  %5867 = vmatmul.mubr.f32.gmra.mrb[0].mxu0 %v5797
  %v5868 = vpop.f32.mrb[0].mxu0
  %v5869 = vadd.f32 0.0, %v5868
  %v5870 = vpop.f32.mrb[0].mxu0
  %5871 = vmatprep.mubr.f32.mxu0 0.0
  %5872 = vmatmul.mubr.f32.gmra.mrb[0].mxu0 %v5800
  %v5873 = vpop.f32.mrb[0].mxu0
  %v5874 = vadd.f32 0.0, %v5873
  %v5875 = vpop.f32.mrb[0].mxu0
  %5876 = vdwg.mxu0
  %5879 = vrot.lane.b32.xlu0 %v5869, 96
  %v5880 = vpop.permute.xlu0 %5879
  %5881 = vrot.lane.b32.xlu0 %v5874, 96
  %v5882 = vpop.permute.xlu0 %5881
  %v5883 = vsel %vm471, %v5869, 0
  %v5885 = vsel %vm471, %v5874, 0
  %v5887 = vsel %vm471, %v5880, 0
  %v5889 = vsel %vm471, %v5882, 0
  %5891 = vmatprep.subr.mxu0 0.0
  %5892 = vmatpush1.xpose.msra.mxu0 %v5887
  %5893 = vmatprep.subr.mxu0 0.0
  %5894 = vmatpush1.xpose.msra.mxu0 %v5889
  %5895 = vmatprep.subr.mxu0 0.0
  %5896 = vmatpush1.xpose.msra.mxu0 0.0
  %5897 = vmatprep.subr.mxu0 0.0
  %5898 = vmatpush1.xpose.msra.mxu0 0.0
  %5899 = vmatprep.subr.mxu0 0.0
  %5900 = vmatpush1.xpose.msra.mxu0 0.0
  %5901 = vmatprep.subr.mxu0 0.0
  %5902 = vmatpush1.xpose.msra.mxu0 0.0
  %5903 = vmatprep.subr.mxu0 0.0
  %5904 = vmatpush1.xpose.msra.mxu0 0.0
  %5905 = vmatprep.subr.mxu0 0.0
  %5906 = vmatpush1.xpose.msra.mxu0 0.0
  %5907 = vmatprep.subr.mxu0 0.0
  %5908 = vmatpush1.xpose.msra.mxu0 0.0
  %5909 = vmatprep.subr.mxu0 0.0
  %5910 = vmatpush1.xpose.msra.mxu0 0.0
  %5911 = vmatprep.subr.mxu0 0.0
  %5912 = vmatpush1.xpose.msra.mxu0 0.0
  %5913 = vmatprep.subr.mxu0 0.0
  %5914 = vmatpush1.xpose.msra.mxu0 0.0
  %5915 = vmatprep.subr.mxu0 0.0
  %5916 = vmatpush1.xpose.msra.mxu0 0.0
  %5917 = vmatprep.subr.mxu0 0.0
  %5918 = vmatpush1.xpose.msra.mxu0 0.0
  %5919 = vmatprep.subr.mxu0 0.0
  %5920 = vmatpush1.xpose.msra.mxu0 0.0
  %5921 = vmatprep.subr.mxu0 0.0
  %5922 = vmatpush1.xpose.msra.mxu0 0.0
  %5923 = vmatprep.subr.mxu0 0.0
  %5924 = vmatpush1.xpose.msra.mxu0 0.0
  %5925 = vmatprep.subr.mxu0 0.0
  %5926 = vmatpush1.xpose.msra.mxu0 0.0
  %5927 = vmatprep.subr.mxu0 0.0
  %5928 = vmatpush1.xpose.msra.mxu0 0.0
  %5929 = vmatprep.subr.mxu0 0.0
  %5930 = vmatpush1.xpose.msra.mxu0 0.0
  %5931 = vmatprep.subr.mxu0 0.0
  %5932 = vmatpush1.xpose.msra.mxu0 0.0
  %5933 = vmatprep.subr.mxu0 0.0
  %5934 = vmatpush1.xpose.msra.mxu0 0.0
  %5935 = vmatprep.subr.mxu0 0.0
  %5936 = vmatpush1.xpose.msra.mxu0 0.0
  %5937 = vmatprep.subr.mxu0 0.0
  %5938 = vmatpush1.xpose.msra.mxu0 0.0
  %5939 = vmatprep.subr.mxu0 0.0
  %5940 = vmatpush1.xpose.msra.mxu0 0.0
  %5941 = vmatprep.subr.mxu0 0.0
  %5942 = vmatpush1.xpose.msra.mxu0 0.0
  %5943 = vmatprep.subr.mxu0 0.0
  %5944 = vmatpush1.xpose.msra.mxu0 0.0
  %5945 = vmatprep.subr.mxu0 0.0
  %5946 = vmatpush1.xpose.msra.mxu0 0.0
  %5947 = vmatprep.subr.mxu0 0.0
  %5948 = vmatpush1.xpose.msra.mxu0 0.0
  %5949 = vmatprep.subr.mxu0 0.0
  %5950 = vmatpush1.xpose.msra.mxu0 0.0
  %5951 = vmatprep.subr.mxu0 0.0
  %5952 = vmatpush1.xpose.msra.mxu0 0.0
  %5953 = vmatprep.subr.mxu0 0.0
  %5954 = vmatpush1.xpose.msra.mxu0 0.0
  %5955 = vmatprep.mubr.f32.mxu0 0.0
  %5956 = vmatmul.mubr.f32.gmra.mrb[0].mxu0 %v5883
  %v5957 = vpop.f32.mrb[0].mxu0
  %v5958 = vadd.f32 %v3461, %v5957
  %v5959 = vpop.f32.mrb[0].mxu0
  %5960 = vmatprep.mubr.f32.mxu0 0.0
  %5961 = vmatmul.mubr.f32.gmra.mrb[0].mxu0 %v5885
  %v5962 = vpop.f32.mrb[0].mxu0
  %v5963 = vadd.f32 %v3462, %v5962
  %v5964 = vpop.f32.mrb[0].mxu0
  %5965 = vdwg.mxu0
  %v5966 = vsel %vm1458, %v5958, -inf
  %5967 = vmax.xlane.f32.xlu0 %v5966
  %v5968 = vpop.xlane.xlu0 %5967
  %v5969 = vsel %vm1458, %v5963, -inf
  %5970 = vmax.xlane.f32.xlu0 %v5969
  %v5971 = vpop.xlane.xlu0 %5970
  %v5972 = vsub.f32 %v5958, %v5968
  %v5973 = vsub.f32 %v5963, %v5971
  %v5974 = vmul.f32 %v5972, 1.442695
  %v5975 = vpow.pop %v5974
  %v5976 = vmul.f32 %v5973, 1.442695
  %v5977 = vpow.pop %v5976
  %v5978 = vsel %vm1458, %v5975, 0.0
  %5979 = vadd.xlane.f32.xlu0 %v5978
  %v5980 = vpop.xlane.xlu0 %5979
  %v5981 = vsel %vm1458, %v5977, 0.0
  %5982 = vadd.xlane.f32.xlu0 %v5981
  %v5983 = vpop.xlane.xlu0 %5982
  %v5984 = vrcp.pop %v5980
  %v5985 = vrcp.pop %v5983
  %v5986 = vmul.f32 %v5975, %v5984
  %v5987 = vmul.f32 %v5977, %v5985
  %5988 = vrot.lane.b32.xlu0 %v5869, 64
  %v5989 = vpop.permute.xlu0 %5988
  %5990 = vrot.lane.b32.xlu0 %v5874, 64
  %v5991 = vpop.permute.xlu0 %5990
  %v5995 = vsel %vm1458, %v5986, 0
  %v5998 = vsel %vm1458, %v5987, 0
  %6000 = vmatprep.subr.mxu0 0.0
  %6001 = vmatpush1.msra.mxu0 %v5989
  %6002 = vmatprep.subr.mxu0 0.0
  %6003 = vmatpush1.msra.mxu0 %v5991
  %6004 = vmatprep.subr.mxu0 0.0
  %6005 = vmatpush1.msra.mxu0 0.0
  %6006 = vmatprep.subr.mxu0 0.0
  %6007 = vmatpush1.msra.mxu0 0.0
  %6008 = vmatprep.subr.mxu0 0.0
  %6009 = vmatpush1.msra.mxu0 0.0
  %6010 = vmatprep.subr.mxu0 0.0
  %6011 = vmatpush1.msra.mxu0 0.0
  %6012 = vmatprep.subr.mxu0 0.0
  %6013 = vmatpush1.msra.mxu0 0.0
  %6014 = vmatprep.subr.mxu0 0.0
  %6015 = vmatpush1.msra.mxu0 0.0
  %6016 = vmatprep.subr.mxu0 0.0
  %6017 = vmatpush1.msra.mxu0 0.0
  %6018 = vmatprep.subr.mxu0 0.0
  %6019 = vmatpush1.msra.mxu0 0.0
  %6020 = vmatprep.subr.mxu0 0.0
  %6021 = vmatpush1.msra.mxu0 0.0
  %6022 = vmatprep.subr.mxu0 0.0
  %6023 = vmatpush1.msra.mxu0 0.0
  %6024 = vmatprep.subr.mxu0 0.0
  %6025 = vmatpush1.msra.mxu0 0.0
  %6026 = vmatprep.subr.mxu0 0.0
  %6027 = vmatpush1.msra.mxu0 0.0
  %6028 = vmatprep.subr.mxu0 0.0
  %6029 = vmatpush1.msra.mxu0 0.0
  %6030 = vmatprep.subr.mxu0 0.0
  %6031 = vmatpush1.msra.mxu0 0.0
  %6032 = vmatprep.subr.mxu0 0.0
  %6033 = vmatpush1.msra.mxu0 0.0
  %6034 = vmatprep.subr.mxu0 0.0
  %6035 = vmatpush1.msra.mxu0 0.0
  %6036 = vmatprep.subr.mxu0 0.0
  %6037 = vmatpush1.msra.mxu0 0.0
  %6038 = vmatprep.subr.mxu0 0.0
  %6039 = vmatpush1.msra.mxu0 0.0
  %6040 = vmatprep.subr.mxu0 0.0
  %6041 = vmatpush1.msra.mxu0 0.0
  %6042 = vmatprep.subr.mxu0 0.0
  %6043 = vmatpush1.msra.mxu0 0.0
  %6044 = vmatprep.subr.mxu0 0.0
  %6045 = vmatpush1.msra.mxu0 0.0
  %6046 = vmatprep.subr.mxu0 0.0
  %6047 = vmatpush1.msra.mxu0 0.0
  %6048 = vmatprep.subr.mxu0 0.0
  %6049 = vmatpush1.msra.mxu0 0.0
  %6050 = vmatprep.subr.mxu0 0.0
  %6051 = vmatpush1.msra.mxu0 0.0
  %6052 = vmatprep.subr.mxu0 0.0
  %6053 = vmatpush1.msra.mxu0 0.0
  %6054 = vmatprep.subr.mxu0 0.0
  %6055 = vmatpush1.msra.mxu0 0.0
  %6056 = vmatprep.subr.mxu0 0.0
  %6057 = vmatpush1.msra.mxu0 0.0
  %6058 = vmatprep.subr.mxu0 0.0
  %6059 = vmatpush1.msra.mxu0 0.0
  %6060 = vmatprep.subr.mxu0 0.0
  %6061 = vmatpush1.msra.mxu0 0.0
  %6062 = vmatprep.subr.mxu0 0.0
  %6063 = vmatpush1.msra.mxu0 0.0
  %6064 = vmatprep.mubr.f32.mxu0 0.0
  %6065 = vmatmul.mubr.f32.gmra.mrb[0].mxu0 %v5995
  %v6066 = vpop.f32.mrb[0].mxu0
  %v6067 = vadd.f32 0.0, %v6066
  %v6068 = vpop.f32.mrb[0].mxu0
  %6069 = vmatprep.mubr.f32.mxu0 0.0
  %6070 = vmatmul.mubr.f32.gmra.mrb[0].mxu0 %v5998
  %v6071 = vpop.f32.mrb[0].mxu0
  %v6072 = vadd.f32 0.0, %v6071
  %v6073 = vpop.f32.mrb[0].mxu0
  %6074 = vdwg.mxu0
  %6075 = vrot.lane.b32.xlu0 %v5869, 120
  %v6076 = vpop.permute.xlu0 %6075
  %6077 = vrot.lane.b32.xlu0 %v5874, 120
  %v6078 = vpop.permute.xlu0 %6077
  %6079 = vrot.lane.b32.xlu0 %v5869, 88
  %v6080 = vpop.permute.xlu0 %6079
  %6081 = vrot.lane.b32.xlu0 %v5874, 88
  %v6082 = vpop.permute.xlu0 %6081
  %v6083 = vsel %vm471, %v6076, 0
  %v6085 = vsel %vm471, %v6078, 0
  %v6087 = vsel %vm471, %v6080, 0
  %v6089 = vsel %vm471, %v6082, 0
  %6091 = vmatprep.subr.mxu0 0.0
  %6092 = vmatpush1.xpose.msra.mxu0 %v6087
  %6093 = vmatprep.subr.mxu0 0.0
  %6094 = vmatpush1.xpose.msra.mxu0 %v6089
  %6095 = vmatprep.subr.mxu0 0.0
  %6096 = vmatpush1.xpose.msra.mxu0 0.0
  %6097 = vmatprep.subr.mxu0 0.0
  %6098 = vmatpush1.xpose.msra.mxu0 0.0
  %6099 = vmatprep.subr.mxu0 0.0
  %6100 = vmatpush1.xpose.msra.mxu0 0.0
  %6101 = vmatprep.subr.mxu0 0.0
  %6102 = vmatpush1.xpose.msra.mxu0 0.0
  %6103 = vmatprep.subr.mxu0 0.0
  %6104 = vmatpush1.xpose.msra.mxu0 0.0
  %6105 = vmatprep.subr.mxu0 0.0
  %6106 = vmatpush1.xpose.msra.mxu0 0.0
  %6107 = vmatprep.subr.mxu0 0.0
  %6108 = vmatpush1.xpose.msra.mxu0 0.0
  %6109 = vmatprep.subr.mxu0 0.0
  %6110 = vmatpush1.xpose.msra.mxu0 0.0
  %6111 = vmatprep.subr.mxu0 0.0
  %6112 = vmatpush1.xpose.msra.mxu0 0.0
  %6113 = vmatprep.subr.mxu0 0.0
  %6114 = vmatpush1.xpose.msra.mxu0 0.0
  %6115 = vmatprep.subr.mxu0 0.0
  %6116 = vmatpush1.xpose.msra.mxu0 0.0
  %6117 = vmatprep.subr.mxu0 0.0
  %6118 = vmatpush1.xpose.msra.mxu0 0.0
  %6119 = vmatprep.subr.mxu0 0.0
  %6120 = vmatpush1.xpose.msra.mxu0 0.0
  %6121 = vmatprep.subr.mxu0 0.0
  %6122 = vmatpush1.xpose.msra.mxu0 0.0
  %6123 = vmatprep.subr.mxu0 0.0
  %6124 = vmatpush1.xpose.msra.mxu0 0.0
  %6125 = vmatprep.subr.mxu0 0.0
  %6126 = vmatpush1.xpose.msra.mxu0 0.0
  %6127 = vmatprep.subr.mxu0 0.0
  %6128 = vmatpush1.xpose.msra.mxu0 0.0
  %6129 = vmatprep.subr.mxu0 0.0
  %6130 = vmatpush1.xpose.msra.mxu0 0.0
  %6131 = vmatprep.subr.mxu0 0.0
  %6132 = vmatpush1.xpose.msra.mxu0 0.0
  %6133 = vmatprep.subr.mxu0 0.0
  %6134 = vmatpush1.xpose.msra.mxu0 0.0
  %6135 = vmatprep.subr.mxu0 0.0
  %6136 = vmatpush1.xpose.msra.mxu0 0.0
  %6137 = vmatprep.subr.mxu0 0.0
  %6138 = vmatpush1.xpose.msra.mxu0 0.0
  %6139 = vmatprep.subr.mxu0 0.0
  %6140 = vmatpush1.xpose.msra.mxu0 0.0
  %6141 = vmatprep.subr.mxu0 0.0
  %6142 = vmatpush1.xpose.msra.mxu0 0.0
  %6143 = vmatprep.subr.mxu0 0.0
  %6144 = vmatpush1.xpose.msra.mxu0 0.0
  %6145 = vmatprep.subr.mxu0 0.0
  %6146 = vmatpush1.xpose.msra.mxu0 0.0
  %6147 = vmatprep.subr.mxu0 0.0
  %6148 = vmatpush1.xpose.msra.mxu0 0.0
  %6149 = vmatprep.subr.mxu0 0.0
  %6150 = vmatpush1.xpose.msra.mxu0 0.0
  %6151 = vmatprep.subr.mxu0 0.0
  %6152 = vmatpush1.xpose.msra.mxu0 0.0
  %6153 = vmatprep.subr.mxu0 0.0
  %6154 = vmatpush1.xpose.msra.mxu0 0.0
  %6155 = vmatprep.mubr.f32.mxu0 0.0
  %6156 = vmatmul.mubr.f32.gmra.mrb[0].mxu0 %v6083
  %v6157 = vpop.f32.mrb[0].mxu0
  %v6158 = vadd.f32 %v3662, %v6157
  %v6159 = vpop.f32.mrb[0].mxu0
  %6160 = vmatprep.mubr.f32.mxu0 0.0
  %6161 = vmatmul.mubr.f32.gmra.mrb[0].mxu0 %v6085
  %v6162 = vpop.f32.mrb[0].mxu0
  %v6163 = vadd.f32 %v3663, %v6162
  %v6164 = vpop.f32.mrb[0].mxu0
  %6165 = vdwg.mxu0
  %v6166 = vsel %vm1458, %v6158, -inf
  %6167 = vmax.xlane.f32.xlu0 %v6166
  %v6168 = vpop.xlane.xlu0 %6167
  %v6169 = vsel %vm1458, %v6163, -inf
  %6170 = vmax.xlane.f32.xlu0 %v6169
  %v6171 = vpop.xlane.xlu0 %6170
  %v6172 = vsub.f32 %v6158, %v6168
  %v6173 = vsub.f32 %v6163, %v6171
  %v6174 = vmul.f32 %v6172, 1.442695
  %v6175 = vpow.pop %v6174
  %v6176 = vmul.f32 %v6173, 1.442695
  %v6177 = vpow.pop %v6176
  %v6178 = vsel %vm1458, %v6175, 0.0
  %6179 = vadd.xlane.f32.xlu0 %v6178
  %v6180 = vpop.xlane.xlu0 %6179
  %v6181 = vsel %vm1458, %v6177, 0.0
  %6182 = vadd.xlane.f32.xlu0 %v6181
  %v6183 = vpop.xlane.xlu0 %6182
  %v6184 = vrcp.pop %v6180
  %v6185 = vrcp.pop %v6183
  %v6186 = vmul.f32 %v6175, %v6184
  %v6187 = vmul.f32 %v6177, %v6185
  %6188 = vrot.lane.b32.xlu0 %v5869, 56
  %v6189 = vpop.permute.xlu0 %6188
  %6190 = vrot.lane.b32.xlu0 %v5874, 56
  %v6191 = vpop.permute.xlu0 %6190
  %v6195 = vsel %vm1458, %v6186, 0
  %v6198 = vsel %vm1458, %v6187, 0
  %6200 = vmatprep.subr.mxu0 0.0
  %6201 = vmatpush1.msra.mxu0 %v6189
  %6202 = vmatprep.subr.mxu0 0.0
  %6203 = vmatpush1.msra.mxu0 %v6191
  %6204 = vmatprep.subr.mxu0 0.0
  %6205 = vmatpush1.msra.mxu0 0.0
  %6206 = vmatprep.subr.mxu0 0.0
  %6207 = vmatpush1.msra.mxu0 0.0
  %6208 = vmatprep.subr.mxu0 0.0
  %6209 = vmatpush1.msra.mxu0 0.0
  %6210 = vmatprep.subr.mxu0 0.0
  %6211 = vmatpush1.msra.mxu0 0.0
  %6212 = vmatprep.subr.mxu0 0.0
  %6213 = vmatpush1.msra.mxu0 0.0
  %6214 = vmatprep.subr.mxu0 0.0
  %6215 = vmatpush1.msra.mxu0 0.0
  %6216 = vmatprep.subr.mxu0 0.0
  %6217 = vmatpush1.msra.mxu0 0.0
  %6218 = vmatprep.subr.mxu0 0.0
  %6219 = vmatpush1.msra.mxu0 0.0
  %6220 = vmatprep.subr.mxu0 0.0
  %6221 = vmatpush1.msra.mxu0 0.0
  %6222 = vmatprep.subr.mxu0 0.0
  %6223 = vmatpush1.msra.mxu0 0.0
  %6224 = vmatprep.subr.mxu0 0.0
  %6225 = vmatpush1.msra.mxu0 0.0
  %6226 = vmatprep.subr.mxu0 0.0
  %6227 = vmatpush1.msra.mxu0 0.0
  %6228 = vmatprep.subr.mxu0 0.0
  %6229 = vmatpush1.msra.mxu0 0.0
  %6230 = vmatprep.subr.mxu0 0.0
  %6231 = vmatpush1.msra.mxu0 0.0
  %6232 = vmatprep.subr.mxu0 0.0
  %6233 = vmatpush1.msra.mxu0 0.0
  %6234 = vmatprep.subr.mxu0 0.0
  %6235 = vmatpush1.msra.mxu0 0.0
  %6236 = vmatprep.subr.mxu0 0.0
  %6237 = vmatpush1.msra.mxu0 0.0
  %6238 = vmatprep.subr.mxu0 0.0
  %6239 = vmatpush1.msra.mxu0 0.0
  %6240 = vmatprep.subr.mxu0 0.0
  %6241 = vmatpush1.msra.mxu0 0.0
  %6242 = vmatprep.subr.mxu0 0.0
  %6243 = vmatpush1.msra.mxu0 0.0
  %6244 = vmatprep.subr.mxu0 0.0
  %6245 = vmatpush1.msra.mxu0 0.0
  %6246 = vmatprep.subr.mxu0 0.0
  %6247 = vmatpush1.msra.mxu0 0.0
  %6248 = vmatprep.subr.mxu0 0.0
  %6249 = vmatpush1.msra.mxu0 0.0
  %6250 = vmatprep.subr.mxu0 0.0
  %6251 = vmatpush1.msra.mxu0 0.0
  %6252 = vmatprep.subr.mxu0 0.0
  %6253 = vmatpush1.msra.mxu0 0.0
  %6254 = vmatprep.subr.mxu0 0.0
  %6255 = vmatpush1.msra.mxu0 0.0
  %6256 = vmatprep.subr.mxu0 0.0
  %6257 = vmatpush1.msra.mxu0 0.0
  %6258 = vmatprep.subr.mxu0 0.0
  %6259 = vmatpush1.msra.mxu0 0.0
  %6260 = vmatprep.subr.mxu0 0.0
  %6261 = vmatpush1.msra.mxu0 0.0
  %6262 = vmatprep.subr.mxu0 0.0
  %6263 = vmatpush1.msra.mxu0 0.0
  %6264 = vmatprep.mubr.f32.mxu0 0.0
  %6265 = vmatmul.mubr.f32.gmra.mrb[0].mxu0 %v6195
  %v6266 = vpop.f32.mrb[0].mxu0
  %v6267 = vadd.f32 0.0, %v6266
  %v6268 = vpop.f32.mrb[0].mxu0
  %6269 = vmatprep.mubr.f32.mxu0 0.0
  %6270 = vmatmul.mubr.f32.gmra.mrb[0].mxu0 %v6198
  %v6271 = vpop.f32.mrb[0].mxu0
  %v6272 = vadd.f32 0.0, %v6271
  %v6273 = vpop.f32.mrb[0].mxu0
  %6274 = vdwg.mxu0
  %6275 = vrot.lane.b32.xlu0 %v5869, 112
  %v6276 = vpop.permute.xlu0 %6275
  %6277 = vrot.lane.b32.xlu0 %v5874, 112
  %v6278 = vpop.permute.xlu0 %6277
  %6279 = vrot.lane.b32.xlu0 %v5869, 80
  %v6280 = vpop.permute.xlu0 %6279
  %6281 = vrot.lane.b32.xlu0 %v5874, 80
  %v6282 = vpop.permute.xlu0 %6281
  %v6283 = vsel %vm471, %v6276, 0
  %v6285 = vsel %vm471, %v6278, 0
  %v6287 = vsel %vm471, %v6280, 0
  %v6289 = vsel %vm471, %v6282, 0
  %6291 = vmatprep.subr.mxu0 0.0
  %6292 = vmatpush1.xpose.msra.mxu0 %v6287
  %6293 = vmatprep.subr.mxu0 0.0
  %6294 = vmatpush1.xpose.msra.mxu0 %v6289
  %6295 = vmatprep.subr.mxu0 0.0
  %6296 = vmatpush1.xpose.msra.mxu0 0.0
  %6297 = vmatprep.subr.mxu0 0.0
  %6298 = vmatpush1.xpose.msra.mxu0 0.0
  %6299 = vmatprep.subr.mxu0 0.0
  %6300 = vmatpush1.xpose.msra.mxu0 0.0
  %6301 = vmatprep.subr.mxu0 0.0
  %6302 = vmatpush1.xpose.msra.mxu0 0.0
  %6303 = vmatprep.subr.mxu0 0.0
  %6304 = vmatpush1.xpose.msra.mxu0 0.0
  %6305 = vmatprep.subr.mxu0 0.0
  %6306 = vmatpush1.xpose.msra.mxu0 0.0
  %6307 = vmatprep.subr.mxu0 0.0
  %6308 = vmatpush1.xpose.msra.mxu0 0.0
  %6309 = vmatprep.subr.mxu0 0.0
  %6310 = vmatpush1.xpose.msra.mxu0 0.0
  %6311 = vmatprep.subr.mxu0 0.0
  %6312 = vmatpush1.xpose.msra.mxu0 0.0
  %6313 = vmatprep.subr.mxu0 0.0
  %6314 = vmatpush1.xpose.msra.mxu0 0.0
  %6315 = vmatprep.subr.mxu0 0.0
  %6316 = vmatpush1.xpose.msra.mxu0 0.0
  %6317 = vmatprep.subr.mxu0 0.0
  %6318 = vmatpush1.xpose.msra.mxu0 0.0
  %6319 = vmatprep.subr.mxu0 0.0
  %6320 = vmatpush1.xpose.msra.mxu0 0.0
  %6321 = vmatprep.subr.mxu0 0.0
  %6322 = vmatpush1.xpose.msra.mxu0 0.0
  %6323 = vmatprep.subr.mxu0 0.0
  %6324 = vmatpush1.xpose.msra.mxu0 0.0
  %6325 = vmatprep.subr.mxu0 0.0
  %6326 = vmatpush1.xpose.msra.mxu0 0.0
  %6327 = vmatprep.subr.mxu0 0.0
  %6328 = vmatpush1.xpose.msra.mxu0 0.0
  %6329 = vmatprep.subr.mxu0 0.0
  %6330 = vmatpush1.xpose.msra.mxu0 0.0
  %6331 = vmatprep.subr.mxu0 0.0
  %6332 = vmatpush1.xpose.msra.mxu0 0.0
  %6333 = vmatprep.subr.mxu0 0.0
  %6334 = vmatpush1.xpose.msra.mxu0 0.0
  %6335 = vmatprep.subr.mxu0 0.0
  %6336 = vmatpush1.xpose.msra.mxu0 0.0
  %6337 = vmatprep.subr.mxu0 0.0
  %6338 = vmatpush1.xpose.msra.mxu0 0.0
  %6339 = vmatprep.subr.mxu0 0.0
  %6340 = vmatpush1.xpose.msra.mxu0 0.0
  %6341 = vmatprep.subr.mxu0 0.0
  %6342 = vmatpush1.xpose.msra.mxu0 0.0
  %6343 = vmatprep.subr.mxu0 0.0
  %6344 = vmatpush1.xpose.msra.mxu0 0.0
  %6345 = vmatprep.subr.mxu0 0.0
  %6346 = vmatpush1.xpose.msra.mxu0 0.0
  %6347 = vmatprep.subr.mxu0 0.0
  %6348 = vmatpush1.xpose.msra.mxu0 0.0
  %6349 = vmatprep.subr.mxu0 0.0
  %6350 = vmatpush1.xpose.msra.mxu0 0.0
  %6351 = vmatprep.subr.mxu0 0.0
  %6352 = vmatpush1.xpose.msra.mxu0 0.0
  %6353 = vmatprep.subr.mxu0 0.0
  %6354 = vmatpush1.xpose.msra.mxu0 0.0
  %6355 = vmatprep.mubr.f32.mxu0 0.0
  %6356 = vmatmul.mubr.f32.gmra.mrb[0].mxu0 %v6283
  %v6357 = vpop.f32.mrb[0].mxu0
  %v6358 = vadd.f32 %v3865, %v6357
  %v6359 = vpop.f32.mrb[0].mxu0
  %6360 = vmatprep.mubr.f32.mxu0 0.0
  %6361 = vmatmul.mubr.f32.gmra.mrb[0].mxu0 %v6285
  %v6362 = vpop.f32.mrb[0].mxu0
  %v6363 = vadd.f32 %v3866, %v6362
  %v6364 = vpop.f32.mrb[0].mxu0
  %6365 = vdwg.mxu0
  %v6366 = vsel %vm1458, %v6358, -inf
  %6367 = vmax.xlane.f32.xlu0 %v6366
  %v6368 = vpop.xlane.xlu0 %6367
  %v6369 = vsel %vm1458, %v6363, -inf
  %6370 = vmax.xlane.f32.xlu0 %v6369
  %v6371 = vpop.xlane.xlu0 %6370
  %v6372 = vsub.f32 %v6358, %v6368
  %v6373 = vsub.f32 %v6363, %v6371
  %v6374 = vmul.f32 %v6372, 1.442695
  %v6375 = vpow.pop %v6374
  %v6376 = vmul.f32 %v6373, 1.442695
  %v6377 = vpow.pop %v6376
  %v6378 = vsel %vm1458, %v6375, 0.0
  %6379 = vadd.xlane.f32.xlu0 %v6378
  %v6380 = vpop.xlane.xlu0 %6379
  %v6381 = vsel %vm1458, %v6377, 0.0
  %6382 = vadd.xlane.f32.xlu0 %v6381
  %v6383 = vpop.xlane.xlu0 %6382
  %v6384 = vrcp.pop %v6380
  %v6385 = vrcp.pop %v6383
  %v6386 = vmul.f32 %v6375, %v6384
  %v6387 = vmul.f32 %v6377, %v6385
  %6388 = vrot.lane.b32.xlu0 %v5869, 48
  %v6389 = vpop.permute.xlu0 %6388
  %6390 = vrot.lane.b32.xlu0 %v5874, 48
  %v6391 = vpop.permute.xlu0 %6390
  %v6395 = vsel %vm1458, %v6386, 0
  %v6398 = vsel %vm1458, %v6387, 0
  %6400 = vmatprep.subr.mxu0 0.0
  %6401 = vmatpush1.msra.mxu0 %v6389
  %6402 = vmatprep.subr.mxu0 0.0
  %6403 = vmatpush1.msra.mxu0 %v6391
  %6404 = vmatprep.subr.mxu0 0.0
  %6405 = vmatpush1.msra.mxu0 0.0
  %6406 = vmatprep.subr.mxu0 0.0
  %6407 = vmatpush1.msra.mxu0 0.0
  %6408 = vmatprep.subr.mxu0 0.0
  %6409 = vmatpush1.msra.mxu0 0.0
  %6410 = vmatprep.subr.mxu0 0.0
  %6411 = vmatpush1.msra.mxu0 0.0
  %6412 = vmatprep.subr.mxu0 0.0
  %6413 = vmatpush1.msra.mxu0 0.0
  %6414 = vmatprep.subr.mxu0 0.0
  %6415 = vmatpush1.msra.mxu0 0.0
  %6416 = vmatprep.subr.mxu0 0.0
  %6417 = vmatpush1.msra.mxu0 0.0
  %6418 = vmatprep.subr.mxu0 0.0
  %6419 = vmatpush1.msra.mxu0 0.0
  %6420 = vmatprep.subr.mxu0 0.0
  %6421 = vmatpush1.msra.mxu0 0.0
  %6422 = vmatprep.subr.mxu0 0.0
  %6423 = vmatpush1.msra.mxu0 0.0
  %6424 = vmatprep.subr.mxu0 0.0
  %6425 = vmatpush1.msra.mxu0 0.0
  %6426 = vmatprep.subr.mxu0 0.0
  %6427 = vmatpush1.msra.mxu0 0.0
  %6428 = vmatprep.subr.mxu0 0.0
  %6429 = vmatpush1.msra.mxu0 0.0
  %6430 = vmatprep.subr.mxu0 0.0
  %6431 = vmatpush1.msra.mxu0 0.0
  %6432 = vmatprep.subr.mxu0 0.0
  %6433 = vmatpush1.msra.mxu0 0.0
  %6434 = vmatprep.subr.mxu0 0.0
  %6435 = vmatpush1.msra.mxu0 0.0
  %6436 = vmatprep.subr.mxu0 0.0
  %6437 = vmatpush1.msra.mxu0 0.0
  %6438 = vmatprep.subr.mxu0 0.0
  %6439 = vmatpush1.msra.mxu0 0.0
  %6440 = vmatprep.subr.mxu0 0.0
  %6441 = vmatpush1.msra.mxu0 0.0
  %6442 = vmatprep.subr.mxu0 0.0
  %6443 = vmatpush1.msra.mxu0 0.0
  %6444 = vmatprep.subr.mxu0 0.0
  %6445 = vmatpush1.msra.mxu0 0.0
  %6446 = vmatprep.subr.mxu0 0.0
  %6447 = vmatpush1.msra.mxu0 0.0
  %6448 = vmatprep.subr.mxu0 0.0
  %6449 = vmatpush1.msra.mxu0 0.0
  %6450 = vmatprep.subr.mxu0 0.0
  %6451 = vmatpush1.msra.mxu0 0.0
  %6452 = vmatprep.subr.mxu0 0.0
  %6453 = vmatpush1.msra.mxu0 0.0
  %6454 = vmatprep.subr.mxu0 0.0
  %6455 = vmatpush1.msra.mxu0 0.0
  %6456 = vmatprep.subr.mxu0 0.0
  %6457 = vmatpush1.msra.mxu0 0.0
  %6458 = vmatprep.subr.mxu0 0.0
  %6459 = vmatpush1.msra.mxu0 0.0
  %6460 = vmatprep.subr.mxu0 0.0
  %6461 = vmatpush1.msra.mxu0 0.0
  %6462 = vmatprep.subr.mxu0 0.0
  %6463 = vmatpush1.msra.mxu0 0.0
  %6464 = vmatprep.mubr.f32.mxu0 0.0
  %6465 = vmatmul.mubr.f32.gmra.mrb[0].mxu0 %v6395
  %v6466 = vpop.f32.mrb[0].mxu0
  %v6467 = vadd.f32 0.0, %v6466
  %v6468 = vpop.f32.mrb[0].mxu0
  %6469 = vmatprep.mubr.f32.mxu0 0.0
  %6470 = vmatmul.mubr.f32.gmra.mrb[0].mxu0 %v6398
  %v6471 = vpop.f32.mrb[0].mxu0
  %v6472 = vadd.f32 0.0, %v6471
  %v6473 = vpop.f32.mrb[0].mxu0
  %6474 = vdwg.mxu0
  %6475 = vrot.lane.b32.xlu0 %v5869, 104
  %v6476 = vpop.permute.xlu0 %6475
  %6477 = vrot.lane.b32.xlu0 %v5874, 104
  %v6478 = vpop.permute.xlu0 %6477
  %6479 = vrot.lane.b32.xlu0 %v5869, 72
  %v6480 = vpop.permute.xlu0 %6479
  %6481 = vrot.lane.b32.xlu0 %v5874, 72
  %v6482 = vpop.permute.xlu0 %6481
  %v6483 = vsel %vm471, %v6476, 0
  %v6485 = vsel %vm471, %v6478, 0
  %v6487 = vsel %vm471, %v6480, 0
  %v6489 = vsel %vm471, %v6482, 0
  %6491 = vmatprep.subr.mxu0 0.0
  %6492 = vmatpush1.xpose.msra.mxu0 %v6487
  %6493 = vmatprep.subr.mxu0 0.0
  %6494 = vmatpush1.xpose.msra.mxu0 %v6489
  %6495 = vmatprep.subr.mxu0 0.0
  %6496 = vmatpush1.xpose.msra.mxu0 0.0
  %6497 = vmatprep.subr.mxu0 0.0
  %6498 = vmatpush1.xpose.msra.mxu0 0.0
  %6499 = vmatprep.subr.mxu0 0.0
  %6500 = vmatpush1.xpose.msra.mxu0 0.0
  %6501 = vmatprep.subr.mxu0 0.0
  %6502 = vmatpush1.xpose.msra.mxu0 0.0
  %6503 = vmatprep.subr.mxu0 0.0
  %6504 = vmatpush1.xpose.msra.mxu0 0.0
  %6505 = vmatprep.subr.mxu0 0.0
  %6506 = vmatpush1.xpose.msra.mxu0 0.0
  %6507 = vmatprep.subr.mxu0 0.0
  %6508 = vmatpush1.xpose.msra.mxu0 0.0
  %6509 = vmatprep.subr.mxu0 0.0
  %6510 = vmatpush1.xpose.msra.mxu0 0.0
  %6511 = vmatprep.subr.mxu0 0.0
  %6512 = vmatpush1.xpose.msra.mxu0 0.0
  %6513 = vmatprep.subr.mxu0 0.0
  %6514 = vmatpush1.xpose.msra.mxu0 0.0
  %6515 = vmatprep.subr.mxu0 0.0
  %6516 = vmatpush1.xpose.msra.mxu0 0.0
  %6517 = vmatprep.subr.mxu0 0.0
  %6518 = vmatpush1.xpose.msra.mxu0 0.0
  %6519 = vmatprep.subr.mxu0 0.0
  %6520 = vmatpush1.xpose.msra.mxu0 0.0
  %6521 = vmatprep.subr.mxu0 0.0
  %6522 = vmatpush1.xpose.msra.mxu0 0.0
  %6523 = vmatprep.subr.mxu0 0.0
  %6524 = vmatpush1.xpose.msra.mxu0 0.0
  %6525 = vmatprep.subr.mxu0 0.0
  %6526 = vmatpush1.xpose.msra.mxu0 0.0
  %6527 = vmatprep.subr.mxu0 0.0
  %6528 = vmatpush1.xpose.msra.mxu0 0.0
  %6529 = vmatprep.subr.mxu0 0.0
  %6530 = vmatpush1.xpose.msra.mxu0 0.0
  %6531 = vmatprep.subr.mxu0 0.0
  %6532 = vmatpush1.xpose.msra.mxu0 0.0
  %6533 = vmatprep.subr.mxu0 0.0
  %6534 = vmatpush1.xpose.msra.mxu0 0.0
  %6535 = vmatprep.subr.mxu0 0.0
  %6536 = vmatpush1.xpose.msra.mxu0 0.0
  %6537 = vmatprep.subr.mxu0 0.0
  %6538 = vmatpush1.xpose.msra.mxu0 0.0
  %6539 = vmatprep.subr.mxu0 0.0
  %6540 = vmatpush1.xpose.msra.mxu0 0.0
  %6541 = vmatprep.subr.mxu0 0.0
  %6542 = vmatpush1.xpose.msra.mxu0 0.0
  %6543 = vmatprep.subr.mxu0 0.0
  %6544 = vmatpush1.xpose.msra.mxu0 0.0
  %6545 = vmatprep.subr.mxu0 0.0
  %6546 = vmatpush1.xpose.msra.mxu0 0.0
  %6547 = vmatprep.subr.mxu0 0.0
  %6548 = vmatpush1.xpose.msra.mxu0 0.0
  %6549 = vmatprep.subr.mxu0 0.0
  %6550 = vmatpush1.xpose.msra.mxu0 0.0
  %6551 = vmatprep.subr.mxu0 0.0
  %6552 = vmatpush1.xpose.msra.mxu0 0.0
  %6553 = vmatprep.subr.mxu0 0.0
  %6554 = vmatpush1.xpose.msra.mxu0 0.0
  %6555 = vmatprep.mubr.f32.mxu0 0.0
  %6556 = vmatmul.mubr.f32.gmra.mrb[0].mxu0 %v6483
  %v6557 = vpop.f32.mrb[0].mxu0
  %v6558 = vadd.f32 %v4068, %v6557
  %v6559 = vpop.f32.mrb[0].mxu0
  %6560 = vmatprep.mubr.f32.mxu0 0.0
  %6561 = vmatmul.mubr.f32.gmra.mrb[0].mxu0 %v6485
  %v6562 = vpop.f32.mrb[0].mxu0
  %v6563 = vadd.f32 %v4069, %v6562
  %v6564 = vpop.f32.mrb[0].mxu0
  %6565 = vdwg.mxu0
  %v6566 = vsel %vm1458, %v6558, -inf
  %6567 = vmax.xlane.f32.xlu0 %v6566
  %v6568 = vpop.xlane.xlu0 %6567
  %v6569 = vsel %vm1458, %v6563, -inf
  %6570 = vmax.xlane.f32.xlu0 %v6569
  %v6571 = vpop.xlane.xlu0 %6570
  %v6572 = vsub.f32 %v6558, %v6568
  %v6573 = vsub.f32 %v6563, %v6571
  %v6574 = vmul.f32 %v6572, 1.442695
  %v6575 = vpow.pop %v6574
  %v6576 = vmul.f32 %v6573, 1.442695
  %v6577 = vpow.pop %v6576
  %v6578 = vsel %vm1458, %v6575, 0.0
  %6579 = vadd.xlane.f32.xlu0 %v6578
  %v6580 = vpop.xlane.xlu0 %6579
  %v6581 = vsel %vm1458, %v6577, 0.0
  %6582 = vadd.xlane.f32.xlu0 %v6581
  %v6583 = vpop.xlane.xlu0 %6582
  %v6584 = vrcp.pop %v6580
  %v6585 = vrcp.pop %v6583
  %v6586 = vmul.f32 %v6575, %v6584
  %v6587 = vmul.f32 %v6577, %v6585
  %6588 = vrot.lane.b32.xlu0 %v5869, 40
  %v6589 = vpop.permute.xlu0 %6588
  %6590 = vrot.lane.b32.xlu0 %v5874, 40
  %v6591 = vpop.permute.xlu0 %6590
  %v6595 = vsel %vm1458, %v6586, 0
  %v6598 = vsel %vm1458, %v6587, 0
  %6600 = vmatprep.subr.mxu0 0.0
  %6601 = vmatpush1.msra.mxu0 %v6589
  %6602 = vmatprep.subr.mxu0 0.0
  %6603 = vmatpush1.msra.mxu0 %v6591
  %6604 = vmatprep.subr.mxu0 0.0
  %6605 = vmatpush1.msra.mxu0 0.0
  %6606 = vmatprep.subr.mxu0 0.0
  %6607 = vmatpush1.msra.mxu0 0.0
  %6608 = vmatprep.subr.mxu0 0.0
  %6609 = vmatpush1.msra.mxu0 0.0
  %6610 = vmatprep.subr.mxu0 0.0
  %6611 = vmatpush1.msra.mxu0 0.0
  %6612 = vmatprep.subr.mxu0 0.0
  %6613 = vmatpush1.msra.mxu0 0.0
  %6614 = vmatprep.subr.mxu0 0.0
  %6615 = vmatpush1.msra.mxu0 0.0
  %6616 = vmatprep.subr.mxu0 0.0
  %6617 = vmatpush1.msra.mxu0 0.0
  %6618 = vmatprep.subr.mxu0 0.0
  %6619 = vmatpush1.msra.mxu0 0.0
  %6620 = vmatprep.subr.mxu0 0.0
  %6621 = vmatpush1.msra.mxu0 0.0
  %6622 = vmatprep.subr.mxu0 0.0
  %6623 = vmatpush1.msra.mxu0 0.0
  %6624 = vmatprep.subr.mxu0 0.0
  %6625 = vmatpush1.msra.mxu0 0.0
  %6626 = vmatprep.subr.mxu0 0.0
  %6627 = vmatpush1.msra.mxu0 0.0
  %6628 = vmatprep.subr.mxu0 0.0
  %6629 = vmatpush1.msra.mxu0 0.0
  %6630 = vmatprep.subr.mxu0 0.0
  %6631 = vmatpush1.msra.mxu0 0.0
  %6632 = vmatprep.subr.mxu0 0.0
  %6633 = vmatpush1.msra.mxu0 0.0
  %6634 = vmatprep.subr.mxu0 0.0
  %6635 = vmatpush1.msra.mxu0 0.0
  %6636 = vmatprep.subr.mxu0 0.0
  %6637 = vmatpush1.msra.mxu0 0.0
  %6638 = vmatprep.subr.mxu0 0.0
  %6639 = vmatpush1.msra.mxu0 0.0
  %6640 = vmatprep.subr.mxu0 0.0
  %6641 = vmatpush1.msra.mxu0 0.0
  %6642 = vmatprep.subr.mxu0 0.0
  %6643 = vmatpush1.msra.mxu0 0.0
  %6644 = vmatprep.subr.mxu0 0.0
  %6645 = vmatpush1.msra.mxu0 0.0
  %6646 = vmatprep.subr.mxu0 0.0
  %6647 = vmatpush1.msra.mxu0 0.0
  %6648 = vmatprep.subr.mxu0 0.0
  %6649 = vmatpush1.msra.mxu0 0.0
  %6650 = vmatprep.subr.mxu0 0.0
  %6651 = vmatpush1.msra.mxu0 0.0
  %6652 = vmatprep.subr.mxu0 0.0
  %6653 = vmatpush1.msra.mxu0 0.0
  %6654 = vmatprep.subr.mxu0 0.0
  %6655 = vmatpush1.msra.mxu0 0.0
  %6656 = vmatprep.subr.mxu0 0.0
  %6657 = vmatpush1.msra.mxu0 0.0
  %6658 = vmatprep.subr.mxu0 0.0
  %6659 = vmatpush1.msra.mxu0 0.0
  %6660 = vmatprep.subr.mxu0 0.0
  %6661 = vmatpush1.msra.mxu0 0.0
  %6662 = vmatprep.subr.mxu0 0.0
  %6663 = vmatpush1.msra.mxu0 0.0
  %6664 = vmatprep.mubr.f32.mxu0 0.0
  %6665 = vmatmul.mubr.f32.gmra.mrb[0].mxu0 %v6595
  %v6666 = vpop.f32.mrb[0].mxu0
  %v6667 = vadd.f32 0.0, %v6666
  %v6668 = vpop.f32.mrb[0].mxu0
  %6669 = vmatprep.mubr.f32.mxu0 0.0
  %6670 = vmatmul.mubr.f32.gmra.mrb[0].mxu0 %v6598
  %v6671 = vpop.f32.mrb[0].mxu0
  %v6672 = vadd.f32 0.0, %v6671
  %v6673 = vpop.f32.mrb[0].mxu0
  %6674 = vdwg.mxu0
  %6677 = vrot.lane.b32.xlu0 %v6267, 8
  %v6678 = vpop.permute.xlu0 %6677
  %6679 = vrot.lane.b32.xlu0 %v6272, 8
  %v6680 = vpop.permute.xlu0 %6679
  %6685 = vrot.lane.b32.xlu0 %v6467, 16
  %v6686 = vpop.permute.xlu0 %6685
  %6687 = vrot.lane.b32.xlu0 %v6472, 16
  %v6688 = vpop.permute.xlu0 %6687
  %6693 = vrot.lane.b32.xlu0 %v6667, 24
  %v6694 = vpop.permute.xlu0 %6693
  %6695 = vrot.lane.b32.xlu0 %v6672, 24
  %v6696 = vpop.permute.xlu0 %6695
  %v6699 = vsel %vm471, %v6067, %v6678
  %v6700 = vsel %vm471, %v6072, %v6680
  %v6701 = vsel %vm1458, %v6699, %v6686
  %v6702 = vsel %vm1458, %v6700, %v6688
  %v6703 = vsel %vm1462, %v6701, %v6694
  %v6704 = vsel %vm1462, %v6702, %v6696
  %s6705 = scalar_lea.vmem %s16, 32
  %v6706 = vld [vmem:[%s6705] sm:$0xff]
  %v6707 = vld [vmem:[%s6705 + $0x8] sm:$0xff]
  %v6708 = vld [vmem:[%s6705 + $0x10] sm:$0xff]
  %v6709 = vld [vmem:[%s6705 + $0x18] sm:$0xff]
  %v6711 = vsel %vm333, %v6703, 0
  %v6714 = vsel %vm333, %v6704, 0
  %6716 = vmatprep.subr.mxu0 0.0
  %6717 = vmatpush1.msra.mxu0 %v6706
  %6718 = vmatprep.subr.mxu0 0.0
  %6719 = vmatpush1.msra.mxu0 %v6707
  %6720 = vmatprep.subr.mxu0 0.0
  %6721 = vmatpush1.msra.mxu0 %v6708
  %6722 = vmatprep.subr.mxu0 0.0
  %6723 = vmatpush1.msra.mxu0 %v6709
  %6724 = vmatprep.subr.mxu0 0.0
  %6725 = vmatpush1.msra.mxu0 0.0
  %6726 = vmatprep.subr.mxu0 0.0
  %6727 = vmatpush1.msra.mxu0 0.0
  %6728 = vmatprep.subr.mxu0 0.0
  %6729 = vmatpush1.msra.mxu0 0.0
  %6730 = vmatprep.subr.mxu0 0.0
  %6731 = vmatpush1.msra.mxu0 0.0
  %6732 = vmatprep.subr.mxu0 0.0
  %6733 = vmatpush1.msra.mxu0 0.0
  %6734 = vmatprep.subr.mxu0 0.0
  %6735 = vmatpush1.msra.mxu0 0.0
  %6736 = vmatprep.subr.mxu0 0.0
  %6737 = vmatpush1.msra.mxu0 0.0
  %6738 = vmatprep.subr.mxu0 0.0
  %6739 = vmatpush1.msra.mxu0 0.0
  %6740 = vmatprep.subr.mxu0 0.0
  %6741 = vmatpush1.msra.mxu0 0.0
  %6742 = vmatprep.subr.mxu0 0.0
  %6743 = vmatpush1.msra.mxu0 0.0
  %6744 = vmatprep.subr.mxu0 0.0
  %6745 = vmatpush1.msra.mxu0 0.0
  %6746 = vmatprep.subr.mxu0 0.0
  %6747 = vmatpush1.msra.mxu0 0.0
  %6748 = vmatprep.subr.mxu0 0.0
  %6749 = vmatpush1.msra.mxu0 0.0
  %6750 = vmatprep.subr.mxu0 0.0
  %6751 = vmatpush1.msra.mxu0 0.0
  %6752 = vmatprep.subr.mxu0 0.0
  %6753 = vmatpush1.msra.mxu0 0.0
  %6754 = vmatprep.subr.mxu0 0.0
  %6755 = vmatpush1.msra.mxu0 0.0
  %6756 = vmatprep.subr.mxu0 0.0
  %6757 = vmatpush1.msra.mxu0 0.0
  %6758 = vmatprep.subr.mxu0 0.0
  %6759 = vmatpush1.msra.mxu0 0.0
  %6760 = vmatprep.subr.mxu0 0.0
  %6761 = vmatpush1.msra.mxu0 0.0
  %6762 = vmatprep.subr.mxu0 0.0
  %6763 = vmatpush1.msra.mxu0 0.0
  %6764 = vmatprep.subr.mxu0 0.0
  %6765 = vmatpush1.msra.mxu0 0.0
  %6766 = vmatprep.subr.mxu0 0.0
  %6767 = vmatpush1.msra.mxu0 0.0
  %6768 = vmatprep.subr.mxu0 0.0
  %6769 = vmatpush1.msra.mxu0 0.0
  %6770 = vmatprep.subr.mxu0 0.0
  %6771 = vmatpush1.msra.mxu0 0.0
  %6772 = vmatprep.subr.mxu0 0.0
  %6773 = vmatpush1.msra.mxu0 0.0
  %6774 = vmatprep.subr.mxu0 0.0
  %6775 = vmatpush1.msra.mxu0 0.0
  %6776 = vmatprep.subr.mxu0 0.0
  %6777 = vmatpush1.msra.mxu0 0.0
  %6778 = vmatprep.subr.mxu0 0.0
  %6779 = vmatpush1.msra.mxu0 0.0
  %6780 = vmatprep.mubr.f32.mxu0 0.0
  %6781 = vmatmul.mubr.f32.gmra.mrb[0].mxu0 %v6711
  %v6782 = vpop.f32.mrb[0].mxu0
  %v6783 = vadd.f32 0.0, %v6782
  %v6784 = vpop.f32.mrb[0].mxu0
  %6785 = vmatprep.mubr.f32.mxu0 0.0
  %6786 = vmatmul.mubr.f32.gmra.mrb[0].mxu0 %v6714
  %v6787 = vpop.f32.mrb[0].mxu0
  %v6788 = vadd.f32 0.0, %v6787
  %v6789 = vpop.f32.mrb[0].mxu0
  %6790 = vdwg.mxu0
  %v6791 = vadd.f32 %v5763, %v6783
  %v6792 = vadd.f32 %v5764, %v6788
  %s6793 = scalar_lea.vmem %s17, 1
  %v6794 = vld [vmem:[%s6793] sm:$0x1]
  %v6795 = vmul.f32 %v6791, %v6791
  %v6796 = vmul.f32 %v6792, %v6792
  %v6797 = vsel %vm333, %v6795, 0.0
  %6798 = vadd.xlane.f32.xlu0 %v6797
  %v6799 = vpop.xlane.xlu0 %6798
  %v6800 = vsel %vm333, %v6796, 0.0
  %6801 = vadd.xlane.f32.xlu0 %v6800
  %v6802 = vpop.xlane.xlu0 %6801
  %v6803 = vmul.f32 %v6799, %v344
  %v6804 = vmul.f32 %v6802, %v344
  %v6805 = vadd.f32 %v6803, 1e-06
  %v6806 = vadd.f32 %v6804, 1e-06
  %v6807 = vrsqrt.pop %v6805
  %v6808 = vrsqrt.pop %v6806
  %v6809 = vmul.f32 %v6791, %v6807
  %v6810 = vmul.f32 %v6792, %v6808
  %v6812 = vlaneseq
  %v6813 = vshrl.u32 %v6812, 7
  %v6814 = vsub.s32 0, %v6813
  %v6815 = vrot.slane %v6794, %v6814
  %v6817 = vmul.f32 %v6809, %v6815
  %v6818 = vmul.f32 %v6810, %v6815
  %s6819 = scalar_lea.vmem %s18, 32
  %v6820 = vld [vmem:[%s6819] sm:$0xff]
  %v6821 = vld [vmem:[%s6819 + $0x8] sm:$0xff]
  %v6822 = vld [vmem:[%s6819 + $0x10] sm:$0xff]
  %v6823 = vld [vmem:[%s6819 + $0x18] sm:$0xff]
  %v6825 = vsel %vm333, %v6817, 0
  %v6828 = vsel %vm333, %v6818, 0
  %6830 = vmatprep.subr.mxu0 0.0
  %6831 = vmatpush1.msra.mxu0 %v6820
  %6832 = vmatprep.subr.mxu0 0.0
  %6833 = vmatpush1.msra.mxu0 %v6821
  %6834 = vmatprep.subr.mxu0 0.0
  %6835 = vmatpush1.msra.mxu0 %v6822
  %6836 = vmatprep.subr.mxu0 0.0
  %6837 = vmatpush1.msra.mxu0 %v6823
  %6838 = vmatprep.subr.mxu0 0.0
  %6839 = vmatpush1.msra.mxu0 0.0
  %6840 = vmatprep.subr.mxu0 0.0
  %6841 = vmatpush1.msra.mxu0 0.0
  %6842 = vmatprep.subr.mxu0 0.0
  %6843 = vmatpush1.msra.mxu0 0.0
  %6844 = vmatprep.subr.mxu0 0.0
  %6845 = vmatpush1.msra.mxu0 0.0
  %6846 = vmatprep.subr.mxu0 0.0
  %6847 = vmatpush1.msra.mxu0 0.0
  %6848 = vmatprep.subr.mxu0 0.0
  %6849 = vmatpush1.msra.mxu0 0.0
  %6850 = vmatprep.subr.mxu0 0.0
  %6851 = vmatpush1.msra.mxu0 0.0
  %6852 = vmatprep.subr.mxu0 0.0
  %6853 = vmatpush1.msra.mxu0 0.0
  %6854 = vmatprep.subr.mxu0 0.0
  %6855 = vmatpush1.msra.mxu0 0.0
  %6856 = vmatprep.subr.mxu0 0.0
  %6857 = vmatpush1.msra.mxu0 0.0
  %6858 = vmatprep.subr.mxu0 0.0
  %6859 = vmatpush1.msra.mxu0 0.0
  %6860 = vmatprep.subr.mxu0 0.0
  %6861 = vmatpush1.msra.mxu0 0.0
  %6862 = vmatprep.subr.mxu0 0.0
  %6863 = vmatpush1.msra.mxu0 0.0
  %6864 = vmatprep.subr.mxu0 0.0
  %6865 = vmatpush1.msra.mxu0 0.0
  %6866 = vmatprep.subr.mxu0 0.0
  %6867 = vmatpush1.msra.mxu0 0.0
  %6868 = vmatprep.subr.mxu0 0.0
  %6869 = vmatpush1.msra.mxu0 0.0
  %6870 = vmatprep.subr.mxu0 0.0
  %6871 = vmatpush1.msra.mxu0 0.0
  %6872 = vmatprep.subr.mxu0 0.0
  %6873 = vmatpush1.msra.mxu0 0.0
  %6874 = vmatprep.subr.mxu0 0.0
  %6875 = vmatpush1.msra.mxu0 0.0
  %6876 = vmatprep.subr.mxu0 0.0
  %6877 = vmatpush1.msra.mxu0 0.0
  %6878 = vmatprep.subr.mxu0 0.0
  %6879 = vmatpush1.msra.mxu0 0.0
  %6880 = vmatprep.subr.mxu0 0.0
  %6881 = vmatpush1.msra.mxu0 0.0
  %6882 = vmatprep.subr.mxu0 0.0
  %6883 = vmatpush1.msra.mxu0 0.0
  %6884 = vmatprep.subr.mxu0 0.0
  %6885 = vmatpush1.msra.mxu0 0.0
  %6886 = vmatprep.subr.mxu0 0.0
  %6887 = vmatpush1.msra.mxu0 0.0
  %6888 = vmatprep.subr.mxu0 0.0
  %6889 = vmatpush1.msra.mxu0 0.0
  %6890 = vmatprep.subr.mxu0 0.0
  %6891 = vmatpush1.msra.mxu0 0.0
  %6892 = vmatprep.subr.mxu0 0.0
  %6893 = vmatpush1.msra.mxu0 0.0
  %6894 = vmatprep.mubr.f32.mxu0 0.0
  %6895 = vmatmul.mubr.f32.gmra.mrb[0].mxu0 %v6825
  %v6896 = vpop.f32.mrb[0].mxu0
  %v6897 = vadd.f32 0.0, %v6896
  %v6898 = vpop.f32.mrb[0].mxu0
  %6899 = vmatprep.mubr.f32.mxu0 0.0
  %6900 = vmatmul.mubr.f32.gmra.mrb[0].mxu0 %v6828
  %v6901 = vpop.f32.mrb[0].mxu0
  %v6902 = vadd.f32 0.0, %v6901
  %v6903 = vpop.f32.mrb[0].mxu0
  %6904 = vdwg.mxu0
  %s6905 = scalar_lea.vmem %s19, 32
  %v6906 = vld [vmem:[%s6905] sm:$0xff]
  %v6907 = vld [vmem:[%s6905 + $0x8] sm:$0xff]
  %v6908 = vld [vmem:[%s6905 + $0x10] sm:$0xff]
  %v6909 = vld [vmem:[%s6905 + $0x18] sm:$0xff]
  %6910 = vmatprep.subr.mxu0 0.0
  %6911 = vmatpush1.msra.mxu0 %v6906
  %6912 = vmatprep.subr.mxu0 0.0
  %6913 = vmatpush1.msra.mxu0 %v6907
  %6914 = vmatprep.subr.mxu0 0.0
  %6915 = vmatpush1.msra.mxu0 %v6908
  %6916 = vmatprep.subr.mxu0 0.0
  %6917 = vmatpush1.msra.mxu0 %v6909
  %6918 = vmatprep.subr.mxu0 0.0
  %6919 = vmatpush1.msra.mxu0 0.0
  %6920 = vmatprep.subr.mxu0 0.0
  %6921 = vmatpush1.msra.mxu0 0.0
  %6922 = vmatprep.subr.mxu0 0.0
  %6923 = vmatpush1.msra.mxu0 0.0
  %6924 = vmatprep.subr.mxu0 0.0
  %6925 = vmatpush1.msra.mxu0 0.0
  %6926 = vmatprep.subr.mxu0 0.0
  %6927 = vmatpush1.msra.mxu0 0.0
  %6928 = vmatprep.subr.mxu0 0.0
  %6929 = vmatpush1.msra.mxu0 0.0
  %6930 = vmatprep.subr.mxu0 0.0
  %6931 = vmatpush1.msra.mxu0 0.0
  %6932 = vmatprep.subr.mxu0 0.0
  %6933 = vmatpush1.msra.mxu0 0.0
  %6934 = vmatprep.subr.mxu0 0.0
  %6935 = vmatpush1.msra.mxu0 0.0
  %6936 = vmatprep.subr.mxu0 0.0
  %6937 = vmatpush1.msra.mxu0 0.0
  %6938 = vmatprep.subr.mxu0 0.0
  %6939 = vmatpush1.msra.mxu0 0.0
  %6940 = vmatprep.subr.mxu0 0.0
  %6941 = vmatpush1.msra.mxu0 0.0
  %6942 = vmatprep.subr.mxu0 0.0
  %6943 = vmatpush1.msra.mxu0 0.0
  %6944 = vmatprep.subr.mxu0 0.0
  %6945 = vmatpush1.msra.mxu0 0.0
  %6946 = vmatprep.subr.mxu0 0.0
  %6947 = vmatpush1.msra.mxu0 0.0
  %6948 = vmatprep.subr.mxu0 0.0
  %6949 = vmatpush1.msra.mxu0 0.0
  %6950 = vmatprep.subr.mxu0 0.0
  %6951 = vmatpush1.msra.mxu0 0.0
  %6952 = vmatprep.subr.mxu0 0.0
  %6953 = vmatpush1.msra.mxu0 0.0
  %6954 = vmatprep.subr.mxu0 0.0
  %6955 = vmatpush1.msra.mxu0 0.0
  %6956 = vmatprep.subr.mxu0 0.0
  %6957 = vmatpush1.msra.mxu0 0.0
  %6958 = vmatprep.subr.mxu0 0.0
  %6959 = vmatpush1.msra.mxu0 0.0
  %6960 = vmatprep.subr.mxu0 0.0
  %6961 = vmatpush1.msra.mxu0 0.0
  %6962 = vmatprep.subr.mxu0 0.0
  %6963 = vmatpush1.msra.mxu0 0.0
  %6964 = vmatprep.subr.mxu0 0.0
  %6965 = vmatpush1.msra.mxu0 0.0
  %6966 = vmatprep.subr.mxu0 0.0
  %6967 = vmatpush1.msra.mxu0 0.0
  %6968 = vmatprep.subr.mxu0 0.0
  %6969 = vmatpush1.msra.mxu0 0.0
  %6970 = vmatprep.subr.mxu0 0.0
  %6971 = vmatpush1.msra.mxu0 0.0
  %6972 = vmatprep.subr.mxu0 0.0
  %6973 = vmatpush1.msra.mxu0 0.0
  %6974 = vmatprep.mubr.f32.mxu0 0.0
  %6975 = vmatmul.mubr.f32.gmra.mrb[0].mxu0 %v4502
  %v6976 = vpop.f32.mrb[0].mxu0
  %v6977 = vadd.f32 0.0, %v6976
  %v6978 = vpop.f32.mrb[0].mxu0
  %6979 = vmatprep.mubr.f32.mxu0 0.0
  %6980 = vmatmul.mubr.f32.gmra.mrb[0].mxu0 %v4505
  %v6981 = vpop.f32.mrb[0].mxu0
  %v6982 = vadd.f32 0.0, %v6981
  %v6983 = vpop.f32.mrb[0].mxu0
  %6984 = vmatprep.mubr.f32.mxu0 0.0
  %6985 = vmatmul.mubr.f32.gmra.mrb[0].mxu0 %v4508
  %v6986 = vpop.f32.mrb[0].mxu0
  %v6987 = vadd.f32 0.0, %v6986
  %v6988 = vpop.f32.mrb[0].mxu0
  %6989 = vdwg.mxu0
  %v6991 = vsel %vm471, %v6897, 0
  %v6994 = vsel %vm471, %v6902, 0
  %v6997 = vsel %vm471, %v6977, 0
  %v7000 = vsel %vm471, %v6982, 0
  %v7003 = vsel %vm471, %v6987, 0
  %7005 = vmatprep.subr.mxu0 0.0
  %7006 = vmatpush1.xpose.msra.mxu0 %v6997
  %7007 = vmatprep.subr.mxu0 0.0
  %7008 = vmatpush1.xpose.msra.mxu0 %v7000
  %7009 = vmatprep.subr.mxu0 0.0
  %7010 = vmatpush1.xpose.msra.mxu0 %v7003
  %7011 = vmatprep.subr.mxu0 0.0
  %7012 = vmatpush1.xpose.msra.mxu0 0.0
  %7013 = vmatprep.subr.mxu0 0.0
  %7014 = vmatpush1.xpose.msra.mxu0 0.0
  %7015 = vmatprep.subr.mxu0 0.0
  %7016 = vmatpush1.xpose.msra.mxu0 0.0
  %7017 = vmatprep.subr.mxu0 0.0
  %7018 = vmatpush1.xpose.msra.mxu0 0.0
  %7019 = vmatprep.subr.mxu0 0.0
  %7020 = vmatpush1.xpose.msra.mxu0 0.0
  %7021 = vmatprep.subr.mxu0 0.0
  %7022 = vmatpush1.xpose.msra.mxu0 0.0
  %7023 = vmatprep.subr.mxu0 0.0
  %7024 = vmatpush1.xpose.msra.mxu0 0.0
  %7025 = vmatprep.subr.mxu0 0.0
  %7026 = vmatpush1.xpose.msra.mxu0 0.0
  %7027 = vmatprep.subr.mxu0 0.0
  %7028 = vmatpush1.xpose.msra.mxu0 0.0
  %7029 = vmatprep.subr.mxu0 0.0
  %7030 = vmatpush1.xpose.msra.mxu0 0.0
  %7031 = vmatprep.subr.mxu0 0.0
  %7032 = vmatpush1.xpose.msra.mxu0 0.0
  %7033 = vmatprep.subr.mxu0 0.0
  %7034 = vmatpush1.xpose.msra.mxu0 0.0
  %7035 = vmatprep.subr.mxu0 0.0
  %7036 = vmatpush1.xpose.msra.mxu0 0.0
  %7037 = vmatprep.subr.mxu0 0.0
  %7038 = vmatpush1.xpose.msra.mxu0 0.0
  %7039 = vmatprep.subr.mxu0 0.0
  %7040 = vmatpush1.xpose.msra.mxu0 0.0
  %7041 = vmatprep.subr.mxu0 0.0
  %7042 = vmatpush1.xpose.msra.mxu0 0.0
  %7043 = vmatprep.subr.mxu0 0.0
  %7044 = vmatpush1.xpose.msra.mxu0 0.0
  %7045 = vmatprep.subr.mxu0 0.0
  %7046 = vmatpush1.xpose.msra.mxu0 0.0
  %7047 = vmatprep.subr.mxu0 0.0
  %7048 = vmatpush1.xpose.msra.mxu0 0.0
  %7049 = vmatprep.subr.mxu0 0.0
  %7050 = vmatpush1.xpose.msra.mxu0 0.0
  %7051 = vmatprep.subr.mxu0 0.0
  %7052 = vmatpush1.xpose.msra.mxu0 0.0
  %7053 = vmatprep.subr.mxu0 0.0
  %7054 = vmatpush1.xpose.msra.mxu0 0.0
  %7055 = vmatprep.subr.mxu0 0.0
  %7056 = vmatpush1.xpose.msra.mxu0 0.0
  %7057 = vmatprep.subr.mxu0 0.0
  %7058 = vmatpush1.xpose.msra.mxu0 0.0
  %7059 = vmatprep.subr.mxu0 0.0
  %7060 = vmatpush1.xpose.msra.mxu0 0.0
  %7061 = vmatprep.subr.mxu0 0.0
  %7062 = vmatpush1.xpose.msra.mxu0 0.0
  %7063 = vmatprep.subr.mxu0 0.0
  %7064 = vmatpush1.xpose.msra.mxu0 0.0
  %7065 = vmatprep.subr.mxu0 0.0
  %7066 = vmatpush1.xpose.msra.mxu0 0.0
  %7067 = vmatprep.subr.mxu0 0.0
  %7068 = vmatpush1.xpose.msra.mxu0 0.0
  %7069 = vmatprep.mubr.f32.mxu0 0.0
  %7070 = vmatmul.mubr.f32.gmra.mrb[0].mxu0 %v6991
  %v7071 = vpop.f32.mrb[0].mxu0
  %v7072 = vadd.f32 %v4590, %v7071
  %v7073 = vpop.f32.mrb[0].mxu0
  %7074 = vmatprep.mubr.f32.mxu0 0.0
  %7075 = vmatmul.mubr.f32.gmra.mrb[0].mxu0 %v6994
  %v7076 = vpop.f32.mrb[0].mxu0
  %v7077 = vadd.f32 %v4591, %v7076
  %v7078 = vpop.f32.mrb[0].mxu0
  %7079 = vdwg.mxu0
  %v7080 = vsel %vm564, %v7072, -inf
  %7081 = vmax.xlane.f32.xlu0 %v7080
  %v7082 = vpop.xlane.xlu0 %7081
  %v7083 = vsel %vm564, %v7077, -inf
  %7084 = vmax.xlane.f32.xlu0 %v7083
  %v7085 = vpop.xlane.xlu0 %7084
  %v7086 = vsub.f32 %v7072, %v7082
  %v7087 = vsub.f32 %v7077, %v7085
  %v7088 = vmul.f32 %v7086, 1.442695
  %v7089 = vpow.pop %v7088
  %v7090 = vmul.f32 %v7087, 1.442695
  %v7091 = vpow.pop %v7090
  %v7092 = vsel %vm564, %v7089, 0.0
  %7093 = vadd.xlane.f32.xlu0 %v7092
  %v7094 = vpop.xlane.xlu0 %7093
  %v7095 = vsel %vm564, %v7091, 0.0
  %7096 = vadd.xlane.f32.xlu0 %v7095
  %v7097 = vpop.xlane.xlu0 %7096
  %v7098 = vrcp.pop %v7094
  %v7099 = vrcp.pop %v7097
  %v7100 = vmul.f32 %v7089, %v7098
  %v7101 = vmul.f32 %v7091, %v7099
  %7102 = vrot.lane.b32.xlu0 %v6977, 96
  %v7103 = vpop.permute.xlu0 %7102
  %7104 = vrot.lane.b32.xlu0 %v6982, 96
  %v7105 = vpop.permute.xlu0 %7104
  %7106 = vrot.lane.b32.xlu0 %v6987, 96
  %v7107 = vpop.permute.xlu0 %7106
  %v7111 = vsel %vm564, %v7100, 0
  %v7114 = vsel %vm564, %v7101, 0
  %v7116 = vsel %vm616, %v7107, 0
  %7118 = vmatprep.subr.mxu0 0.0
  %7119 = vmatpush1.msra.mxu0 %v7103
  %7120 = vmatprep.subr.mxu0 0.0
  %7121 = vmatpush1.msra.mxu0 %v7105
  %7122 = vmatprep.subr.mxu0 0.0
  %7123 = vmatpush1.msra.mxu0 %v7116
  %7124 = vmatprep.subr.mxu0 0.0
  %7125 = vmatpush1.msra.mxu0 0.0
  %7126 = vmatprep.subr.mxu0 0.0
  %7127 = vmatpush1.msra.mxu0 0.0
  %7128 = vmatprep.subr.mxu0 0.0
  %7129 = vmatpush1.msra.mxu0 0.0
  %7130 = vmatprep.subr.mxu0 0.0
  %7131 = vmatpush1.msra.mxu0 0.0
  %7132 = vmatprep.subr.mxu0 0.0
  %7133 = vmatpush1.msra.mxu0 0.0
  %7134 = vmatprep.subr.mxu0 0.0
  %7135 = vmatpush1.msra.mxu0 0.0
  %7136 = vmatprep.subr.mxu0 0.0
  %7137 = vmatpush1.msra.mxu0 0.0
  %7138 = vmatprep.subr.mxu0 0.0
  %7139 = vmatpush1.msra.mxu0 0.0
  %7140 = vmatprep.subr.mxu0 0.0
  %7141 = vmatpush1.msra.mxu0 0.0
  %7142 = vmatprep.subr.mxu0 0.0
  %7143 = vmatpush1.msra.mxu0 0.0
  %7144 = vmatprep.subr.mxu0 0.0
  %7145 = vmatpush1.msra.mxu0 0.0
  %7146 = vmatprep.subr.mxu0 0.0
  %7147 = vmatpush1.msra.mxu0 0.0
  %7148 = vmatprep.subr.mxu0 0.0
  %7149 = vmatpush1.msra.mxu0 0.0
  %7150 = vmatprep.subr.mxu0 0.0
  %7151 = vmatpush1.msra.mxu0 0.0
  %7152 = vmatprep.subr.mxu0 0.0
  %7153 = vmatpush1.msra.mxu0 0.0
  %7154 = vmatprep.subr.mxu0 0.0
  %7155 = vmatpush1.msra.mxu0 0.0
  %7156 = vmatprep.subr.mxu0 0.0
  %7157 = vmatpush1.msra.mxu0 0.0
  %7158 = vmatprep.subr.mxu0 0.0
  %7159 = vmatpush1.msra.mxu0 0.0
  %7160 = vmatprep.subr.mxu0 0.0
  %7161 = vmatpush1.msra.mxu0 0.0
  %7162 = vmatprep.subr.mxu0 0.0
  %7163 = vmatpush1.msra.mxu0 0.0
  %7164 = vmatprep.subr.mxu0 0.0
  %7165 = vmatpush1.msra.mxu0 0.0
  %7166 = vmatprep.subr.mxu0 0.0
  %7167 = vmatpush1.msra.mxu0 0.0
  %7168 = vmatprep.subr.mxu0 0.0
  %7169 = vmatpush1.msra.mxu0 0.0
  %7170 = vmatprep.subr.mxu0 0.0
  %7171 = vmatpush1.msra.mxu0 0.0
  %7172 = vmatprep.subr.mxu0 0.0
  %7173 = vmatpush1.msra.mxu0 0.0
  %7174 = vmatprep.subr.mxu0 0.0
  %7175 = vmatpush1.msra.mxu0 0.0
  %7176 = vmatprep.subr.mxu0 0.0
  %7177 = vmatpush1.msra.mxu0 0.0
  %7178 = vmatprep.subr.mxu0 0.0
  %7179 = vmatpush1.msra.mxu0 0.0
  %7180 = vmatprep.subr.mxu0 0.0
  %7181 = vmatpush1.msra.mxu0 0.0
  %7182 = vmatprep.mubr.f32.mxu0 0.0
  %7183 = vmatmul.mubr.f32.gmra.mrb[0].mxu0 %v7111
  %v7184 = vpop.f32.mrb[0].mxu0
  %v7185 = vadd.f32 0.0, %v7184
  %v7186 = vpop.f32.mrb[0].mxu0
  %7187 = vmatprep.mubr.f32.mxu0 0.0
  %7188 = vmatmul.mubr.f32.gmra.mrb[0].mxu0 %v7114
  %v7189 = vpop.f32.mrb[0].mxu0
  %v7190 = vadd.f32 0.0, %v7189
  %v7191 = vpop.f32.mrb[0].mxu0
  %7192 = vdwg.mxu0
  %7193 = vrot.lane.b32.xlu0 %v6897, 120
  %v7194 = vpop.permute.xlu0 %7193
  %7195 = vrot.lane.b32.xlu0 %v6902, 120
  %v7196 = vpop.permute.xlu0 %7195
  %7197 = vrot.lane.b32.xlu0 %v6977, 120
  %v7198 = vpop.permute.xlu0 %7197
  %7199 = vrot.lane.b32.xlu0 %v6982, 120
  %v7200 = vpop.permute.xlu0 %7199
  %7201 = vrot.lane.b32.xlu0 %v6987, 120
  %v7202 = vpop.permute.xlu0 %7201
  %v7203 = vsel %vm471, %v7194, 0
  %v7205 = vsel %vm471, %v7196, 0
  %v7207 = vsel %vm471, %v7198, 0
  %v7209 = vsel %vm471, %v7200, 0
  %v7211 = vsel %vm471, %v7202, 0
  %7213 = vmatprep.subr.mxu0 0.0
  %7214 = vmatpush1.xpose.msra.mxu0 %v7207
  %7215 = vmatprep.subr.mxu0 0.0
  %7216 = vmatpush1.xpose.msra.mxu0 %v7209
  %7217 = vmatprep.subr.mxu0 0.0
  %7218 = vmatpush1.xpose.msra.mxu0 %v7211
  %7219 = vmatprep.subr.mxu0 0.0
  %7220 = vmatpush1.xpose.msra.mxu0 0.0
  %7221 = vmatprep.subr.mxu0 0.0
  %7222 = vmatpush1.xpose.msra.mxu0 0.0
  %7223 = vmatprep.subr.mxu0 0.0
  %7224 = vmatpush1.xpose.msra.mxu0 0.0
  %7225 = vmatprep.subr.mxu0 0.0
  %7226 = vmatpush1.xpose.msra.mxu0 0.0
  %7227 = vmatprep.subr.mxu0 0.0
  %7228 = vmatpush1.xpose.msra.mxu0 0.0
  %7229 = vmatprep.subr.mxu0 0.0
  %7230 = vmatpush1.xpose.msra.mxu0 0.0
  %7231 = vmatprep.subr.mxu0 0.0
  %7232 = vmatpush1.xpose.msra.mxu0 0.0
  %7233 = vmatprep.subr.mxu0 0.0
  %7234 = vmatpush1.xpose.msra.mxu0 0.0
  %7235 = vmatprep.subr.mxu0 0.0
  %7236 = vmatpush1.xpose.msra.mxu0 0.0
  %7237 = vmatprep.subr.mxu0 0.0
  %7238 = vmatpush1.xpose.msra.mxu0 0.0
  %7239 = vmatprep.subr.mxu0 0.0
  %7240 = vmatpush1.xpose.msra.mxu0 0.0
  %7241 = vmatprep.subr.mxu0 0.0
  %7242 = vmatpush1.xpose.msra.mxu0 0.0
  %7243 = vmatprep.subr.mxu0 0.0
  %7244 = vmatpush1.xpose.msra.mxu0 0.0
  %7245 = vmatprep.subr.mxu0 0.0
  %7246 = vmatpush1.xpose.msra.mxu0 0.0
  %7247 = vmatprep.subr.mxu0 0.0
  %7248 = vmatpush1.xpose.msra.mxu0 0.0
  %7249 = vmatprep.subr.mxu0 0.0
  %7250 = vmatpush1.xpose.msra.mxu0 0.0
  %7251 = vmatprep.subr.mxu0 0.0
  %7252 = vmatpush1.xpose.msra.mxu0 0.0
  %7253 = vmatprep.subr.mxu0 0.0
  %7254 = vmatpush1.xpose.msra.mxu0 0.0
  %7255 = vmatprep.subr.mxu0 0.0
  %7256 = vmatpush1.xpose.msra.mxu0 0.0
  %7257 = vmatprep.subr.mxu0 0.0
  %7258 = vmatpush1.xpose.msra.mxu0 0.0
  %7259 = vmatprep.subr.mxu0 0.0
  %7260 = vmatpush1.xpose.msra.mxu0 0.0
  %7261 = vmatprep.subr.mxu0 0.0
  %7262 = vmatpush1.xpose.msra.mxu0 0.0
  %7263 = vmatprep.subr.mxu0 0.0
  %7264 = vmatpush1.xpose.msra.mxu0 0.0
  %7265 = vmatprep.subr.mxu0 0.0
  %7266 = vmatpush1.xpose.msra.mxu0 0.0
  %7267 = vmatprep.subr.mxu0 0.0
  %7268 = vmatpush1.xpose.msra.mxu0 0.0
  %7269 = vmatprep.subr.mxu0 0.0
  %7270 = vmatpush1.xpose.msra.mxu0 0.0
  %7271 = vmatprep.subr.mxu0 0.0
  %7272 = vmatpush1.xpose.msra.mxu0 0.0
  %7273 = vmatprep.subr.mxu0 0.0
  %7274 = vmatpush1.xpose.msra.mxu0 0.0
  %7275 = vmatprep.subr.mxu0 0.0
  %7276 = vmatpush1.xpose.msra.mxu0 0.0
  %7277 = vmatprep.mubr.f32.mxu0 0.0
  %7278 = vmatmul.mubr.f32.gmra.mrb[0].mxu0 %v7203
  %v7279 = vpop.f32.mrb[0].mxu0
  %v7280 = vadd.f32 %v4590, %v7279
  %v7281 = vpop.f32.mrb[0].mxu0
  %7282 = vmatprep.mubr.f32.mxu0 0.0
  %7283 = vmatmul.mubr.f32.gmra.mrb[0].mxu0 %v7205
  %v7284 = vpop.f32.mrb[0].mxu0
  %v7285 = vadd.f32 %v4591, %v7284
  %v7286 = vpop.f32.mrb[0].mxu0
  %7287 = vdwg.mxu0
  %v7288 = vsel %vm564, %v7280, -inf
  %7289 = vmax.xlane.f32.xlu0 %v7288
  %v7290 = vpop.xlane.xlu0 %7289
  %v7291 = vsel %vm564, %v7285, -inf
  %7292 = vmax.xlane.f32.xlu0 %v7291
  %v7293 = vpop.xlane.xlu0 %7292
  %v7294 = vsub.f32 %v7280, %v7290
  %v7295 = vsub.f32 %v7285, %v7293
  %v7296 = vmul.f32 %v7294, 1.442695
  %v7297 = vpow.pop %v7296
  %v7298 = vmul.f32 %v7295, 1.442695
  %v7299 = vpow.pop %v7298
  %v7300 = vsel %vm564, %v7297, 0.0
  %7301 = vadd.xlane.f32.xlu0 %v7300
  %v7302 = vpop.xlane.xlu0 %7301
  %v7303 = vsel %vm564, %v7299, 0.0
  %7304 = vadd.xlane.f32.xlu0 %v7303
  %v7305 = vpop.xlane.xlu0 %7304
  %v7306 = vrcp.pop %v7302
  %v7307 = vrcp.pop %v7305
  %v7308 = vmul.f32 %v7297, %v7306
  %v7309 = vmul.f32 %v7299, %v7307
  %7310 = vrot.lane.b32.xlu0 %v6977, 88
  %v7311 = vpop.permute.xlu0 %7310
  %7312 = vrot.lane.b32.xlu0 %v6982, 88
  %v7313 = vpop.permute.xlu0 %7312
  %7314 = vrot.lane.b32.xlu0 %v6987, 88
  %v7315 = vpop.permute.xlu0 %7314
  %v7319 = vsel %vm564, %v7308, 0
  %v7322 = vsel %vm564, %v7309, 0
  %v7324 = vsel %vm616, %v7315, 0
  %7326 = vmatprep.subr.mxu0 0.0
  %7327 = vmatpush1.msra.mxu0 %v7311
  %7328 = vmatprep.subr.mxu0 0.0
  %7329 = vmatpush1.msra.mxu0 %v7313
  %7330 = vmatprep.subr.mxu0 0.0
  %7331 = vmatpush1.msra.mxu0 %v7324
  %7332 = vmatprep.subr.mxu0 0.0
  %7333 = vmatpush1.msra.mxu0 0.0
  %7334 = vmatprep.subr.mxu0 0.0
  %7335 = vmatpush1.msra.mxu0 0.0
  %7336 = vmatprep.subr.mxu0 0.0
  %7337 = vmatpush1.msra.mxu0 0.0
  %7338 = vmatprep.subr.mxu0 0.0
  %7339 = vmatpush1.msra.mxu0 0.0
  %7340 = vmatprep.subr.mxu0 0.0
  %7341 = vmatpush1.msra.mxu0 0.0
  %7342 = vmatprep.subr.mxu0 0.0
  %7343 = vmatpush1.msra.mxu0 0.0
  %7344 = vmatprep.subr.mxu0 0.0
  %7345 = vmatpush1.msra.mxu0 0.0
  %7346 = vmatprep.subr.mxu0 0.0
  %7347 = vmatpush1.msra.mxu0 0.0
  %7348 = vmatprep.subr.mxu0 0.0
  %7349 = vmatpush1.msra.mxu0 0.0
  %7350 = vmatprep.subr.mxu0 0.0
  %7351 = vmatpush1.msra.mxu0 0.0
  %7352 = vmatprep.subr.mxu0 0.0
  %7353 = vmatpush1.msra.mxu0 0.0
  %7354 = vmatprep.subr.mxu0 0.0
  %7355 = vmatpush1.msra.mxu0 0.0
  %7356 = vmatprep.subr.mxu0 0.0
  %7357 = vmatpush1.msra.mxu0 0.0
  %7358 = vmatprep.subr.mxu0 0.0
  %7359 = vmatpush1.msra.mxu0 0.0
  %7360 = vmatprep.subr.mxu0 0.0
  %7361 = vmatpush1.msra.mxu0 0.0
  %7362 = vmatprep.subr.mxu0 0.0
  %7363 = vmatpush1.msra.mxu0 0.0
  %7364 = vmatprep.subr.mxu0 0.0
  %7365 = vmatpush1.msra.mxu0 0.0
  %7366 = vmatprep.subr.mxu0 0.0
  %7367 = vmatpush1.msra.mxu0 0.0
  %7368 = vmatprep.subr.mxu0 0.0
  %7369 = vmatpush1.msra.mxu0 0.0
  %7370 = vmatprep.subr.mxu0 0.0
  %7371 = vmatpush1.msra.mxu0 0.0
  %7372 = vmatprep.subr.mxu0 0.0
  %7373 = vmatpush1.msra.mxu0 0.0
  %7374 = vmatprep.subr.mxu0 0.0
  %7375 = vmatpush1.msra.mxu0 0.0
  %7376 = vmatprep.subr.mxu0 0.0
  %7377 = vmatpush1.msra.mxu0 0.0
  %7378 = vmatprep.subr.mxu0 0.0
  %7379 = vmatpush1.msra.mxu0 0.0
  %7380 = vmatprep.subr.mxu0 0.0
  %7381 = vmatpush1.msra.mxu0 0.0
  %7382 = vmatprep.subr.mxu0 0.0
  %7383 = vmatpush1.msra.mxu0 0.0
  %7384 = vmatprep.subr.mxu0 0.0
  %7385 = vmatpush1.msra.mxu0 0.0
  %7386 = vmatprep.subr.mxu0 0.0
  %7387 = vmatpush1.msra.mxu0 0.0
  %7388 = vmatprep.subr.mxu0 0.0
  %7389 = vmatpush1.msra.mxu0 0.0
  %7390 = vmatprep.mubr.f32.mxu0 0.0
  %7391 = vmatmul.mubr.f32.gmra.mrb[0].mxu0 %v7319
  %v7392 = vpop.f32.mrb[0].mxu0
  %v7393 = vadd.f32 0.0, %v7392
  %v7394 = vpop.f32.mrb[0].mxu0
  %7395 = vmatprep.mubr.f32.mxu0 0.0
  %7396 = vmatmul.mubr.f32.gmra.mrb[0].mxu0 %v7322
  %v7397 = vpop.f32.mrb[0].mxu0
  %v7398 = vadd.f32 0.0, %v7397
  %v7399 = vpop.f32.mrb[0].mxu0
  %7400 = vdwg.mxu0
  %7401 = vrot.lane.b32.xlu0 %v6897, 112
  %v7402 = vpop.permute.xlu0 %7401
  %7403 = vrot.lane.b32.xlu0 %v6902, 112
  %v7404 = vpop.permute.xlu0 %7403
  %7405 = vrot.lane.b32.xlu0 %v6977, 112
  %v7406 = vpop.permute.xlu0 %7405
  %7407 = vrot.lane.b32.xlu0 %v6982, 112
  %v7408 = vpop.permute.xlu0 %7407
  %7409 = vrot.lane.b32.xlu0 %v6987, 112
  %v7410 = vpop.permute.xlu0 %7409
  %v7411 = vsel %vm471, %v7402, 0
  %v7413 = vsel %vm471, %v7404, 0
  %v7415 = vsel %vm471, %v7406, 0
  %v7417 = vsel %vm471, %v7408, 0
  %v7419 = vsel %vm471, %v7410, 0
  %7421 = vmatprep.subr.mxu0 0.0
  %7422 = vmatpush1.xpose.msra.mxu0 %v7415
  %7423 = vmatprep.subr.mxu0 0.0
  %7424 = vmatpush1.xpose.msra.mxu0 %v7417
  %7425 = vmatprep.subr.mxu0 0.0
  %7426 = vmatpush1.xpose.msra.mxu0 %v7419
  %7427 = vmatprep.subr.mxu0 0.0
  %7428 = vmatpush1.xpose.msra.mxu0 0.0
  %7429 = vmatprep.subr.mxu0 0.0
  %7430 = vmatpush1.xpose.msra.mxu0 0.0
  %7431 = vmatprep.subr.mxu0 0.0
  %7432 = vmatpush1.xpose.msra.mxu0 0.0
  %7433 = vmatprep.subr.mxu0 0.0
  %7434 = vmatpush1.xpose.msra.mxu0 0.0
  %7435 = vmatprep.subr.mxu0 0.0
  %7436 = vmatpush1.xpose.msra.mxu0 0.0
  %7437 = vmatprep.subr.mxu0 0.0
  %7438 = vmatpush1.xpose.msra.mxu0 0.0
  %7439 = vmatprep.subr.mxu0 0.0
  %7440 = vmatpush1.xpose.msra.mxu0 0.0
  %7441 = vmatprep.subr.mxu0 0.0
  %7442 = vmatpush1.xpose.msra.mxu0 0.0
  %7443 = vmatprep.subr.mxu0 0.0
  %7444 = vmatpush1.xpose.msra.mxu0 0.0
  %7445 = vmatprep.subr.mxu0 0.0
  %7446 = vmatpush1.xpose.msra.mxu0 0.0
  %7447 = vmatprep.subr.mxu0 0.0
  %7448 = vmatpush1.xpose.msra.mxu0 0.0
  %7449 = vmatprep.subr.mxu0 0.0
  %7450 = vmatpush1.xpose.msra.mxu0 0.0
  %7451 = vmatprep.subr.mxu0 0.0
  %7452 = vmatpush1.xpose.msra.mxu0 0.0
  %7453 = vmatprep.subr.mxu0 0.0
  %7454 = vmatpush1.xpose.msra.mxu0 0.0
  %7455 = vmatprep.subr.mxu0 0.0
  %7456 = vmatpush1.xpose.msra.mxu0 0.0
  %7457 = vmatprep.subr.mxu0 0.0
  %7458 = vmatpush1.xpose.msra.mxu0 0.0
  %7459 = vmatprep.subr.mxu0 0.0
  %7460 = vmatpush1.xpose.msra.mxu0 0.0
  %7461 = vmatprep.subr.mxu0 0.0
  %7462 = vmatpush1.xpose.msra.mxu0 0.0
  %7463 = vmatprep.subr.mxu0 0.0
  %7464 = vmatpush1.xpose.msra.mxu0 0.0
  %7465 = vmatprep.subr.mxu0 0.0
  %7466 = vmatpush1.xpose.msra.mxu0 0.0
  %7467 = vmatprep.subr.mxu0 0.0
  %7468 = vmatpush1.xpose.msra.mxu0 0.0
  %7469 = vmatprep.subr.mxu0 0.0
  %7470 = vmatpush1.xpose.msra.mxu0 0.0
  %7471 = vmatprep.subr.mxu0 0.0
  %7472 = vmatpush1.xpose.msra.mxu0 0.0
  %7473 = vmatprep.subr.mxu0 0.0
  %7474 = vmatpush1.xpose.msra.mxu0 0.0
  %7475 = vmatprep.subr.mxu0 0.0
  %7476 = vmatpush1.xpose.msra.mxu0 0.0
  %7477 = vmatprep.subr.mxu0 0.0
  %7478 = vmatpush1.xpose.msra.mxu0 0.0
  %7479 = vmatprep.subr.mxu0 0.0
  %7480 = vmatpush1.xpose.msra.mxu0 0.0
  %7481 = vmatprep.subr.mxu0 0.0
  %7482 = vmatpush1.xpose.msra.mxu0 0.0
  %7483 = vmatprep.subr.mxu0 0.0
  %7484 = vmatpush1.xpose.msra.mxu0 0.0
  %7485 = vmatprep.mubr.f32.mxu0 0.0
  %7486 = vmatmul.mubr.f32.gmra.mrb[0].mxu0 %v7411
  %v7487 = vpop.f32.mrb[0].mxu0
  %v7488 = vadd.f32 %v4590, %v7487
  %v7489 = vpop.f32.mrb[0].mxu0
  %7490 = vmatprep.mubr.f32.mxu0 0.0
  %7491 = vmatmul.mubr.f32.gmra.mrb[0].mxu0 %v7413
  %v7492 = vpop.f32.mrb[0].mxu0
  %v7493 = vadd.f32 %v4591, %v7492
  %v7494 = vpop.f32.mrb[0].mxu0
  %7495 = vdwg.mxu0
  %v7496 = vsel %vm564, %v7488, -inf
  %7497 = vmax.xlane.f32.xlu0 %v7496
  %v7498 = vpop.xlane.xlu0 %7497
  %v7499 = vsel %vm564, %v7493, -inf
  %7500 = vmax.xlane.f32.xlu0 %v7499
  %v7501 = vpop.xlane.xlu0 %7500
  %v7502 = vsub.f32 %v7488, %v7498
  %v7503 = vsub.f32 %v7493, %v7501
  %v7504 = vmul.f32 %v7502, 1.442695
  %v7505 = vpow.pop %v7504
  %v7506 = vmul.f32 %v7503, 1.442695
  %v7507 = vpow.pop %v7506
  %v7508 = vsel %vm564, %v7505, 0.0
  %7509 = vadd.xlane.f32.xlu0 %v7508
  %v7510 = vpop.xlane.xlu0 %7509
  %v7511 = vsel %vm564, %v7507, 0.0
  %7512 = vadd.xlane.f32.xlu0 %v7511
  %v7513 = vpop.xlane.xlu0 %7512
  %v7514 = vrcp.pop %v7510
  %v7515 = vrcp.pop %v7513
  %v7516 = vmul.f32 %v7505, %v7514
  %v7517 = vmul.f32 %v7507, %v7515
  %7518 = vrot.lane.b32.xlu0 %v6977, 80
  %v7519 = vpop.permute.xlu0 %7518
  %7520 = vrot.lane.b32.xlu0 %v6982, 80
  %v7521 = vpop.permute.xlu0 %7520
  %7522 = vrot.lane.b32.xlu0 %v6987, 80
  %v7523 = vpop.permute.xlu0 %7522
  %v7527 = vsel %vm564, %v7516, 0
  %v7530 = vsel %vm564, %v7517, 0
  %v7532 = vsel %vm616, %v7523, 0
  %7534 = vmatprep.subr.mxu0 0.0
  %7535 = vmatpush1.msra.mxu0 %v7519
  %7536 = vmatprep.subr.mxu0 0.0
  %7537 = vmatpush1.msra.mxu0 %v7521
  %7538 = vmatprep.subr.mxu0 0.0
  %7539 = vmatpush1.msra.mxu0 %v7532
  %7540 = vmatprep.subr.mxu0 0.0
  %7541 = vmatpush1.msra.mxu0 0.0
  %7542 = vmatprep.subr.mxu0 0.0
  %7543 = vmatpush1.msra.mxu0 0.0
  %7544 = vmatprep.subr.mxu0 0.0
  %7545 = vmatpush1.msra.mxu0 0.0
  %7546 = vmatprep.subr.mxu0 0.0
  %7547 = vmatpush1.msra.mxu0 0.0
  %7548 = vmatprep.subr.mxu0 0.0
  %7549 = vmatpush1.msra.mxu0 0.0
  %7550 = vmatprep.subr.mxu0 0.0
  %7551 = vmatpush1.msra.mxu0 0.0
  %7552 = vmatprep.subr.mxu0 0.0
  %7553 = vmatpush1.msra.mxu0 0.0
  %7554 = vmatprep.subr.mxu0 0.0
  %7555 = vmatpush1.msra.mxu0 0.0
  %7556 = vmatprep.subr.mxu0 0.0
  %7557 = vmatpush1.msra.mxu0 0.0
  %7558 = vmatprep.subr.mxu0 0.0
  %7559 = vmatpush1.msra.mxu0 0.0
  %7560 = vmatprep.subr.mxu0 0.0
  %7561 = vmatpush1.msra.mxu0 0.0
  %7562 = vmatprep.subr.mxu0 0.0
  %7563 = vmatpush1.msra.mxu0 0.0
  %7564 = vmatprep.subr.mxu0 0.0
  %7565 = vmatpush1.msra.mxu0 0.0
  %7566 = vmatprep.subr.mxu0 0.0
  %7567 = vmatpush1.msra.mxu0 0.0
  %7568 = vmatprep.subr.mxu0 0.0
  %7569 = vmatpush1.msra.mxu0 0.0
  %7570 = vmatprep.subr.mxu0 0.0
  %7571 = vmatpush1.msra.mxu0 0.0
  %7572 = vmatprep.subr.mxu0 0.0
  %7573 = vmatpush1.msra.mxu0 0.0
  %7574 = vmatprep.subr.mxu0 0.0
  %7575 = vmatpush1.msra.mxu0 0.0
  %7576 = vmatprep.subr.mxu0 0.0
  %7577 = vmatpush1.msra.mxu0 0.0
  %7578 = vmatprep.subr.mxu0 0.0
  %7579 = vmatpush1.msra.mxu0 0.0
  %7580 = vmatprep.subr.mxu0 0.0
  %7581 = vmatpush1.msra.mxu0 0.0
  %7582 = vmatprep.subr.mxu0 0.0
  %7583 = vmatpush1.msra.mxu0 0.0
  %7584 = vmatprep.subr.mxu0 0.0
  %7585 = vmatpush1.msra.mxu0 0.0
  %7586 = vmatprep.subr.mxu0 0.0
  %7587 = vmatpush1.msra.mxu0 0.0
  %7588 = vmatprep.subr.mxu0 0.0
  %7589 = vmatpush1.msra.mxu0 0.0
  %7590 = vmatprep.subr.mxu0 0.0
  %7591 = vmatpush1.msra.mxu0 0.0
  %7592 = vmatprep.subr.mxu0 0.0
  %7593 = vmatpush1.msra.mxu0 0.0
  %7594 = vmatprep.subr.mxu0 0.0
  %7595 = vmatpush1.msra.mxu0 0.0
  %7596 = vmatprep.subr.mxu0 0.0
  %7597 = vmatpush1.msra.mxu0 0.0
  %7598 = vmatprep.mubr.f32.mxu0 0.0
  %7599 = vmatmul.mubr.f32.gmra.mrb[0].mxu0 %v7527
  %v7600 = vpop.f32.mrb[0].mxu0
  %v7601 = vadd.f32 0.0, %v7600
  %v7602 = vpop.f32.mrb[0].mxu0
  %7603 = vmatprep.mubr.f32.mxu0 0.0
  %7604 = vmatmul.mubr.f32.gmra.mrb[0].mxu0 %v7530
  %v7605 = vpop.f32.mrb[0].mxu0
  %v7606 = vadd.f32 0.0, %v7605
  %v7607 = vpop.f32.mrb[0].mxu0
  %7608 = vdwg.mxu0
  %7609 = vrot.lane.b32.xlu0 %v6897, 104
  %v7610 = vpop.permute.xlu0 %7609
  %7611 = vrot.lane.b32.xlu0 %v6902, 104
  %v7612 = vpop.permute.xlu0 %7611
  %7613 = vrot.lane.b32.xlu0 %v6977, 104
  %v7614 = vpop.permute.xlu0 %7613
  %7615 = vrot.lane.b32.xlu0 %v6982, 104
  %v7616 = vpop.permute.xlu0 %7615
  %7617 = vrot.lane.b32.xlu0 %v6987, 104
  %v7618 = vpop.permute.xlu0 %7617
  %v7619 = vsel %vm471, %v7610, 0
  %v7621 = vsel %vm471, %v7612, 0
  %v7623 = vsel %vm471, %v7614, 0
  %v7625 = vsel %vm471, %v7616, 0
  %v7627 = vsel %vm471, %v7618, 0
  %7629 = vmatprep.subr.mxu0 0.0
  %7630 = vmatpush1.xpose.msra.mxu0 %v7623
  %7631 = vmatprep.subr.mxu0 0.0
  %7632 = vmatpush1.xpose.msra.mxu0 %v7625
  %7633 = vmatprep.subr.mxu0 0.0
  %7634 = vmatpush1.xpose.msra.mxu0 %v7627
  %7635 = vmatprep.subr.mxu0 0.0
  %7636 = vmatpush1.xpose.msra.mxu0 0.0
  %7637 = vmatprep.subr.mxu0 0.0
  %7638 = vmatpush1.xpose.msra.mxu0 0.0
  %7639 = vmatprep.subr.mxu0 0.0
  %7640 = vmatpush1.xpose.msra.mxu0 0.0
  %7641 = vmatprep.subr.mxu0 0.0
  %7642 = vmatpush1.xpose.msra.mxu0 0.0
  %7643 = vmatprep.subr.mxu0 0.0
  %7644 = vmatpush1.xpose.msra.mxu0 0.0
  %7645 = vmatprep.subr.mxu0 0.0
  %7646 = vmatpush1.xpose.msra.mxu0 0.0
  %7647 = vmatprep.subr.mxu0 0.0
  %7648 = vmatpush1.xpose.msra.mxu0 0.0
  %7649 = vmatprep.subr.mxu0 0.0
  %7650 = vmatpush1.xpose.msra.mxu0 0.0
  %7651 = vmatprep.subr.mxu0 0.0
  %7652 = vmatpush1.xpose.msra.mxu0 0.0
  %7653 = vmatprep.subr.mxu0 0.0
  %7654 = vmatpush1.xpose.msra.mxu0 0.0
  %7655 = vmatprep.subr.mxu0 0.0
  %7656 = vmatpush1.xpose.msra.mxu0 0.0
  %7657 = vmatprep.subr.mxu0 0.0
  %7658 = vmatpush1.xpose.msra.mxu0 0.0
  %7659 = vmatprep.subr.mxu0 0.0
  %7660 = vmatpush1.xpose.msra.mxu0 0.0
  %7661 = vmatprep.subr.mxu0 0.0
  %7662 = vmatpush1.xpose.msra.mxu0 0.0
  %7663 = vmatprep.subr.mxu0 0.0
  %7664 = vmatpush1.xpose.msra.mxu0 0.0
  %7665 = vmatprep.subr.mxu0 0.0
  %7666 = vmatpush1.xpose.msra.mxu0 0.0
  %7667 = vmatprep.subr.mxu0 0.0
  %7668 = vmatpush1.xpose.msra.mxu0 0.0
  %7669 = vmatprep.subr.mxu0 0.0
  %7670 = vmatpush1.xpose.msra.mxu0 0.0
  %7671 = vmatprep.subr.mxu0 0.0
  %7672 = vmatpush1.xpose.msra.mxu0 0.0
  %7673 = vmatprep.subr.mxu0 0.0
  %7674 = vmatpush1.xpose.msra.mxu0 0.0
  %7675 = vmatprep.subr.mxu0 0.0
  %7676 = vmatpush1.xpose.msra.mxu0 0.0
  %7677 = vmatprep.subr.mxu0 0.0
  %7678 = vmatpush1.xpose.msra.mxu0 0.0
  %7679 = vmatprep.subr.mxu0 0.0
  %7680 = vmatpush1.xpose.msra.mxu0 0.0
  %7681 = vmatprep.subr.mxu0 0.0
  %7682 = vmatpush1.xpose.msra.mxu0 0.0
  %7683 = vmatprep.subr.mxu0 0.0
  %7684 = vmatpush1.xpose.msra.mxu0 0.0
  %7685 = vmatprep.subr.mxu0 0.0
  %7686 = vmatpush1.xpose.msra.mxu0 0.0
  %7687 = vmatprep.subr.mxu0 0.0
  %7688 = vmatpush1.xpose.msra.mxu0 0.0
  %7689 = vmatprep.subr.mxu0 0.0
  %7690 = vmatpush1.xpose.msra.mxu0 0.0
  %7691 = vmatprep.subr.mxu0 0.0
  %7692 = vmatpush1.xpose.msra.mxu0 0.0
  %7693 = vmatprep.mubr.f32.mxu0 0.0
  %7694 = vmatmul.mubr.f32.gmra.mrb[0].mxu0 %v7619
  %v7695 = vpop.f32.mrb[0].mxu0
  %v7696 = vadd.f32 %v4590, %v7695
  %v7697 = vpop.f32.mrb[0].mxu0
  %7698 = vmatprep.mubr.f32.mxu0 0.0
  %7699 = vmatmul.mubr.f32.gmra.mrb[0].mxu0 %v7621
  %v7700 = vpop.f32.mrb[0].mxu0
  %v7701 = vadd.f32 %v4591, %v7700
  %v7702 = vpop.f32.mrb[0].mxu0
  %7703 = vdwg.mxu0
  %v7704 = vsel %vm564, %v7696, -inf
  %7705 = vmax.xlane.f32.xlu0 %v7704
  %v7706 = vpop.xlane.xlu0 %7705
  %v7707 = vsel %vm564, %v7701, -inf
  %7708 = vmax.xlane.f32.xlu0 %v7707
  %v7709 = vpop.xlane.xlu0 %7708
  %v7710 = vsub.f32 %v7696, %v7706
  %v7711 = vsub.f32 %v7701, %v7709
  %v7712 = vmul.f32 %v7710, 1.442695
  %v7713 = vpow.pop %v7712
  %v7714 = vmul.f32 %v7711, 1.442695
  %v7715 = vpow.pop %v7714
  %v7716 = vsel %vm564, %v7713, 0.0
  %7717 = vadd.xlane.f32.xlu0 %v7716
  %v7718 = vpop.xlane.xlu0 %7717
  %v7719 = vsel %vm564, %v7715, 0.0
  %7720 = vadd.xlane.f32.xlu0 %v7719
  %v7721 = vpop.xlane.xlu0 %7720
  %v7722 = vrcp.pop %v7718
  %v7723 = vrcp.pop %v7721
  %v7724 = vmul.f32 %v7713, %v7722
  %v7725 = vmul.f32 %v7715, %v7723
  %7726 = vrot.lane.b32.xlu0 %v6977, 72
  %v7727 = vpop.permute.xlu0 %7726
  %7728 = vrot.lane.b32.xlu0 %v6982, 72
  %v7729 = vpop.permute.xlu0 %7728
  %7730 = vrot.lane.b32.xlu0 %v6987, 72
  %v7731 = vpop.permute.xlu0 %7730
  %v7735 = vsel %vm564, %v7724, 0
  %v7738 = vsel %vm564, %v7725, 0
  %v7740 = vsel %vm616, %v7731, 0
  %7742 = vmatprep.subr.mxu0 0.0
  %7743 = vmatpush1.msra.mxu0 %v7727
  %7744 = vmatprep.subr.mxu0 0.0
  %7745 = vmatpush1.msra.mxu0 %v7729
  %7746 = vmatprep.subr.mxu0 0.0
  %7747 = vmatpush1.msra.mxu0 %v7740
  %7748 = vmatprep.subr.mxu0 0.0
  %7749 = vmatpush1.msra.mxu0 0.0
  %7750 = vmatprep.subr.mxu0 0.0
  %7751 = vmatpush1.msra.mxu0 0.0
  %7752 = vmatprep.subr.mxu0 0.0
  %7753 = vmatpush1.msra.mxu0 0.0
  %7754 = vmatprep.subr.mxu0 0.0
  %7755 = vmatpush1.msra.mxu0 0.0
  %7756 = vmatprep.subr.mxu0 0.0
  %7757 = vmatpush1.msra.mxu0 0.0
  %7758 = vmatprep.subr.mxu0 0.0
  %7759 = vmatpush1.msra.mxu0 0.0
  %7760 = vmatprep.subr.mxu0 0.0
  %7761 = vmatpush1.msra.mxu0 0.0
  %7762 = vmatprep.subr.mxu0 0.0
  %7763 = vmatpush1.msra.mxu0 0.0
  %7764 = vmatprep.subr.mxu0 0.0
  %7765 = vmatpush1.msra.mxu0 0.0
  %7766 = vmatprep.subr.mxu0 0.0
  %7767 = vmatpush1.msra.mxu0 0.0
  %7768 = vmatprep.subr.mxu0 0.0
  %7769 = vmatpush1.msra.mxu0 0.0
  %7770 = vmatprep.subr.mxu0 0.0
  %7771 = vmatpush1.msra.mxu0 0.0
  %7772 = vmatprep.subr.mxu0 0.0
  %7773 = vmatpush1.msra.mxu0 0.0
  %7774 = vmatprep.subr.mxu0 0.0
  %7775 = vmatpush1.msra.mxu0 0.0
  %7776 = vmatprep.subr.mxu0 0.0
  %7777 = vmatpush1.msra.mxu0 0.0
  %7778 = vmatprep.subr.mxu0 0.0
  %7779 = vmatpush1.msra.mxu0 0.0
  %7780 = vmatprep.subr.mxu0 0.0
  %7781 = vmatpush1.msra.mxu0 0.0
  %7782 = vmatprep.subr.mxu0 0.0
  %7783 = vmatpush1.msra.mxu0 0.0
  %7784 = vmatprep.subr.mxu0 0.0
  %7785 = vmatpush1.msra.mxu0 0.0
  %7786 = vmatprep.subr.mxu0 0.0
  %7787 = vmatpush1.msra.mxu0 0.0
  %7788 = vmatprep.subr.mxu0 0.0
  %7789 = vmatpush1.msra.mxu0 0.0
  %7790 = vmatprep.subr.mxu0 0.0
  %7791 = vmatpush1.msra.mxu0 0.0
  %7792 = vmatprep.subr.mxu0 0.0
  %7793 = vmatpush1.msra.mxu0 0.0
  %7794 = vmatprep.subr.mxu0 0.0
  %7795 = vmatpush1.msra.mxu0 0.0
  %7796 = vmatprep.subr.mxu0 0.0
  %7797 = vmatpush1.msra.mxu0 0.0
  %7798 = vmatprep.subr.mxu0 0.0
  %7799 = vmatpush1.msra.mxu0 0.0
  %7800 = vmatprep.subr.mxu0 0.0
  %7801 = vmatpush1.msra.mxu0 0.0
  %7802 = vmatprep.subr.mxu0 0.0
  %7803 = vmatpush1.msra.mxu0 0.0
  %7804 = vmatprep.subr.mxu0 0.0
  %7805 = vmatpush1.msra.mxu0 0.0
  %7806 = vmatprep.mubr.f32.mxu0 0.0
  %7807 = vmatmul.mubr.f32.gmra.mrb[0].mxu0 %v7735
  %v7808 = vpop.f32.mrb[0].mxu0
  %v7809 = vadd.f32 0.0, %v7808
  %v7810 = vpop.f32.mrb[0].mxu0
  %7811 = vmatprep.mubr.f32.mxu0 0.0
  %7812 = vmatmul.mubr.f32.gmra.mrb[0].mxu0 %v7738
  %v7813 = vpop.f32.mrb[0].mxu0
  %v7814 = vadd.f32 0.0, %v7813
  %v7815 = vpop.f32.mrb[0].mxu0
  %7816 = vdwg.mxu0
  %7819 = vrot.lane.b32.xlu0 %v7393, 8
  %v7820 = vpop.permute.xlu0 %7819
  %7821 = vrot.lane.b32.xlu0 %v7398, 8
  %v7822 = vpop.permute.xlu0 %7821
  %7827 = vrot.lane.b32.xlu0 %v7601, 16
  %v7828 = vpop.permute.xlu0 %7827
  %7829 = vrot.lane.b32.xlu0 %v7606, 16
  %v7830 = vpop.permute.xlu0 %7829
  %7835 = vrot.lane.b32.xlu0 %v7809, 24
  %v7836 = vpop.permute.xlu0 %7835
  %7837 = vrot.lane.b32.xlu0 %v7814, 24
  %v7838 = vpop.permute.xlu0 %7837
  %v7841 = vsel %vm471, %v7185, %v7820
  %v7842 = vsel %vm471, %v7190, %v7822
  %v7843 = vsel %vm1458, %v7841, %v7828
  %v7844 = vsel %vm1458, %v7842, %v7830
  %v7845 = vsel %vm1462, %v7843, %v7836
  %v7846 = vsel %vm1462, %v7844, %v7838
  %s7847 = scalar_lea.vmem %s20, 32
  %v7848 = vld [vmem:[%s7847] sm:$0xff]
  %v7849 = vld [vmem:[%s7847 + $0x8] sm:$0xff]
  %v7850 = vld [vmem:[%s7847 + $0x10] sm:$0xff]
  %v7851 = vld [vmem:[%s7847 + $0x18] sm:$0xff]
  %v7853 = vsel %vm333, %v7845, 0
  %v7856 = vsel %vm333, %v7846, 0
  %7858 = vmatprep.subr.mxu0 0.0
  %7859 = vmatpush1.msra.mxu0 %v7848
  %7860 = vmatprep.subr.mxu0 0.0
  %7861 = vmatpush1.msra.mxu0 %v7849
  %7862 = vmatprep.subr.mxu0 0.0
  %7863 = vmatpush1.msra.mxu0 %v7850
  %7864 = vmatprep.subr.mxu0 0.0
  %7865 = vmatpush1.msra.mxu0 %v7851
  %7866 = vmatprep.subr.mxu0 0.0
  %7867 = vmatpush1.msra.mxu0 0.0
  %7868 = vmatprep.subr.mxu0 0.0
  %7869 = vmatpush1.msra.mxu0 0.0
  %7870 = vmatprep.subr.mxu0 0.0
  %7871 = vmatpush1.msra.mxu0 0.0
  %7872 = vmatprep.subr.mxu0 0.0
  %7873 = vmatpush1.msra.mxu0 0.0
  %7874 = vmatprep.subr.mxu0 0.0
  %7875 = vmatpush1.msra.mxu0 0.0
  %7876 = vmatprep.subr.mxu0 0.0
  %7877 = vmatpush1.msra.mxu0 0.0
  %7878 = vmatprep.subr.mxu0 0.0
  %7879 = vmatpush1.msra.mxu0 0.0
  %7880 = vmatprep.subr.mxu0 0.0
  %7881 = vmatpush1.msra.mxu0 0.0
  %7882 = vmatprep.subr.mxu0 0.0
  %7883 = vmatpush1.msra.mxu0 0.0
  %7884 = vmatprep.subr.mxu0 0.0
  %7885 = vmatpush1.msra.mxu0 0.0
  %7886 = vmatprep.subr.mxu0 0.0
  %7887 = vmatpush1.msra.mxu0 0.0
  %7888 = vmatprep.subr.mxu0 0.0
  %7889 = vmatpush1.msra.mxu0 0.0
  %7890 = vmatprep.subr.mxu0 0.0
  %7891 = vmatpush1.msra.mxu0 0.0
  %7892 = vmatprep.subr.mxu0 0.0
  %7893 = vmatpush1.msra.mxu0 0.0
  %7894 = vmatprep.subr.mxu0 0.0
  %7895 = vmatpush1.msra.mxu0 0.0
  %7896 = vmatprep.subr.mxu0 0.0
  %7897 = vmatpush1.msra.mxu0 0.0
  %7898 = vmatprep.subr.mxu0 0.0
  %7899 = vmatpush1.msra.mxu0 0.0
  %7900 = vmatprep.subr.mxu0 0.0
  %7901 = vmatpush1.msra.mxu0 0.0
  %7902 = vmatprep.subr.mxu0 0.0
  %7903 = vmatpush1.msra.mxu0 0.0
  %7904 = vmatprep.subr.mxu0 0.0
  %7905 = vmatpush1.msra.mxu0 0.0
  %7906 = vmatprep.subr.mxu0 0.0
  %7907 = vmatpush1.msra.mxu0 0.0
  %7908 = vmatprep.subr.mxu0 0.0
  %7909 = vmatpush1.msra.mxu0 0.0
  %7910 = vmatprep.subr.mxu0 0.0
  %7911 = vmatpush1.msra.mxu0 0.0
  %7912 = vmatprep.subr.mxu0 0.0
  %7913 = vmatpush1.msra.mxu0 0.0
  %7914 = vmatprep.subr.mxu0 0.0
  %7915 = vmatpush1.msra.mxu0 0.0
  %7916 = vmatprep.subr.mxu0 0.0
  %7917 = vmatpush1.msra.mxu0 0.0
  %7918 = vmatprep.subr.mxu0 0.0
  %7919 = vmatpush1.msra.mxu0 0.0
  %7920 = vmatprep.subr.mxu0 0.0
  %7921 = vmatpush1.msra.mxu0 0.0
  %7922 = vmatprep.mubr.f32.mxu0 0.0
  %7923 = vmatmul.mubr.f32.gmra.mrb[0].mxu0 %v7853
  %v7924 = vpop.f32.mrb[0].mxu0
  %v7925 = vadd.f32 0.0, %v7924
  %v7926 = vpop.f32.mrb[0].mxu0
  %7927 = vmatprep.mubr.f32.mxu0 0.0
  %7928 = vmatmul.mubr.f32.gmra.mrb[0].mxu0 %v7856
  %v7929 = vpop.f32.mrb[0].mxu0
  %v7930 = vadd.f32 0.0, %v7929
  %v7931 = vpop.f32.mrb[0].mxu0
  %7932 = vdwg.mxu0
  %v7933 = vadd.f32 %v6791, %v7925
  %v7934 = vadd.f32 %v6792, %v7930
  %s7935 = scalar_lea.vmem %s21, 1
  %v7936 = vld [vmem:[%s7935] sm:$0x1]
  %v7937 = vmul.f32 %v7933, %v7933
  %v7938 = vmul.f32 %v7934, %v7934
  %v7939 = vsel %vm333, %v7937, 0.0
  %7940 = vadd.xlane.f32.xlu0 %v7939
  %v7941 = vpop.xlane.xlu0 %7940
  %v7942 = vsel %vm333, %v7938, 0.0
  %7943 = vadd.xlane.f32.xlu0 %v7942
  %v7944 = vpop.xlane.xlu0 %7943
  %v7945 = vmul.f32 %v7941, %v344
  %v7946 = vmul.f32 %v7944, %v344
  %v7947 = vadd.f32 %v7945, 1e-06
  %v7948 = vadd.f32 %v7946, 1e-06
  %v7949 = vrsqrt.pop %v7947
  %v7950 = vrsqrt.pop %v7948
  %v7951 = vmul.f32 %v7933, %v7949
  %v7952 = vmul.f32 %v7934, %v7950
  %v7954 = vlaneseq
  %v7955 = vshrl.u32 %v7954, 7
  %v7956 = vsub.s32 0, %v7955
  %v7957 = vrot.slane %v7936, %v7956
  %v7959 = vmul.f32 %v7951, %v7957
  %v7960 = vmul.f32 %v7952, %v7957
  %s7961 = scalar_lea.vmem %s22, 32
  %v7962 = vld [vmem:[%s7961] sm:$0xff]
  %v7963 = vld [vmem:[%s7961 + $0x8] sm:$0xff]
  %v7964 = vld [vmem:[%s7961 + $0x10] sm:$0xff]
  %v7965 = vld [vmem:[%s7961 + $0x18] sm:$0xff]
  %v7967 = vsel %vm333, %v7959, 0
  %v7970 = vsel %vm333, %v7960, 0
  %7972 = vmatprep.subr.mxu0 0.0
  %7973 = vmatpush1.msra.mxu0 %v7962
  %7974 = vmatprep.subr.mxu0 0.0
  %7975 = vmatpush1.msra.mxu0 %v7963
  %7976 = vmatprep.subr.mxu0 0.0
  %7977 = vmatpush1.msra.mxu0 %v7964
  %7978 = vmatprep.subr.mxu0 0.0
  %7979 = vmatpush1.msra.mxu0 %v7965
  %7980 = vmatprep.subr.mxu0 0.0
  %7981 = vmatpush1.msra.mxu0 0.0
  %7982 = vmatprep.subr.mxu0 0.0
  %7983 = vmatpush1.msra.mxu0 0.0
  %7984 = vmatprep.subr.mxu0 0.0
  %7985 = vmatpush1.msra.mxu0 0.0
  %7986 = vmatprep.subr.mxu0 0.0
  %7987 = vmatpush1.msra.mxu0 0.0
  %7988 = vmatprep.subr.mxu0 0.0
  %7989 = vmatpush1.msra.mxu0 0.0
  %7990 = vmatprep.subr.mxu0 0.0
  %7991 = vmatpush1.msra.mxu0 0.0
  %7992 = vmatprep.subr.mxu0 0.0
  %7993 = vmatpush1.msra.mxu0 0.0
  %7994 = vmatprep.subr.mxu0 0.0
  %7995 = vmatpush1.msra.mxu0 0.0
  %7996 = vmatprep.subr.mxu0 0.0
  %7997 = vmatpush1.msra.mxu0 0.0
  %7998 = vmatprep.subr.mxu0 0.0
  %7999 = vmatpush1.msra.mxu0 0.0
  %8000 = vmatprep.subr.mxu0 0.0
  %8001 = vmatpush1.msra.mxu0 0.0
  %8002 = vmatprep.subr.mxu0 0.0
  %8003 = vmatpush1.msra.mxu0 0.0
  %8004 = vmatprep.subr.mxu0 0.0
  %8005 = vmatpush1.msra.mxu0 0.0
  %8006 = vmatprep.subr.mxu0 0.0
  %8007 = vmatpush1.msra.mxu0 0.0
  %8008 = vmatprep.subr.mxu0 0.0
  %8009 = vmatpush1.msra.mxu0 0.0
  %8010 = vmatprep.subr.mxu0 0.0
  %8011 = vmatpush1.msra.mxu0 0.0
  %8012 = vmatprep.subr.mxu0 0.0
  %8013 = vmatpush1.msra.mxu0 0.0
  %8014 = vmatprep.subr.mxu0 0.0
  %8015 = vmatpush1.msra.mxu0 0.0
  %8016 = vmatprep.subr.mxu0 0.0
  %8017 = vmatpush1.msra.mxu0 0.0
  %8018 = vmatprep.subr.mxu0 0.0
  %8019 = vmatpush1.msra.mxu0 0.0
  %8020 = vmatprep.subr.mxu0 0.0
  %8021 = vmatpush1.msra.mxu0 0.0
  %8022 = vmatprep.subr.mxu0 0.0
  %8023 = vmatpush1.msra.mxu0 0.0
  %8024 = vmatprep.subr.mxu0 0.0
  %8025 = vmatpush1.msra.mxu0 0.0
  %8026 = vmatprep.subr.mxu0 0.0
  %8027 = vmatpush1.msra.mxu0 0.0
  %8028 = vmatprep.subr.mxu0 0.0
  %8029 = vmatpush1.msra.mxu0 0.0
  %8030 = vmatprep.subr.mxu0 0.0
  %8031 = vmatpush1.msra.mxu0 0.0
  %8032 = vmatprep.subr.mxu0 0.0
  %8033 = vmatpush1.msra.mxu0 0.0
  %8034 = vmatprep.subr.mxu0 0.0
  %8035 = vmatpush1.msra.mxu0 0.0
  %8036 = vmatprep.mubr.f32.mxu0 0.0
  %8037 = vmatmul.mubr.f32.gmra.mrb[0].mxu0 %v7967
  %v8038 = vpop.f32.mrb[0].mxu0
  %v8039 = vadd.f32 0.0, %v8038
  %v8040 = vpop.f32.mrb[0].mxu0
  %8041 = vmatprep.mubr.f32.mxu0 0.0
  %8042 = vmatmul.mubr.f32.gmra.mrb[0].mxu0 %v7970
  %v8043 = vpop.f32.mrb[0].mxu0
  %v8044 = vadd.f32 0.0, %v8043
  %v8045 = vpop.f32.mrb[0].mxu0
  %8046 = vdwg.mxu0
  %v8047 = vmul.f32 %v8039, 0.5
  %v8048 = vmul.f32 %v8044, 0.5
  %v8049 = vmul.f32 %v8039, 0.044715
  %v8050 = vmul.f32 %v8044, 0.044715
  %v8051 = vmul.f32 %v8049, %v8039
  %v8052 = vmul.f32 %v8050, %v8044
  %v8053 = vmul.f32 %v8051, %v8039
  %v8054 = vmul.f32 %v8052, %v8044
  %v8055 = vadd.f32 %v8039, %v8053
  %v8056 = vadd.f32 %v8044, %v8054
  %v8057 = vmul.f32 %v8055, 0.7978846
  %v8058 = vmul.f32 %v8056, 0.7978846
  %v8059 = vtanh.pop %v8057
  %v8060 = vtanh.pop %v8058
  %v8061 = vadd.f32 %v8059, 1.0
  %v8062 = vadd.f32 %v8060, 1.0
  %v8063 = vmul.f32 %v8047, %v8061
  %v8064 = vmul.f32 %v8048, %v8062
  %8067 = vrot.lane.b32.xlu0 %v8039, 64
  %v8068 = vpop.permute.xlu0 %8067
  %8069 = vrot.lane.b32.xlu0 %v8044, 64
  %v8070 = vpop.permute.xlu0 %8069
  %v8073 = vmul.f32 %v8063, %v8068
  %v8074 = vmul.f32 %v8064, %v8070
  %s8075 = scalar_lea.vmem %s23, 64
  %v8076 = vld [vmem:[%s8075] sm:$0xff]
  %v8077 = vld [vmem:[%s8075 + $0x8] sm:$0xff]
  %v8078 = vld [vmem:[%s8075 + $0x10] sm:$0xff]
  %v8079 = vld [vmem:[%s8075 + $0x18] sm:$0xff]
  %v8080 = vld [vmem:[%s8075 + $0x20] sm:$0xff]
  %v8081 = vld [vmem:[%s8075 + $0x28] sm:$0xff]
  %v8082 = vld [vmem:[%s8075 + $0x30] sm:$0xff]
  %v8083 = vld [vmem:[%s8075 + $0x38] sm:$0xff]
  %v8085 = vsel %vm94, %v8073, 0
  %v8088 = vsel %vm94, %v8074, 0
  %8090 = vmatprep.subr.mxu0 0.0
  %8091 = vmatpush1.msra.mxu0 %v8076
  %8092 = vmatprep.subr.mxu0 0.0
  %8093 = vmatpush1.msra.mxu0 %v8077
  %8094 = vmatprep.subr.mxu0 0.0
  %8095 = vmatpush1.msra.mxu0 %v8078
  %8096 = vmatprep.subr.mxu0 0.0
  %8097 = vmatpush1.msra.mxu0 %v8079
  %8098 = vmatprep.subr.mxu0 0.0
  %8099 = vmatpush1.msra.mxu0 %v8080
  %8100 = vmatprep.subr.mxu0 0.0
  %8101 = vmatpush1.msra.mxu0 %v8081
  %8102 = vmatprep.subr.mxu0 0.0
  %8103 = vmatpush1.msra.mxu0 %v8082
  %8104 = vmatprep.subr.mxu0 0.0
  %8105 = vmatpush1.msra.mxu0 %v8083
  %8106 = vmatprep.subr.mxu0 0.0
  %8107 = vmatpush1.msra.mxu0 0.0
  %8108 = vmatprep.subr.mxu0 0.0
  %8109 = vmatpush1.msra.mxu0 0.0
  %8110 = vmatprep.subr.mxu0 0.0
  %8111 = vmatpush1.msra.mxu0 0.0
  %8112 = vmatprep.subr.mxu0 0.0
  %8113 = vmatpush1.msra.mxu0 0.0
  %8114 = vmatprep.subr.mxu0 0.0
  %8115 = vmatpush1.msra.mxu0 0.0
  %8116 = vmatprep.subr.mxu0 0.0
  %8117 = vmatpush1.msra.mxu0 0.0
  %8118 = vmatprep.subr.mxu0 0.0
  %8119 = vmatpush1.msra.mxu0 0.0
  %8120 = vmatprep.subr.mxu0 0.0
  %8121 = vmatpush1.msra.mxu0 0.0
  %8122 = vmatprep.subr.mxu0 0.0
  %8123 = vmatpush1.msra.mxu0 0.0
  %8124 = vmatprep.subr.mxu0 0.0
  %8125 = vmatpush1.msra.mxu0 0.0
  %8126 = vmatprep.subr.mxu0 0.0
  %8127 = vmatpush1.msra.mxu0 0.0
  %8128 = vmatprep.subr.mxu0 0.0
  %8129 = vmatpush1.msra.mxu0 0.0
  %8130 = vmatprep.subr.mxu0 0.0
  %8131 = vmatpush1.msra.mxu0 0.0
  %8132 = vmatprep.subr.mxu0 0.0
  %8133 = vmatpush1.msra.mxu0 0.0
  %8134 = vmatprep.subr.mxu0 0.0
  %8135 = vmatpush1.msra.mxu0 0.0
  %8136 = vmatprep.subr.mxu0 0.0
  %8137 = vmatpush1.msra.mxu0 0.0
  %8138 = vmatprep.subr.mxu0 0.0
  %8139 = vmatpush1.msra.mxu0 0.0
  %8140 = vmatprep.subr.mxu0 0.0
  %8141 = vmatpush1.msra.mxu0 0.0
  %8142 = vmatprep.subr.mxu0 0.0
  %8143 = vmatpush1.msra.mxu0 0.0
  %8144 = vmatprep.subr.mxu0 0.0
  %8145 = vmatpush1.msra.mxu0 0.0
  %8146 = vmatprep.subr.mxu0 0.0
  %8147 = vmatpush1.msra.mxu0 0.0
  %8148 = vmatprep.subr.mxu0 0.0
  %8149 = vmatpush1.msra.mxu0 0.0
  %8150 = vmatprep.subr.mxu0 0.0
  %8151 = vmatpush1.msra.mxu0 0.0
  %8152 = vmatprep.subr.mxu0 0.0
  %8153 = vmatpush1.msra.mxu0 0.0
  %8154 = vmatprep.mubr.f32.mxu0 0.0
  %8155 = vmatmul.mubr.f32.gmra.mrb[0].mxu0 %v8085
  %v8156 = vpop.f32.mrb[0].mxu0
  %v8157 = vadd.f32 0.0, %v8156
  %v8158 = vpop.f32.mrb[0].mxu0
  %8159 = vmatprep.mubr.f32.mxu0 0.0
  %8160 = vmatmul.mubr.f32.gmra.mrb[0].mxu0 %v8088
  %v8161 = vpop.f32.mrb[0].mxu0
  %v8162 = vadd.f32 0.0, %v8161
  %v8163 = vpop.f32.mrb[0].mxu0
  %8164 = vdwg.mxu0
  %v8165 = vadd.f32 %v7933, %v8157
  %v8166 = vadd.f32 %v7934, %v8162
  %v8167 = vld [vmem:[%s24] sm:$0x1]
  %v8168 = vmul.f32 %v8165, %v8165
  %v8169 = vmul.f32 %v8166, %v8166
  %v8170 = vsel %vm333, %v8168, 0.0
  %8171 = vadd.xlane.f32.xlu0 %v8170
  %v8172 = vpop.xlane.xlu0 %8171
  %v8173 = vsel %vm333, %v8169, 0.0
  %8174 = vadd.xlane.f32.xlu0 %v8173
  %v8175 = vpop.xlane.xlu0 %8174
  %v8176 = vmul.f32 %v8172, %v344
  %v8177 = vmul.f32 %v8175, %v344
  %v8178 = vadd.f32 %v8176, 1e-06
  %v8179 = vadd.f32 %v8177, 1e-06
  %v8180 = vrsqrt.pop %v8178
  %v8181 = vrsqrt.pop %v8179
  %v8182 = vmul.f32 %v8165, %v8180
  %v8183 = vmul.f32 %v8166, %v8181
  %v8185 = vlaneseq
  %v8186 = vshrl.u32 %v8185, 7
  %v8187 = vsub.s32 0, %v8186
  %v8188 = vrot.slane %v8167, %v8187
  %v8190 = vmul.f32 %v8182, %v8188
  %v8191 = vmul.f32 %v8183, %v8188
  %v8192 = vld [vmem:[%s25] sm:$0xff]
  %v8193 = vld [vmem:[%s25 + $0x8] sm:$0xff]
  %v8194 = vld [vmem:[%s25 + $0x10] sm:$0xff]
  %v8195 = vld [vmem:[%s25 + $0x18] sm:$0xff]
  %v8197 = vsel %vm333, %v8190, 0
  %v8200 = vsel %vm333, %v8191, 0
  %8202 = vmatprep.subr.mxu0 0.0
  %8203 = vmatpush1.msra.mxu0 %v8192
  %8204 = vmatprep.subr.mxu0 0.0
  %8205 = vmatpush1.msra.mxu0 %v8193
  %8206 = vmatprep.subr.mxu0 0.0
  %8207 = vmatpush1.msra.mxu0 %v8194
  %8208 = vmatprep.subr.mxu0 0.0
  %8209 = vmatpush1.msra.mxu0 %v8195
  %8210 = vmatprep.subr.mxu0 0.0
  %8211 = vmatpush1.msra.mxu0 0.0
  %8212 = vmatprep.subr.mxu0 0.0
  %8213 = vmatpush1.msra.mxu0 0.0
  %8214 = vmatprep.subr.mxu0 0.0
  %8215 = vmatpush1.msra.mxu0 0.0
  %8216 = vmatprep.subr.mxu0 0.0
  %8217 = vmatpush1.msra.mxu0 0.0
  %8218 = vmatprep.subr.mxu0 0.0
  %8219 = vmatpush1.msra.mxu0 0.0
  %8220 = vmatprep.subr.mxu0 0.0
  %8221 = vmatpush1.msra.mxu0 0.0
  %8222 = vmatprep.subr.mxu0 0.0
  %8223 = vmatpush1.msra.mxu0 0.0
  %8224 = vmatprep.subr.mxu0 0.0
  %8225 = vmatpush1.msra.mxu0 0.0
  %8226 = vmatprep.subr.mxu0 0.0
  %8227 = vmatpush1.msra.mxu0 0.0
  %8228 = vmatprep.subr.mxu0 0.0
  %8229 = vmatpush1.msra.mxu0 0.0
  %8230 = vmatprep.subr.mxu0 0.0
  %8231 = vmatpush1.msra.mxu0 0.0
  %8232 = vmatprep.subr.mxu0 0.0
  %8233 = vmatpush1.msra.mxu0 0.0
  %8234 = vmatprep.subr.mxu0 0.0
  %8235 = vmatpush1.msra.mxu0 0.0
  %8236 = vmatprep.subr.mxu0 0.0
  %8237 = vmatpush1.msra.mxu0 0.0
  %8238 = vmatprep.subr.mxu0 0.0
  %8239 = vmatpush1.msra.mxu0 0.0
  %8240 = vmatprep.subr.mxu0 0.0
  %8241 = vmatpush1.msra.mxu0 0.0
  %8242 = vmatprep.subr.mxu0 0.0
  %8243 = vmatpush1.msra.mxu0 0.0
  %8244 = vmatprep.subr.mxu0 0.0
  %8245 = vmatpush1.msra.mxu0 0.0
  %8246 = vmatprep.subr.mxu0 0.0
  %8247 = vmatpush1.msra.mxu0 0.0
  %8248 = vmatprep.subr.mxu0 0.0
  %8249 = vmatpush1.msra.mxu0 0.0
  %8250 = vmatprep.subr.mxu0 0.0
  %8251 = vmatpush1.msra.mxu0 0.0
  %8252 = vmatprep.subr.mxu0 0.0
  %8253 = vmatpush1.msra.mxu0 0.0
  %8254 = vmatprep.subr.mxu0 0.0
  %8255 = vmatpush1.msra.mxu0 0.0
  %8256 = vmatprep.subr.mxu0 0.0
  %8257 = vmatpush1.msra.mxu0 0.0
  %8258 = vmatprep.subr.mxu0 0.0
  %8259 = vmatpush1.msra.mxu0 0.0
  %8260 = vmatprep.subr.mxu0 0.0
  %8261 = vmatpush1.msra.mxu0 0.0
  %8262 = vmatprep.subr.mxu0 0.0
  %8263 = vmatpush1.msra.mxu0 0.0
  %8264 = vmatprep.subr.mxu0 0.0
  %8265 = vmatpush1.msra.mxu0 0.0
  %8266 = vmatprep.mubr.f32.mxu0 0.0
  %8267 = vmatmul.mubr.f32.gmra.mrb[0].mxu0 %v8197
  %v8268 = vpop.f32.mrb[0].mxu0
  %v8269 = vadd.f32 0.0, %v8268
  %v8270 = vpop.f32.mrb[0].mxu0
  %8271 = vmatprep.mubr.f32.mxu0 0.0
  %8272 = vmatmul.mubr.f32.gmra.mrb[0].mxu0 %v8200
  %v8273 = vpop.f32.mrb[0].mxu0
  %v8274 = vadd.f32 0.0, %v8273
  %v8275 = vpop.f32.mrb[0].mxu0
  %8276 = vdwg.mxu0
  %8277 = vst [vmem:[%s26] sm:$0xff] %v8269
  %8278 = vst [vmem:[%s26 + $0x8] sm:$0xff] %v8274
  // Predicated region
  $region106: #{seq2seq_forward.1} parent=0 // pred_check
    _
  $region107: #{seq2seq_forward.1} parent=0 // pred_check_branch
    %8280 = sbr.rel (0) target = $region109
  $region108: #{seq2seq_forward.1} parent=0 // pred_region
    _
  $region109: #{seq2seq_forward.1} parent=0 // pred_fallthru
    _
  // Predicated region
  $region110: #{seq2seq_forward.1} parent=0 // pred_check
    _
  $region111: #{seq2seq_forward.1} parent=0 // pred_check_branch
    %8282 = sbr.rel (0) target = $region113
  $region112: #{seq2seq_forward.1} parent=0 // pred_region
    _
  $region113: #{seq2seq_forward.1} parent=0 // pred_fallthru
    _

</llo_original>
